<compile_context>
chip_gen: v7x
topology: tpu7x:2x2x1
jax: 0.10.0
libtpu: 0.0.40
codegen_flags: <defaults>
</compile_context>

<pallas_src>
import functools

import jax
import jax.numpy as jnp
import numpy as np
from jax.experimental import pallas as pl
from jax.experimental.pallas import tpu as pltpu

EPS = 1e-5
_VMEM_LIMIT = 32 * 1024 * 1024  # explicit scoped-VMEM budget (safe on v5e/v6e/v7x)


# ----------------------------------------------------------------------------
# Pass 1: moment pass for BN1..BN4 and BN11 (row-tiled, parallel grid).
# Emits per-tile partial sums; the wrapper reduces them and folds the BN
# scales into the 1x1 conv weights.
# ----------------------------------------------------------------------------
def stats1_kernel(c1_ref, c2_ref, c3_ref, c4_ref, w_ref, mom_ref):
    # c*_ref : (TR, 64) bf16 row tiles of the flattened children
    # w_ref  : (4, 64, 128) bf16 un-folded 1x1 conv weights
    # mom_ref: (1, 14, 128) f32 per-tile partial moments:
    #          rows 0..3  = sum_rows(conv_k)
    #          rows 4..13 = sum_rows(conv_i * conv_j) for i <= j
    convs = []
    for k, c_ref in enumerate((c1_ref, c2_ref, c3_ref, c4_ref)):
        convs.append(
            jnp.dot(c_ref[...], w_ref[k], preferred_element_type=jnp.float32))
    for k in range(4):
        mom_ref[0, k:k + 1, :] = jnp.sum(convs[k], axis=0, keepdims=True)
    p = 4
    for i in range(4):
        for j in range(i, 4):
            mom_ref[0, p:p + 1, :] = jnp.sum(
                convs[i] * convs[j], axis=0, keepdims=True)
            p += 1


# ----------------------------------------------------------------------------
# Pass 2: fused stage-1 compute (folded 1x1 convs + BN11 + ReLU) and the 3x3
# conv as ONE K=1152 matmul.  One image per grid step; halo + im2col stay in
# VMEM scratch.  Also emits per-image partial sums for BN12.
# ----------------------------------------------------------------------------
def fused_kernel(c1_ref, c2_ref, c3_ref, c4_ref, wff_ref, shift_ref,
                 w3_ref, b2_ref, u_ref, ps_ref, rp_ref, taps_ref, *, H, W):
    HW = H * W
    # ---- stage 1: r = ReLU(bn11(sum_k bn_k(conv1x1_k(c_k)))) with the BN
    #      scales folded into wff and the constant folded into `shift`. ----
    acc = jnp.dot(c1_ref[0], wff_ref[0], preferred_element_type=jnp.float32)
    acc = acc + jnp.dot(c2_ref[0], wff_ref[1], preferred_element_type=jnp.float32)
    acc = acc + jnp.dot(c3_ref[0], wff_ref[2], preferred_element_type=jnp.float32)
    acc = acc + jnp.dot(c4_ref[0], wff_ref[3], preferred_element_type=jnp.float32)
    r = jnp.maximum(acc + shift_ref[...], 0.0)                 # (HW, 128) f32

    # ---- zero-padded image (3x3 conv halo) in VMEM; never goes to HBM ----
    rp_ref[...] = jnp.zeros_like(rp_ref)
    rp_ref[1:H + 1, 1:W + 1, :] = r.astype(rp_ref.dtype).reshape(H, W, 128)

    # ---- in-VMEM im2col, then ONE (HW, 9*128) x (9*128, 64) matmul ----
    for t in range(9):
        dy, dx = t // 3, t % 3
        tap = rp_ref[dy:dy + H, dx:dx + W, :]                  # (H, W, 128) bf16
        taps_ref[:, t * 128:(t + 1) * 128] = tap.reshape(HW, 128)
    u = jnp.dot(taps_ref[...], w3_ref[...],
                preferred_element_type=jnp.float32) + b2_ref[...]   # (HW, 64)
    u_ref[0] = u
    # per-image partial sums for BN12 (global stats finalized in the wrapper)
    ps_ref[0, 0:1, :] = jnp.sum(u, axis=0, keepdims=True)
    ps_ref[0, 1:2, :] = jnp.sum(u * u, axis=0, keepdims=True)


# ----------------------------------------------------------------------------
# Pass 3: BN12 affine + ReLU on lane-dense (R/2, 128) tiles (parallel grid).
# ----------------------------------------------------------------------------
def bn_relu_kernel(u_ref, a_ref, b_ref, o_ref):
    o_ref[...] = jnp.maximum(u_ref[...] * a_ref[...] + b_ref[...], 0.0)


def _pick_tile(n, cap):
    t = cap
    while t >= 8:
        if n % t == 0:
            return t
        t //= 2
    return n  # fall back to the full extent (always a legal block)


# ----------------------------------------------------------------------------
# Wrapper
# ----------------------------------------------------------------------------
@jax.jit
def adj_encoder_forward(c1, c2, c3, c4, params):
    N, Cin, H, W = c1.shape
    assert Cin == 64
    HW = H * W
    R = N * HW
    assert R % 2 == 0

    def to_rows(x):  # NCHW -> (N, H*W, C), bf16 for the MXU
        return jnp.transpose(x, (0, 2, 3, 1)).reshape(N, HW, Cin).astype(
            jnp.bfloat16)

    cr = [to_rows(c) for c in (c1, c2, c3, c4)]        # 4 x (N, HW, 64) bf16
    crf = [c.reshape(R, Cin) for c in cr]              # free contiguous views

    # ------------------- pass 1: moments for bn1..4 / bn11 -------------------
    w1_bf16 = params["w1x1"].astype(jnp.bfloat16)
    TR = _pick_tile(R, 256)
    g1 = R // TR
    mom_parts = pl.pallas_call(
        stats1_kernel,
        out_shape=jax.ShapeDtypeStruct((g1, 14, 128), jnp.float32),
        grid=(g1,),
        in_specs=[pl.BlockSpec((TR, 64), lambda i: (i, 0))] * 4
        + [pl.BlockSpec((4, 64, 128), lambda i: (0, 0, 0))],
        out_specs=pl.BlockSpec((1, 14, 128), lambda i: (i, 0, 0)),
        compiler_params=pltpu.CompilerParams(
            dimension_semantics=("parallel",), vmem_limit_bytes=_VMEM_LIMIT),
    )(crf[0], crf[1], crf[2], crf[3], w1_bf16)
    mom = jnp.sum(mom_parts, axis=0)                   # (14, 128) f32

    # ---- fold BN1..4 and BN11 into the 1x1 weights (tiny per-channel algebra)
    # bn_k(conv_k + bias_k) = (conv_k - mean_k) * scale_k + beta_k ; the betas,
    # the conv bias and the mean shifts are per-channel constants removed by
    # bn11's centering, so
    #   bn11(sum_k bn_k(...)) = a11 * (s' - mean(s')) + beta11,
    #   s' = sum_k conv_k * scale_k = sum_k c_k @ (W_k * scale_k).
    means = mom[0:4] / R
    second = {}
    p = 4
    for i in range(4):
        for j in range(i, 4):
            second[(i, j)] = mom[p] / R
            p += 1
    g5, be5 = params["g5"], params["be5"]
    scales = []
    for k in range(4):
        var_k = second[(k, k)] - means[k] * means[k]
        scales.append(g5[k] * jax.lax.rsqrt(var_k + EPS))
    mu_s = sum(scales[k] * means[k] for k in range(4))
    var_s = jnp.zeros((128,), jnp.float32)
    for i in range(4):
        for j in range(4):
            a, b = (i, j) if i <= j else (j, i)
            var_s = var_s + scales[i] * scales[j] * (
                second[(a, b)] - means[i] * means[j])
    a11 = g5[4] * jax.lax.rsqrt(var_s + EPS)
    shift = (be5[4] - a11 * mu_s).reshape(1, 128).astype(jnp.float32)
    wff = (params["w1x1"]
           * (jnp.stack(scales) * a11)[:, None, :]).astype(jnp.bfloat16)

    # ---------- pass 2: fused stage-1 + 3x3 conv (one image per step) --------
    w3_flat = params["w3x3"].reshape(9 * 128, 64).astype(jnp.bfloat16)
    b2 = params["bsec"].astype(jnp.float32)
    kern2 = functools.partial(fused_kernel, H=H, W=W)
    u, pstats = pl.pallas_call(
        kern2,
        out_shape=[jax.ShapeDtypeStruct((N, HW, 64), jnp.float32),
                   jax.ShapeDtypeStruct((N, 2, 64), jnp.float32)],
        grid=(N,),
        in_specs=[pl.BlockSpec((1, HW, 64), lambda n: (n, 0, 0))] * 4
        + [pl.BlockSpec((4, 64, 128), lambda n: (0, 0, 0)),
           pl.BlockSpec((1, 128), lambda n: (0, 0)),
           pl.BlockSpec((9 * 128, 64), lambda n: (0, 0)),
           pl.BlockSpec((1, 64), lambda n: (0, 0))],
        out_specs=[pl.BlockSpec((1, HW, 64), lambda n: (n, 0, 0)),
                   pl.BlockSpec((1, 2, 64), lambda n: (n, 0, 0))],
        scratch_shapes=[pltpu.VMEM((H + 2, W + 2, 128), jnp.bfloat16),
                        pltpu.VMEM((HW, 9 * 128), jnp.bfloat16)],
        compiler_params=pltpu.CompilerParams(
            dimension_semantics=("parallel",), vmem_limit_bytes=_VMEM_LIMIT),
    )(cr[0], cr[1], cr[2], cr[3], wff, shift, w3_flat, b2)

    # -------------------- bn12 stats finalize (per-channel) ------------------
    tot = jnp.sum(pstats, axis=0)                      # (2, 64)
    mean12 = tot[0] / R
    var12 = tot[1] / R - mean12 * mean12
    a12 = params["g12"][0] * jax.lax.rsqrt(var12 + EPS)
    b12 = params["be12"][0] - a12 * mean12
    # lane-dense layout packs 2 pixels per 128-lane row -> duplicate the affine
    a12_2 = jnp.concatenate([a12, a12]).reshape(1, 128)
    b12_2 = jnp.concatenate([b12, b12]).reshape(1, 128)

    # -------------- pass 3: bn12 affine + ReLU on lane-dense tiles -----------
    Rh = R // 2
    u2 = u.reshape(Rh, 128)                            # free contiguous view
    TR3 = _pick_tile(Rh, 512)
    g3 = Rh // TR3
    y2 = pl.pallas_call(
        bn_relu_kernel,
        out_shape=jax.ShapeDtypeStruct((Rh, 128), jnp.float32),
        grid=(g3,),
        in_specs=[pl.BlockSpec((TR3, 128), lambda i: (i, 0)),
                  pl.BlockSpec((1, 128), lambda i: (0, 0)),
                  pl.BlockSpec((1, 128), lambda i: (0, 0))],
        out_specs=pl.BlockSpec((TR3, 128), lambda i: (i, 0)),
        compiler_params=pltpu.CompilerParams(
            dimension_semantics=("parallel",), vmem_limit_bytes=_VMEM_LIMIT),
    )(u2, a12_2, b12_2)

    return jnp.transpose(y2.reshape(N, H, W, 64), (0, 3, 1, 2))  # back to NCHW


# ----------------------------------------------------------------------------
# Pure-JAX f32 reference (direct formulation of the PyTorch forward).
# ----------------------------------------------------------------------------
def reference_forward(c1, c2, c3, c4, params):
    N, Cin, H, W = c1.shape
    R = N * H * W

    def to_rows(x):
        return jnp.transpose(x, (0, 2, 3, 1)).reshape(R, Cin).astype(jnp.float32)

    def bn(x, g, b):
        mean = jnp.mean(x, axis=0, keepdims=True)
        var = jnp.mean((x - mean) ** 2, axis=0, keepdims=True)
        return (x - mean) / jnp.sqrt(var + EPS) * g + b

    cs = [to_rows(c) for c in (c1, c2, c3, c4)]
    g5, be5 = params["g5"], params["be5"]
    acc = bn(cs[0] @ params["w1x1"][0] + params["b1"], g5[0:1], be5[0:1])
    for k in range(1, 4):
        acc = acc + bn(cs[k] @ params["w1x1"][k], g5[k:k + 1], be5[k:k + 1])
    acc = bn(acc, g5[4:5], be5[4:5])
    r = jnp.maximum(acc, 0.0)

    r4 = r.reshape(N, H, W, 128)
    rp = jnp.pad(r4, ((0, 0), (1, 1), (1, 1), (0, 0)))
    conv = jnp.zeros((R, 64), jnp.float32)
    for dy in range(3):
        for dx in range(3):
            tap = rp[:, dy:dy + H, dx:dx + W, :].reshape(R, 128)
            conv = conv + tap @ params["w3x3"][dy * 3 + dx]
    conv = conv + params["bsec"]
    y = jnp.maximum(bn(conv, params["g12"], params["be12"]), 0.0)
    return jnp.transpose(y.reshape(N, H, W, 64), (0, 3, 1, 2))


# ----------------------------------------------------------------------------
# Deterministic parameter init (shapes from AdjEncoder.__init__)
# ----------------------------------------------------------------------------
def make_params(key):
    ks = jax.random.split(key, 8)
    return {
        # child1..child4: Conv2d(64, 128, k=1); stored as (in=64, out=128)
        "w1x1": 0.05 * jax.random.normal(ks[0], (4, 64, 128), jnp.float32),
        "b1": 0.05 * jax.random.normal(ks[1], (1, 128), jnp.float32),
        # second: Conv2d(128, 64, k=3, pad=1); tap k=(dy*3+dx) -> (in=128, out=64)
        "w3x3": 0.02 * jax.random.normal(ks[2], (9, 128, 64), jnp.float32),
        "bsec": 0.05 * jax.random.normal(ks[3], (1, 64), jnp.float32),
        # BN affine params (bn1..bn4, bn11) and bn12
        "g5": 1.0 + 0.1 * jax.random.normal(ks[4], (5, 128), jnp.float32),
        "be5": 0.1 * jax.random.normal(ks[5], (5, 128), jnp.float32),
        "g12": 1.0 + 0.1 * jax.random.normal(ks[6], (1, 64), jnp.float32),
        "be12": 0.1 * jax.random.normal(ks[7], (1, 64), jnp.float32),
    }


if __name__ == "__main__":
    key = jax.random.PRNGKey(0)
    kc1, kc2, kc3, kc4, kp = jax.random.split(key, 5)

    N, Cin, H, W = 2, 64, 16, 16  # Cin=64 fixed by the module definition
    c1 = jax.random.normal(kc1, (N, Cin, H, W), jnp.float32)
    c2 = jax.random.normal(kc2, (N, Cin, H, W), jnp.float32)
    c3 = jax.random.normal(kc3, (N, Cin, H, W), jnp.float32)
    c4 = jax.random.normal(kc4, (N, Cin, H, W), jnp.float32)
    params = make_params(kp)

    out = jax.block_until_ready(adj_encoder_forward(c1, c2, c3, c4, params))
    ref = jax.block_until_ready(reference_forward(c1, c2, c3, c4, params))

    assert out.shape == (N, 64, H, W), out.shape
    err_max = float(jnp.max(jnp.abs(out - ref)))
    err_mean = float(jnp.mean(jnp.abs(out - ref)))
    # Tolerance is bounded by the bf16 MXU operands (~2^-9 relative per
    # rounding) propagated through two batch-norm normalizations; with f32
    # operands this pipeline matches the reference to ~1e-5.
    assert np.isfinite(err_max) and err_max < 1e-1, f"max abs err too large: {err_max}"
    assert err_mean < 2e-2, f"mean abs err too large: {err_mean}"
    print("KERNEL_OK")
</pallas_src>

<mosaic_0001>
module attributes {stable_mosaic.version = 11 : i64} {
  func.func @stats1_kernel(%arg0: i32, %arg1: memref<256x64xbf16, #tpu.memory_space<vmem>>, %arg2: memref<256x64xbf16, #tpu.memory_space<vmem>>, %arg3: memref<256x64xbf16, #tpu.memory_space<vmem>>, %arg4: memref<256x64xbf16, #tpu.memory_space<vmem>>, %arg5: memref<4x64x128xbf16, #tpu.memory_space<vmem>>, %arg6: memref<1x14x128xf32, #tpu.memory_space<vmem>>) attributes {dimension_semantics = [#tpu.dimension_semantics<parallel>], iteration_bounds = array<i64: 2>, scalar_prefetch = 0 : i64, scratch_operands = 0 : i64, tpu.core_type = #tpu.core_type<tc>, window_params = [{transform_indices = @transform_0, window_bounds = array<i64: 256, 64>}, {transform_indices = @transform_1, window_bounds = array<i64: 256, 64>}, {transform_indices = @transform_2, window_bounds = array<i64: 256, 64>}, {transform_indices = @transform_3, window_bounds = array<i64: 256, 64>}, {pipeline_mode = #tpu.pipeline_mode<synchronous>, transform_indices = @transform_4, window_bounds = array<i64: 4, 64, 128>}, {transform_indices = @transform_5, window_bounds = array<i64: 1, 14, 128>}]} {
    %c0 = arith.constant 0 : index
    %c0_0 = arith.constant 0 : index
    %0 = vector.load %arg1[%c0, %c0_0] : memref<256x64xbf16, #tpu.memory_space<vmem>>, vector<256x64xbf16>
    %c0_1 = arith.constant 0 : index
    %c0_2 = arith.constant 0 : index
    %c0_3 = arith.constant 0 : index
    %1 = vector.load %arg5[%c0_1, %c0_2, %c0_3] : memref<4x64x128xbf16, #tpu.memory_space<vmem>>, vector<1x64x128xbf16>
    %2 = vector.shape_cast %1 : vector<1x64x128xbf16> to vector<64x128xbf16>
    %cst = arith.constant dense<0.000000e+00> : vector<256x128xf32>
    %3 = tpu.matmul %0, %2, %cst {dimension_numbers = #tpu.dot_dimension_numbers<[1], [0], [0], [1], [0, 0, 1, 1], [], []>} : vector<256x64xbf16>, vector<64x128xbf16>, vector<256x128xf32> -> vector<256x128xf32>
    %c0_4 = arith.constant 0 : index
    %c0_5 = arith.constant 0 : index
    %4 = vector.load %arg2[%c0_4, %c0_5] : memref<256x64xbf16, #tpu.memory_space<vmem>>, vector<256x64xbf16>
    %c1 = arith.constant 1 : index
    %c0_6 = arith.constant 0 : index
    %c0_7 = arith.constant 0 : index
    %5 = vector.load %arg5[%c1, %c0_6, %c0_7] : memref<4x64x128xbf16, #tpu.memory_space<vmem>>, vector<1x64x128xbf16>
    %6 = vector.shape_cast %5 : vector<1x64x128xbf16> to vector<64x128xbf16>
    %cst_8 = arith.constant dense<0.000000e+00> : vector<256x128xf32>
    %7 = tpu.matmul %4, %6, %cst_8 {dimension_numbers = #tpu.dot_dimension_numbers<[1], [0], [0], [1], [0, 0, 1, 1], [], []>} : vector<256x64xbf16>, vector<64x128xbf16>, vector<256x128xf32> -> vector<256x128xf32>
    %c0_9 = arith.constant 0 : index
    %c0_10 = arith.constant 0 : index
    %8 = vector.load %arg3[%c0_9, %c0_10] : memref<256x64xbf16, #tpu.memory_space<vmem>>, vector<256x64xbf16>
    %c2 = arith.constant 2 : index
    %c0_11 = arith.constant 0 : index
    %c0_12 = arith.constant 0 : index
    %9 = vector.load %arg5[%c2, %c0_11, %c0_12] : memref<4x64x128xbf16, #tpu.memory_space<vmem>>, vector<1x64x128xbf16>
    %10 = vector.shape_cast %9 : vector<1x64x128xbf16> to vector<64x128xbf16>
    %cst_13 = arith.constant dense<0.000000e+00> : vector<256x128xf32>
    %11 = tpu.matmul %8, %10, %cst_13 {dimension_numbers = #tpu.dot_dimension_numbers<[1], [0], [0], [1], [0, 0, 1, 1], [], []>} : vector<256x64xbf16>, vector<64x128xbf16>, vector<256x128xf32> -> vector<256x128xf32>
    %c0_14 = arith.constant 0 : index
    %c0_15 = arith.constant 0 : index
    %12 = vector.load %arg4[%c0_14, %c0_15] : memref<256x64xbf16, #tpu.memory_space<vmem>>, vector<256x64xbf16>
    %c3 = arith.constant 3 : index
    %c0_16 = arith.constant 0 : index
    %c0_17 = arith.constant 0 : index
    %13 = vector.load %arg5[%c3, %c0_16, %c0_17] : memref<4x64x128xbf16, #tpu.memory_space<vmem>>, vector<1x64x128xbf16>
    %14 = vector.shape_cast %13 : vector<1x64x128xbf16> to vector<64x128xbf16>
    %cst_18 = arith.constant dense<0.000000e+00> : vector<256x128xf32>
    %15 = tpu.matmul %12, %14, %cst_18 {dimension_numbers = #tpu.dot_dimension_numbers<[1], [0], [0], [1], [0, 0, 1, 1], [], []>} : vector<256x64xbf16>, vector<64x128xbf16>, vector<256x128xf32> -> vector<256x128xf32>
    %cst_19 = arith.constant dense<0.000000e+00> : vector<128xf32>
    %16 = vector.multi_reduction <add>, %3, %cst_19 [0] : vector<256x128xf32> to vector<128xf32>
    %17 = vector.shape_cast %16 : vector<128xf32> to vector<1x128xf32>
    %c0_20 = arith.constant 0 : index
    %c0_21 = arith.constant 0 : index
    %c0_22 = arith.constant 0 : index
    %18 = vector.load %arg6[%c0_20, %c0_21, %c0_22] : memref<1x14x128xf32, #tpu.memory_space<vmem>>, vector<1x1x128xf32>
    %19 = vector.shape_cast %18 : vector<1x1x128xf32> to vector<1x128xf32>
    %20 = vector.shape_cast %17 : vector<1x128xf32> to vector<1x1x128xf32>
    tpu.vector_store %arg6[%c0_20, %c0_21, %c0_22], %20 {strides = array<i32>} : memref<1x14x128xf32, #tpu.memory_space<vmem>>, vector<1x1x128xf32>,
    %cst_23 = arith.constant dense<0.000000e+00> : vector<128xf32>
    %21 = vector.multi_reduction <add>, %7, %cst_23 [0] : vector<256x128xf32> to vector<128xf32>
    %22 = vector.shape_cast %21 : vector<128xf32> to vector<1x128xf32>
    %c0_24 = arith.constant 0 : index
    %c1_25 = arith.constant 1 : index
    %c0_26 = arith.constant 0 : index
    %23 = vector.load %arg6[%c0_24, %c1_25, %c0_26] : memref<1x14x128xf32, #tpu.memory_space<vmem>>, vector<1x1x128xf32>
    %24 = vector.shape_cast %23 : vector<1x1x128xf32> to vector<1x128xf32>
    %25 = vector.shape_cast %22 : vector<1x128xf32> to vector<1x1x128xf32>
    tpu.vector_store %arg6[%c0_24, %c1_25, %c0_26], %25 {strides = array<i32>} : memref<1x14x128xf32, #tpu.memory_space<vmem>>, vector<1x1x128xf32>,
    %cst_27 = arith.constant dense<0.000000e+00> : vector<128xf32>
    %26 = vector.multi_reduction <add>, %11, %cst_27 [0] : vector<256x128xf32> to vector<128xf32>
    %27 = vector.shape_cast %26 : vector<128xf32> to vector<1x128xf32>
    %c0_28 = arith.constant 0 : index
    %c2_29 = arith.constant 2 : index
    %c0_30 = arith.constant 0 : index
    %28 = vector.load %arg6[%c0_28, %c2_29, %c0_30] : memref<1x14x128xf32, #tpu.memory_space<vmem>>, vector<1x1x128xf32>
    %29 = vector.shape_cast %28 : vector<1x1x128xf32> to vector<1x128xf32>
    %30 = vector.shape_cast %27 : vector<1x128xf32> to vector<1x1x128xf32>
    tpu.vector_store %arg6[%c0_28, %c2_29, %c0_30], %30 {strides = array<i32>} : memref<1x14x128xf32, #tpu.memory_space<vmem>>, vector<1x1x128xf32>,
    %cst_31 = arith.constant dense<0.000000e+00> : vector<128xf32>
    %31 = vector.multi_reduction <add>, %15, %cst_31 [0] : vector<256x128xf32> to vector<128xf32>
    %32 = vector.shape_cast %31 : vector<128xf32> to vector<1x128xf32>
    %c0_32 = arith.constant 0 : index
    %c3_33 = arith.constant 3 : index
    %c0_34 = arith.constant 0 : index
    %33 = vector.load %arg6[%c0_32, %c3_33, %c0_34] : memref<1x14x128xf32, #tpu.memory_space<vmem>>, vector<1x1x128xf32>
    %34 = vector.shape_cast %33 : vector<1x1x128xf32> to vector<1x128xf32>
    %35 = vector.shape_cast %32 : vector<1x128xf32> to vector<1x1x128xf32>
    tpu.vector_store %arg6[%c0_32, %c3_33, %c0_34], %35 {strides = array<i32>} : memref<1x14x128xf32, #tpu.memory_space<vmem>>, vector<1x1x128xf32>,
    %36 = arith.mulf %3, %3 : vector<256x128xf32>
    %cst_35 = arith.constant dense<0.000000e+00> : vector<128xf32>
    %37 = vector.multi_reduction <add>, %36, %cst_35 [0] : vector<256x128xf32> to vector<128xf32>
    %38 = vector.shape_cast %37 : vector<128xf32> to vector<1x128xf32>
    %c0_36 = arith.constant 0 : index
    %c4 = arith.constant 4 : index
    %c0_37 = arith.constant 0 : index
    %39 = vector.load %arg6[%c0_36, %c4, %c0_37] : memref<1x14x128xf32, #tpu.memory_space<vmem>>, vector<1x1x128xf32>
    %40 = vector.shape_cast %39 : vector<1x1x128xf32> to vector<1x128xf32>
    %41 = vector.shape_cast %38 : vector<1x128xf32> to vector<1x1x128xf32>
    tpu.vector_store %arg6[%c0_36, %c4, %c0_37], %41 {strides = array<i32>} : memref<1x14x128xf32, #tpu.memory_space<vmem>>, vector<1x1x128xf32>,
    %42 = arith.mulf %3, %7 : vector<256x128xf32>
    %cst_38 = arith.constant dense<0.000000e+00> : vector<128xf32>
    %43 = vector.multi_reduction <add>, %42, %cst_38 [0] : vector<256x128xf32> to vector<128xf32>
    %44 = vector.shape_cast %43 : vector<128xf32> to vector<1x128xf32>
    %c0_39 = arith.constant 0 : index
    %c5 = arith.constant 5 : index
    %c0_40 = arith.constant 0 : index
    %45 = vector.load %arg6[%c0_39, %c5, %c0_40] : memref<1x14x128xf32, #tpu.memory_space<vmem>>, vector<1x1x128xf32>
    %46 = vector.shape_cast %45 : vector<1x1x128xf32> to vector<1x128xf32>
    %47 = vector.shape_cast %44 : vector<1x128xf32> to vector<1x1x128xf32>
    tpu.vector_store %arg6[%c0_39, %c5, %c0_40], %47 {strides = array<i32>} : memref<1x14x128xf32, #tpu.memory_space<vmem>>, vector<1x1x128xf32>,
    %48 = arith.mulf %3, %11 : vector<256x128xf32>
    %cst_41 = arith.constant dense<0.000000e+00> : vector<128xf32>
    %49 = vector.multi_reduction <add>, %48, %cst_41 [0] : vector<256x128xf32> to vector<128xf32>
    %50 = vector.shape_cast %49 : vector<128xf32> to vector<1x128xf32>
    %c0_42 = arith.constant 0 : index
    %c6 = arith.constant 6 : index
    %c0_43 = arith.constant 0 : index
    %51 = vector.load %arg6[%c0_42, %c6, %c0_43] : memref<1x14x128xf32, #tpu.memory_space<vmem>>, vector<1x1x128xf32>
    %52 = vector.shape_cast %51 : vector<1x1x128xf32> to vector<1x128xf32>
    %53 = vector.shape_cast %50 : vector<1x128xf32> to vector<1x1x128xf32>
    tpu.vector_store %arg6[%c0_42, %c6, %c0_43], %53 {strides = array<i32>} : memref<1x14x128xf32, #tpu.memory_space<vmem>>, vector<1x1x128xf32>,
    %54 = arith.mulf %3, %15 : vector<256x128xf32>
    %cst_44 = arith.constant dense<0.000000e+00> : vector<128xf32>
    %55 = vector.multi_reduction <add>, %54, %cst_44 [0] : vector<256x128xf32> to vector<128xf32>
    %56 = vector.shape_cast %55 : vector<128xf32> to vector<1x128xf32>
    %c0_45 = arith.constant 0 : index
    %c7 = arith.constant 7 : index
    %c0_46 = arith.constant 0 : index
    %57 = vector.load %arg6[%c0_45, %c7, %c0_46] : memref<1x14x128xf32, #tpu.memory_space<vmem>>, vector<1x1x128xf32>
    %58 = vector.shape_cast %57 : vector<1x1x128xf32> to vector<1x128xf32>
    %59 = vector.shape_cast %56 : vector<1x128xf32> to vector<1x1x128xf32>
    tpu.vector_store %arg6[%c0_45, %c7, %c0_46], %59 {strides = array<i32>} : memref<1x14x128xf32, #tpu.memory_space<vmem>>, vector<1x1x128xf32>,
    %60 = arith.mulf %7, %7 : vector<256x128xf32>
    %cst_47 = arith.constant dense<0.000000e+00> : vector<128xf32>
    %61 = vector.multi_reduction <add>, %60, %cst_47 [0] : vector<256x128xf32> to vector<128xf32>
    %62 = vector.shape_cast %61 : vector<128xf32> to vector<1x128xf32>
    %c0_48 = arith.constant 0 : index
    %c8 = arith.constant 8 : index
    %c0_49 = arith.constant 0 : index
    %63 = vector.load %arg6[%c0_48, %c8, %c0_49] : memref<1x14x128xf32, #tpu.memory_space<vmem>>, vector<1x1x128xf32>
    %64 = vector.shape_cast %63 : vector<1x1x128xf32> to vector<1x128xf32>
    %65 = vector.shape_cast %62 : vector<1x128xf32> to vector<1x1x128xf32>
    tpu.vector_store %arg6[%c0_48, %c8, %c0_49], %65 {strides = array<i32>} : memref<1x14x128xf32, #tpu.memory_space<vmem>>, vector<1x1x128xf32>,
    %66 = arith.mulf %7, %11 : vector<256x128xf32>
    %cst_50 = arith.constant dense<0.000000e+00> : vector<128xf32>
    %67 = vector.multi_reduction <add>, %66, %cst_50 [0] : vector<256x128xf32> to vector<128xf32>
    %68 = vector.shape_cast %67 : vector<128xf32> to vector<1x128xf32>
    %c0_51 = arith.constant 0 : index
    %c9 = arith.constant 9 : index
    %c0_52 = arith.constant 0 : index
    %69 = vector.load %arg6[%c0_51, %c9, %c0_52] : memref<1x14x128xf32, #tpu.memory_space<vmem>>, vector<1x1x128xf32>
    %70 = vector.shape_cast %69 : vector<1x1x128xf32> to vector<1x128xf32>
    %71 = vector.shape_cast %68 : vector<1x128xf32> to vector<1x1x128xf32>
    tpu.vector_store %arg6[%c0_51, %c9, %c0_52], %71 {strides = array<i32>} : memref<1x14x128xf32, #tpu.memory_space<vmem>>, vector<1x1x128xf32>,
    %72 = arith.mulf %7, %15 : vector<256x128xf32>
    %cst_53 = arith.constant dense<0.000000e+00> : vector<128xf32>
    %73 = vector.multi_reduction <add>, %72, %cst_53 [0] : vector<256x128xf32> to vector<128xf32>
    %74 = vector.shape_cast %73 : vector<128xf32> to vector<1x128xf32>
    %c0_54 = arith.constant 0 : index
    %c10 = arith.constant 10 : index
    %c0_55 = arith.constant 0 : index
    %75 = vector.load %arg6[%c0_54, %c10, %c0_55] : memref<1x14x128xf32, #tpu.memory_space<vmem>>, vector<1x1x128xf32>
    %76 = vector.shape_cast %75 : vector<1x1x128xf32> to vector<1x128xf32>
    %77 = vector.shape_cast %74 : vector<1x128xf32> to vector<1x1x128xf32>
    tpu.vector_store %arg6[%c0_54, %c10, %c0_55], %77 {strides = array<i32>} : memref<1x14x128xf32, #tpu.memory_space<vmem>>, vector<1x1x128xf32>,
    %78 = arith.mulf %11, %11 : vector<256x128xf32>
    %cst_56 = arith.constant dense<0.000000e+00> : vector<128xf32>
    %79 = vector.multi_reduction <add>, %78, %cst_56 [0] : vector<256x128xf32> to vector<128xf32>
    %80 = vector.shape_cast %79 : vector<128xf32> to vector<1x128xf32>
    %c0_57 = arith.constant 0 : index
    %c11 = arith.constant 11 : index
    %c0_58 = arith.constant 0 : index
    %81 = vector.load %arg6[%c0_57, %c11, %c0_58] : memref<1x14x128xf32, #tpu.memory_space<vmem>>, vector<1x1x128xf32>
    %82 = vector.shape_cast %81 : vector<1x1x128xf32> to vector<1x128xf32>
    %83 = vector.shape_cast %80 : vector<1x128xf32> to vector<1x1x128xf32>
    tpu.vector_store %arg6[%c0_57, %c11, %c0_58], %83 {strides = array<i32>} : memref<1x14x128xf32, #tpu.memory_space<vmem>>, vector<1x1x128xf32>,
    %84 = arith.mulf %11, %15 : vector<256x128xf32>
    %cst_59 = arith.constant dense<0.000000e+00> : vector<128xf32>
    %85 = vector.multi_reduction <add>, %84, %cst_59 [0] : vector<256x128xf32> to vector<128xf32>
    %86 = vector.shape_cast %85 : vector<128xf32> to vector<1x128xf32>
    %c0_60 = arith.constant 0 : index
    %c12 = arith.constant 12 : index
    %c0_61 = arith.constant 0 : index
    %87 = vector.load %arg6[%c0_60, %c12, %c0_61] : memref<1x14x128xf32, #tpu.memory_space<vmem>>, vector<1x1x128xf32>
    %88 = vector.shape_cast %87 : vector<1x1x128xf32> to vector<1x128xf32>
    %89 = vector.shape_cast %86 : vector<1x128xf32> to vector<1x1x128xf32>
    tpu.vector_store %arg6[%c0_60, %c12, %c0_61], %89 {strides = array<i32>} : memref<1x14x128xf32, #tpu.memory_space<vmem>>, vector<1x1x128xf32>,
    %90 = arith.mulf %15, %15 : vector<256x128xf32>
    %cst_62 = arith.constant dense<0.000000e+00> : vector<128xf32>
    %91 = vector.multi_reduction <add>, %90, %cst_62 [0] : vector<256x128xf32> to vector<128xf32>
    %92 = vector.shape_cast %91 : vector<128xf32> to vector<1x128xf32>
    %c0_63 = arith.constant 0 : index
    %c13 = arith.constant 13 : index
    %c0_64 = arith.constant 0 : index
    %93 = vector.load %arg6[%c0_63, %c13, %c0_64] : memref<1x14x128xf32, #tpu.memory_space<vmem>>, vector<1x1x128xf32>
    %94 = vector.shape_cast %93 : vector<1x1x128xf32> to vector<1x128xf32>
    %95 = vector.shape_cast %92 : vector<1x128xf32> to vector<1x1x128xf32>
    tpu.vector_store %arg6[%c0_63, %c13, %c0_64], %95 {strides = array<i32>} : memref<1x14x128xf32, #tpu.memory_space<vmem>>, vector<1x1x128xf32>,
    return
  }
  func.func @transform_0(%arg0: i32) -> (i32, i32) {
    %c0_i32 = arith.constant 0 : i32
    %c0_i32_0 = arith.constant 0 : i32
    return %arg0, %c0_i32 : i32, i32
  }
  func.func @transform_1(%arg0: i32) -> (i32, i32) {
    %c0_i32 = arith.constant 0 : i32
    %c0_i32_0 = arith.constant 0 : i32
    return %arg0, %c0_i32 : i32, i32
  }
  func.func @transform_2(%arg0: i32) -> (i32, i32) {
    %c0_i32 = arith.constant 0 : i32
    %c0_i32_0 = arith.constant 0 : i32
    return %arg0, %c0_i32 : i32, i32
  }
  func.func @transform_3(%arg0: i32) -> (i32, i32) {
    %c0_i32 = arith.constant 0 : i32
    %c0_i32_0 = arith.constant 0 : i32
    return %arg0, %c0_i32 : i32, i32
  }
  func.func @transform_4(%arg0: i32) -> (i32, i32, i32) {
    %c0_i32 = arith.constant 0 : i32
    %c0_i32_0 = arith.constant 0 : i32
    %c0_i32_1 = arith.constant 0 : i32
    %c0_i32_2 = arith.constant 0 : i32
    return %c0_i32, %c0_i32_0, %c0_i32_1 : i32, i32, i32
  }
  func.func @transform_5(%arg0: i32) -> (i32, i32, i32) {
    %c0_i32 = arith.constant 0 : i32
    %c0_i32_0 = arith.constant 0 : i32
    %c0_i32_1 = arith.constant 0 : i32
    return %arg0, %c0_i32, %c0_i32_0 : i32, i32, i32
  }
}

module attributes {stable_mosaic.version = 11 : i64} {
  func.func @fused_kernel(%arg0: i32, %arg1: memref<1x256x64xbf16, #tpu.memory_space<vmem>>, %arg2: memref<1x256x64xbf16, #tpu.memory_space<vmem>>, %arg3: memref<1x256x64xbf16, #tpu.memory_space<vmem>>, %arg4: memref<1x256x64xbf16, #tpu.memory_space<vmem>>, %arg5: memref<4x64x128xbf16, #tpu.memory_space<vmem>>, %arg6: memref<1x128xf32, #tpu.memory_space<vmem>>, %arg7: memref<1152x64xbf16, #tpu.memory_space<vmem>>, %arg8: memref<1x64xf32, #tpu.memory_space<vmem>>, %arg9: memref<1x256x64xf32, #tpu.memory_space<vmem>>, %arg10: memref<1x2x64xf32, #tpu.memory_space<vmem>>, %arg11: memref<18x18x128xbf16, #tpu.memory_space<vmem>>, %arg12: memref<256x1152xbf16, #tpu.memory_space<vmem>>) attributes {dimension_semantics = [#tpu.dimension_semantics<parallel>], iteration_bounds = array<i64: 2>, scalar_prefetch = 0 : i64, scratch_operands = 2 : i64, tpu.core_type = #tpu.core_type<tc>, window_params = [{transform_indices = @transform_0, window_bounds = array<i64: 1, 256, 64>}, {transform_indices = @transform_1, window_bounds = array<i64: 1, 256, 64>}, {transform_indices = @transform_2, window_bounds = array<i64: 1, 256, 64>}, {transform_indices = @transform_3, window_bounds = array<i64: 1, 256, 64>}, {pipeline_mode = #tpu.pipeline_mode<synchronous>, transform_indices = @transform_4, window_bounds = array<i64: 4, 64, 128>}, {pipeline_mode = #tpu.pipeline_mode<synchronous>, transform_indices = @transform_5, window_bounds = array<i64: 1, 128>}, {pipeline_mode = #tpu.pipeline_mode<synchronous>, transform_indices = @transform_6, window_bounds = array<i64: 1152, 64>}, {pipeline_mode = #tpu.pipeline_mode<synchronous>, transform_indices = @transform_7, window_bounds = array<i64: 1, 64>}, {transform_indices = @transform_8, window_bounds = array<i64: 1, 256, 64>}, {transform_indices = @transform_9, window_bounds = array<i64: 1, 2, 64>}]} {
    %c0 = arith.constant 0 : index
    %c0_0 = arith.constant 0 : index
    %c0_1 = arith.constant 0 : index
    %0 = vector.load %arg1[%c0, %c0_0, %c0_1] : memref<1x256x64xbf16, #tpu.memory_space<vmem>>, vector<1x256x64xbf16>
    %1 = vector.shape_cast %0 : vector<1x256x64xbf16> to vector<256x64xbf16>
    %c0_2 = arith.constant 0 : index
    %c0_3 = arith.constant 0 : index
    %c0_4 = arith.constant 0 : index
    %2 = vector.load %arg5[%c0_2, %c0_3, %c0_4] : memref<4x64x128xbf16, #tpu.memory_space<vmem>>, vector<1x64x128xbf16>
    %3 = vector.shape_cast %2 : vector<1x64x128xbf16> to vector<64x128xbf16>
    %cst = arith.constant dense<0.000000e+00> : vector<256x128xf32>
    %4 = tpu.matmul %1, %3, %cst {dimension_numbers = #tpu.dot_dimension_numbers<[1], [0], [0], [1], [0, 0, 1, 1], [], []>} : vector<256x64xbf16>, vector<64x128xbf16>, vector<256x128xf32> -> vector<256x128xf32>
    %c0_5 = arith.constant 0 : index
    %c0_6 = arith.constant 0 : index
    %c0_7 = arith.constant 0 : index
    %5 = vector.load %arg2[%c0_5, %c0_6, %c0_7] : memref<1x256x64xbf16, #tpu.memory_space<vmem>>, vector<1x256x64xbf16>
    %6 = vector.shape_cast %5 : vector<1x256x64xbf16> to vector<256x64xbf16>
    %c1 = arith.constant 1 : index
    %c0_8 = arith.constant 0 : index
    %c0_9 = arith.constant 0 : index
    %7 = vector.load %arg5[%c1, %c0_8, %c0_9] : memref<4x64x128xbf16, #tpu.memory_space<vmem>>, vector<1x64x128xbf16>
    %8 = vector.shape_cast %7 : vector<1x64x128xbf16> to vector<64x128xbf16>
    %cst_10 = arith.constant dense<0.000000e+00> : vector<256x128xf32>
    %9 = tpu.matmul %6, %8, %cst_10 {dimension_numbers = #tpu.dot_dimension_numbers<[1], [0], [0], [1], [0, 0, 1, 1], [], []>} : vector<256x64xbf16>, vector<64x128xbf16>, vector<256x128xf32> -> vector<256x128xf32>
    %10 = arith.addf %4, %9 : vector<256x128xf32>
    %c0_11 = arith.constant 0 : index
    %c0_12 = arith.constant 0 : index
    %c0_13 = arith.constant 0 : index
    %11 = vector.load %arg3[%c0_11, %c0_12, %c0_13] : memref<1x256x64xbf16, #tpu.memory_space<vmem>>, vector<1x256x64xbf16>
    %12 = vector.shape_cast %11 : vector<1x256x64xbf16> to vector<256x64xbf16>
    %c2 = arith.constant 2 : index
    %c0_14 = arith.constant 0 : index
    %c0_15 = arith.constant 0 : index
    %13 = vector.load %arg5[%c2, %c0_14, %c0_15] : memref<4x64x128xbf16, #tpu.memory_space<vmem>>, vector<1x64x128xbf16>
    %14 = vector.shape_cast %13 : vector<1x64x128xbf16> to vector<64x128xbf16>
    %cst_16 = arith.constant dense<0.000000e+00> : vector<256x128xf32>
    %15 = tpu.matmul %12, %14, %cst_16 {dimension_numbers = #tpu.dot_dimension_numbers<[1], [0], [0], [1], [0, 0, 1, 1], [], []>} : vector<256x64xbf16>, vector<64x128xbf16>, vector<256x128xf32> -> vector<256x128xf32>
    %16 = arith.addf %10, %15 : vector<256x128xf32>
    %c0_17 = arith.constant 0 : index
    %c0_18 = arith.constant 0 : index
    %c0_19 = arith.constant 0 : index
    %17 = vector.load %arg4[%c0_17, %c0_18, %c0_19] : memref<1x256x64xbf16, #tpu.memory_space<vmem>>, vector<1x256x64xbf16>
    %18 = vector.shape_cast %17 : vector<1x256x64xbf16> to vector<256x64xbf16>
    %c3 = arith.constant 3 : index
    %c0_20 = arith.constant 0 : index
    %c0_21 = arith.constant 0 : index
    %19 = vector.load %arg5[%c3, %c0_20, %c0_21] : memref<4x64x128xbf16, #tpu.memory_space<vmem>>, vector<1x64x128xbf16>
    %20 = vector.shape_cast %19 : vector<1x64x128xbf16> to vector<64x128xbf16>
    %cst_22 = arith.constant dense<0.000000e+00> : vector<256x128xf32>
    %21 = tpu.matmul %18, %20, %cst_22 {dimension_numbers = #tpu.dot_dimension_numbers<[1], [0], [0], [1], [0, 0, 1, 1], [], []>} : vector<256x64xbf16>, vector<64x128xbf16>, vector<256x128xf32> -> vector<256x128xf32>
    %22 = arith.addf %16, %21 : vector<256x128xf32>
    %c0_23 = arith.constant 0 : index
    %c0_24 = arith.constant 0 : index
    %23 = vector.load %arg6[%c0_23, %c0_24] : memref<1x128xf32, #tpu.memory_space<vmem>>, vector<1x128xf32>
    %24 = vector.broadcast %23 : vector<1x128xf32> to vector<256x128xf32>
    %25 = arith.addf %22, %24 : vector<256x128xf32>
    %cst_25 = arith.constant 0.000000e+00 : f32
    %26 = vector.broadcast %cst_25 : f32 to vector<256x128xf32>
    %27 = arith.maximumf %25, %26 : vector<256x128xf32>
    %cst_26 = arith.constant 0.000000e+00 : bf16
    %28 = vector.broadcast %cst_26 : bf16 to vector<18x18x128xbf16>
    %c0_27 = arith.constant 0 : index
    %c0_28 = arith.constant 0 : index
    %c0_29 = arith.constant 0 : index
    %29 = vector.load %arg11[%c0_27, %c0_28, %c0_29] : memref<18x18x128xbf16, #tpu.memory_space<vmem>>, vector<18x18x128xbf16>
    tpu.vector_store %arg11[%c0_27, %c0_28, %c0_29], %28 {strides = array<i32>} : memref<18x18x128xbf16, #tpu.memory_space<vmem>>, vector<18x18x128xbf16>,
    %30 = arith.truncf %27 : vector<256x128xf32> to vector<256x128xbf16>
    %31 = vector.shape_cast %30 : vector<256x128xbf16> to vector<16x16x128xbf16>
    %c1_30 = arith.constant 1 : index
    %c1_31 = arith.constant 1 : index
    %c0_32 = arith.constant 0 : index
    %32 = vector.load %arg11[%c1_30, %c1_31, %c0_32] : memref<18x18x128xbf16, #tpu.memory_space<vmem>>, vector<16x16x128xbf16>
    tpu.vector_store %arg11[%c1_30, %c1_31, %c0_32], %31 {strides = array<i32>} : memref<18x18x128xbf16, #tpu.memory_space<vmem>>, vector<16x16x128xbf16>,
    %c0_33 = arith.constant 0 : index
    %c0_34 = arith.constant 0 : index
    %c0_35 = arith.constant 0 : index
    %33 = vector.load %arg11[%c0_33, %c0_34, %c0_35] : memref<18x18x128xbf16, #tpu.memory_space<vmem>>, vector<16x16x128xbf16>
    %34 = vector.shape_cast %33 : vector<16x16x128xbf16> to vector<256x128xbf16>
    %c0_36 = arith.constant 0 : index
    %c0_37 = arith.constant 0 : index
    %35 = vector.load %arg12[%c0_36, %c0_37] : memref<256x1152xbf16, #tpu.memory_space<vmem>>, vector<256x128xbf16>
    tpu.vector_store %arg12[%c0_36, %c0_37], %34 {strides = array<i32>} : memref<256x1152xbf16, #tpu.memory_space<vmem>>, vector<256x128xbf16>,
    %c0_38 = arith.constant 0 : index
    %c1_39 = arith.constant 1 : index
    %c0_40 = arith.constant 0 : index
    %36 = vector.load %arg11[%c0_38, %c1_39, %c0_40] : memref<18x18x128xbf16, #tpu.memory_space<vmem>>, vector<16x16x128xbf16>
    %37 = vector.shape_cast %36 : vector<16x16x128xbf16> to vector<256x128xbf16>
    %c0_41 = arith.constant 0 : index
    %c128 = arith.constant 128 : index
    %38 = vector.load %arg12[%c0_41, %c128] : memref<256x1152xbf16, #tpu.memory_space<vmem>>, vector<256x128xbf16>
    tpu.vector_store %arg12[%c0_41, %c128], %37 {strides = array<i32>} : memref<256x1152xbf16, #tpu.memory_space<vmem>>, vector<256x128xbf16>,
    %c0_42 = arith.constant 0 : index
    %c2_43 = arith.constant 2 : index
    %c0_44 = arith.constant 0 : index
    %39 = vector.load %arg11[%c0_42, %c2_43, %c0_44] : memref<18x18x128xbf16, #tpu.memory_space<vmem>>, vector<16x16x128xbf16>
    %40 = vector.shape_cast %39 : vector<16x16x128xbf16> to vector<256x128xbf16>
    %c0_45 = arith.constant 0 : index
    %c256 = arith.constant 256 : index
    %41 = vector.load %arg12[%c0_45, %c256] : memref<256x1152xbf16, #tpu.memory_space<vmem>>, vector<256x128xbf16>
    tpu.vector_store %arg12[%c0_45, %c256], %40 {strides = array<i32>} : memref<256x1152xbf16, #tpu.memory_space<vmem>>, vector<256x128xbf16>,
    %c1_46 = arith.constant 1 : index
    %c0_47 = arith.constant 0 : index
    %c0_48 = arith.constant 0 : index
    %42 = vector.load %arg11[%c1_46, %c0_47, %c0_48] : memref<18x18x128xbf16, #tpu.memory_space<vmem>>, vector<16x16x128xbf16>
    %43 = vector.shape_cast %42 : vector<16x16x128xbf16> to vector<256x128xbf16>
    %c0_49 = arith.constant 0 : index
    %c384 = arith.constant 384 : index
    %44 = vector.load %arg12[%c0_49, %c384] : memref<256x1152xbf16, #tpu.memory_space<vmem>>, vector<256x128xbf16>
    tpu.vector_store %arg12[%c0_49, %c384], %43 {strides = array<i32>} : memref<256x1152xbf16, #tpu.memory_space<vmem>>, vector<256x128xbf16>,
    %c1_50 = arith.constant 1 : index
    %c1_51 = arith.constant 1 : index
    %c0_52 = arith.constant 0 : index
    %45 = vector.load %arg11[%c1_50, %c1_51, %c0_52] : memref<18x18x128xbf16, #tpu.memory_space<vmem>>, vector<16x16x128xbf16>
    %46 = vector.shape_cast %45 : vector<16x16x128xbf16> to vector<256x128xbf16>
    %c0_53 = arith.constant 0 : index
    %c512 = arith.constant 512 : index
    %47 = vector.load %arg12[%c0_53, %c512] : memref<256x1152xbf16, #tpu.memory_space<vmem>>, vector<256x128xbf16>
    tpu.vector_store %arg12[%c0_53, %c512], %46 {strides = array<i32>} : memref<256x1152xbf16, #tpu.memory_space<vmem>>, vector<256x128xbf16>,
    %c1_54 = arith.constant 1 : index
    %c2_55 = arith.constant 2 : index
    %c0_56 = arith.constant 0 : index
    %48 = vector.load %arg11[%c1_54, %c2_55, %c0_56] : memref<18x18x128xbf16, #tpu.memory_space<vmem>>, vector<16x16x128xbf16>
    %49 = vector.shape_cast %48 : vector<16x16x128xbf16> to vector<256x128xbf16>
    %c0_57 = arith.constant 0 : index
    %c640 = arith.constant 640 : index
    %50 = vector.load %arg12[%c0_57, %c640] : memref<256x1152xbf16, #tpu.memory_space<vmem>>, vector<256x128xbf16>
    tpu.vector_store %arg12[%c0_57, %c640], %49 {strides = array<i32>} : memref<256x1152xbf16, #tpu.memory_space<vmem>>, vector<256x128xbf16>,
    %c2_58 = arith.constant 2 : index
    %c0_59 = arith.constant 0 : index
    %c0_60 = arith.constant 0 : index
    %51 = vector.load %arg11[%c2_58, %c0_59, %c0_60] : memref<18x18x128xbf16, #tpu.memory_space<vmem>>, vector<16x16x128xbf16>
    %52 = vector.shape_cast %51 : vector<16x16x128xbf16> to vector<256x128xbf16>
    %c0_61 = arith.constant 0 : index
    %c768 = arith.constant 768 : index
    %53 = vector.load %arg12[%c0_61, %c768] : memref<256x1152xbf16, #tpu.memory_space<vmem>>, vector<256x128xbf16>
    tpu.vector_store %arg12[%c0_61, %c768], %52 {strides = array<i32>} : memref<256x1152xbf16, #tpu.memory_space<vmem>>, vector<256x128xbf16>,
    %c2_62 = arith.constant 2 : index
    %c1_63 = arith.constant 1 : index
    %c0_64 = arith.constant 0 : index
    %54 = vector.load %arg11[%c2_62, %c1_63, %c0_64] : memref<18x18x128xbf16, #tpu.memory_space<vmem>>, vector<16x16x128xbf16>
    %55 = vector.shape_cast %54 : vector<16x16x128xbf16> to vector<256x128xbf16>
    %c0_65 = arith.constant 0 : index
    %c896 = arith.constant 896 : index
    %56 = vector.load %arg12[%c0_65, %c896] : memref<256x1152xbf16, #tpu.memory_space<vmem>>, vector<256x128xbf16>
    tpu.vector_store %arg12[%c0_65, %c896], %55 {strides = array<i32>} : memref<256x1152xbf16, #tpu.memory_space<vmem>>, vector<256x128xbf16>,
    %c2_66 = arith.constant 2 : index
    %c2_67 = arith.constant 2 : index
    %c0_68 = arith.constant 0 : index
    %57 = vector.load %arg11[%c2_66, %c2_67, %c0_68] : memref<18x18x128xbf16, #tpu.memory_space<vmem>>, vector<16x16x128xbf16>
    %58 = vector.shape_cast %57 : vector<16x16x128xbf16> to vector<256x128xbf16>
    %c0_69 = arith.constant 0 : index
    %c1024 = arith.constant 1024 : index
    %59 = vector.load %arg12[%c0_69, %c1024] : memref<256x1152xbf16, #tpu.memory_space<vmem>>, vector<256x128xbf16>
    tpu.vector_store %arg12[%c0_69, %c1024], %58 {strides = array<i32>} : memref<256x1152xbf16, #tpu.memory_space<vmem>>, vector<256x128xbf16>,
    %c0_70 = arith.constant 0 : index
    %c0_71 = arith.constant 0 : index
    %60 = vector.load %arg12[%c0_70, %c0_71] : memref<256x1152xbf16, #tpu.memory_space<vmem>>, vector<256x1152xbf16>
    %c0_72 = arith.constant 0 : index
    %c0_73 = arith.constant 0 : index
    %61 = vector.load %arg7[%c0_72, %c0_73] : memref<1152x64xbf16, #tpu.memory_space<vmem>>, vector<1152x64xbf16>
    %cst_74 = arith.constant dense<0.000000e+00> : vector<256x64xf32>
    %62 = tpu.matmul %60, %61, %cst_74 {dimension_numbers = #tpu.dot_dimension_numbers<[1], [0], [0], [1], [0, 0, 1, 1], [], []>} : vector<256x1152xbf16>, vector<1152x64xbf16>, vector<256x64xf32> -> vector<256x64xf32>
    %c0_75 = arith.constant 0 : index
    %c0_76 = arith.constant 0 : index
    %63 = vector.load %arg8[%c0_75, %c0_76] : memref<1x64xf32, #tpu.memory_space<vmem>>, vector<1x64xf32>
    %64 = vector.broadcast %63 : vector<1x64xf32> to vector<256x64xf32>
    %65 = arith.addf %62, %64 : vector<256x64xf32>
    %c0_77 = arith.constant 0 : index
    %c0_78 = arith.constant 0 : index
    %c0_79 = arith.constant 0 : index
    %66 = vector.load %arg9[%c0_77, %c0_78, %c0_79] : memref<1x256x64xf32, #tpu.memory_space<vmem>>, vector<1x256x64xf32>
    %67 = vector.shape_cast %66 : vector<1x256x64xf32> to vector<256x64xf32>
    %68 = vector.shape_cast %65 : vector<256x64xf32> to vector<1x256x64xf32>
    tpu.vector_store %arg9[%c0_77, %c0_78, %c0_79], %68 {strides = array<i32>} : memref<1x256x64xf32, #tpu.memory_space<vmem>>, vector<1x256x64xf32>,
    %cst_80 = arith.constant dense<0.000000e+00> : vector<64xf32>
    %69 = vector.multi_reduction <add>, %65, %cst_80 [0] : vector<256x64xf32> to vector<64xf32>
    %70 = vector.shape_cast %69 : vector<64xf32> to vector<1x64xf32>
    %c0_81 = arith.constant 0 : index
    %c0_82 = arith.constant 0 : index
    %c0_83 = arith.constant 0 : index
    %71 = vector.load %arg10[%c0_81, %c0_82, %c0_83] : memref<1x2x64xf32, #tpu.memory_space<vmem>>, vector<1x1x64xf32>
    %72 = vector.shape_cast %71 : vector<1x1x64xf32> to vector<1x64xf32>
    %73 = vector.shape_cast %70 : vector<1x64xf32> to vector<1x1x64xf32>
    tpu.vector_store %arg10[%c0_81, %c0_82, %c0_83], %73 {strides = array<i32>} : memref<1x2x64xf32, #tpu.memory_space<vmem>>, vector<1x1x64xf32>,
    %74 = arith.mulf %65, %65 : vector<256x64xf32>
    %cst_84 = arith.constant dense<0.000000e+00> : vector<64xf32>
    %75 = vector.multi_reduction <add>, %74, %cst_84 [0] : vector<256x64xf32> to vector<64xf32>
    %76 = vector.shape_cast %75 : vector<64xf32> to vector<1x64xf32>
    %c0_85 = arith.constant 0 : index
    %c1_86 = arith.constant 1 : index
    %c0_87 = arith.constant 0 : index
    %77 = vector.load %arg10[%c0_85, %c1_86, %c0_87] : memref<1x2x64xf32, #tpu.memory_space<vmem>>, vector<1x1x64xf32>
    %78 = vector.shape_cast %77 : vector<1x1x64xf32> to vector<1x64xf32>
    %79 = vector.shape_cast %76 : vector<1x64xf32> to vector<1x1x64xf32>
    tpu.vector_store %arg10[%c0_85, %c1_86, %c0_87], %79 {strides = array<i32>} : memref<1x2x64xf32, #tpu.memory_space<vmem>>, vector<1x1x64xf32>,
    return
  }
  func.func @transform_0(%arg0: i32) -> (i32, i32, i32) {
    %c0_i32 = arith.constant 0 : i32
    %c0_i32_0 = arith.constant 0 : i32
    %c0_i32_1 = arith.constant 0 : i32
    return %arg0, %c0_i32, %c0_i32_0 : i32, i32, i32
  }
  func.func @transform_1(%arg0: i32) -> (i32, i32, i32) {
    %c0_i32 = arith.constant 0 : i32
    %c0_i32_0 = arith.constant 0 : i32
    %c0_i32_1 = arith.constant 0 : i32
    return %arg0, %c0_i32, %c0_i32_0 : i32, i32, i32
  }
  func.func @transform_2(%arg0: i32) -> (i32, i32, i32) {
    %c0_i32 = arith.constant 0 : i32
    %c0_i32_0 = arith.constant 0 : i32
    %c0_i32_1 = arith.constant 0 : i32
    return %arg0, %c0_i32, %c0_i32_0 : i32, i32, i32
  }
  func.func @transform_3(%arg0: i32) -> (i32, i32, i32) {
    %c0_i32 = arith.constant 0 : i32
    %c0_i32_0 = arith.constant 0 : i32
    %c0_i32_1 = arith.constant 0 : i32
    return %arg0, %c0_i32, %c0_i32_0 : i32, i32, i32
  }
  func.func @transform_4(%arg0: i32) -> (i32, i32, i32) {
    %c0_i32 = arith.constant 0 : i32
    %c0_i32_0 = arith.constant 0 : i32
    %c0_i32_1 = arith.constant 0 : i32
    %c0_i32_2 = arith.constant 0 : i32
    return %c0_i32, %c0_i32_0, %c0_i32_1 : i32, i32, i32
  }
  func.func @transform_5(%arg0: i32) -> (i32, i32) {
    %c0_i32 = arith.constant 0 : i32
    %c0_i32_0 = arith.constant 0 : i32
    %c0_i32_1 = arith.constant 0 : i32
    return %c0_i32, %c0_i32_0 : i32, i32
  }
  func.func @transform_6(%arg0: i32) -> (i32, i32) {
    %c0_i32 = arith.constant 0 : i32
    %c0_i32_0 = arith.constant 0 : i32
    %c0_i32_1 = arith.constant 0 : i32
    return %c0_i32, %c0_i32_0 : i32, i32
  }
  func.func @transform_7(%arg0: i32) -> (i32, i32) {
    %c0_i32 = arith.constant 0 : i32
    %c0_i32_0 = arith.constant 0 : i32
    %c0_i32_1 = arith.constant 0 : i32
    return %c0_i32, %c0_i32_0 : i32, i32
  }
  func.func @transform_8(%arg0: i32) -> (i32, i32, i32) {
    %c0_i32 = arith.constant 0 : i32
    %c0_i32_0 = arith.constant 0 : i32
    %c0_i32_1 = arith.constant 0 : i32
    return %arg0, %c0_i32, %c0_i32_0 : i32, i32, i32
  }
  func.func @transform_9(%arg0: i32) -> (i32, i32, i32) {
    %c0_i32 = arith.constant 0 : i32
    %c0_i32_0 = arith.constant 0 : i32
    %c0_i32_1 = arith.constant 0 : i32
    return %arg0, %c0_i32, %c0_i32_0 : i32, i32, i32
  }
}

module attributes {stable_mosaic.version = 11 : i64} {
  func.func @bn_relu_kernel(%arg0: i32, %arg1: memref<256x128xf32, #tpu.memory_space<vmem>>, %arg2: memref<1x128xf32, #tpu.memory_space<vmem>>, %arg3: memref<1x128xf32, #tpu.memory_space<vmem>>, %arg4: memref<256x128xf32, #tpu.memory_space<vmem>>) attributes {dimension_semantics = [#tpu.dimension_semantics<parallel>], iteration_bounds = array<i64: 1>, scalar_prefetch = 0 : i64, scratch_operands = 0 : i64, tpu.core_type = #tpu.core_type<tc>, window_params = [{transform_indices = @transform_0, window_bounds = array<i64: 256, 128>}, {pipeline_mode = #tpu.pipeline_mode<synchronous>, transform_indices = @transform_1, window_bounds = array<i64: 1, 128>}, {pipeline_mode = #tpu.pipeline_mode<synchronous>, transform_indices = @transform_2, window_bounds = array<i64: 1, 128>}, {transform_indices = @transform_3, window_bounds = array<i64: 256, 128>}]} {
    %c0 = arith.constant 0 : index
    %c0_0 = arith.constant 0 : index
    %0 = vector.load %arg1[%c0, %c0_0] : memref<256x128xf32, #tpu.memory_space<vmem>>, vector<256x128xf32>
    %c0_1 = arith.constant 0 : index
    %c0_2 = arith.constant 0 : index
    %1 = vector.load %arg2[%c0_1, %c0_2] : memref<1x128xf32, #tpu.memory_space<vmem>>, vector<1x128xf32>
    %2 = vector.broadcast %1 : vector<1x128xf32> to vector<256x128xf32>
    %3 = arith.mulf %0, %2 : vector<256x128xf32>
    %c0_3 = arith.constant 0 : index
    %c0_4 = arith.constant 0 : index
    %4 = vector.load %arg3[%c0_3, %c0_4] : memref<1x128xf32, #tpu.memory_space<vmem>>, vector<1x128xf32>
    %5 = vector.broadcast %4 : vector<1x128xf32> to vector<256x128xf32>
    %6 = arith.addf %3, %5 : vector<256x128xf32>
    %cst = arith.constant 0.000000e+00 : f32
    %7 = vector.broadcast %cst : f32 to vector<256x128xf32>
    %8 = arith.maximumf %6, %7 : vector<256x128xf32>
    %c0_5 = arith.constant 0 : index
    %c0_6 = arith.constant 0 : index
    %9 = vector.load %arg4[%c0_5, %c0_6] : memref<256x128xf32, #tpu.memory_space<vmem>>, vector<256x128xf32>
    tpu.vector_store %arg4[%c0_5, %c0_6], %8 {strides = array<i32>} : memref<256x128xf32, #tpu.memory_space<vmem>>, vector<256x128xf32>,
    return
  }
  func.func @transform_0(%arg0: i32) -> (i32, i32) {
    %c0_i32 = arith.constant 0 : i32
    %c0_i32_0 = arith.constant 0 : i32
    return %arg0, %c0_i32 : i32, i32
  }
  func.func @transform_1(%arg0: i32) -> (i32, i32) {
    %c0_i32 = arith.constant 0 : i32
    %c0_i32_0 = arith.constant 0 : i32
    %c0_i32_1 = arith.constant 0 : i32
    return %c0_i32, %c0_i32_0 : i32, i32
  }
  func.func @transform_2(%arg0: i32) -> (i32, i32) {
    %c0_i32 = arith.constant 0 : i32
    %c0_i32_0 = arith.constant 0 : i32
    %c0_i32_1 = arith.constant 0 : i32
    return %c0_i32, %c0_i32_0 : i32, i32
  }
  func.func @transform_3(%arg0: i32) -> (i32, i32) {
    %c0_i32 = arith.constant 0 : i32
    %c0_i32_0 = arith.constant 0 : i32
    return %arg0, %c0_i32 : i32, i32
  }
}

</mosaic_0001>

<llo_original>
// kernel: adj_encoder_forward.3
$region0: #{adj_encoder_forward.3}
  #allocation0 [shape = 'u32[]', space=smem, size = 0x4, offset = 0x4, fixed_abs, tag = 'smem constant byte address 0x4 - core index']
  #allocation1 [shape = 'u32[144,128]{1,0:T(1,128)}', space=vmem, size = 0x12000, scoped, tag = 'internal scratch']
  %s0 = inlined_call_operand.vmem [shape: bf16[512,64], index: 0, kind: input, shape index: {}]
  %s1 = inlined_call_operand.vmem [shape: bf16[512,64], index: 1, kind: input, shape index: {}]
  %s2 = inlined_call_operand.vmem [shape: bf16[512,64], index: 2, kind: input, shape index: {}]
  %s3 = inlined_call_operand.vmem [shape: bf16[512,64], index: 3, kind: input, shape index: {}]
  %s4 = inlined_call_operand.vmem [shape: bf16[4,64,128], index: 4, kind: input, shape index: {}]
  %s5 = inlined_call_operand.vmem [shape: f32[2,14,128], index: 5, kind: output, shape index: {}]
  %s6 = sld [smem:[#allocation0]]
  $region53: #{adj_encoder_forward.3} parent=0
    _
  %s8 = ssub.s32 1, %s6
  %s9 = scalar_select 0, %s8, %s6
  loop: start=0, step=1, limit=4
  $region2: #{adj_encoder_forward.3} parent=0 // loop_pre_header
    _
  $region3: #{adj_encoder_forward.3} parent=0 // loop_header
    %s11 = sphi 0, %s15
    %p12 = scmp.ge.s32.totalorder %s11, 4
    %s21 = sphi 0, %s23
    %s24 = sphi 0, %s21
    %s25 = sphi 0, %s24
    %s41 = sphi 0, %s25
    %s47 = sphi 0, %s49
    %s50 = sphi 0, %s47
    %s51 = sphi 0, %s50
    %s67 = sphi 0, %s51
    %s73 = sphi 0, %s75
    %s76 = sphi 0, %s73
    %s77 = sphi 0, %s76
    %s93 = sphi 0, %s77
    %s99 = sphi 0, %s101
    %s102 = sphi 0, %s99
    %s103 = sphi 0, %s102
    %s119 = sphi 0, %s103
    %s123 = sphi 0, %s123
    %s125 = sphi 0, %s123
    %s126 = sphi 0, %s125
    %s140 = sphi 0, %s126
    %s146 = sphi 0, %s148
    %s149 = sphi 0, %s146
    %s150 = sphi 0, %s149
    %s166 = sphi 0, %s150
  $region4: #{adj_encoder_forward.3} parent=0 // loop_header_branch
    %14 = sbr.rel (%p12) target = $region8
  $region5: #{adj_encoder_forward.3} parent=0 // loop_body
    %s16 = ssub.s32 %s11, 1
    %s17 = ssub.s32 %s11, 2
    %s18 = sadd.s32 %s11, 1
    %s19 = ssub.s32 %s11, %s18
    %p20 = scmp.eq.s32.totalorder %s19, 0
    %s22 = sadd.s32 %s21, 1
    %s23 = scalar_select %p20, %s21, %s22
    %p26 = pneg %p20
    %p27 = scmp.eq.s32.totalorder %s11, 1
    %p28 = por %p26, %p27
    %p29 = scmp.ne.s32.totalorder %s21, %s24
    %p30 = scmp.eq.s32.totalorder %s11, 0
    %p31 = por %p29, %p30
    %p32 = scmp.ne.s32.totalorder %s21, %s24
    %p33 = scmp.eq.s32.totalorder %s16, 1
    %p34 = por %p32, %p33
    %p35 = scmp.ne.s32.totalorder %s24, %s25
    %p36 = scmp.eq.s32.totalorder %s16, 0
    %p37 = por %p35, %p36
    %p38 = scmp.ne.s32.totalorder %s24, %s25
    %p39 = scmp.eq.s32.totalorder %s17, 1
    %p40 = por %p38, %p39
    %p42 = scmp.ne.s32.totalorder %s25, %s41
    %p43 = scmp.eq.s32.totalorder %s17, 0
    %p44 = por %p42, %p43
    %s45 = ssub.s32 %s11, %s18
    %p46 = scmp.eq.s32.totalorder %s45, 0
    %s48 = sadd.s32 %s47, 1
    %s49 = scalar_select %p46, %s47, %s48
    %p52 = pneg %p46
    %p53 = scmp.eq.s32.totalorder %s11, 1
    %p54 = por %p52, %p53
    %p55 = scmp.ne.s32.totalorder %s47, %s50
    %p56 = scmp.eq.s32.totalorder %s11, 0
    %p57 = por %p55, %p56
    %p58 = scmp.ne.s32.totalorder %s47, %s50
    %p59 = scmp.eq.s32.totalorder %s16, 1
    %p60 = por %p58, %p59
    %p61 = scmp.ne.s32.totalorder %s50, %s51
    %p62 = scmp.eq.s32.totalorder %s16, 0
    %p63 = por %p61, %p62
    %p64 = scmp.ne.s32.totalorder %s50, %s51
    %p65 = scmp.eq.s32.totalorder %s17, 1
    %p66 = por %p64, %p65
    %p68 = scmp.ne.s32.totalorder %s51, %s67
    %p69 = scmp.eq.s32.totalorder %s17, 0
    %p70 = por %p68, %p69
    %s71 = ssub.s32 %s11, %s18
    %p72 = scmp.eq.s32.totalorder %s71, 0
    %s74 = sadd.s32 %s73, 1
    %s75 = scalar_select %p72, %s73, %s74
    %p78 = pneg %p72
    %p79 = scmp.eq.s32.totalorder %s11, 1
    %p80 = por %p78, %p79
    %p81 = scmp.ne.s32.totalorder %s73, %s76
    %p82 = scmp.eq.s32.totalorder %s11, 0
    %p83 = por %p81, %p82
    %p84 = scmp.ne.s32.totalorder %s73, %s76
    %p85 = scmp.eq.s32.totalorder %s16, 1
    %p86 = por %p84, %p85
    %p87 = scmp.ne.s32.totalorder %s76, %s77
    %p88 = scmp.eq.s32.totalorder %s16, 0
    %p89 = por %p87, %p88
    %p90 = scmp.ne.s32.totalorder %s76, %s77
    %p91 = scmp.eq.s32.totalorder %s17, 1
    %p92 = por %p90, %p91
    %p94 = scmp.ne.s32.totalorder %s77, %s93
    %p95 = scmp.eq.s32.totalorder %s17, 0
    %p96 = por %p94, %p95
    %s97 = ssub.s32 %s11, %s18
    %p98 = scmp.eq.s32.totalorder %s97, 0
    %s100 = sadd.s32 %s99, 1
    %s101 = scalar_select %p98, %s99, %s100
    %p104 = pneg %p98
    %p105 = scmp.eq.s32.totalorder %s11, 1
    %p106 = por %p104, %p105
    %p107 = scmp.ne.s32.totalorder %s99, %s102
    %p108 = scmp.eq.s32.totalorder %s11, 0
    %p109 = por %p107, %p108
    %p110 = scmp.ne.s32.totalorder %s99, %s102
    %p111 = scmp.eq.s32.totalorder %s16, 1
    %p112 = por %p110, %p111
    %p113 = scmp.ne.s32.totalorder %s102, %s103
    %p114 = scmp.eq.s32.totalorder %s16, 0
    %p115 = por %p113, %p114
    %p116 = scmp.ne.s32.totalorder %s102, %s103
    %p117 = scmp.eq.s32.totalorder %s17, 1
    %p118 = por %p116, %p117
    %p120 = scmp.ne.s32.totalorder %s103, %s119
    %p121 = scmp.eq.s32.totalorder %s17, 0
    %p122 = por %p120, %p121
    %s124 = sadd.s32 %s123, 1
    %p127 = scmp.eq.s32.totalorder %s11, 1
    %p128 = scmp.ne.s32.totalorder %s123, %s125
    %p129 = scmp.eq.s32.totalorder %s11, 0
    %p130 = por %p128, %p129
    %p131 = scmp.ne.s32.totalorder %s123, %s125
    %p132 = scmp.eq.s32.totalorder %s16, 1
    %p133 = por %p131, %p132
    %p134 = scmp.ne.s32.totalorder %s125, %s126
    %p135 = scmp.eq.s32.totalorder %s16, 0
    %p136 = por %p134, %p135
    %p137 = scmp.ne.s32.totalorder %s125, %s126
    %p138 = scmp.eq.s32.totalorder %s17, 1
    %p139 = por %p137, %p138
    %p141 = scmp.ne.s32.totalorder %s126, %s140
    %p142 = scmp.eq.s32.totalorder %s17, 0
    %p143 = por %p141, %p142
    %s144 = ssub.s32 %s11, %s18
    %p145 = scmp.eq.s32.totalorder %s144, 0
    %s147 = sadd.s32 %s146, 1
    %s148 = scalar_select %p145, %s146, %s147
    %p151 = pneg %p145
    %p152 = scmp.eq.s32.totalorder %s11, 1
    %p153 = por %p151, %p152
    %p154 = scmp.ne.s32.totalorder %s146, %s149
    %p155 = scmp.eq.s32.totalorder %s11, 0
    %p156 = por %p154, %p155
    %p157 = scmp.ne.s32.totalorder %s146, %s149
    %p158 = scmp.eq.s32.totalorder %s16, 1
    %p159 = por %p157, %p158
    %p160 = scmp.ne.s32.totalorder %s149, %s150
    %p161 = scmp.eq.s32.totalorder %s16, 0
    %p162 = por %p160, %p161
    %p163 = scmp.ne.s32.totalorder %s149, %s150
    %p164 = scmp.eq.s32.totalorder %s17, 1
    %p165 = por %p163, %p164
    %p167 = scmp.ne.s32.totalorder %s150, %s166
    %p168 = scmp.eq.s32.totalorder %s17, 0
    %p169 = por %p167, %p168
    %p170 = scmp.le.s32.totalorder 1, %s11
    %p171 = scmp.lt.s32.totalorder %s11, 3
    %p172 = pnand %p170, %p171
    %p173 = pneg %p172
    // Predicated region
    $region9: #{adj_encoder_forward.3} parent=5 // pred_check
      _
    $region10: #{adj_encoder_forward.3} parent=5 // pred_check_branch
      %175 = sbr.rel (%p172) target = $region12
    $region11: #{adj_encoder_forward.3} parent=5 // pred_region
      %s176 = ssub.s32 %s11, 1
      // Predicated region
      $region13: #{adj_encoder_forward.3} parent=11 // pred_check
        %p177 = pneg %p136
      $region14: #{adj_encoder_forward.3} parent=11 // pred_check_branch
        %179 = sbr.rel (%p177) target = $region16
      $region15: #{adj_encoder_forward.3} parent=11 // pred_region
        _
      $region16: #{adj_encoder_forward.3} parent=11 // pred_fallthru
        _
    $region12: #{adj_encoder_forward.3} parent=5 // pred_fallthru
      _
    %p180 = scmp.lt.s32.totalorder %s11, 2
    // Predicated region
    $region17: #{adj_encoder_forward.3} parent=5 // pred_check
      %p181 = pneg %p180
    $region18: #{adj_encoder_forward.3} parent=5 // pred_check_branch
      %183 = sbr.rel (%p181) target = $region20
    $region19: #{adj_encoder_forward.3} parent=5 // pred_region
      // Predicated region
      $region21: #{adj_encoder_forward.3} parent=19 // pred_check
        %p184 = pneg %p31
      $region22: #{adj_encoder_forward.3} parent=19 // pred_check_branch
        %186 = sbr.rel (%p184) target = $region24
      $region23: #{adj_encoder_forward.3} parent=19 // pred_region
        %s187 = smul.u32 32, %s11
        %p188 = scmp.lt.s32.totalorder %s187, 63
        %s189 = scalar_select %p188, %s187, 63
        %s190 = smul.addr %s189, 4
        %s191 = scalar_lea.vmem %s0, %s190
        %s192 = smul.u32 32, %s11
      $region24: #{adj_encoder_forward.3} parent=19 // pred_fallthru
        _
      // Predicated region
      $region25: #{adj_encoder_forward.3} parent=19 // pred_check
        %p193 = pneg %p57
      $region26: #{adj_encoder_forward.3} parent=19 // pred_check_branch
        %195 = sbr.rel (%p193) target = $region28
      $region27: #{adj_encoder_forward.3} parent=19 // pred_region
        %s196 = smul.u32 32, %s11
        %p197 = scmp.lt.s32.totalorder %s196, 63
        %s198 = scalar_select %p197, %s196, 63
        %s199 = smul.addr %s198, 4
        %s200 = scalar_lea.vmem %s1, %s199
        %s201 = smul.u32 32, %s11
      $region28: #{adj_encoder_forward.3} parent=19 // pred_fallthru
        _
      // Predicated region
      $region29: #{adj_encoder_forward.3} parent=19 // pred_check
        %p202 = pneg %p83
      $region30: #{adj_encoder_forward.3} parent=19 // pred_check_branch
        %204 = sbr.rel (%p202) target = $region32
      $region31: #{adj_encoder_forward.3} parent=19 // pred_region
        %s205 = smul.u32 32, %s11
        %p206 = scmp.lt.s32.totalorder %s205, 63
        %s207 = scalar_select %p206, %s205, 63
        %s208 = smul.addr %s207, 4
        %s209 = scalar_lea.vmem %s2, %s208
        %s210 = smul.u32 32, %s11
      $region32: #{adj_encoder_forward.3} parent=19 // pred_fallthru
        _
      // Predicated region
      $region33: #{adj_encoder_forward.3} parent=19 // pred_check
        %p211 = pneg %p109
      $region34: #{adj_encoder_forward.3} parent=19 // pred_check_branch
        %213 = sbr.rel (%p211) target = $region36
      $region35: #{adj_encoder_forward.3} parent=19 // pred_region
        %s214 = smul.u32 32, %s11
        %p215 = scmp.lt.s32.totalorder %s214, 63
        %s216 = scalar_select %p215, %s214, 63
        %s217 = smul.addr %s216, 4
        %s218 = scalar_lea.vmem %s3, %s217
        %s219 = smul.u32 32, %s11
      $region36: #{adj_encoder_forward.3} parent=19 // pred_fallthru
        _
    $region20: #{adj_encoder_forward.3} parent=5 // pred_fallthru
      _
    %p220 = scmp.le.s32.totalorder 1, %s11
    %p221 = scmp.lt.s32.totalorder %s11, 3
    %p222 = pnand %p220, %p221
    %p223 = pneg %p222
    // Predicated region
    $region37: #{adj_encoder_forward.3} parent=5 // pred_check
      _
    $region38: #{adj_encoder_forward.3} parent=5 // pred_check_branch
      %225 = sbr.rel (%p222) target = $region40
    $region39: #{adj_encoder_forward.3} parent=5 // pred_region
      %s226 = ssub.s32 %s11, 1
      %s227 = smul.u32 32, %s16
      %p228 = scmp.lt.s32.totalorder %s227, 63
      %s229 = scalar_select %p228, %s227, 63
      %s230 = smul.addr %s229, 4
      %s231 = scalar_lea.vmem %s0, %s230
      %p232 = pneg %p37
      %p233 = pneg %p34
      %s234 = smul.u32 32, %s16
      %p235 = scmp.lt.s32.totalorder %s234, 63
      %s236 = scalar_select %p235, %s234, 63
      %s237 = smul.addr %s236, 4
      %s238 = scalar_lea.vmem %s1, %s237
      %p239 = pneg %p63
      %p240 = pneg %p60
      %s241 = smul.u32 32, %s16
      %p242 = scmp.lt.s32.totalorder %s241, 63
      %s243 = scalar_select %p242, %s241, 63
      %s244 = smul.addr %s243, 4
      %s245 = scalar_lea.vmem %s2, %s244
      %p246 = pneg %p89
      %p247 = pneg %p86
      %s248 = smul.u32 32, %s16
      %p249 = scmp.lt.s32.totalorder %s248, 63
      %s250 = scalar_select %p249, %s248, 63
      %s251 = smul.addr %s250, 4
      %s252 = scalar_lea.vmem %s3, %s251
      %p253 = pneg %p115
      %p254 = pneg %p112
      %p255 = pneg %p136
      %p256 = pneg %p133
      %p257 = pneg %p162
      %p258 = pneg %p159
      %p259 = scmp.lt.s32.totalorder %s16, 1
      %s260 = scalar_select %p259, %s16, 1
      %s261 = smul.addr %s260, 2
      %s262 = smul.addr %s261, 8
      %s263 = scalar_lea.vmem %s5, %s262
      %s264 = smul.u32 32, %s16
      %p265 = scmp.lt.s32.totalorder %s264, 63
      %s266 = scalar_select %p265, %s264, 63
      %s267 = smul.addr %s266, 4
      %s268 = scalar_lea.vmem %s0, %s267
      %s269 = smul.u32 32, %s16
      %s270 = smul.u32 32, %s16
      %p271 = scmp.lt.s32.totalorder %s270, 63
      %s272 = scalar_select %p271, %s270, 63
      %s273 = smul.addr %s272, 4
      %s274 = scalar_lea.vmem %s1, %s273
      %s275 = smul.u32 32, %s16
      %s276 = smul.u32 32, %s16
      %p277 = scmp.lt.s32.totalorder %s276, 63
      %s278 = scalar_select %p277, %s276, 63
      %s279 = smul.addr %s278, 4
      %s280 = scalar_lea.vmem %s2, %s279
      %s281 = smul.u32 32, %s16
      %s282 = smul.u32 32, %s16
      %p283 = scmp.lt.s32.totalorder %s282, 63
      %s284 = scalar_select %p283, %s282, 63
      %s285 = smul.addr %s284, 4
      %s286 = scalar_lea.vmem %s3, %s285
      %s287 = smul.u32 32, %s16
      %p288 = scmp.lt.s32.totalorder %s16, 1
      %s289 = scalar_select %p288, %s16, 1
      %s290 = smul.addr %s289, 2
      %s291 = smul.addr %s290, 8
      %s292 = scalar_lea.vmem %s5, %s291
      %v294 = vld [vmem:[%s268] sm:$0xf]
      %v295 = vld [vmem:[%s268 + $0x4] sm:$0xf]
      %v296 = vld [vmem:[%s268 + $0x8] sm:$0xf]
      %v297 = vld [vmem:[%s268 + $0xc] sm:$0xf]
      %v298 = vld [vmem:[%s268 + $0x10] sm:$0xf]
      %v299 = vld [vmem:[%s268 + $0x14] sm:$0xf]
      %v300 = vld [vmem:[%s268 + $0x18] sm:$0xf]
      %v301 = vld [vmem:[%s268 + $0x1c] sm:$0xf]
      %v302 = vld [vmem:[%s268 + $0x20] sm:$0xf]
      %v303 = vld [vmem:[%s268 + $0x24] sm:$0xf]
      %v304 = vld [vmem:[%s268 + $0x28] sm:$0xf]
      %v305 = vld [vmem:[%s268 + $0x2c] sm:$0xf]
      %v306 = vld [vmem:[%s268 + $0x30] sm:$0xf]
      %v307 = vld [vmem:[%s268 + $0x34] sm:$0xf]
      %v308 = vld [vmem:[%s268 + $0x38] sm:$0xf]
      %v309 = vld [vmem:[%s268 + $0x3c] sm:$0xf]
      %v310 = vld [vmem:[%s268 + $0x40] sm:$0xf]
      %v311 = vld [vmem:[%s268 + $0x44] sm:$0xf]
      %v312 = vld [vmem:[%s268 + $0x48] sm:$0xf]
      %v313 = vld [vmem:[%s268 + $0x4c] sm:$0xf]
      %v314 = vld [vmem:[%s268 + $0x50] sm:$0xf]
      %v315 = vld [vmem:[%s268 + $0x54] sm:$0xf]
      %v316 = vld [vmem:[%s268 + $0x58] sm:$0xf]
      %v317 = vld [vmem:[%s268 + $0x5c] sm:$0xf]
      %v318 = vld [vmem:[%s268 + $0x60] sm:$0xf]
      %v319 = vld [vmem:[%s268 + $0x64] sm:$0xf]
      %v320 = vld [vmem:[%s268 + $0x68] sm:$0xf]
      %v321 = vld [vmem:[%s268 + $0x6c] sm:$0xf]
      %v322 = vld [vmem:[%s268 + $0x70] sm:$0xf]
      %v323 = vld [vmem:[%s268 + $0x74] sm:$0xf]
      %v324 = vld [vmem:[%s268 + $0x78] sm:$0xf]
      %v325 = vld [vmem:[%s268 + $0x7c] sm:$0xf]
      %v326 = vld [vmem:[%s4] sm:$0xf]
      %v327 = vld [vmem:[%s4 + $0x4] sm:$0xf]
      %v328 = vld [vmem:[%s4 + $0x8] sm:$0xf]
      %v329 = vld [vmem:[%s4 + $0xc] sm:$0xf]
      %v330 = vld [vmem:[%s4 + $0x10] sm:$0xf]
      %v331 = vld [vmem:[%s4 + $0x14] sm:$0xf]
      %v332 = vld [vmem:[%s4 + $0x18] sm:$0xf]
      %v333 = vld [vmem:[%s4 + $0x1c] sm:$0xf]
      %v366 = vunpack.c.l.b16 %v294
      %v367 = vunpack.c.l.b16 %v295
      %v368 = vunpack.c.l.b16 %v296
      %v369 = vunpack.c.l.b16 %v297
      %v370 = vunpack.c.l.b16 %v298
      %v371 = vunpack.c.l.b16 %v299
      %v372 = vunpack.c.l.b16 %v300
      %v373 = vunpack.c.l.b16 %v301
      %v374 = vunpack.c.l.b16 %v302
      %v375 = vunpack.c.l.b16 %v303
      %v376 = vunpack.c.l.b16 %v304
      %v377 = vunpack.c.l.b16 %v305
      %v378 = vunpack.c.l.b16 %v306
      %v379 = vunpack.c.l.b16 %v307
      %v380 = vunpack.c.l.b16 %v308
      %v381 = vunpack.c.l.b16 %v309
      %v382 = vunpack.c.l.b16 %v310
      %v383 = vunpack.c.l.b16 %v311
      %v384 = vunpack.c.l.b16 %v312
      %v385 = vunpack.c.l.b16 %v313
      %v386 = vunpack.c.l.b16 %v314
      %v387 = vunpack.c.l.b16 %v315
      %v388 = vunpack.c.l.b16 %v316
      %v389 = vunpack.c.l.b16 %v317
      %v390 = vunpack.c.l.b16 %v318
      %v391 = vunpack.c.l.b16 %v319
      %v392 = vunpack.c.l.b16 %v320
      %v393 = vunpack.c.l.b16 %v321
      %v394 = vunpack.c.l.b16 %v322
      %v395 = vunpack.c.l.b16 %v323
      %v396 = vunpack.c.l.b16 %v324
      %v397 = vunpack.c.l.b16 %v325
      %v398 = vpack.c.b16 %v367, %v366
      %v399 = vpack.c.b16 %v369, %v368
      %v400 = vpack.c.b16 %v371, %v370
      %v401 = vpack.c.b16 %v373, %v372
      %v402 = vpack.c.b16 %v375, %v374
      %v403 = vpack.c.b16 %v377, %v376
      %v404 = vpack.c.b16 %v379, %v378
      %v405 = vpack.c.b16 %v381, %v380
      %v406 = vpack.c.b16 %v383, %v382
      %v407 = vpack.c.b16 %v385, %v384
      %v408 = vpack.c.b16 %v387, %v386
      %v409 = vpack.c.b16 %v389, %v388
      %v410 = vpack.c.b16 %v391, %v390
      %v411 = vpack.c.b16 %v393, %v392
      %v412 = vpack.c.b16 %v395, %v394
      %v413 = vpack.c.b16 %v397, %v396
      %v422 = vunpack.c.l.b16 %v326
      %v423 = vunpack.c.l.b16 %v327
      %v424 = vunpack.c.l.b16 %v328
      %v425 = vunpack.c.l.b16 %v329
      %v426 = vunpack.c.l.b16 %v330
      %v427 = vunpack.c.l.b16 %v331
      %v428 = vunpack.c.l.b16 %v332
      %v429 = vunpack.c.l.b16 %v333
      %v430 = vpack.c.b16 %v423, %v422
      %v431 = vpack.c.b16 %v425, %v424
      %v432 = vpack.c.b16 %v427, %v426
      %v433 = vpack.c.b16 %v429, %v428
      %vm438 = vcmask 523264
      %v440 = vsel %vm438, %v398, 0
      %v443 = vsel %vm438, %v399, 0
      %v446 = vsel %vm438, %v400, 0
      %v449 = vsel %vm438, %v401, 0
      %v452 = vsel %vm438, %v402, 0
      %v455 = vsel %vm438, %v403, 0
      %v458 = vsel %vm438, %v404, 0
      %v461 = vsel %vm438, %v405, 0
      %v464 = vsel %vm438, %v406, 0
      %v467 = vsel %vm438, %v407, 0
      %v470 = vsel %vm438, %v408, 0
      %v473 = vsel %vm438, %v409, 0
      %v476 = vsel %vm438, %v410, 0
      %v479 = vsel %vm438, %v411, 0
      %v482 = vsel %vm438, %v412, 0
      %v485 = vsel %vm438, %v413, 0
      %487 = vmatprep.subr.bf16.mxu0 0
      %488 = vmatpush1.bf16.msra.mxu0 %v430
      %489 = vmatprep.subr.bf16.mxu0 0
      %490 = vmatpush1.bf16.msra.mxu0 %v431
      %491 = vmatprep.subr.bf16.mxu0 0
      %492 = vmatpush1.bf16.msra.mxu0 %v432
      %493 = vmatprep.subr.bf16.mxu0 0
      %494 = vmatpush1.bf16.msra.mxu0 %v433
      %495 = vmatprep.subr.bf16.mxu0 0
      %496 = vmatpush1.bf16.msra.mxu0 0
      %497 = vmatprep.subr.bf16.mxu0 0
      %498 = vmatpush1.bf16.msra.mxu0 0
      %499 = vmatprep.subr.bf16.mxu0 0
      %500 = vmatpush1.bf16.msra.mxu0 0
      %501 = vmatprep.subr.bf16.mxu0 0
      %502 = vmatpush1.bf16.msra.mxu0 0
      %503 = vmatprep.subr.bf16.mxu0 0
      %504 = vmatpush1.bf16.msra.mxu0 0
      %505 = vmatprep.subr.bf16.mxu0 0
      %506 = vmatpush1.bf16.msra.mxu0 0
      %507 = vmatprep.subr.bf16.mxu0 0
      %508 = vmatpush1.bf16.msra.mxu0 0
      %509 = vmatprep.subr.bf16.mxu0 0
      %510 = vmatpush1.bf16.msra.mxu0 0
      %511 = vmatprep.subr.bf16.mxu0 0
      %512 = vmatpush1.bf16.msra.mxu0 0
      %513 = vmatprep.subr.bf16.mxu0 0
      %514 = vmatpush1.bf16.msra.mxu0 0
      %515 = vmatprep.subr.bf16.mxu0 0
      %516 = vmatpush1.bf16.msra.mxu0 0
      %517 = vmatprep.subr.bf16.mxu0 0
      %518 = vmatpush1.bf16.msra.mxu0 0
      %519 = vmatprep.mubr.bf16.mxu0 0
      %520 = vmatmul.mubr.bf16.gmra.mrb[0].mxu0 %v440
      %v521 = vpop.f32.mrb[0].mxu0
      %v522 = vadd.f32 0.0, %v521
      %v523 = vpop.f32.mrb[0].mxu0
      %v524 = vpop.f32.mrb[0].mxu0
      %v525 = vadd.f32 0.0, %v524
      %v526 = vpop.f32.mrb[0].mxu0
      %527 = vmatprep.mubr.bf16.mxu0 0
      %528 = vmatmul.mubr.bf16.gmra.mrb[0].mxu0 %v443
      %v529 = vpop.f32.mrb[0].mxu0
      %v530 = vadd.f32 0.0, %v529
      %v531 = vpop.f32.mrb[0].mxu0
      %v532 = vpop.f32.mrb[0].mxu0
      %v533 = vadd.f32 0.0, %v532
      %v534 = vpop.f32.mrb[0].mxu0
      %535 = vmatprep.mubr.bf16.mxu0 0
      %536 = vmatmul.mubr.bf16.gmra.mrb[0].mxu0 %v446
      %v537 = vpop.f32.mrb[0].mxu0
      %v538 = vadd.f32 0.0, %v537
      %v539 = vpop.f32.mrb[0].mxu0
      %v540 = vpop.f32.mrb[0].mxu0
      %v541 = vadd.f32 0.0, %v540
      %v542 = vpop.f32.mrb[0].mxu0
      %543 = vmatprep.mubr.bf16.mxu0 0
      %544 = vmatmul.mubr.bf16.gmra.mrb[0].mxu0 %v449
      %v545 = vpop.f32.mrb[0].mxu0
      %v546 = vadd.f32 0.0, %v545
      %v547 = vpop.f32.mrb[0].mxu0
      %v548 = vpop.f32.mrb[0].mxu0
      %v549 = vadd.f32 0.0, %v548
      %v550 = vpop.f32.mrb[0].mxu0
      %551 = vmatprep.mubr.bf16.mxu0 0
      %552 = vmatmul.mubr.bf16.gmra.mrb[0].mxu0 %v452
      %v553 = vpop.f32.mrb[0].mxu0
      %v554 = vadd.f32 0.0, %v553
      %v555 = vpop.f32.mrb[0].mxu0
      %v556 = vpop.f32.mrb[0].mxu0
      %v557 = vadd.f32 0.0, %v556
      %v558 = vpop.f32.mrb[0].mxu0
      %559 = vmatprep.mubr.bf16.mxu0 0
      %560 = vmatmul.mubr.bf16.gmra.mrb[0].mxu0 %v455
      %v561 = vpop.f32.mrb[0].mxu0
      %v562 = vadd.f32 0.0, %v561
      %v563 = vpop.f32.mrb[0].mxu0
      %v564 = vpop.f32.mrb[0].mxu0
      %v565 = vadd.f32 0.0, %v564
      %v566 = vpop.f32.mrb[0].mxu0
      %567 = vmatprep.mubr.bf16.mxu0 0
      %568 = vmatmul.mubr.bf16.gmra.mrb[0].mxu0 %v458
      %v569 = vpop.f32.mrb[0].mxu0
      %v570 = vadd.f32 0.0, %v569
      %v571 = vpop.f32.mrb[0].mxu0
      %v572 = vpop.f32.mrb[0].mxu0
      %v573 = vadd.f32 0.0, %v572
      %v574 = vpop.f32.mrb[0].mxu0
      %575 = vmatprep.mubr.bf16.mxu0 0
      %576 = vmatmul.mubr.bf16.gmra.mrb[0].mxu0 %v461
      %v577 = vpop.f32.mrb[0].mxu0
      %v578 = vadd.f32 0.0, %v577
      %v579 = vpop.f32.mrb[0].mxu0
      %v580 = vpop.f32.mrb[0].mxu0
      %v581 = vadd.f32 0.0, %v580
      %v582 = vpop.f32.mrb[0].mxu0
      %583 = vmatprep.mubr.bf16.mxu0 0
      %584 = vmatmul.mubr.bf16.gmra.mrb[0].mxu0 %v464
      %v585 = vpop.f32.mrb[0].mxu0
      %v586 = vadd.f32 0.0, %v585
      %v587 = vpop.f32.mrb[0].mxu0
      %v588 = vpop.f32.mrb[0].mxu0
      %v589 = vadd.f32 0.0, %v588
      %v590 = vpop.f32.mrb[0].mxu0
      %591 = vmatprep.mubr.bf16.mxu0 0
      %592 = vmatmul.mubr.bf16.gmra.mrb[0].mxu0 %v467
      %v593 = vpop.f32.mrb[0].mxu0
      %v594 = vadd.f32 0.0, %v593
      %v595 = vpop.f32.mrb[0].mxu0
      %v596 = vpop.f32.mrb[0].mxu0
      %v597 = vadd.f32 0.0, %v596
      %v598 = vpop.f32.mrb[0].mxu0
      %599 = vmatprep.mubr.bf16.mxu0 0
      %600 = vmatmul.mubr.bf16.gmra.mrb[0].mxu0 %v470
      %v601 = vpop.f32.mrb[0].mxu0
      %v602 = vadd.f32 0.0, %v601
      %v603 = vpop.f32.mrb[0].mxu0
      %v604 = vpop.f32.mrb[0].mxu0
      %v605 = vadd.f32 0.0, %v604
      %v606 = vpop.f32.mrb[0].mxu0
      %607 = vmatprep.mubr.bf16.mxu0 0
      %608 = vmatmul.mubr.bf16.gmra.mrb[0].mxu0 %v473
      %v609 = vpop.f32.mrb[0].mxu0
      %v610 = vadd.f32 0.0, %v609
      %v611 = vpop.f32.mrb[0].mxu0
      %v612 = vpop.f32.mrb[0].mxu0
      %v613 = vadd.f32 0.0, %v612
      %v614 = vpop.f32.mrb[0].mxu0
      %615 = vmatprep.mubr.bf16.mxu0 0
      %616 = vmatmul.mubr.bf16.gmra.mrb[0].mxu0 %v476
      %v617 = vpop.f32.mrb[0].mxu0
      %v618 = vadd.f32 0.0, %v617
      %v619 = vpop.f32.mrb[0].mxu0
      %v620 = vpop.f32.mrb[0].mxu0
      %v621 = vadd.f32 0.0, %v620
      %v622 = vpop.f32.mrb[0].mxu0
      %623 = vmatprep.mubr.bf16.mxu0 0
      %624 = vmatmul.mubr.bf16.gmra.mrb[0].mxu0 %v479
      %v625 = vpop.f32.mrb[0].mxu0
      %v626 = vadd.f32 0.0, %v625
      %v627 = vpop.f32.mrb[0].mxu0
      %v628 = vpop.f32.mrb[0].mxu0
      %v629 = vadd.f32 0.0, %v628
      %v630 = vpop.f32.mrb[0].mxu0
      %631 = vmatprep.mubr.bf16.mxu0 0
      %632 = vmatmul.mubr.bf16.gmra.mrb[0].mxu0 %v482
      %v633 = vpop.f32.mrb[0].mxu0
      %v634 = vadd.f32 0.0, %v633
      %v635 = vpop.f32.mrb[0].mxu0
      %v636 = vpop.f32.mrb[0].mxu0
      %v637 = vadd.f32 0.0, %v636
      %v638 = vpop.f32.mrb[0].mxu0
      %639 = vmatprep.mubr.bf16.mxu0 0
      %640 = vmatmul.mubr.bf16.gmra.mrb[0].mxu0 %v485
      %v641 = vpop.f32.mrb[0].mxu0
      %v642 = vadd.f32 0.0, %v641
      %v643 = vpop.f32.mrb[0].mxu0
      %v644 = vpop.f32.mrb[0].mxu0
      %v645 = vadd.f32 0.0, %v644
      %v646 = vpop.f32.mrb[0].mxu0
      %647 = vdwg.mxu0
      %v648 = vld [vmem:[%s274] sm:$0xf]
      %v649 = vld [vmem:[%s274 + $0x4] sm:$0xf]
      %v650 = vld [vmem:[%s274 + $0x8] sm:$0xf]
      %v651 = vld [vmem:[%s274 + $0xc] sm:$0xf]
      %v652 = vld [vmem:[%s274 + $0x10] sm:$0xf]
      %v653 = vld [vmem:[%s274 + $0x14] sm:$0xf]
      %v654 = vld [vmem:[%s274 + $0x18] sm:$0xf]
      %v655 = vld [vmem:[%s274 + $0x1c] sm:$0xf]
      %v656 = vld [vmem:[%s274 + $0x20] sm:$0xf]
      %v657 = vld [vmem:[%s274 + $0x24] sm:$0xf]
      %v658 = vld [vmem:[%s274 + $0x28] sm:$0xf]
      %v659 = vld [vmem:[%s274 + $0x2c] sm:$0xf]
      %v660 = vld [vmem:[%s274 + $0x30] sm:$0xf]
      %v661 = vld [vmem:[%s274 + $0x34] sm:$0xf]
      %v662 = vld [vmem:[%s274 + $0x38] sm:$0xf]
      %v663 = vld [vmem:[%s274 + $0x3c] sm:$0xf]
      %v664 = vld [vmem:[%s274 + $0x40] sm:$0xf]
      %v665 = vld [vmem:[%s274 + $0x44] sm:$0xf]
      %v666 = vld [vmem:[%s274 + $0x48] sm:$0xf]
      %v667 = vld [vmem:[%s274 + $0x4c] sm:$0xf]
      %v668 = vld [vmem:[%s274 + $0x50] sm:$0xf]
      %v669 = vld [vmem:[%s274 + $0x54] sm:$0xf]
      %v670 = vld [vmem:[%s274 + $0x58] sm:$0xf]
      %v671 = vld [vmem:[%s274 + $0x5c] sm:$0xf]
      %v672 = vld [vmem:[%s274 + $0x60] sm:$0xf]
      %v673 = vld [vmem:[%s274 + $0x64] sm:$0xf]
      %v674 = vld [vmem:[%s274 + $0x68] sm:$0xf]
      %v675 = vld [vmem:[%s274 + $0x6c] sm:$0xf]
      %v676 = vld [vmem:[%s274 + $0x70] sm:$0xf]
      %v677 = vld [vmem:[%s274 + $0x74] sm:$0xf]
      %v678 = vld [vmem:[%s274 + $0x78] sm:$0xf]
      %v679 = vld [vmem:[%s274 + $0x7c] sm:$0xf]
      %s680 = scalar_lea.vmem %s4, 32
      %v681 = vld [vmem:[%s680] sm:$0xf]
      %v682 = vld [vmem:[%s680 + $0x4] sm:$0xf]
      %v683 = vld [vmem:[%s680 + $0x8] sm:$0xf]
      %v684 = vld [vmem:[%s680 + $0xc] sm:$0xf]
      %v685 = vld [vmem:[%s680 + $0x10] sm:$0xf]
      %v686 = vld [vmem:[%s680 + $0x14] sm:$0xf]
      %v687 = vld [vmem:[%s680 + $0x18] sm:$0xf]
      %v688 = vld [vmem:[%s680 + $0x1c] sm:$0xf]
      %v721 = vunpack.c.l.b16 %v648
      %v722 = vunpack.c.l.b16 %v649
      %v723 = vunpack.c.l.b16 %v650
      %v724 = vunpack.c.l.b16 %v651
      %v725 = vunpack.c.l.b16 %v652
      %v726 = vunpack.c.l.b16 %v653
      %v727 = vunpack.c.l.b16 %v654
      %v728 = vunpack.c.l.b16 %v655
      %v729 = vunpack.c.l.b16 %v656
      %v730 = vunpack.c.l.b16 %v657
      %v731 = vunpack.c.l.b16 %v658
      %v732 = vunpack.c.l.b16 %v659
      %v733 = vunpack.c.l.b16 %v660
      %v734 = vunpack.c.l.b16 %v661
      %v735 = vunpack.c.l.b16 %v662
      %v736 = vunpack.c.l.b16 %v663
      %v737 = vunpack.c.l.b16 %v664
      %v738 = vunpack.c.l.b16 %v665
      %v739 = vunpack.c.l.b16 %v666
      %v740 = vunpack.c.l.b16 %v667
      %v741 = vunpack.c.l.b16 %v668
      %v742 = vunpack.c.l.b16 %v669
      %v743 = vunpack.c.l.b16 %v670
      %v744 = vunpack.c.l.b16 %v671
      %v745 = vunpack.c.l.b16 %v672
      %v746 = vunpack.c.l.b16 %v673
      %v747 = vunpack.c.l.b16 %v674
      %v748 = vunpack.c.l.b16 %v675
      %v749 = vunpack.c.l.b16 %v676
      %v750 = vunpack.c.l.b16 %v677
      %v751 = vunpack.c.l.b16 %v678
      %v752 = vunpack.c.l.b16 %v679
      %v753 = vpack.c.b16 %v722, %v721
      %v754 = vpack.c.b16 %v724, %v723
      %v755 = vpack.c.b16 %v726, %v725
      %v756 = vpack.c.b16 %v728, %v727
      %v757 = vpack.c.b16 %v730, %v729
      %v758 = vpack.c.b16 %v732, %v731
      %v759 = vpack.c.b16 %v734, %v733
      %v760 = vpack.c.b16 %v736, %v735
      %v761 = vpack.c.b16 %v738, %v737
      %v762 = vpack.c.b16 %v740, %v739
      %v763 = vpack.c.b16 %v742, %v741
      %v764 = vpack.c.b16 %v744, %v743
      %v765 = vpack.c.b16 %v746, %v745
      %v766 = vpack.c.b16 %v748, %v747
      %v767 = vpack.c.b16 %v750, %v749
      %v768 = vpack.c.b16 %v752, %v751
      %v777 = vunpack.c.l.b16 %v681
      %v778 = vunpack.c.l.b16 %v682
      %v779 = vunpack.c.l.b16 %v683
      %v780 = vunpack.c.l.b16 %v684
      %v781 = vunpack.c.l.b16 %v685
      %v782 = vunpack.c.l.b16 %v686
      %v783 = vunpack.c.l.b16 %v687
      %v784 = vunpack.c.l.b16 %v688
      %v785 = vpack.c.b16 %v778, %v777
      %v786 = vpack.c.b16 %v780, %v779
      %v787 = vpack.c.b16 %v782, %v781
      %v788 = vpack.c.b16 %v784, %v783
      %v794 = vsel %vm438, %v753, 0
      %v797 = vsel %vm438, %v754, 0
      %v800 = vsel %vm438, %v755, 0
      %v803 = vsel %vm438, %v756, 0
      %v806 = vsel %vm438, %v757, 0
      %v809 = vsel %vm438, %v758, 0
      %v812 = vsel %vm438, %v759, 0
      %v815 = vsel %vm438, %v760, 0
      %v818 = vsel %vm438, %v761, 0
      %v821 = vsel %vm438, %v762, 0
      %v824 = vsel %vm438, %v763, 0
      %v827 = vsel %vm438, %v764, 0
      %v830 = vsel %vm438, %v765, 0
      %v833 = vsel %vm438, %v766, 0
      %v836 = vsel %vm438, %v767, 0
      %v839 = vsel %vm438, %v768, 0
      %841 = vmatprep.subr.bf16.mxu0 0
      %842 = vmatpush1.bf16.msra.mxu0 %v785
      %843 = vmatprep.subr.bf16.mxu0 0
      %844 = vmatpush1.bf16.msra.mxu0 %v786
      %845 = vmatprep.subr.bf16.mxu0 0
      %846 = vmatpush1.bf16.msra.mxu0 %v787
      %847 = vmatprep.subr.bf16.mxu0 0
      %848 = vmatpush1.bf16.msra.mxu0 %v788
      %849 = vmatprep.subr.bf16.mxu0 0
      %850 = vmatpush1.bf16.msra.mxu0 0
      %851 = vmatprep.subr.bf16.mxu0 0
      %852 = vmatpush1.bf16.msra.mxu0 0
      %853 = vmatprep.subr.bf16.mxu0 0
      %854 = vmatpush1.bf16.msra.mxu0 0
      %855 = vmatprep.subr.bf16.mxu0 0
      %856 = vmatpush1.bf16.msra.mxu0 0
      %857 = vmatprep.subr.bf16.mxu0 0
      %858 = vmatpush1.bf16.msra.mxu0 0
      %859 = vmatprep.subr.bf16.mxu0 0
      %860 = vmatpush1.bf16.msra.mxu0 0
      %861 = vmatprep.subr.bf16.mxu0 0
      %862 = vmatpush1.bf16.msra.mxu0 0
      %863 = vmatprep.subr.bf16.mxu0 0
      %864 = vmatpush1.bf16.msra.mxu0 0
      %865 = vmatprep.subr.bf16.mxu0 0
      %866 = vmatpush1.bf16.msra.mxu0 0
      %867 = vmatprep.subr.bf16.mxu0 0
      %868 = vmatpush1.bf16.msra.mxu0 0
      %869 = vmatprep.subr.bf16.mxu0 0
      %870 = vmatpush1.bf16.msra.mxu0 0
      %871 = vmatprep.subr.bf16.mxu0 0
      %872 = vmatpush1.bf16.msra.mxu0 0
      %873 = vmatprep.mubr.bf16.mxu0 0
      %874 = vmatmul.mubr.bf16.gmra.mrb[0].mxu0 %v794
      %v875 = vpop.f32.mrb[0].mxu0
      %v876 = vadd.f32 0.0, %v875
      %v877 = vpop.f32.mrb[0].mxu0
      %v878 = vpop.f32.mrb[0].mxu0
      %v879 = vadd.f32 0.0, %v878
      %v880 = vpop.f32.mrb[0].mxu0
      %881 = vmatprep.mubr.bf16.mxu0 0
      %882 = vmatmul.mubr.bf16.gmra.mrb[0].mxu0 %v797
      %v883 = vpop.f32.mrb[0].mxu0
      %v884 = vadd.f32 0.0, %v883
      %v885 = vpop.f32.mrb[0].mxu0
      %v886 = vpop.f32.mrb[0].mxu0
      %v887 = vadd.f32 0.0, %v886
      %v888 = vpop.f32.mrb[0].mxu0
      %889 = vmatprep.mubr.bf16.mxu0 0
      %890 = vmatmul.mubr.bf16.gmra.mrb[0].mxu0 %v800
      %v891 = vpop.f32.mrb[0].mxu0
      %v892 = vadd.f32 0.0, %v891
      %v893 = vpop.f32.mrb[0].mxu0
      %v894 = vpop.f32.mrb[0].mxu0
      %v895 = vadd.f32 0.0, %v894
      %v896 = vpop.f32.mrb[0].mxu0
      %897 = vmatprep.mubr.bf16.mxu0 0
      %898 = vmatmul.mubr.bf16.gmra.mrb[0].mxu0 %v803
      %v899 = vpop.f32.mrb[0].mxu0
      %v900 = vadd.f32 0.0, %v899
      %v901 = vpop.f32.mrb[0].mxu0
      %v902 = vpop.f32.mrb[0].mxu0
      %v903 = vadd.f32 0.0, %v902
      %v904 = vpop.f32.mrb[0].mxu0
      %905 = vmatprep.mubr.bf16.mxu0 0
      %906 = vmatmul.mubr.bf16.gmra.mrb[0].mxu0 %v806
      %v907 = vpop.f32.mrb[0].mxu0
      %v908 = vadd.f32 0.0, %v907
      %v909 = vpop.f32.mrb[0].mxu0
      %v910 = vpop.f32.mrb[0].mxu0
      %v911 = vadd.f32 0.0, %v910
      %v912 = vpop.f32.mrb[0].mxu0
      %913 = vmatprep.mubr.bf16.mxu0 0
      %914 = vmatmul.mubr.bf16.gmra.mrb[0].mxu0 %v809
      %v915 = vpop.f32.mrb[0].mxu0
      %v916 = vadd.f32 0.0, %v915
      %v917 = vpop.f32.mrb[0].mxu0
      %v918 = vpop.f32.mrb[0].mxu0
      %v919 = vadd.f32 0.0, %v918
      %v920 = vpop.f32.mrb[0].mxu0
      %921 = vmatprep.mubr.bf16.mxu0 0
      %922 = vmatmul.mubr.bf16.gmra.mrb[0].mxu0 %v812
      %v923 = vpop.f32.mrb[0].mxu0
      %v924 = vadd.f32 0.0, %v923
      %v925 = vpop.f32.mrb[0].mxu0
      %v926 = vpop.f32.mrb[0].mxu0
      %v927 = vadd.f32 0.0, %v926
      %v928 = vpop.f32.mrb[0].mxu0
      %929 = vmatprep.mubr.bf16.mxu0 0
      %930 = vmatmul.mubr.bf16.gmra.mrb[0].mxu0 %v815
      %v931 = vpop.f32.mrb[0].mxu0
      %v932 = vadd.f32 0.0, %v931
      %v933 = vpop.f32.mrb[0].mxu0
      %v934 = vpop.f32.mrb[0].mxu0
      %v935 = vadd.f32 0.0, %v934
      %v936 = vpop.f32.mrb[0].mxu0
      %937 = vmatprep.mubr.bf16.mxu0 0
      %938 = vmatmul.mubr.bf16.gmra.mrb[0].mxu0 %v818
      %v939 = vpop.f32.mrb[0].mxu0
      %v940 = vadd.f32 0.0, %v939
      %v941 = vpop.f32.mrb[0].mxu0
      %v942 = vpop.f32.mrb[0].mxu0
      %v943 = vadd.f32 0.0, %v942
      %v944 = vpop.f32.mrb[0].mxu0
      %945 = vmatprep.mubr.bf16.mxu0 0
      %946 = vmatmul.mubr.bf16.gmra.mrb[0].mxu0 %v821
      %v947 = vpop.f32.mrb[0].mxu0
      %v948 = vadd.f32 0.0, %v947
      %v949 = vpop.f32.mrb[0].mxu0
      %v950 = vpop.f32.mrb[0].mxu0
      %v951 = vadd.f32 0.0, %v950
      %v952 = vpop.f32.mrb[0].mxu0
      %953 = vmatprep.mubr.bf16.mxu0 0
      %954 = vmatmul.mubr.bf16.gmra.mrb[0].mxu0 %v824
      %v955 = vpop.f32.mrb[0].mxu0
      %v956 = vadd.f32 0.0, %v955
      %v957 = vpop.f32.mrb[0].mxu0
      %v958 = vpop.f32.mrb[0].mxu0
      %v959 = vadd.f32 0.0, %v958
      %v960 = vpop.f32.mrb[0].mxu0
      %961 = vmatprep.mubr.bf16.mxu0 0
      %962 = vmatmul.mubr.bf16.gmra.mrb[0].mxu0 %v827
      %v963 = vpop.f32.mrb[0].mxu0
      %v964 = vadd.f32 0.0, %v963
      %v965 = vpop.f32.mrb[0].mxu0
      %v966 = vpop.f32.mrb[0].mxu0
      %v967 = vadd.f32 0.0, %v966
      %v968 = vpop.f32.mrb[0].mxu0
      %969 = vmatprep.mubr.bf16.mxu0 0
      %970 = vmatmul.mubr.bf16.gmra.mrb[0].mxu0 %v830
      %v971 = vpop.f32.mrb[0].mxu0
      %v972 = vadd.f32 0.0, %v971
      %v973 = vpop.f32.mrb[0].mxu0
      %v974 = vpop.f32.mrb[0].mxu0
      %v975 = vadd.f32 0.0, %v974
      %v976 = vpop.f32.mrb[0].mxu0
      %977 = vmatprep.mubr.bf16.mxu0 0
      %978 = vmatmul.mubr.bf16.gmra.mrb[0].mxu0 %v833
      %v979 = vpop.f32.mrb[0].mxu0
      %v980 = vadd.f32 0.0, %v979
      %v981 = vpop.f32.mrb[0].mxu0
      %v982 = vpop.f32.mrb[0].mxu0
      %v983 = vadd.f32 0.0, %v982
      %v984 = vpop.f32.mrb[0].mxu0
      %985 = vmatprep.mubr.bf16.mxu0 0
      %986 = vmatmul.mubr.bf16.gmra.mrb[0].mxu0 %v836
      %v987 = vpop.f32.mrb[0].mxu0
      %v988 = vadd.f32 0.0, %v987
      %v989 = vpop.f32.mrb[0].mxu0
      %v990 = vpop.f32.mrb[0].mxu0
      %v991 = vadd.f32 0.0, %v990
      %v992 = vpop.f32.mrb[0].mxu0
      %993 = vmatprep.mubr.bf16.mxu0 0
      %994 = vmatmul.mubr.bf16.gmra.mrb[0].mxu0 %v839
      %v995 = vpop.f32.mrb[0].mxu0
      %v996 = vadd.f32 0.0, %v995
      %v997 = vpop.f32.mrb[0].mxu0
      %v998 = vpop.f32.mrb[0].mxu0
      %v999 = vadd.f32 0.0, %v998
      %v1000 = vpop.f32.mrb[0].mxu0
      %1001 = vdwg.mxu0
      %v1002 = vld [vmem:[%s280] sm:$0xf]
      %v1003 = vld [vmem:[%s280 + $0x4] sm:$0xf]
      %v1004 = vld [vmem:[%s280 + $0x8] sm:$0xf]
      %v1005 = vld [vmem:[%s280 + $0xc] sm:$0xf]
      %v1006 = vld [vmem:[%s280 + $0x10] sm:$0xf]
      %v1007 = vld [vmem:[%s280 + $0x14] sm:$0xf]
      %v1008 = vld [vmem:[%s280 + $0x18] sm:$0xf]
      %v1009 = vld [vmem:[%s280 + $0x1c] sm:$0xf]
      %v1010 = vld [vmem:[%s280 + $0x20] sm:$0xf]
      %v1011 = vld [vmem:[%s280 + $0x24] sm:$0xf]
      %v1012 = vld [vmem:[%s280 + $0x28] sm:$0xf]
      %v1013 = vld [vmem:[%s280 + $0x2c] sm:$0xf]
      %v1014 = vld [vmem:[%s280 + $0x30] sm:$0xf]
      %v1015 = vld [vmem:[%s280 + $0x34] sm:$0xf]
      %v1016 = vld [vmem:[%s280 + $0x38] sm:$0xf]
      %v1017 = vld [vmem:[%s280 + $0x3c] sm:$0xf]
      %v1018 = vld [vmem:[%s280 + $0x40] sm:$0xf]
      %v1019 = vld [vmem:[%s280 + $0x44] sm:$0xf]
      %v1020 = vld [vmem:[%s280 + $0x48] sm:$0xf]
      %v1021 = vld [vmem:[%s280 + $0x4c] sm:$0xf]
      %v1022 = vld [vmem:[%s280 + $0x50] sm:$0xf]
      %v1023 = vld [vmem:[%s280 + $0x54] sm:$0xf]
      %v1024 = vld [vmem:[%s280 + $0x58] sm:$0xf]
      %v1025 = vld [vmem:[%s280 + $0x5c] sm:$0xf]
      %v1026 = vld [vmem:[%s280 + $0x60] sm:$0xf]
      %v1027 = vld [vmem:[%s280 + $0x64] sm:$0xf]
      %v1028 = vld [vmem:[%s280 + $0x68] sm:$0xf]
      %v1029 = vld [vmem:[%s280 + $0x6c] sm:$0xf]
      %v1030 = vld [vmem:[%s280 + $0x70] sm:$0xf]
      %v1031 = vld [vmem:[%s280 + $0x74] sm:$0xf]
      %v1032 = vld [vmem:[%s280 + $0x78] sm:$0xf]
      %v1033 = vld [vmem:[%s280 + $0x7c] sm:$0xf]
      %s1034 = scalar_lea.vmem %s4, 64
      %v1035 = vld [vmem:[%s1034] sm:$0xf]
      %v1036 = vld [vmem:[%s1034 + $0x4] sm:$0xf]
      %v1037 = vld [vmem:[%s1034 + $0x8] sm:$0xf]
      %v1038 = vld [vmem:[%s1034 + $0xc] sm:$0xf]
      %v1039 = vld [vmem:[%s1034 + $0x10] sm:$0xf]
      %v1040 = vld [vmem:[%s1034 + $0x14] sm:$0xf]
      %v1041 = vld [vmem:[%s1034 + $0x18] sm:$0xf]
      %v1042 = vld [vmem:[%s1034 + $0x1c] sm:$0xf]
      %v1075 = vunpack.c.l.b16 %v1002
      %v1076 = vunpack.c.l.b16 %v1003
      %v1077 = vunpack.c.l.b16 %v1004
      %v1078 = vunpack.c.l.b16 %v1005
      %v1079 = vunpack.c.l.b16 %v1006
      %v1080 = vunpack.c.l.b16 %v1007
      %v1081 = vunpack.c.l.b16 %v1008
      %v1082 = vunpack.c.l.b16 %v1009
      %v1083 = vunpack.c.l.b16 %v1010
      %v1084 = vunpack.c.l.b16 %v1011
      %v1085 = vunpack.c.l.b16 %v1012
      %v1086 = vunpack.c.l.b16 %v1013
      %v1087 = vunpack.c.l.b16 %v1014
      %v1088 = vunpack.c.l.b16 %v1015
      %v1089 = vunpack.c.l.b16 %v1016
      %v1090 = vunpack.c.l.b16 %v1017
      %v1091 = vunpack.c.l.b16 %v1018
      %v1092 = vunpack.c.l.b16 %v1019
      %v1093 = vunpack.c.l.b16 %v1020
      %v1094 = vunpack.c.l.b16 %v1021
      %v1095 = vunpack.c.l.b16 %v1022
      %v1096 = vunpack.c.l.b16 %v1023
      %v1097 = vunpack.c.l.b16 %v1024
      %v1098 = vunpack.c.l.b16 %v1025
      %v1099 = vunpack.c.l.b16 %v1026
      %v1100 = vunpack.c.l.b16 %v1027
      %v1101 = vunpack.c.l.b16 %v1028
      %v1102 = vunpack.c.l.b16 %v1029
      %v1103 = vunpack.c.l.b16 %v1030
      %v1104 = vunpack.c.l.b16 %v1031
      %v1105 = vunpack.c.l.b16 %v1032
      %v1106 = vunpack.c.l.b16 %v1033
      %v1107 = vpack.c.b16 %v1076, %v1075
      %v1108 = vpack.c.b16 %v1078, %v1077
      %v1109 = vpack.c.b16 %v1080, %v1079
      %v1110 = vpack.c.b16 %v1082, %v1081
      %v1111 = vpack.c.b16 %v1084, %v1083
      %v1112 = vpack.c.b16 %v1086, %v1085
      %v1113 = vpack.c.b16 %v1088, %v1087
      %v1114 = vpack.c.b16 %v1090, %v1089
      %v1115 = vpack.c.b16 %v1092, %v1091
      %v1116 = vpack.c.b16 %v1094, %v1093
      %v1117 = vpack.c.b16 %v1096, %v1095
      %v1118 = vpack.c.b16 %v1098, %v1097
      %v1119 = vpack.c.b16 %v1100, %v1099
      %v1120 = vpack.c.b16 %v1102, %v1101
      %v1121 = vpack.c.b16 %v1104, %v1103
      %v1122 = vpack.c.b16 %v1106, %v1105
      %v1131 = vunpack.c.l.b16 %v1035
      %v1132 = vunpack.c.l.b16 %v1036
      %v1133 = vunpack.c.l.b16 %v1037
      %v1134 = vunpack.c.l.b16 %v1038
      %v1135 = vunpack.c.l.b16 %v1039
      %v1136 = vunpack.c.l.b16 %v1040
      %v1137 = vunpack.c.l.b16 %v1041
      %v1138 = vunpack.c.l.b16 %v1042
      %v1139 = vpack.c.b16 %v1132, %v1131
      %v1140 = vpack.c.b16 %v1134, %v1133
      %v1141 = vpack.c.b16 %v1136, %v1135
      %v1142 = vpack.c.b16 %v1138, %v1137
      %v1148 = vsel %vm438, %v1107, 0
      %v1151 = vsel %vm438, %v1108, 0
      %v1154 = vsel %vm438, %v1109, 0
      %v1157 = vsel %vm438, %v1110, 0
      %v1160 = vsel %vm438, %v1111, 0
      %v1163 = vsel %vm438, %v1112, 0
      %v1166 = vsel %vm438, %v1113, 0
      %v1169 = vsel %vm438, %v1114, 0
      %v1172 = vsel %vm438, %v1115, 0
      %v1175 = vsel %vm438, %v1116, 0
      %v1178 = vsel %vm438, %v1117, 0
      %v1181 = vsel %vm438, %v1118, 0
      %v1184 = vsel %vm438, %v1119, 0
      %v1187 = vsel %vm438, %v1120, 0
      %v1190 = vsel %vm438, %v1121, 0
      %v1193 = vsel %vm438, %v1122, 0
      %1195 = vmatprep.subr.bf16.mxu0 0
      %1196 = vmatpush1.bf16.msra.mxu0 %v1139
      %1197 = vmatprep.subr.bf16.mxu0 0
      %1198 = vmatpush1.bf16.msra.mxu0 %v1140
      %1199 = vmatprep.subr.bf16.mxu0 0
      %1200 = vmatpush1.bf16.msra.mxu0 %v1141
      %1201 = vmatprep.subr.bf16.mxu0 0
      %1202 = vmatpush1.bf16.msra.mxu0 %v1142
      %1203 = vmatprep.subr.bf16.mxu0 0
      %1204 = vmatpush1.bf16.msra.mxu0 0
      %1205 = vmatprep.subr.bf16.mxu0 0
      %1206 = vmatpush1.bf16.msra.mxu0 0
      %1207 = vmatprep.subr.bf16.mxu0 0
      %1208 = vmatpush1.bf16.msra.mxu0 0
      %1209 = vmatprep.subr.bf16.mxu0 0
      %1210 = vmatpush1.bf16.msra.mxu0 0
      %1211 = vmatprep.subr.bf16.mxu0 0
      %1212 = vmatpush1.bf16.msra.mxu0 0
      %1213 = vmatprep.subr.bf16.mxu0 0
      %1214 = vmatpush1.bf16.msra.mxu0 0
      %1215 = vmatprep.subr.bf16.mxu0 0
      %1216 = vmatpush1.bf16.msra.mxu0 0
      %1217 = vmatprep.subr.bf16.mxu0 0
      %1218 = vmatpush1.bf16.msra.mxu0 0
      %1219 = vmatprep.subr.bf16.mxu0 0
      %1220 = vmatpush1.bf16.msra.mxu0 0
      %1221 = vmatprep.subr.bf16.mxu0 0
      %1222 = vmatpush1.bf16.msra.mxu0 0
      %1223 = vmatprep.subr.bf16.mxu0 0
      %1224 = vmatpush1.bf16.msra.mxu0 0
      %1225 = vmatprep.subr.bf16.mxu0 0
      %1226 = vmatpush1.bf16.msra.mxu0 0
      %1227 = vmatprep.mubr.bf16.mxu0 0
      %1228 = vmatmul.mubr.bf16.gmra.mrb[0].mxu0 %v1148
      %v1229 = vpop.f32.mrb[0].mxu0
      %v1230 = vadd.f32 0.0, %v1229
      %v1231 = vpop.f32.mrb[0].mxu0
      %v1232 = vpop.f32.mrb[0].mxu0
      %v1233 = vadd.f32 0.0, %v1232
      %v1234 = vpop.f32.mrb[0].mxu0
      %1235 = vmatprep.mubr.bf16.mxu0 0
      %1236 = vmatmul.mubr.bf16.gmra.mrb[0].mxu0 %v1151
      %v1237 = vpop.f32.mrb[0].mxu0
      %v1238 = vadd.f32 0.0, %v1237
      %v1239 = vpop.f32.mrb[0].mxu0
      %v1240 = vpop.f32.mrb[0].mxu0
      %v1241 = vadd.f32 0.0, %v1240
      %v1242 = vpop.f32.mrb[0].mxu0
      %1243 = vmatprep.mubr.bf16.mxu0 0
      %1244 = vmatmul.mubr.bf16.gmra.mrb[0].mxu0 %v1154
      %v1245 = vpop.f32.mrb[0].mxu0
      %v1246 = vadd.f32 0.0, %v1245
      %v1247 = vpop.f32.mrb[0].mxu0
      %v1248 = vpop.f32.mrb[0].mxu0
      %v1249 = vadd.f32 0.0, %v1248
      %v1250 = vpop.f32.mrb[0].mxu0
      %1251 = vmatprep.mubr.bf16.mxu0 0
      %1252 = vmatmul.mubr.bf16.gmra.mrb[0].mxu0 %v1157
      %v1253 = vpop.f32.mrb[0].mxu0
      %v1254 = vadd.f32 0.0, %v1253
      %v1255 = vpop.f32.mrb[0].mxu0
      %v1256 = vpop.f32.mrb[0].mxu0
      %v1257 = vadd.f32 0.0, %v1256
      %v1258 = vpop.f32.mrb[0].mxu0
      %1259 = vmatprep.mubr.bf16.mxu0 0
      %1260 = vmatmul.mubr.bf16.gmra.mrb[0].mxu0 %v1160
      %v1261 = vpop.f32.mrb[0].mxu0
      %v1262 = vadd.f32 0.0, %v1261
      %v1263 = vpop.f32.mrb[0].mxu0
      %v1264 = vpop.f32.mrb[0].mxu0
      %v1265 = vadd.f32 0.0, %v1264
      %v1266 = vpop.f32.mrb[0].mxu0
      %1267 = vmatprep.mubr.bf16.mxu0 0
      %1268 = vmatmul.mubr.bf16.gmra.mrb[0].mxu0 %v1163
      %v1269 = vpop.f32.mrb[0].mxu0
      %v1270 = vadd.f32 0.0, %v1269
      %v1271 = vpop.f32.mrb[0].mxu0
      %v1272 = vpop.f32.mrb[0].mxu0
      %v1273 = vadd.f32 0.0, %v1272
      %v1274 = vpop.f32.mrb[0].mxu0
      %1275 = vmatprep.mubr.bf16.mxu0 0
      %1276 = vmatmul.mubr.bf16.gmra.mrb[0].mxu0 %v1166
      %v1277 = vpop.f32.mrb[0].mxu0
      %v1278 = vadd.f32 0.0, %v1277
      %v1279 = vpop.f32.mrb[0].mxu0
      %v1280 = vpop.f32.mrb[0].mxu0
      %v1281 = vadd.f32 0.0, %v1280
      %v1282 = vpop.f32.mrb[0].mxu0
      %1283 = vmatprep.mubr.bf16.mxu0 0
      %1284 = vmatmul.mubr.bf16.gmra.mrb[0].mxu0 %v1169
      %v1285 = vpop.f32.mrb[0].mxu0
      %v1286 = vadd.f32 0.0, %v1285
      %v1287 = vpop.f32.mrb[0].mxu0
      %v1288 = vpop.f32.mrb[0].mxu0
      %v1289 = vadd.f32 0.0, %v1288
      %v1290 = vpop.f32.mrb[0].mxu0
      %1291 = vmatprep.mubr.bf16.mxu0 0
      %1292 = vmatmul.mubr.bf16.gmra.mrb[0].mxu0 %v1172
      %v1293 = vpop.f32.mrb[0].mxu0
      %v1294 = vadd.f32 0.0, %v1293
      %v1295 = vpop.f32.mrb[0].mxu0
      %v1296 = vpop.f32.mrb[0].mxu0
      %v1297 = vadd.f32 0.0, %v1296
      %v1298 = vpop.f32.mrb[0].mxu0
      %1299 = vmatprep.mubr.bf16.mxu0 0
      %1300 = vmatmul.mubr.bf16.gmra.mrb[0].mxu0 %v1175
      %v1301 = vpop.f32.mrb[0].mxu0
      %v1302 = vadd.f32 0.0, %v1301
      %v1303 = vpop.f32.mrb[0].mxu0
      %v1304 = vpop.f32.mrb[0].mxu0
      %v1305 = vadd.f32 0.0, %v1304
      %v1306 = vpop.f32.mrb[0].mxu0
      %1307 = vmatprep.mubr.bf16.mxu0 0
      %1308 = vmatmul.mubr.bf16.gmra.mrb[0].mxu0 %v1178
      %v1309 = vpop.f32.mrb[0].mxu0
      %v1310 = vadd.f32 0.0, %v1309
      %v1311 = vpop.f32.mrb[0].mxu0
      %v1312 = vpop.f32.mrb[0].mxu0
      %v1313 = vadd.f32 0.0, %v1312
      %v1314 = vpop.f32.mrb[0].mxu0
      %1315 = vmatprep.mubr.bf16.mxu0 0
      %1316 = vmatmul.mubr.bf16.gmra.mrb[0].mxu0 %v1181
      %v1317 = vpop.f32.mrb[0].mxu0
      %v1318 = vadd.f32 0.0, %v1317
      %v1319 = vpop.f32.mrb[0].mxu0
      %v1320 = vpop.f32.mrb[0].mxu0
      %v1321 = vadd.f32 0.0, %v1320
      %v1322 = vpop.f32.mrb[0].mxu0
      %1323 = vmatprep.mubr.bf16.mxu0 0
      %1324 = vmatmul.mubr.bf16.gmra.mrb[0].mxu0 %v1184
      %v1325 = vpop.f32.mrb[0].mxu0
      %v1326 = vadd.f32 0.0, %v1325
      %v1327 = vpop.f32.mrb[0].mxu0
      %v1328 = vpop.f32.mrb[0].mxu0
      %v1329 = vadd.f32 0.0, %v1328
      %v1330 = vpop.f32.mrb[0].mxu0
      %1331 = vmatprep.mubr.bf16.mxu0 0
      %1332 = vmatmul.mubr.bf16.gmra.mrb[0].mxu0 %v1187
      %v1333 = vpop.f32.mrb[0].mxu0
      %v1334 = vadd.f32 0.0, %v1333
      %v1335 = vpop.f32.mrb[0].mxu0
      %v1336 = vpop.f32.mrb[0].mxu0
      %v1337 = vadd.f32 0.0, %v1336
      %v1338 = vpop.f32.mrb[0].mxu0
      %1339 = vmatprep.mubr.bf16.mxu0 0
      %1340 = vmatmul.mubr.bf16.gmra.mrb[0].mxu0 %v1190
      %v1341 = vpop.f32.mrb[0].mxu0
      %v1342 = vadd.f32 0.0, %v1341
      %v1343 = vpop.f32.mrb[0].mxu0
      %v1344 = vpop.f32.mrb[0].mxu0
      %v1345 = vadd.f32 0.0, %v1344
      %v1346 = vpop.f32.mrb[0].mxu0
      %1347 = vmatprep.mubr.bf16.mxu0 0
      %1348 = vmatmul.mubr.bf16.gmra.mrb[0].mxu0 %v1193
      %v1349 = vpop.f32.mrb[0].mxu0
      %v1350 = vadd.f32 0.0, %v1349
      %v1351 = vpop.f32.mrb[0].mxu0
      %v1352 = vpop.f32.mrb[0].mxu0
      %v1353 = vadd.f32 0.0, %v1352
      %v1354 = vpop.f32.mrb[0].mxu0
      %1355 = vdwg.mxu0
      %v1356 = vld [vmem:[%s286] sm:$0xf]
      %v1357 = vld [vmem:[%s286 + $0x4] sm:$0xf]
      %v1358 = vld [vmem:[%s286 + $0x8] sm:$0xf]
      %v1359 = vld [vmem:[%s286 + $0xc] sm:$0xf]
      %v1360 = vld [vmem:[%s286 + $0x10] sm:$0xf]
      %v1361 = vld [vmem:[%s286 + $0x14] sm:$0xf]
      %v1362 = vld [vmem:[%s286 + $0x18] sm:$0xf]
      %v1363 = vld [vmem:[%s286 + $0x1c] sm:$0xf]
      %v1364 = vld [vmem:[%s286 + $0x20] sm:$0xf]
      %v1365 = vld [vmem:[%s286 + $0x24] sm:$0xf]
      %v1366 = vld [vmem:[%s286 + $0x28] sm:$0xf]
      %v1367 = vld [vmem:[%s286 + $0x2c] sm:$0xf]
      %v1368 = vld [vmem:[%s286 + $0x30] sm:$0xf]
      %v1369 = vld [vmem:[%s286 + $0x34] sm:$0xf]
      %v1370 = vld [vmem:[%s286 + $0x38] sm:$0xf]
      %v1371 = vld [vmem:[%s286 + $0x3c] sm:$0xf]
      %v1372 = vld [vmem:[%s286 + $0x40] sm:$0xf]
      %v1373 = vld [vmem:[%s286 + $0x44] sm:$0xf]
      %v1374 = vld [vmem:[%s286 + $0x48] sm:$0xf]
      %v1375 = vld [vmem:[%s286 + $0x4c] sm:$0xf]
      %v1376 = vld [vmem:[%s286 + $0x50] sm:$0xf]
      %v1377 = vld [vmem:[%s286 + $0x54] sm:$0xf]
      %v1378 = vld [vmem:[%s286 + $0x58] sm:$0xf]
      %v1379 = vld [vmem:[%s286 + $0x5c] sm:$0xf]
      %v1380 = vld [vmem:[%s286 + $0x60] sm:$0xf]
      %v1381 = vld [vmem:[%s286 + $0x64] sm:$0xf]
      %v1382 = vld [vmem:[%s286 + $0x68] sm:$0xf]
      %v1383 = vld [vmem:[%s286 + $0x6c] sm:$0xf]
      %v1384 = vld [vmem:[%s286 + $0x70] sm:$0xf]
      %v1385 = vld [vmem:[%s286 + $0x74] sm:$0xf]
      %v1386 = vld [vmem:[%s286 + $0x78] sm:$0xf]
      %v1387 = vld [vmem:[%s286 + $0x7c] sm:$0xf]
      %s1388 = scalar_lea.vmem %s4, 96
      %v1389 = vld [vmem:[%s1388] sm:$0xf]
      %v1390 = vld [vmem:[%s1388 + $0x4] sm:$0xf]
      %v1391 = vld [vmem:[%s1388 + $0x8] sm:$0xf]
      %v1392 = vld [vmem:[%s1388 + $0xc] sm:$0xf]
      %v1393 = vld [vmem:[%s1388 + $0x10] sm:$0xf]
      %v1394 = vld [vmem:[%s1388 + $0x14] sm:$0xf]
      %v1395 = vld [vmem:[%s1388 + $0x18] sm:$0xf]
      %v1396 = vld [vmem:[%s1388 + $0x1c] sm:$0xf]
      %v1429 = vunpack.c.l.b16 %v1356
      %v1430 = vunpack.c.l.b16 %v1357
      %v1431 = vunpack.c.l.b16 %v1358
      %v1432 = vunpack.c.l.b16 %v1359
      %v1433 = vunpack.c.l.b16 %v1360
      %v1434 = vunpack.c.l.b16 %v1361
      %v1435 = vunpack.c.l.b16 %v1362
      %v1436 = vunpack.c.l.b16 %v1363
      %v1437 = vunpack.c.l.b16 %v1364
      %v1438 = vunpack.c.l.b16 %v1365
      %v1439 = vunpack.c.l.b16 %v1366
      %v1440 = vunpack.c.l.b16 %v1367
      %v1441 = vunpack.c.l.b16 %v1368
      %v1442 = vunpack.c.l.b16 %v1369
      %v1443 = vunpack.c.l.b16 %v1370
      %v1444 = vunpack.c.l.b16 %v1371
      %v1445 = vunpack.c.l.b16 %v1372
      %v1446 = vunpack.c.l.b16 %v1373
      %v1447 = vunpack.c.l.b16 %v1374
      %v1448 = vunpack.c.l.b16 %v1375
      %v1449 = vunpack.c.l.b16 %v1376
      %v1450 = vunpack.c.l.b16 %v1377
      %v1451 = vunpack.c.l.b16 %v1378
      %v1452 = vunpack.c.l.b16 %v1379
      %v1453 = vunpack.c.l.b16 %v1380
      %v1454 = vunpack.c.l.b16 %v1381
      %v1455 = vunpack.c.l.b16 %v1382
      %v1456 = vunpack.c.l.b16 %v1383
      %v1457 = vunpack.c.l.b16 %v1384
      %v1458 = vunpack.c.l.b16 %v1385
      %v1459 = vunpack.c.l.b16 %v1386
      %v1460 = vunpack.c.l.b16 %v1387
      %v1461 = vpack.c.b16 %v1430, %v1429
      %v1462 = vpack.c.b16 %v1432, %v1431
      %v1463 = vpack.c.b16 %v1434, %v1433
      %v1464 = vpack.c.b16 %v1436, %v1435
      %v1465 = vpack.c.b16 %v1438, %v1437
      %v1466 = vpack.c.b16 %v1440, %v1439
      %v1467 = vpack.c.b16 %v1442, %v1441
      %v1468 = vpack.c.b16 %v1444, %v1443
      %v1469 = vpack.c.b16 %v1446, %v1445
      %v1470 = vpack.c.b16 %v1448, %v1447
      %v1471 = vpack.c.b16 %v1450, %v1449
      %v1472 = vpack.c.b16 %v1452, %v1451
      %v1473 = vpack.c.b16 %v1454, %v1453
      %v1474 = vpack.c.b16 %v1456, %v1455
      %v1475 = vpack.c.b16 %v1458, %v1457
      %v1476 = vpack.c.b16 %v1460, %v1459
      %v1485 = vunpack.c.l.b16 %v1389
      %v1486 = vunpack.c.l.b16 %v1390
      %v1487 = vunpack.c.l.b16 %v1391
      %v1488 = vunpack.c.l.b16 %v1392
      %v1489 = vunpack.c.l.b16 %v1393
      %v1490 = vunpack.c.l.b16 %v1394
      %v1491 = vunpack.c.l.b16 %v1395
      %v1492 = vunpack.c.l.b16 %v1396
      %v1493 = vpack.c.b16 %v1486, %v1485
      %v1494 = vpack.c.b16 %v1488, %v1487
      %v1495 = vpack.c.b16 %v1490, %v1489
      %v1496 = vpack.c.b16 %v1492, %v1491
      %v1502 = vsel %vm438, %v1461, 0
      %v1505 = vsel %vm438, %v1462, 0
      %v1508 = vsel %vm438, %v1463, 0
      %v1511 = vsel %vm438, %v1464, 0
      %v1514 = vsel %vm438, %v1465, 0
      %v1517 = vsel %vm438, %v1466, 0
      %v1520 = vsel %vm438, %v1467, 0
      %v1523 = vsel %vm438, %v1468, 0
      %v1526 = vsel %vm438, %v1469, 0
      %v1529 = vsel %vm438, %v1470, 0
      %v1532 = vsel %vm438, %v1471, 0
      %v1535 = vsel %vm438, %v1472, 0
      %v1538 = vsel %vm438, %v1473, 0
      %v1541 = vsel %vm438, %v1474, 0
      %v1544 = vsel %vm438, %v1475, 0
      %v1547 = vsel %vm438, %v1476, 0
      %1549 = vmatprep.subr.bf16.mxu0 0
      %1550 = vmatpush1.bf16.msra.mxu0 %v1493
      %1551 = vmatprep.subr.bf16.mxu0 0
      %1552 = vmatpush1.bf16.msra.mxu0 %v1494
      %1553 = vmatprep.subr.bf16.mxu0 0
      %1554 = vmatpush1.bf16.msra.mxu0 %v1495
      %1555 = vmatprep.subr.bf16.mxu0 0
      %1556 = vmatpush1.bf16.msra.mxu0 %v1496
      %1557 = vmatprep.subr.bf16.mxu0 0
      %1558 = vmatpush1.bf16.msra.mxu0 0
      %1559 = vmatprep.subr.bf16.mxu0 0
      %1560 = vmatpush1.bf16.msra.mxu0 0
      %1561 = vmatprep.subr.bf16.mxu0 0
      %1562 = vmatpush1.bf16.msra.mxu0 0
      %1563 = vmatprep.subr.bf16.mxu0 0
      %1564 = vmatpush1.bf16.msra.mxu0 0
      %1565 = vmatprep.subr.bf16.mxu0 0
      %1566 = vmatpush1.bf16.msra.mxu0 0
      %1567 = vmatprep.subr.bf16.mxu0 0
      %1568 = vmatpush1.bf16.msra.mxu0 0
      %1569 = vmatprep.subr.bf16.mxu0 0
      %1570 = vmatpush1.bf16.msra.mxu0 0
      %1571 = vmatprep.subr.bf16.mxu0 0
      %1572 = vmatpush1.bf16.msra.mxu0 0
      %1573 = vmatprep.subr.bf16.mxu0 0
      %1574 = vmatpush1.bf16.msra.mxu0 0
      %1575 = vmatprep.subr.bf16.mxu0 0
      %1576 = vmatpush1.bf16.msra.mxu0 0
      %1577 = vmatprep.subr.bf16.mxu0 0
      %1578 = vmatpush1.bf16.msra.mxu0 0
      %1579 = vmatprep.subr.bf16.mxu0 0
      %1580 = vmatpush1.bf16.msra.mxu0 0
      %1581 = vmatprep.mubr.bf16.mxu0 0
      %1582 = vmatmul.mubr.bf16.gmra.mrb[0].mxu0 %v1502
      %v1583 = vpop.f32.mrb[0].mxu0
      %v1584 = vadd.f32 0.0, %v1583
      %v1585 = vpop.f32.mrb[0].mxu0
      %v1586 = vpop.f32.mrb[0].mxu0
      %v1587 = vadd.f32 0.0, %v1586
      %v1588 = vpop.f32.mrb[0].mxu0
      %1589 = vmatprep.mubr.bf16.mxu0 0
      %1590 = vmatmul.mubr.bf16.gmra.mrb[0].mxu0 %v1505
      %v1591 = vpop.f32.mrb[0].mxu0
      %v1592 = vadd.f32 0.0, %v1591
      %v1593 = vpop.f32.mrb[0].mxu0
      %v1594 = vpop.f32.mrb[0].mxu0
      %v1595 = vadd.f32 0.0, %v1594
      %v1596 = vpop.f32.mrb[0].mxu0
      %1597 = vmatprep.mubr.bf16.mxu0 0
      %1598 = vmatmul.mubr.bf16.gmra.mrb[0].mxu0 %v1508
      %v1599 = vpop.f32.mrb[0].mxu0
      %v1600 = vadd.f32 0.0, %v1599
      %v1601 = vpop.f32.mrb[0].mxu0
      %v1602 = vpop.f32.mrb[0].mxu0
      %v1603 = vadd.f32 0.0, %v1602
      %v1604 = vpop.f32.mrb[0].mxu0
      %1605 = vmatprep.mubr.bf16.mxu0 0
      %1606 = vmatmul.mubr.bf16.gmra.mrb[0].mxu0 %v1511
      %v1607 = vpop.f32.mrb[0].mxu0
      %v1608 = vadd.f32 0.0, %v1607
      %v1609 = vpop.f32.mrb[0].mxu0
      %v1610 = vpop.f32.mrb[0].mxu0
      %v1611 = vadd.f32 0.0, %v1610
      %v1612 = vpop.f32.mrb[0].mxu0
      %1613 = vmatprep.mubr.bf16.mxu0 0
      %1614 = vmatmul.mubr.bf16.gmra.mrb[0].mxu0 %v1514
      %v1615 = vpop.f32.mrb[0].mxu0
      %v1616 = vadd.f32 0.0, %v1615
      %v1617 = vpop.f32.mrb[0].mxu0
      %v1618 = vpop.f32.mrb[0].mxu0
      %v1619 = vadd.f32 0.0, %v1618
      %v1620 = vpop.f32.mrb[0].mxu0
      %1621 = vmatprep.mubr.bf16.mxu0 0
      %1622 = vmatmul.mubr.bf16.gmra.mrb[0].mxu0 %v1517
      %v1623 = vpop.f32.mrb[0].mxu0
      %v1624 = vadd.f32 0.0, %v1623
      %v1625 = vpop.f32.mrb[0].mxu0
      %v1626 = vpop.f32.mrb[0].mxu0
      %v1627 = vadd.f32 0.0, %v1626
      %v1628 = vpop.f32.mrb[0].mxu0
      %1629 = vmatprep.mubr.bf16.mxu0 0
      %1630 = vmatmul.mubr.bf16.gmra.mrb[0].mxu0 %v1520
      %v1631 = vpop.f32.mrb[0].mxu0
      %v1632 = vadd.f32 0.0, %v1631
      %v1633 = vpop.f32.mrb[0].mxu0
      %v1634 = vpop.f32.mrb[0].mxu0
      %v1635 = vadd.f32 0.0, %v1634
      %v1636 = vpop.f32.mrb[0].mxu0
      %1637 = vmatprep.mubr.bf16.mxu0 0
      %1638 = vmatmul.mubr.bf16.gmra.mrb[0].mxu0 %v1523
      %v1639 = vpop.f32.mrb[0].mxu0
      %v1640 = vadd.f32 0.0, %v1639
      %v1641 = vpop.f32.mrb[0].mxu0
      %v1642 = vpop.f32.mrb[0].mxu0
      %v1643 = vadd.f32 0.0, %v1642
      %v1644 = vpop.f32.mrb[0].mxu0
      %1645 = vmatprep.mubr.bf16.mxu0 0
      %1646 = vmatmul.mubr.bf16.gmra.mrb[0].mxu0 %v1526
      %v1647 = vpop.f32.mrb[0].mxu0
      %v1648 = vadd.f32 0.0, %v1647
      %v1649 = vpop.f32.mrb[0].mxu0
      %v1650 = vpop.f32.mrb[0].mxu0
      %v1651 = vadd.f32 0.0, %v1650
      %v1652 = vpop.f32.mrb[0].mxu0
      %1653 = vmatprep.mubr.bf16.mxu0 0
      %1654 = vmatmul.mubr.bf16.gmra.mrb[0].mxu0 %v1529
      %v1655 = vpop.f32.mrb[0].mxu0
      %v1656 = vadd.f32 0.0, %v1655
      %v1657 = vpop.f32.mrb[0].mxu0
      %v1658 = vpop.f32.mrb[0].mxu0
      %v1659 = vadd.f32 0.0, %v1658
      %v1660 = vpop.f32.mrb[0].mxu0
      %1661 = vmatprep.mubr.bf16.mxu0 0
      %1662 = vmatmul.mubr.bf16.gmra.mrb[0].mxu0 %v1532
      %v1663 = vpop.f32.mrb[0].mxu0
      %v1664 = vadd.f32 0.0, %v1663
      %v1665 = vpop.f32.mrb[0].mxu0
      %v1666 = vpop.f32.mrb[0].mxu0
      %v1667 = vadd.f32 0.0, %v1666
      %v1668 = vpop.f32.mrb[0].mxu0
      %1669 = vmatprep.mubr.bf16.mxu0 0
      %1670 = vmatmul.mubr.bf16.gmra.mrb[0].mxu0 %v1535
      %v1671 = vpop.f32.mrb[0].mxu0
      %v1672 = vadd.f32 0.0, %v1671
      %v1673 = vpop.f32.mrb[0].mxu0
      %v1674 = vpop.f32.mrb[0].mxu0
      %v1675 = vadd.f32 0.0, %v1674
      %v1676 = vpop.f32.mrb[0].mxu0
      %1677 = vmatprep.mubr.bf16.mxu0 0
      %1678 = vmatmul.mubr.bf16.gmra.mrb[0].mxu0 %v1538
      %v1679 = vpop.f32.mrb[0].mxu0
      %v1680 = vadd.f32 0.0, %v1679
      %v1681 = vpop.f32.mrb[0].mxu0
      %v1682 = vpop.f32.mrb[0].mxu0
      %v1683 = vadd.f32 0.0, %v1682
      %v1684 = vpop.f32.mrb[0].mxu0
      %1685 = vmatprep.mubr.bf16.mxu0 0
      %1686 = vmatmul.mubr.bf16.gmra.mrb[0].mxu0 %v1541
      %v1687 = vpop.f32.mrb[0].mxu0
      %v1688 = vadd.f32 0.0, %v1687
      %v1689 = vpop.f32.mrb[0].mxu0
      %v1690 = vpop.f32.mrb[0].mxu0
      %v1691 = vadd.f32 0.0, %v1690
      %v1692 = vpop.f32.mrb[0].mxu0
      %1693 = vmatprep.mubr.bf16.mxu0 0
      %1694 = vmatmul.mubr.bf16.gmra.mrb[0].mxu0 %v1544
      %v1695 = vpop.f32.mrb[0].mxu0
      %v1696 = vadd.f32 0.0, %v1695
      %v1697 = vpop.f32.mrb[0].mxu0
      %v1698 = vpop.f32.mrb[0].mxu0
      %v1699 = vadd.f32 0.0, %v1698
      %v1700 = vpop.f32.mrb[0].mxu0
      %1701 = vmatprep.mubr.bf16.mxu0 0
      %1702 = vmatmul.mubr.bf16.gmra.mrb[0].mxu0 %v1547
      %v1703 = vpop.f32.mrb[0].mxu0
      %v1704 = vadd.f32 0.0, %v1703
      %v1705 = vpop.f32.mrb[0].mxu0
      %v1706 = vpop.f32.mrb[0].mxu0
      %v1707 = vadd.f32 0.0, %v1706
      %v1708 = vpop.f32.mrb[0].mxu0
      %1709 = vdwg.mxu0
      %v1710 = vadd.f32 %v522, %v525
      %v1711 = vadd.f32 %v1710, %v530
      %v1712 = vadd.f32 %v1711, %v533
      %v1713 = vadd.f32 %v1712, %v538
      %v1714 = vadd.f32 %v1713, %v541
      %v1715 = vadd.f32 %v1714, %v546
      %v1716 = vadd.f32 %v1715, %v549
      %v1717 = vadd.f32 %v1716, %v554
      %v1718 = vadd.f32 %v1717, %v557
      %v1719 = vadd.f32 %v1718, %v562
      %v1720 = vadd.f32 %v1719, %v565
      %v1721 = vadd.f32 %v1720, %v570
      %v1722 = vadd.f32 %v1721, %v573
      %v1723 = vadd.f32 %v1722, %v578
      %v1724 = vadd.f32 %v1723, %v581
      %v1725 = vadd.f32 %v1724, %v586
      %v1726 = vadd.f32 %v1725, %v589
      %v1727 = vadd.f32 %v1726, %v594
      %v1728 = vadd.f32 %v1727, %v597
      %v1729 = vadd.f32 %v1728, %v602
      %v1730 = vadd.f32 %v1729, %v605
      %v1731 = vadd.f32 %v1730, %v610
      %v1732 = vadd.f32 %v1731, %v613
      %v1733 = vadd.f32 %v1732, %v618
      %v1734 = vadd.f32 %v1733, %v621
      %v1735 = vadd.f32 %v1734, %v626
      %v1736 = vadd.f32 %v1735, %v629
      %v1737 = vadd.f32 %v1736, %v634
      %v1738 = vadd.f32 %v1737, %v637
      %v1739 = vadd.f32 %v1738, %v642
      %v1740 = vadd.f32 %v1739, %v645
      %v1741 = vrot.slane %v1740, 4
      %v1742 = vadd.f32 %v1740, %v1741
      %v1743 = vrot.slane %v1742, 2
      %v1744 = vadd.f32 %v1742, %v1743
      %v1745 = vrot.slane %v1744, 1
      %v1746 = vadd.f32 %v1744, %v1745
      %1747 = vst [vmem:[%s292] sm:$0x1] %v1746
      %v1748 = vadd.f32 %v876, %v879
      %v1749 = vadd.f32 %v1748, %v884
      %v1750 = vadd.f32 %v1749, %v887
      %v1751 = vadd.f32 %v1750, %v892
      %v1752 = vadd.f32 %v1751, %v895
      %v1753 = vadd.f32 %v1752, %v900
      %v1754 = vadd.f32 %v1753, %v903
      %v1755 = vadd.f32 %v1754, %v908
      %v1756 = vadd.f32 %v1755, %v911
      %v1757 = vadd.f32 %v1756, %v916
      %v1758 = vadd.f32 %v1757, %v919
      %v1759 = vadd.f32 %v1758, %v924
      %v1760 = vadd.f32 %v1759, %v927
      %v1761 = vadd.f32 %v1760, %v932
      %v1762 = vadd.f32 %v1761, %v935
      %v1763 = vadd.f32 %v1762, %v940
      %v1764 = vadd.f32 %v1763, %v943
      %v1765 = vadd.f32 %v1764, %v948
      %v1766 = vadd.f32 %v1765, %v951
      %v1767 = vadd.f32 %v1766, %v956
      %v1768 = vadd.f32 %v1767, %v959
      %v1769 = vadd.f32 %v1768, %v964
      %v1770 = vadd.f32 %v1769, %v967
      %v1771 = vadd.f32 %v1770, %v972
      %v1772 = vadd.f32 %v1771, %v975
      %v1773 = vadd.f32 %v1772, %v980
      %v1774 = vadd.f32 %v1773, %v983
      %v1775 = vadd.f32 %v1774, %v988
      %v1776 = vadd.f32 %v1775, %v991
      %v1777 = vadd.f32 %v1776, %v996
      %v1778 = vadd.f32 %v1777, %v999
      %v1779 = vrot.slane %v1778, 4
      %v1780 = vadd.f32 %v1778, %v1779
      %v1781 = vrot.slane %v1780, 2
      %v1782 = vadd.f32 %v1780, %v1781
      %v1783 = vrot.slane %v1782, 1
      %v1784 = vadd.f32 %v1782, %v1783
      %1785 = vst [vmem:[%s292 + $0x1] sm:$0x1] %v1784
      %v1786 = vadd.f32 %v1230, %v1233
      %v1787 = vadd.f32 %v1786, %v1238
      %v1788 = vadd.f32 %v1787, %v1241
      %v1789 = vadd.f32 %v1788, %v1246
      %v1790 = vadd.f32 %v1789, %v1249
      %v1791 = vadd.f32 %v1790, %v1254
      %v1792 = vadd.f32 %v1791, %v1257
      %v1793 = vadd.f32 %v1792, %v1262
      %v1794 = vadd.f32 %v1793, %v1265
      %v1795 = vadd.f32 %v1794, %v1270
      %v1796 = vadd.f32 %v1795, %v1273
      %v1797 = vadd.f32 %v1796, %v1278
      %v1798 = vadd.f32 %v1797, %v1281
      %v1799 = vadd.f32 %v1798, %v1286
      %v1800 = vadd.f32 %v1799, %v1289
      %v1801 = vadd.f32 %v1800, %v1294
      %v1802 = vadd.f32 %v1801, %v1297
      %v1803 = vadd.f32 %v1802, %v1302
      %v1804 = vadd.f32 %v1803, %v1305
      %v1805 = vadd.f32 %v1804, %v1310
      %v1806 = vadd.f32 %v1805, %v1313
      %v1807 = vadd.f32 %v1806, %v1318
      %v1808 = vadd.f32 %v1807, %v1321
      %v1809 = vadd.f32 %v1808, %v1326
      %v1810 = vadd.f32 %v1809, %v1329
      %v1811 = vadd.f32 %v1810, %v1334
      %v1812 = vadd.f32 %v1811, %v1337
      %v1813 = vadd.f32 %v1812, %v1342
      %v1814 = vadd.f32 %v1813, %v1345
      %v1815 = vadd.f32 %v1814, %v1350
      %v1816 = vadd.f32 %v1815, %v1353
      %v1817 = vrot.slane %v1816, 4
      %v1818 = vadd.f32 %v1816, %v1817
      %v1819 = vrot.slane %v1818, 2
      %v1820 = vadd.f32 %v1818, %v1819
      %v1821 = vrot.slane %v1820, 1
      %v1822 = vadd.f32 %v1820, %v1821
      %1823 = vst [vmem:[%s292 + $0x2] sm:$0x1] %v1822
      %v1824 = vadd.f32 %v1584, %v1587
      %v1825 = vadd.f32 %v1824, %v1592
      %v1826 = vadd.f32 %v1825, %v1595
      %v1827 = vadd.f32 %v1826, %v1600
      %v1828 = vadd.f32 %v1827, %v1603
      %v1829 = vadd.f32 %v1828, %v1608
      %v1830 = vadd.f32 %v1829, %v1611
      %v1831 = vadd.f32 %v1830, %v1616
      %v1832 = vadd.f32 %v1831, %v1619
      %v1833 = vadd.f32 %v1832, %v1624
      %v1834 = vadd.f32 %v1833, %v1627
      %v1835 = vadd.f32 %v1834, %v1632
      %v1836 = vadd.f32 %v1835, %v1635
      %v1837 = vadd.f32 %v1836, %v1640
      %v1838 = vadd.f32 %v1837, %v1643
      %v1839 = vadd.f32 %v1838, %v1648
      %v1840 = vadd.f32 %v1839, %v1651
      %v1841 = vadd.f32 %v1840, %v1656
      %v1842 = vadd.f32 %v1841, %v1659
      %v1843 = vadd.f32 %v1842, %v1664
      %v1844 = vadd.f32 %v1843, %v1667
      %v1845 = vadd.f32 %v1844, %v1672
      %v1846 = vadd.f32 %v1845, %v1675
      %v1847 = vadd.f32 %v1846, %v1680
      %v1848 = vadd.f32 %v1847, %v1683
      %v1849 = vadd.f32 %v1848, %v1688
      %v1850 = vadd.f32 %v1849, %v1691
      %v1851 = vadd.f32 %v1850, %v1696
      %v1852 = vadd.f32 %v1851, %v1699
      %v1853 = vadd.f32 %v1852, %v1704
      %v1854 = vadd.f32 %v1853, %v1707
      %v1855 = vrot.slane %v1854, 4
      %v1856 = vadd.f32 %v1854, %v1855
      %v1857 = vrot.slane %v1856, 2
      %v1858 = vadd.f32 %v1856, %v1857
      %v1859 = vrot.slane %v1858, 1
      %v1860 = vadd.f32 %v1858, %v1859
      %1861 = vst [vmem:[%s292 + $0x3] sm:$0x1] %v1860
      %v1862 = vmul.f32 %v522, %v522
      %v1863 = vmul.f32 %v525, %v525
      %v1864 = vmul.f32 %v530, %v530
      %v1865 = vmul.f32 %v533, %v533
      %v1866 = vmul.f32 %v538, %v538
      %v1867 = vmul.f32 %v541, %v541
      %v1868 = vmul.f32 %v546, %v546
      %v1869 = vmul.f32 %v549, %v549
      %v1870 = vmul.f32 %v554, %v554
      %v1871 = vmul.f32 %v557, %v557
      %v1872 = vmul.f32 %v562, %v562
      %v1873 = vmul.f32 %v565, %v565
      %v1874 = vmul.f32 %v570, %v570
      %v1875 = vmul.f32 %v573, %v573
      %v1876 = vmul.f32 %v578, %v578
      %v1877 = vmul.f32 %v581, %v581
      %v1878 = vmul.f32 %v586, %v586
      %v1879 = vmul.f32 %v589, %v589
      %v1880 = vmul.f32 %v594, %v594
      %v1881 = vmul.f32 %v597, %v597
      %v1882 = vmul.f32 %v602, %v602
      %v1883 = vmul.f32 %v605, %v605
      %v1884 = vmul.f32 %v610, %v610
      %v1885 = vmul.f32 %v613, %v613
      %v1886 = vmul.f32 %v618, %v618
      %v1887 = vmul.f32 %v621, %v621
      %v1888 = vmul.f32 %v626, %v626
      %v1889 = vmul.f32 %v629, %v629
      %v1890 = vmul.f32 %v634, %v634
      %v1891 = vmul.f32 %v637, %v637
      %v1892 = vmul.f32 %v642, %v642
      %v1893 = vmul.f32 %v645, %v645
      %v1894 = vadd.f32 %v1862, %v1863
      %v1895 = vadd.f32 %v1894, %v1864
      %v1896 = vadd.f32 %v1895, %v1865
      %v1897 = vadd.f32 %v1896, %v1866
      %v1898 = vadd.f32 %v1897, %v1867
      %v1899 = vadd.f32 %v1898, %v1868
      %v1900 = vadd.f32 %v1899, %v1869
      %v1901 = vadd.f32 %v1900, %v1870
      %v1902 = vadd.f32 %v1901, %v1871
      %v1903 = vadd.f32 %v1902, %v1872
      %v1904 = vadd.f32 %v1903, %v1873
      %v1905 = vadd.f32 %v1904, %v1874
      %v1906 = vadd.f32 %v1905, %v1875
      %v1907 = vadd.f32 %v1906, %v1876
      %v1908 = vadd.f32 %v1907, %v1877
      %v1909 = vadd.f32 %v1908, %v1878
      %v1910 = vadd.f32 %v1909, %v1879
      %v1911 = vadd.f32 %v1910, %v1880
      %v1912 = vadd.f32 %v1911, %v1881
      %v1913 = vadd.f32 %v1912, %v1882
      %v1914 = vadd.f32 %v1913, %v1883
      %v1915 = vadd.f32 %v1914, %v1884
      %v1916 = vadd.f32 %v1915, %v1885
      %v1917 = vadd.f32 %v1916, %v1886
      %v1918 = vadd.f32 %v1917, %v1887
      %v1919 = vadd.f32 %v1918, %v1888
      %v1920 = vadd.f32 %v1919, %v1889
      %v1921 = vadd.f32 %v1920, %v1890
      %v1922 = vadd.f32 %v1921, %v1891
      %v1923 = vadd.f32 %v1922, %v1892
      %v1924 = vadd.f32 %v1923, %v1893
      %v1925 = vrot.slane %v1924, 4
      %v1926 = vadd.f32 %v1924, %v1925
      %v1927 = vrot.slane %v1926, 2
      %v1928 = vadd.f32 %v1926, %v1927
      %v1929 = vrot.slane %v1928, 1
      %v1930 = vadd.f32 %v1928, %v1929
      %1931 = vst [vmem:[%s292 + $0x4] sm:$0x1] %v1930
      %v1932 = vmul.f32 %v522, %v876
      %v1933 = vmul.f32 %v525, %v879
      %v1934 = vmul.f32 %v530, %v884
      %v1935 = vmul.f32 %v533, %v887
      %v1936 = vmul.f32 %v538, %v892
      %v1937 = vmul.f32 %v541, %v895
      %v1938 = vmul.f32 %v546, %v900
      %v1939 = vmul.f32 %v549, %v903
      %v1940 = vmul.f32 %v554, %v908
      %v1941 = vmul.f32 %v557, %v911
      %v1942 = vmul.f32 %v562, %v916
      %v1943 = vmul.f32 %v565, %v919
      %v1944 = vmul.f32 %v570, %v924
      %v1945 = vmul.f32 %v573, %v927
      %v1946 = vmul.f32 %v578, %v932
      %v1947 = vmul.f32 %v581, %v935
      %v1948 = vmul.f32 %v586, %v940
      %v1949 = vmul.f32 %v589, %v943
      %v1950 = vmul.f32 %v594, %v948
      %v1951 = vmul.f32 %v597, %v951
      %v1952 = vmul.f32 %v602, %v956
      %v1953 = vmul.f32 %v605, %v959
      %v1954 = vmul.f32 %v610, %v964
      %v1955 = vmul.f32 %v613, %v967
      %v1956 = vmul.f32 %v618, %v972
      %v1957 = vmul.f32 %v621, %v975
      %v1958 = vmul.f32 %v626, %v980
      %v1959 = vmul.f32 %v629, %v983
      %v1960 = vmul.f32 %v634, %v988
      %v1961 = vmul.f32 %v637, %v991
      %v1962 = vmul.f32 %v642, %v996
      %v1963 = vmul.f32 %v645, %v999
      %v1964 = vadd.f32 %v1932, %v1933
      %v1965 = vadd.f32 %v1964, %v1934
      %v1966 = vadd.f32 %v1965, %v1935
      %v1967 = vadd.f32 %v1966, %v1936
      %v1968 = vadd.f32 %v1967, %v1937
      %v1969 = vadd.f32 %v1968, %v1938
      %v1970 = vadd.f32 %v1969, %v1939
      %v1971 = vadd.f32 %v1970, %v1940
      %v1972 = vadd.f32 %v1971, %v1941
      %v1973 = vadd.f32 %v1972, %v1942
      %v1974 = vadd.f32 %v1973, %v1943
      %v1975 = vadd.f32 %v1974, %v1944
      %v1976 = vadd.f32 %v1975, %v1945
      %v1977 = vadd.f32 %v1976, %v1946
      %v1978 = vadd.f32 %v1977, %v1947
      %v1979 = vadd.f32 %v1978, %v1948
      %v1980 = vadd.f32 %v1979, %v1949
      %v1981 = vadd.f32 %v1980, %v1950
      %v1982 = vadd.f32 %v1981, %v1951
      %v1983 = vadd.f32 %v1982, %v1952
      %v1984 = vadd.f32 %v1983, %v1953
      %v1985 = vadd.f32 %v1984, %v1954
      %v1986 = vadd.f32 %v1985, %v1955
      %v1987 = vadd.f32 %v1986, %v1956
      %v1988 = vadd.f32 %v1987, %v1957
      %v1989 = vadd.f32 %v1988, %v1958
      %v1990 = vadd.f32 %v1989, %v1959
      %v1991 = vadd.f32 %v1990, %v1960
      %v1992 = vadd.f32 %v1991, %v1961
      %v1993 = vadd.f32 %v1992, %v1962
      %v1994 = vadd.f32 %v1993, %v1963
      %v1995 = vrot.slane %v1994, 4
      %v1996 = vadd.f32 %v1994, %v1995
      %v1997 = vrot.slane %v1996, 2
      %v1998 = vadd.f32 %v1996, %v1997
      %v1999 = vrot.slane %v1998, 1
      %v2000 = vadd.f32 %v1998, %v1999
      %2001 = vst [vmem:[%s292 + $0x5] sm:$0x1] %v2000
      %v2002 = vmul.f32 %v522, %v1230
      %v2003 = vmul.f32 %v525, %v1233
      %v2004 = vmul.f32 %v530, %v1238
      %v2005 = vmul.f32 %v533, %v1241
      %v2006 = vmul.f32 %v538, %v1246
      %v2007 = vmul.f32 %v541, %v1249
      %v2008 = vmul.f32 %v546, %v1254
      %v2009 = vmul.f32 %v549, %v1257
      %v2010 = vmul.f32 %v554, %v1262
      %v2011 = vmul.f32 %v557, %v1265
      %v2012 = vmul.f32 %v562, %v1270
      %v2013 = vmul.f32 %v565, %v1273
      %v2014 = vmul.f32 %v570, %v1278
      %v2015 = vmul.f32 %v573, %v1281
      %v2016 = vmul.f32 %v578, %v1286
      %v2017 = vmul.f32 %v581, %v1289
      %v2018 = vmul.f32 %v586, %v1294
      %v2019 = vmul.f32 %v589, %v1297
      %v2020 = vmul.f32 %v594, %v1302
      %v2021 = vmul.f32 %v597, %v1305
      %v2022 = vmul.f32 %v602, %v1310
      %v2023 = vmul.f32 %v605, %v1313
      %v2024 = vmul.f32 %v610, %v1318
      %v2025 = vmul.f32 %v613, %v1321
      %v2026 = vmul.f32 %v618, %v1326
      %v2027 = vmul.f32 %v621, %v1329
      %v2028 = vmul.f32 %v626, %v1334
      %v2029 = vmul.f32 %v629, %v1337
      %v2030 = vmul.f32 %v634, %v1342
      %v2031 = vmul.f32 %v637, %v1345
      %v2032 = vmul.f32 %v642, %v1350
      %v2033 = vmul.f32 %v645, %v1353
      %v2034 = vadd.f32 %v2002, %v2003
      %v2035 = vadd.f32 %v2034, %v2004
      %v2036 = vadd.f32 %v2035, %v2005
      %v2037 = vadd.f32 %v2036, %v2006
      %v2038 = vadd.f32 %v2037, %v2007
      %v2039 = vadd.f32 %v2038, %v2008
      %v2040 = vadd.f32 %v2039, %v2009
      %v2041 = vadd.f32 %v2040, %v2010
      %v2042 = vadd.f32 %v2041, %v2011
      %v2043 = vadd.f32 %v2042, %v2012
      %v2044 = vadd.f32 %v2043, %v2013
      %v2045 = vadd.f32 %v2044, %v2014
      %v2046 = vadd.f32 %v2045, %v2015
      %v2047 = vadd.f32 %v2046, %v2016
      %v2048 = vadd.f32 %v2047, %v2017
      %v2049 = vadd.f32 %v2048, %v2018
      %v2050 = vadd.f32 %v2049, %v2019
      %v2051 = vadd.f32 %v2050, %v2020
      %v2052 = vadd.f32 %v2051, %v2021
      %v2053 = vadd.f32 %v2052, %v2022
      %v2054 = vadd.f32 %v2053, %v2023
      %v2055 = vadd.f32 %v2054, %v2024
      %v2056 = vadd.f32 %v2055, %v2025
      %v2057 = vadd.f32 %v2056, %v2026
      %v2058 = vadd.f32 %v2057, %v2027
      %v2059 = vadd.f32 %v2058, %v2028
      %v2060 = vadd.f32 %v2059, %v2029
      %v2061 = vadd.f32 %v2060, %v2030
      %v2062 = vadd.f32 %v2061, %v2031
      %v2063 = vadd.f32 %v2062, %v2032
      %v2064 = vadd.f32 %v2063, %v2033
      %v2065 = vrot.slane %v2064, 4
      %v2066 = vadd.f32 %v2064, %v2065
      %v2067 = vrot.slane %v2066, 2
      %v2068 = vadd.f32 %v2066, %v2067
      %v2069 = vrot.slane %v2068, 1
      %v2070 = vadd.f32 %v2068, %v2069
      %2071 = vst [vmem:[%s292 + $0x6] sm:$0x1] %v2070
      %v2072 = vmul.f32 %v522, %v1584
      %v2073 = vmul.f32 %v525, %v1587
      %v2074 = vmul.f32 %v530, %v1592
      %v2075 = vmul.f32 %v533, %v1595
      %v2076 = vmul.f32 %v538, %v1600
      %v2077 = vmul.f32 %v541, %v1603
      %v2078 = vmul.f32 %v546, %v1608
      %v2079 = vmul.f32 %v549, %v1611
      %v2080 = vmul.f32 %v554, %v1616
      %v2081 = vmul.f32 %v557, %v1619
      %v2082 = vmul.f32 %v562, %v1624
      %v2083 = vmul.f32 %v565, %v1627
      %v2084 = vmul.f32 %v570, %v1632
      %v2085 = vmul.f32 %v573, %v1635
      %v2086 = vmul.f32 %v578, %v1640
      %v2087 = vmul.f32 %v581, %v1643
      %v2088 = vmul.f32 %v586, %v1648
      %v2089 = vmul.f32 %v589, %v1651
      %v2090 = vmul.f32 %v594, %v1656
      %v2091 = vmul.f32 %v597, %v1659
      %v2092 = vmul.f32 %v602, %v1664
      %v2093 = vmul.f32 %v605, %v1667
      %v2094 = vmul.f32 %v610, %v1672
      %v2095 = vmul.f32 %v613, %v1675
      %v2096 = vmul.f32 %v618, %v1680
      %v2097 = vmul.f32 %v621, %v1683
      %v2098 = vmul.f32 %v626, %v1688
      %v2099 = vmul.f32 %v629, %v1691
      %v2100 = vmul.f32 %v634, %v1696
      %v2101 = vmul.f32 %v637, %v1699
      %v2102 = vmul.f32 %v642, %v1704
      %v2103 = vmul.f32 %v645, %v1707
      %v2104 = vadd.f32 %v2072, %v2073
      %v2105 = vadd.f32 %v2104, %v2074
      %v2106 = vadd.f32 %v2105, %v2075
      %v2107 = vadd.f32 %v2106, %v2076
      %v2108 = vadd.f32 %v2107, %v2077
      %v2109 = vadd.f32 %v2108, %v2078
      %v2110 = vadd.f32 %v2109, %v2079
      %v2111 = vadd.f32 %v2110, %v2080
      %v2112 = vadd.f32 %v2111, %v2081
      %v2113 = vadd.f32 %v2112, %v2082
      %v2114 = vadd.f32 %v2113, %v2083
      %v2115 = vadd.f32 %v2114, %v2084
      %v2116 = vadd.f32 %v2115, %v2085
      %v2117 = vadd.f32 %v2116, %v2086
      %v2118 = vadd.f32 %v2117, %v2087
      %v2119 = vadd.f32 %v2118, %v2088
      %v2120 = vadd.f32 %v2119, %v2089
      %v2121 = vadd.f32 %v2120, %v2090
      %v2122 = vadd.f32 %v2121, %v2091
      %v2123 = vadd.f32 %v2122, %v2092
      %v2124 = vadd.f32 %v2123, %v2093
      %v2125 = vadd.f32 %v2124, %v2094
      %v2126 = vadd.f32 %v2125, %v2095
      %v2127 = vadd.f32 %v2126, %v2096
      %v2128 = vadd.f32 %v2127, %v2097
      %v2129 = vadd.f32 %v2128, %v2098
      %v2130 = vadd.f32 %v2129, %v2099
      %v2131 = vadd.f32 %v2130, %v2100
      %v2132 = vadd.f32 %v2131, %v2101
      %v2133 = vadd.f32 %v2132, %v2102
      %v2134 = vadd.f32 %v2133, %v2103
      %v2135 = vrot.slane %v2134, 4
      %v2136 = vadd.f32 %v2134, %v2135
      %v2137 = vrot.slane %v2136, 2
      %v2138 = vadd.f32 %v2136, %v2137
      %v2139 = vrot.slane %v2138, 1
      %v2140 = vadd.f32 %v2138, %v2139
      %2141 = vst [vmem:[%s292 + $0x7] sm:$0x1] %v2140
      %v2142 = vmul.f32 %v876, %v876
      %v2143 = vmul.f32 %v879, %v879
      %v2144 = vmul.f32 %v884, %v884
      %v2145 = vmul.f32 %v887, %v887
      %v2146 = vmul.f32 %v892, %v892
      %v2147 = vmul.f32 %v895, %v895
      %v2148 = vmul.f32 %v900, %v900
      %v2149 = vmul.f32 %v903, %v903
      %v2150 = vmul.f32 %v908, %v908
      %v2151 = vmul.f32 %v911, %v911
      %v2152 = vmul.f32 %v916, %v916
      %v2153 = vmul.f32 %v919, %v919
      %v2154 = vmul.f32 %v924, %v924
      %v2155 = vmul.f32 %v927, %v927
      %v2156 = vmul.f32 %v932, %v932
      %v2157 = vmul.f32 %v935, %v935
      %v2158 = vmul.f32 %v940, %v940
      %v2159 = vmul.f32 %v943, %v943
      %v2160 = vmul.f32 %v948, %v948
      %v2161 = vmul.f32 %v951, %v951
      %v2162 = vmul.f32 %v956, %v956
      %v2163 = vmul.f32 %v959, %v959
      %v2164 = vmul.f32 %v964, %v964
      %v2165 = vmul.f32 %v967, %v967
      %v2166 = vmul.f32 %v972, %v972
      %v2167 = vmul.f32 %v975, %v975
      %v2168 = vmul.f32 %v980, %v980
      %v2169 = vmul.f32 %v983, %v983
      %v2170 = vmul.f32 %v988, %v988
      %v2171 = vmul.f32 %v991, %v991
      %v2172 = vmul.f32 %v996, %v996
      %v2173 = vmul.f32 %v999, %v999
      %v2174 = vadd.f32 %v2142, %v2143
      %v2175 = vadd.f32 %v2174, %v2144
      %v2176 = vadd.f32 %v2175, %v2145
      %v2177 = vadd.f32 %v2176, %v2146
      %v2178 = vadd.f32 %v2177, %v2147
      %v2179 = vadd.f32 %v2178, %v2148
      %v2180 = vadd.f32 %v2179, %v2149
      %v2181 = vadd.f32 %v2180, %v2150
      %v2182 = vadd.f32 %v2181, %v2151
      %v2183 = vadd.f32 %v2182, %v2152
      %v2184 = vadd.f32 %v2183, %v2153
      %v2185 = vadd.f32 %v2184, %v2154
      %v2186 = vadd.f32 %v2185, %v2155
      %v2187 = vadd.f32 %v2186, %v2156
      %v2188 = vadd.f32 %v2187, %v2157
      %v2189 = vadd.f32 %v2188, %v2158
      %v2190 = vadd.f32 %v2189, %v2159
      %v2191 = vadd.f32 %v2190, %v2160
      %v2192 = vadd.f32 %v2191, %v2161
      %v2193 = vadd.f32 %v2192, %v2162
      %v2194 = vadd.f32 %v2193, %v2163
      %v2195 = vadd.f32 %v2194, %v2164
      %v2196 = vadd.f32 %v2195, %v2165
      %v2197 = vadd.f32 %v2196, %v2166
      %v2198 = vadd.f32 %v2197, %v2167
      %v2199 = vadd.f32 %v2198, %v2168
      %v2200 = vadd.f32 %v2199, %v2169
      %v2201 = vadd.f32 %v2200, %v2170
      %v2202 = vadd.f32 %v2201, %v2171
      %v2203 = vadd.f32 %v2202, %v2172
      %v2204 = vadd.f32 %v2203, %v2173
      %v2205 = vrot.slane %v2204, 4
      %v2206 = vadd.f32 %v2204, %v2205
      %v2207 = vrot.slane %v2206, 2
      %v2208 = vadd.f32 %v2206, %v2207
      %v2209 = vrot.slane %v2208, 1
      %v2210 = vadd.f32 %v2208, %v2209
      %2211 = vst [vmem:[%s292 + $0x8] sm:$0x1] %v2210
      %v2212 = vmul.f32 %v876, %v1230
      %v2213 = vmul.f32 %v879, %v1233
      %v2214 = vmul.f32 %v884, %v1238
      %v2215 = vmul.f32 %v887, %v1241
      %v2216 = vmul.f32 %v892, %v1246
      %v2217 = vmul.f32 %v895, %v1249
      %v2218 = vmul.f32 %v900, %v1254
      %v2219 = vmul.f32 %v903, %v1257
      %v2220 = vmul.f32 %v908, %v1262
      %v2221 = vmul.f32 %v911, %v1265
      %v2222 = vmul.f32 %v916, %v1270
      %v2223 = vmul.f32 %v919, %v1273
      %v2224 = vmul.f32 %v924, %v1278
      %v2225 = vmul.f32 %v927, %v1281
      %v2226 = vmul.f32 %v932, %v1286
      %v2227 = vmul.f32 %v935, %v1289
      %v2228 = vmul.f32 %v940, %v1294
      %v2229 = vmul.f32 %v943, %v1297
      %v2230 = vmul.f32 %v948, %v1302
      %v2231 = vmul.f32 %v951, %v1305
      %v2232 = vmul.f32 %v956, %v1310
      %v2233 = vmul.f32 %v959, %v1313
      %v2234 = vmul.f32 %v964, %v1318
      %v2235 = vmul.f32 %v967, %v1321
      %v2236 = vmul.f32 %v972, %v1326
      %v2237 = vmul.f32 %v975, %v1329
      %v2238 = vmul.f32 %v980, %v1334
      %v2239 = vmul.f32 %v983, %v1337
      %v2240 = vmul.f32 %v988, %v1342
      %v2241 = vmul.f32 %v991, %v1345
      %v2242 = vmul.f32 %v996, %v1350
      %v2243 = vmul.f32 %v999, %v1353
      %v2244 = vadd.f32 %v2212, %v2213
      %v2245 = vadd.f32 %v2244, %v2214
      %v2246 = vadd.f32 %v2245, %v2215
      %v2247 = vadd.f32 %v2246, %v2216
      %v2248 = vadd.f32 %v2247, %v2217
      %v2249 = vadd.f32 %v2248, %v2218
      %v2250 = vadd.f32 %v2249, %v2219
      %v2251 = vadd.f32 %v2250, %v2220
      %v2252 = vadd.f32 %v2251, %v2221
      %v2253 = vadd.f32 %v2252, %v2222
      %v2254 = vadd.f32 %v2253, %v2223
      %v2255 = vadd.f32 %v2254, %v2224
      %v2256 = vadd.f32 %v2255, %v2225
      %v2257 = vadd.f32 %v2256, %v2226
      %v2258 = vadd.f32 %v2257, %v2227
      %v2259 = vadd.f32 %v2258, %v2228
      %v2260 = vadd.f32 %v2259, %v2229
      %v2261 = vadd.f32 %v2260, %v2230
      %v2262 = vadd.f32 %v2261, %v2231
      %v2263 = vadd.f32 %v2262, %v2232
      %v2264 = vadd.f32 %v2263, %v2233
      %v2265 = vadd.f32 %v2264, %v2234
      %v2266 = vadd.f32 %v2265, %v2235
      %v2267 = vadd.f32 %v2266, %v2236
      %v2268 = vadd.f32 %v2267, %v2237
      %v2269 = vadd.f32 %v2268, %v2238
      %v2270 = vadd.f32 %v2269, %v2239
      %v2271 = vadd.f32 %v2270, %v2240
      %v2272 = vadd.f32 %v2271, %v2241
      %v2273 = vadd.f32 %v2272, %v2242
      %v2274 = vadd.f32 %v2273, %v2243
      %v2275 = vrot.slane %v2274, 4
      %v2276 = vadd.f32 %v2274, %v2275
      %v2277 = vrot.slane %v2276, 2
      %v2278 = vadd.f32 %v2276, %v2277
      %v2279 = vrot.slane %v2278, 1
      %v2280 = vadd.f32 %v2278, %v2279
      %2281 = vst [vmem:[%s292 + $0x9] sm:$0x1] %v2280
      %v2282 = vmul.f32 %v876, %v1584
      %v2283 = vmul.f32 %v879, %v1587
      %v2284 = vmul.f32 %v884, %v1592
      %v2285 = vmul.f32 %v887, %v1595
      %v2286 = vmul.f32 %v892, %v1600
      %v2287 = vmul.f32 %v895, %v1603
      %v2288 = vmul.f32 %v900, %v1608
      %v2289 = vmul.f32 %v903, %v1611
      %v2290 = vmul.f32 %v908, %v1616
      %v2291 = vmul.f32 %v911, %v1619
      %v2292 = vmul.f32 %v916, %v1624
      %v2293 = vmul.f32 %v919, %v1627
      %v2294 = vmul.f32 %v924, %v1632
      %v2295 = vmul.f32 %v927, %v1635
      %v2296 = vmul.f32 %v932, %v1640
      %v2297 = vmul.f32 %v935, %v1643
      %v2298 = vmul.f32 %v940, %v1648
      %v2299 = vmul.f32 %v943, %v1651
      %v2300 = vmul.f32 %v948, %v1656
      %v2301 = vmul.f32 %v951, %v1659
      %v2302 = vmul.f32 %v956, %v1664
      %v2303 = vmul.f32 %v959, %v1667
      %v2304 = vmul.f32 %v964, %v1672
      %v2305 = vmul.f32 %v967, %v1675
      %v2306 = vmul.f32 %v972, %v1680
      %v2307 = vmul.f32 %v975, %v1683
      %v2308 = vmul.f32 %v980, %v1688
      %v2309 = vmul.f32 %v983, %v1691
      %v2310 = vmul.f32 %v988, %v1696
      %v2311 = vmul.f32 %v991, %v1699
      %v2312 = vmul.f32 %v996, %v1704
      %v2313 = vmul.f32 %v999, %v1707
      %v2314 = vadd.f32 %v2282, %v2283
      %v2315 = vadd.f32 %v2314, %v2284
      %v2316 = vadd.f32 %v2315, %v2285
      %v2317 = vadd.f32 %v2316, %v2286
      %v2318 = vadd.f32 %v2317, %v2287
      %v2319 = vadd.f32 %v2318, %v2288
      %v2320 = vadd.f32 %v2319, %v2289
      %v2321 = vadd.f32 %v2320, %v2290
      %v2322 = vadd.f32 %v2321, %v2291
      %v2323 = vadd.f32 %v2322, %v2292
      %v2324 = vadd.f32 %v2323, %v2293
      %v2325 = vadd.f32 %v2324, %v2294
      %v2326 = vadd.f32 %v2325, %v2295
      %v2327 = vadd.f32 %v2326, %v2296
      %v2328 = vadd.f32 %v2327, %v2297
      %v2329 = vadd.f32 %v2328, %v2298
      %v2330 = vadd.f32 %v2329, %v2299
      %v2331 = vadd.f32 %v2330, %v2300
      %v2332 = vadd.f32 %v2331, %v2301
      %v2333 = vadd.f32 %v2332, %v2302
      %v2334 = vadd.f32 %v2333, %v2303
      %v2335 = vadd.f32 %v2334, %v2304
      %v2336 = vadd.f32 %v2335, %v2305
      %v2337 = vadd.f32 %v2336, %v2306
      %v2338 = vadd.f32 %v2337, %v2307
      %v2339 = vadd.f32 %v2338, %v2308
      %v2340 = vadd.f32 %v2339, %v2309
      %v2341 = vadd.f32 %v2340, %v2310
      %v2342 = vadd.f32 %v2341, %v2311
      %v2343 = vadd.f32 %v2342, %v2312
      %v2344 = vadd.f32 %v2343, %v2313
      %v2345 = vrot.slane %v2344, 4
      %v2346 = vadd.f32 %v2344, %v2345
      %v2347 = vrot.slane %v2346, 2
      %v2348 = vadd.f32 %v2346, %v2347
      %v2349 = vrot.slane %v2348, 1
      %v2350 = vadd.f32 %v2348, %v2349
      %2351 = vst [vmem:[%s292 + $0xa] sm:$0x1] %v2350
      %v2352 = vmul.f32 %v1230, %v1230
      %v2353 = vmul.f32 %v1233, %v1233
      %v2354 = vmul.f32 %v1238, %v1238
      %v2355 = vmul.f32 %v1241, %v1241
      %v2356 = vmul.f32 %v1246, %v1246
      %v2357 = vmul.f32 %v1249, %v1249
      %v2358 = vmul.f32 %v1254, %v1254
      %v2359 = vmul.f32 %v1257, %v1257
      %v2360 = vmul.f32 %v1262, %v1262
      %v2361 = vmul.f32 %v1265, %v1265
      %v2362 = vmul.f32 %v1270, %v1270
      %v2363 = vmul.f32 %v1273, %v1273
      %v2364 = vmul.f32 %v1278, %v1278
      %v2365 = vmul.f32 %v1281, %v1281
      %v2366 = vmul.f32 %v1286, %v1286
      %v2367 = vmul.f32 %v1289, %v1289
      %v2368 = vmul.f32 %v1294, %v1294
      %v2369 = vmul.f32 %v1297, %v1297
      %v2370 = vmul.f32 %v1302, %v1302
      %v2371 = vmul.f32 %v1305, %v1305
      %v2372 = vmul.f32 %v1310, %v1310
      %v2373 = vmul.f32 %v1313, %v1313
      %v2374 = vmul.f32 %v1318, %v1318
      %v2375 = vmul.f32 %v1321, %v1321
      %v2376 = vmul.f32 %v1326, %v1326
      %v2377 = vmul.f32 %v1329, %v1329
      %v2378 = vmul.f32 %v1334, %v1334
      %v2379 = vmul.f32 %v1337, %v1337
      %v2380 = vmul.f32 %v1342, %v1342
      %v2381 = vmul.f32 %v1345, %v1345
      %v2382 = vmul.f32 %v1350, %v1350
      %v2383 = vmul.f32 %v1353, %v1353
      %v2384 = vadd.f32 %v2352, %v2353
      %v2385 = vadd.f32 %v2384, %v2354
      %v2386 = vadd.f32 %v2385, %v2355
      %v2387 = vadd.f32 %v2386, %v2356
      %v2388 = vadd.f32 %v2387, %v2357
      %v2389 = vadd.f32 %v2388, %v2358
      %v2390 = vadd.f32 %v2389, %v2359
      %v2391 = vadd.f32 %v2390, %v2360
      %v2392 = vadd.f32 %v2391, %v2361
      %v2393 = vadd.f32 %v2392, %v2362
      %v2394 = vadd.f32 %v2393, %v2363
      %v2395 = vadd.f32 %v2394, %v2364
      %v2396 = vadd.f32 %v2395, %v2365
      %v2397 = vadd.f32 %v2396, %v2366
      %v2398 = vadd.f32 %v2397, %v2367
      %v2399 = vadd.f32 %v2398, %v2368
      %v2400 = vadd.f32 %v2399, %v2369
      %v2401 = vadd.f32 %v2400, %v2370
      %v2402 = vadd.f32 %v2401, %v2371
      %v2403 = vadd.f32 %v2402, %v2372
      %v2404 = vadd.f32 %v2403, %v2373
      %v2405 = vadd.f32 %v2404, %v2374
      %v2406 = vadd.f32 %v2405, %v2375
      %v2407 = vadd.f32 %v2406, %v2376
      %v2408 = vadd.f32 %v2407, %v2377
      %v2409 = vadd.f32 %v2408, %v2378
      %v2410 = vadd.f32 %v2409, %v2379
      %v2411 = vadd.f32 %v2410, %v2380
      %v2412 = vadd.f32 %v2411, %v2381
      %v2413 = vadd.f32 %v2412, %v2382
      %v2414 = vadd.f32 %v2413, %v2383
      %v2415 = vrot.slane %v2414, 4
      %v2416 = vadd.f32 %v2414, %v2415
      %v2417 = vrot.slane %v2416, 2
      %v2418 = vadd.f32 %v2416, %v2417
      %v2419 = vrot.slane %v2418, 1
      %v2420 = vadd.f32 %v2418, %v2419
      %2421 = vst [vmem:[%s292 + $0xb] sm:$0x1] %v2420
      %v2422 = vmul.f32 %v1230, %v1584
      %v2423 = vmul.f32 %v1233, %v1587
      %v2424 = vmul.f32 %v1238, %v1592
      %v2425 = vmul.f32 %v1241, %v1595
      %v2426 = vmul.f32 %v1246, %v1600
      %v2427 = vmul.f32 %v1249, %v1603
      %v2428 = vmul.f32 %v1254, %v1608
      %v2429 = vmul.f32 %v1257, %v1611
      %v2430 = vmul.f32 %v1262, %v1616
      %v2431 = vmul.f32 %v1265, %v1619
      %v2432 = vmul.f32 %v1270, %v1624
      %v2433 = vmul.f32 %v1273, %v1627
      %v2434 = vmul.f32 %v1278, %v1632
      %v2435 = vmul.f32 %v1281, %v1635
      %v2436 = vmul.f32 %v1286, %v1640
      %v2437 = vmul.f32 %v1289, %v1643
      %v2438 = vmul.f32 %v1294, %v1648
      %v2439 = vmul.f32 %v1297, %v1651
      %v2440 = vmul.f32 %v1302, %v1656
      %v2441 = vmul.f32 %v1305, %v1659
      %v2442 = vmul.f32 %v1310, %v1664
      %v2443 = vmul.f32 %v1313, %v1667
      %v2444 = vmul.f32 %v1318, %v1672
      %v2445 = vmul.f32 %v1321, %v1675
      %v2446 = vmul.f32 %v1326, %v1680
      %v2447 = vmul.f32 %v1329, %v1683
      %v2448 = vmul.f32 %v1334, %v1688
      %v2449 = vmul.f32 %v1337, %v1691
      %v2450 = vmul.f32 %v1342, %v1696
      %v2451 = vmul.f32 %v1345, %v1699
      %v2452 = vmul.f32 %v1350, %v1704
      %v2453 = vmul.f32 %v1353, %v1707
      %v2454 = vadd.f32 %v2422, %v2423
      %v2455 = vadd.f32 %v2454, %v2424
      %v2456 = vadd.f32 %v2455, %v2425
      %v2457 = vadd.f32 %v2456, %v2426
      %v2458 = vadd.f32 %v2457, %v2427
      %v2459 = vadd.f32 %v2458, %v2428
      %v2460 = vadd.f32 %v2459, %v2429
      %v2461 = vadd.f32 %v2460, %v2430
      %v2462 = vadd.f32 %v2461, %v2431
      %v2463 = vadd.f32 %v2462, %v2432
      %v2464 = vadd.f32 %v2463, %v2433
      %v2465 = vadd.f32 %v2464, %v2434
      %v2466 = vadd.f32 %v2465, %v2435
      %v2467 = vadd.f32 %v2466, %v2436
      %v2468 = vadd.f32 %v2467, %v2437
      %v2469 = vadd.f32 %v2468, %v2438
      %v2470 = vadd.f32 %v2469, %v2439
      %v2471 = vadd.f32 %v2470, %v2440
      %v2472 = vadd.f32 %v2471, %v2441
      %v2473 = vadd.f32 %v2472, %v2442
      %v2474 = vadd.f32 %v2473, %v2443
      %v2475 = vadd.f32 %v2474, %v2444
      %v2476 = vadd.f32 %v2475, %v2445
      %v2477 = vadd.f32 %v2476, %v2446
      %v2478 = vadd.f32 %v2477, %v2447
      %v2479 = vadd.f32 %v2478, %v2448
      %v2480 = vadd.f32 %v2479, %v2449
      %v2481 = vadd.f32 %v2480, %v2450
      %v2482 = vadd.f32 %v2481, %v2451
      %v2483 = vadd.f32 %v2482, %v2452
      %v2484 = vadd.f32 %v2483, %v2453
      %v2485 = vrot.slane %v2484, 4
      %v2486 = vadd.f32 %v2484, %v2485
      %v2487 = vrot.slane %v2486, 2
      %v2488 = vadd.f32 %v2486, %v2487
      %v2489 = vrot.slane %v2488, 1
      %v2490 = vadd.f32 %v2488, %v2489
      %2491 = vst [vmem:[%s292 + $0xc] sm:$0x1] %v2490
      %v2492 = vmul.f32 %v1584, %v1584
      %v2493 = vmul.f32 %v1587, %v1587
      %v2494 = vmul.f32 %v1592, %v1592
      %v2495 = vmul.f32 %v1595, %v1595
      %v2496 = vmul.f32 %v1600, %v1600
      %v2497 = vmul.f32 %v1603, %v1603
      %v2498 = vmul.f32 %v1608, %v1608
      %v2499 = vmul.f32 %v1611, %v1611
      %v2500 = vmul.f32 %v1616, %v1616
      %v2501 = vmul.f32 %v1619, %v1619
      %v2502 = vmul.f32 %v1624, %v1624
      %v2503 = vmul.f32 %v1627, %v1627
      %v2504 = vmul.f32 %v1632, %v1632
      %v2505 = vmul.f32 %v1635, %v1635
      %v2506 = vmul.f32 %v1640, %v1640
      %v2507 = vmul.f32 %v1643, %v1643
      %v2508 = vmul.f32 %v1648, %v1648
      %v2509 = vmul.f32 %v1651, %v1651
      %v2510 = vmul.f32 %v1656, %v1656
      %v2511 = vmul.f32 %v1659, %v1659
      %v2512 = vmul.f32 %v1664, %v1664
      %v2513 = vmul.f32 %v1667, %v1667
      %v2514 = vmul.f32 %v1672, %v1672
      %v2515 = vmul.f32 %v1675, %v1675
      %v2516 = vmul.f32 %v1680, %v1680
      %v2517 = vmul.f32 %v1683, %v1683
      %v2518 = vmul.f32 %v1688, %v1688
      %v2519 = vmul.f32 %v1691, %v1691
      %v2520 = vmul.f32 %v1696, %v1696
      %v2521 = vmul.f32 %v1699, %v1699
      %v2522 = vmul.f32 %v1704, %v1704
      %v2523 = vmul.f32 %v1707, %v1707
      %v2524 = vadd.f32 %v2492, %v2493
      %v2525 = vadd.f32 %v2524, %v2494
      %v2526 = vadd.f32 %v2525, %v2495
      %v2527 = vadd.f32 %v2526, %v2496
      %v2528 = vadd.f32 %v2527, %v2497
      %v2529 = vadd.f32 %v2528, %v2498
      %v2530 = vadd.f32 %v2529, %v2499
      %v2531 = vadd.f32 %v2530, %v2500
      %v2532 = vadd.f32 %v2531, %v2501
      %v2533 = vadd.f32 %v2532, %v2502
      %v2534 = vadd.f32 %v2533, %v2503
      %v2535 = vadd.f32 %v2534, %v2504
      %v2536 = vadd.f32 %v2535, %v2505
      %v2537 = vadd.f32 %v2536, %v2506
      %v2538 = vadd.f32 %v2537, %v2507
      %v2539 = vadd.f32 %v2538, %v2508
      %v2540 = vadd.f32 %v2539, %v2509
      %v2541 = vadd.f32 %v2540, %v2510
      %v2542 = vadd.f32 %v2541, %v2511
      %v2543 = vadd.f32 %v2542, %v2512
      %v2544 = vadd.f32 %v2543, %v2513
      %v2545 = vadd.f32 %v2544, %v2514
      %v2546 = vadd.f32 %v2545, %v2515
      %v2547 = vadd.f32 %v2546, %v2516
      %v2548 = vadd.f32 %v2547, %v2517
      %v2549 = vadd.f32 %v2548, %v2518
      %v2550 = vadd.f32 %v2549, %v2519
      %v2551 = vadd.f32 %v2550, %v2520
      %v2552 = vadd.f32 %v2551, %v2521
      %v2553 = vadd.f32 %v2552, %v2522
      %v2554 = vadd.f32 %v2553, %v2523
      %v2555 = vrot.slane %v2554, 4
      %v2556 = vadd.f32 %v2554, %v2555
      %v2557 = vrot.slane %v2556, 2
      %v2558 = vadd.f32 %v2556, %v2557
      %v2559 = vrot.slane %v2558, 1
      %v2560 = vadd.f32 %v2558, %v2559
      %2561 = vst [vmem:[%s292 + $0xd] sm:$0x1] %v2560
      %p2562 = scmp.lt.s32.totalorder %s16, 1
      %s2563 = scalar_select %p2562, %s16, 1
      %s2564 = smul.addr %s2563, 2
      %s2565 = smul.addr %s2564, 8
      %s2566 = scalar_lea.vmem %s5, %s2565
      // Predicated region
      $region41: #{adj_encoder_forward.3} parent=39 // pred_check
        %p2567 = pneg %p159
      $region42: #{adj_encoder_forward.3} parent=39 // pred_check_branch
        %2569 = sbr.rel (%p2567) target = $region44
      $region43: #{adj_encoder_forward.3} parent=39 // pred_region
        _
      $region44: #{adj_encoder_forward.3} parent=39 // pred_fallthru
        _
    $region40: #{adj_encoder_forward.3} parent=5 // pred_fallthru
      _
    %p2570 = scmp.le.s32.totalorder 2, %s11
    // Predicated region
    $region45: #{adj_encoder_forward.3} parent=5 // pred_check
      %p2571 = pneg %p2570
    $region46: #{adj_encoder_forward.3} parent=5 // pred_check_branch
      %2573 = sbr.rel (%p2571) target = $region48
    $region47: #{adj_encoder_forward.3} parent=5 // pred_region
      %s2574 = ssub.s32 %s11, 2
      // Predicated region
      $region49: #{adj_encoder_forward.3} parent=47 // pred_check
        %p2575 = pneg %p165
      $region50: #{adj_encoder_forward.3} parent=47 // pred_check_branch
        %2577 = sbr.rel (%p2575) target = $region52
      $region51: #{adj_encoder_forward.3} parent=47 // pred_region
        %p2578 = scmp.lt.s32.totalorder %s17, 1
        %s2579 = scalar_select %p2578, %s17, 1
        %s2580 = smul.addr %s2579, 2
        %s2581 = smul.addr %s2580, 8
        %s2582 = scalar_lea.vmem %s5, %s2581
      $region52: #{adj_encoder_forward.3} parent=47 // pred_fallthru
        _
    $region48: #{adj_encoder_forward.3} parent=5 // pred_fallthru
      _
  $region6: #{adj_encoder_forward.3} parent=0 // loop_footer
    %s15 = sadd.s32 1, %s11
  $region7: #{adj_encoder_forward.3} parent=0 // loop_footer_branch
    %10 = sbr.rel target = $region3
  $region8: #{adj_encoder_forward.3} parent=0 // loop_exit
    _

// kernel: adj_encoder_forward.5
$region0: #{adj_encoder_forward.5}
  #allocation0 [shape = 'u32[]', space=smem, size = 0x4, offset = 0x4, fixed_abs, tag = 'smem constant byte address 0x4 - core index']
  #allocation1 [shape = 'u32[144,128]{1,0:T(1,128)}', space=vmem, size = 0x12000, scoped, tag = 'internal scratch']
  %s0 = inlined_call_operand.vmem [shape: f32[256,128], index: 0, kind: input, shape index: {}]
  %s1 = inlined_call_operand.vmem [shape: f32[1,128], index: 1, kind: input, shape index: {}]
  %s2 = inlined_call_operand.vmem [shape: f32[1,128], index: 2, kind: input, shape index: {}]
  %s3 = inlined_call_operand.vmem [shape: f32[256,128], index: 3, kind: output, shape index: {}]
  %s4 = sld [smem:[#allocation0]]
  $region22: #{adj_encoder_forward.5} parent=0
    _
  %s6 = ssub.s32 1, %s4
  %s7 = scalar_select 0, %s6, %s4
  // Predicated region
  $region2: #{adj_encoder_forward.5} parent=0 // pred_check
    _
  $region3: #{adj_encoder_forward.5} parent=0 // pred_check_branch
    %9 = sbr.rel (0) target = $region5
  $region4: #{adj_encoder_forward.5} parent=0 // pred_region
    _
  $region5: #{adj_encoder_forward.5} parent=0 // pred_fallthru
    _
  // Predicated region
  $region6: #{adj_encoder_forward.5} parent=0 // pred_check
    _
  $region7: #{adj_encoder_forward.5} parent=0 // pred_check_branch
    %11 = sbr.rel (0) target = $region9
  $region8: #{adj_encoder_forward.5} parent=0 // pred_region
    _
  $region9: #{adj_encoder_forward.5} parent=0 // pred_fallthru
    _
  // Predicated region
  $region10: #{adj_encoder_forward.5} parent=0 // pred_check
    _
  $region11: #{adj_encoder_forward.5} parent=0 // pred_check_branch
    %13 = sbr.rel (0) target = $region13
  $region12: #{adj_encoder_forward.5} parent=0 // pred_region
    _
  $region13: #{adj_encoder_forward.5} parent=0 // pred_fallthru
    _
  %v14 = vld [vmem:[%s0] sm:$0xff]
  %v15 = vld [vmem:[%s0 + $0x8] sm:$0xff]
  %v16 = vld [vmem:[%s0 + $0x10] sm:$0xff]
  %v17 = vld [vmem:[%s0 + $0x18] sm:$0xff]
  %v18 = vld [vmem:[%s0 + $0x20] sm:$0xff]
  %v19 = vld [vmem:[%s0 + $0x28] sm:$0xff]
  %v20 = vld [vmem:[%s0 + $0x30] sm:$0xff]
  %v21 = vld [vmem:[%s0 + $0x38] sm:$0xff]
  %v22 = vld [vmem:[%s0 + $0x40] sm:$0xff]
  %v23 = vld [vmem:[%s0 + $0x48] sm:$0xff]
  %v24 = vld [vmem:[%s0 + $0x50] sm:$0xff]
  %v25 = vld [vmem:[%s0 + $0x58] sm:$0xff]
  %v26 = vld [vmem:[%s0 + $0x60] sm:$0xff]
  %v27 = vld [vmem:[%s0 + $0x68] sm:$0xff]
  %v28 = vld [vmem:[%s0 + $0x70] sm:$0xff]
  %v29 = vld [vmem:[%s0 + $0x78] sm:$0xff]
  %v30 = vld [vmem:[%s0 + $0x80] sm:$0xff]
  %v31 = vld [vmem:[%s0 + $0x88] sm:$0xff]
  %v32 = vld [vmem:[%s0 + $0x90] sm:$0xff]
  %v33 = vld [vmem:[%s0 + $0x98] sm:$0xff]
  %v34 = vld [vmem:[%s0 + $0xa0] sm:$0xff]
  %v35 = vld [vmem:[%s0 + $0xa8] sm:$0xff]
  %v36 = vld [vmem:[%s0 + $0xb0] sm:$0xff]
  %v37 = vld [vmem:[%s0 + $0xb8] sm:$0xff]
  %v38 = vld [vmem:[%s0 + $0xc0] sm:$0xff]
  %v39 = vld [vmem:[%s0 + $0xc8] sm:$0xff]
  %v40 = vld [vmem:[%s0 + $0xd0] sm:$0xff]
  %v41 = vld [vmem:[%s0 + $0xd8] sm:$0xff]
  %v42 = vld [vmem:[%s0 + $0xe0] sm:$0xff]
  %v43 = vld [vmem:[%s0 + $0xe8] sm:$0xff]
  %v44 = vld [vmem:[%s0 + $0xf0] sm:$0xff]
  %v45 = vld [vmem:[%s0 + $0xf8] sm:$0xff]
  %v46 = vld [vmem:[%s1] sm:$0x1]
  %v48 = vlaneseq
  %v49 = vshrl.u32 %v48, 7
  %v50 = vsub.s32 0, %v49
  %v51 = vrot.slane %v46, %v50
  %v53 = vmul.f32 %v14, %v51
  %v54 = vmul.f32 %v15, %v51
  %v55 = vmul.f32 %v16, %v51
  %v56 = vmul.f32 %v17, %v51
  %v57 = vmul.f32 %v18, %v51
  %v58 = vmul.f32 %v19, %v51
  %v59 = vmul.f32 %v20, %v51
  %v60 = vmul.f32 %v21, %v51
  %v61 = vmul.f32 %v22, %v51
  %v62 = vmul.f32 %v23, %v51
  %v63 = vmul.f32 %v24, %v51
  %v64 = vmul.f32 %v25, %v51
  %v65 = vmul.f32 %v26, %v51
  %v66 = vmul.f32 %v27, %v51
  %v67 = vmul.f32 %v28, %v51
  %v68 = vmul.f32 %v29, %v51
  %v69 = vmul.f32 %v30, %v51
  %v70 = vmul.f32 %v31, %v51
  %v71 = vmul.f32 %v32, %v51
  %v72 = vmul.f32 %v33, %v51
  %v73 = vmul.f32 %v34, %v51
  %v74 = vmul.f32 %v35, %v51
  %v75 = vmul.f32 %v36, %v51
  %v76 = vmul.f32 %v37, %v51
  %v77 = vmul.f32 %v38, %v51
  %v78 = vmul.f32 %v39, %v51
  %v79 = vmul.f32 %v40, %v51
  %v80 = vmul.f32 %v41, %v51
  %v81 = vmul.f32 %v42, %v51
  %v82 = vmul.f32 %v43, %v51
  %v83 = vmul.f32 %v44, %v51
  %v84 = vmul.f32 %v45, %v51
  %v85 = vld [vmem:[%s2] sm:$0x1]
  %v87 = vlaneseq
  %v88 = vshrl.u32 %v87, 7
  %v89 = vsub.s32 0, %v88
  %v90 = vrot.slane %v85, %v89
  %v92 = vadd.f32 %v53, %v90
  %v93 = vadd.f32 %v54, %v90
  %v94 = vadd.f32 %v55, %v90
  %v95 = vadd.f32 %v56, %v90
  %v96 = vadd.f32 %v57, %v90
  %v97 = vadd.f32 %v58, %v90
  %v98 = vadd.f32 %v59, %v90
  %v99 = vadd.f32 %v60, %v90
  %v100 = vadd.f32 %v61, %v90
  %v101 = vadd.f32 %v62, %v90
  %v102 = vadd.f32 %v63, %v90
  %v103 = vadd.f32 %v64, %v90
  %v104 = vadd.f32 %v65, %v90
  %v105 = vadd.f32 %v66, %v90
  %v106 = vadd.f32 %v67, %v90
  %v107 = vadd.f32 %v68, %v90
  %v108 = vadd.f32 %v69, %v90
  %v109 = vadd.f32 %v70, %v90
  %v110 = vadd.f32 %v71, %v90
  %v111 = vadd.f32 %v72, %v90
  %v112 = vadd.f32 %v73, %v90
  %v113 = vadd.f32 %v74, %v90
  %v114 = vadd.f32 %v75, %v90
  %v115 = vadd.f32 %v76, %v90
  %v116 = vadd.f32 %v77, %v90
  %v117 = vadd.f32 %v78, %v90
  %v118 = vadd.f32 %v79, %v90
  %v119 = vadd.f32 %v80, %v90
  %v120 = vadd.f32 %v81, %v90
  %v121 = vadd.f32 %v82, %v90
  %v122 = vadd.f32 %v83, %v90
  %v123 = vadd.f32 %v84, %v90
  %v124 = vmax.f32 %v92, 0.0
  %v125 = vmax.f32 %v93, 0.0
  %v126 = vmax.f32 %v94, 0.0
  %v127 = vmax.f32 %v95, 0.0
  %v128 = vmax.f32 %v96, 0.0
  %v129 = vmax.f32 %v97, 0.0
  %v130 = vmax.f32 %v98, 0.0
  %v131 = vmax.f32 %v99, 0.0
  %v132 = vmax.f32 %v100, 0.0
  %v133 = vmax.f32 %v101, 0.0
  %v134 = vmax.f32 %v102, 0.0
  %v135 = vmax.f32 %v103, 0.0
  %v136 = vmax.f32 %v104, 0.0
  %v137 = vmax.f32 %v105, 0.0
  %v138 = vmax.f32 %v106, 0.0
  %v139 = vmax.f32 %v107, 0.0
  %v140 = vmax.f32 %v108, 0.0
  %v141 = vmax.f32 %v109, 0.0
  %v142 = vmax.f32 %v110, 0.0
  %v143 = vmax.f32 %v111, 0.0
  %v144 = vmax.f32 %v112, 0.0
  %v145 = vmax.f32 %v113, 0.0
  %v146 = vmax.f32 %v114, 0.0
  %v147 = vmax.f32 %v115, 0.0
  %v148 = vmax.f32 %v116, 0.0
  %v149 = vmax.f32 %v117, 0.0
  %v150 = vmax.f32 %v118, 0.0
  %v151 = vmax.f32 %v119, 0.0
  %v152 = vmax.f32 %v120, 0.0
  %v153 = vmax.f32 %v121, 0.0
  %v154 = vmax.f32 %v122, 0.0
  %v155 = vmax.f32 %v123, 0.0
  %156 = vst [vmem:[%s3] sm:$0xff] %v124
  %157 = vst [vmem:[%s3 + $0x8] sm:$0xff] %v125
  %158 = vst [vmem:[%s3 + $0x10] sm:$0xff] %v126
  %159 = vst [vmem:[%s3 + $0x18] sm:$0xff] %v127
  %160 = vst [vmem:[%s3 + $0x20] sm:$0xff] %v128
  %161 = vst [vmem:[%s3 + $0x28] sm:$0xff] %v129
  %162 = vst [vmem:[%s3 + $0x30] sm:$0xff] %v130
  %163 = vst [vmem:[%s3 + $0x38] sm:$0xff] %v131
  %164 = vst [vmem:[%s3 + $0x40] sm:$0xff] %v132
  %165 = vst [vmem:[%s3 + $0x48] sm:$0xff] %v133
  %166 = vst [vmem:[%s3 + $0x50] sm:$0xff] %v134
  %167 = vst [vmem:[%s3 + $0x58] sm:$0xff] %v135
  %168 = vst [vmem:[%s3 + $0x60] sm:$0xff] %v136
  %169 = vst [vmem:[%s3 + $0x68] sm:$0xff] %v137
  %170 = vst [vmem:[%s3 + $0x70] sm:$0xff] %v138
  %171 = vst [vmem:[%s3 + $0x78] sm:$0xff] %v139
  %172 = vst [vmem:[%s3 + $0x80] sm:$0xff] %v140
  %173 = vst [vmem:[%s3 + $0x88] sm:$0xff] %v141
  %174 = vst [vmem:[%s3 + $0x90] sm:$0xff] %v142
  %175 = vst [vmem:[%s3 + $0x98] sm:$0xff] %v143
  %176 = vst [vmem:[%s3 + $0xa0] sm:$0xff] %v144
  %177 = vst [vmem:[%s3 + $0xa8] sm:$0xff] %v145
  %178 = vst [vmem:[%s3 + $0xb0] sm:$0xff] %v146
  %179 = vst [vmem:[%s3 + $0xb8] sm:$0xff] %v147
  %180 = vst [vmem:[%s3 + $0xc0] sm:$0xff] %v148
  %181 = vst [vmem:[%s3 + $0xc8] sm:$0xff] %v149
  %182 = vst [vmem:[%s3 + $0xd0] sm:$0xff] %v150
  %183 = vst [vmem:[%s3 + $0xd8] sm:$0xff] %v151
  %184 = vst [vmem:[%s3 + $0xe0] sm:$0xff] %v152
  %185 = vst [vmem:[%s3 + $0xe8] sm:$0xff] %v153
  %186 = vst [vmem:[%s3 + $0xf0] sm:$0xff] %v154
  %187 = vst [vmem:[%s3 + $0xf8] sm:$0xff] %v155
  // Predicated region
  $region14: #{adj_encoder_forward.5} parent=0 // pred_check
    _
  $region15: #{adj_encoder_forward.5} parent=0 // pred_check_branch
    %189 = sbr.rel (0) target = $region17
  $region16: #{adj_encoder_forward.5} parent=0 // pred_region
    _
  $region17: #{adj_encoder_forward.5} parent=0 // pred_fallthru
    _
  // Predicated region
  $region18: #{adj_encoder_forward.5} parent=0 // pred_check
    _
  $region19: #{adj_encoder_forward.5} parent=0 // pred_check_branch
    %191 = sbr.rel (0) target = $region21
  $region20: #{adj_encoder_forward.5} parent=0 // pred_region
    _
  $region21: #{adj_encoder_forward.5} parent=0 // pred_fallthru
    _

// kernel: adj_encoder_forward.4
$region0: #{adj_encoder_forward.4}
  #allocation0 [shape = 'u32[]', space=smem, size = 0x4, offset = 0x4, fixed_abs, tag = 'smem constant byte address 0x4 - core index']
  #allocation1 [shape = 'u32[144,128]{1,0:T(1,128)}', space=vmem, size = 0x12000, scoped, tag = 'internal scratch']
  #allocation2 [shape = 'bf16[18,18,128]{2,1,0:T(8,128)(2,1)}', space=vmem, size = 0x1b000, scoped, tag = 'scratch operand']
  #allocation3 [shape = 'bf16[256,1152]{1,0:T(16,128)(2,1)}', space=vmem, size = 0x90000, scoped, tag = 'scratch operand']
  %s0 = inlined_call_operand.vmem [shape: bf16[2,256,64], index: 0, kind: input, shape index: {}]
  %s1 = inlined_call_operand.vmem [shape: bf16[2,256,64], index: 1, kind: input, shape index: {}]
  %s2 = inlined_call_operand.vmem [shape: bf16[2,256,64], index: 2, kind: input, shape index: {}]
  %s3 = inlined_call_operand.vmem [shape: bf16[2,256,64], index: 3, kind: input, shape index: {}]
  %s4 = inlined_call_operand.vmem [shape: bf16[4,64,128], index: 4, kind: input, shape index: {}]
  %s5 = inlined_call_operand.vmem [shape: f32[1,128], index: 5, kind: input, shape index: {}]
  %s6 = inlined_call_operand.vmem [shape: bf16[1152,64], index: 6, kind: input, shape index: {}]
  %s7 = inlined_call_operand.vmem [shape: f32[1,64], index: 7, kind: input, shape index: {}]
  %s8 = inlined_call_operand.vmem [shape: f32[2,256,64], index: 8, kind: output, shape index: {0}]
  %s9 = inlined_call_operand.vmem [shape: f32[2,2,64], index: 9, kind: output, shape index: {1}]
  %10 = xla_tuple %s8, %s9
  %s11 = sld [smem:[#allocation0]]
  $region73: #{adj_encoder_forward.4} parent=0
    _
  %s13 = ssub.s32 1, %s11
  %s14 = scalar_select 0, %s13, %s11
  loop: start=0, step=1, limit=4
  $region2: #{adj_encoder_forward.4} parent=0 // loop_pre_header
    _
  $region3: #{adj_encoder_forward.4} parent=0 // loop_header
    %s16 = sphi 0, %s20
    %p17 = scmp.ge.s32.totalorder %s16, 4
    %s26 = sphi 0, %s28
    %s29 = sphi 0, %s26
    %s30 = sphi 0, %s29
    %s46 = sphi 0, %s30
    %s52 = sphi 0, %s54
    %s55 = sphi 0, %s52
    %s56 = sphi 0, %s55
    %s72 = sphi 0, %s56
    %s78 = sphi 0, %s80
    %s81 = sphi 0, %s78
    %s82 = sphi 0, %s81
    %s98 = sphi 0, %s82
    %s104 = sphi 0, %s106
    %s107 = sphi 0, %s104
    %s108 = sphi 0, %s107
    %s124 = sphi 0, %s108
    %s128 = sphi 0, %s128
    %s130 = sphi 0, %s128
    %s131 = sphi 0, %s130
    %s145 = sphi 0, %s131
    %s149 = sphi 0, %s149
    %s151 = sphi 0, %s149
    %s152 = sphi 0, %s151
    %s166 = sphi 0, %s152
    %s170 = sphi 0, %s170
    %s172 = sphi 0, %s170
    %s173 = sphi 0, %s172
    %s187 = sphi 0, %s173
    %s191 = sphi 0, %s191
    %s193 = sphi 0, %s191
    %s194 = sphi 0, %s193
    %s208 = sphi 0, %s194
    %s214 = sphi 0, %s216
    %s217 = sphi 0, %s214
    %s218 = sphi 0, %s217
    %s234 = sphi 0, %s218
    %s240 = sphi 0, %s242
    %s243 = sphi 0, %s240
    %s244 = sphi 0, %s243
    %s260 = sphi 0, %s244
  $region4: #{adj_encoder_forward.4} parent=0 // loop_header_branch
    %19 = sbr.rel (%p17) target = $region8
  $region5: #{adj_encoder_forward.4} parent=0 // loop_body
    %s21 = ssub.s32 %s16, 1
    %s22 = ssub.s32 %s16, 2
    %s23 = sadd.s32 %s16, 1
    %s24 = ssub.s32 %s16, %s23
    %p25 = scmp.eq.s32.totalorder %s24, 0
    %s27 = sadd.s32 %s26, 1
    %s28 = scalar_select %p25, %s26, %s27
    %p31 = pneg %p25
    %p32 = scmp.eq.s32.totalorder %s16, 1
    %p33 = por %p31, %p32
    %p34 = scmp.ne.s32.totalorder %s26, %s29
    %p35 = scmp.eq.s32.totalorder %s16, 0
    %p36 = por %p34, %p35
    %p37 = scmp.ne.s32.totalorder %s26, %s29
    %p38 = scmp.eq.s32.totalorder %s21, 1
    %p39 = por %p37, %p38
    %p40 = scmp.ne.s32.totalorder %s29, %s30
    %p41 = scmp.eq.s32.totalorder %s21, 0
    %p42 = por %p40, %p41
    %p43 = scmp.ne.s32.totalorder %s29, %s30
    %p44 = scmp.eq.s32.totalorder %s22, 1
    %p45 = por %p43, %p44
    %p47 = scmp.ne.s32.totalorder %s30, %s46
    %p48 = scmp.eq.s32.totalorder %s22, 0
    %p49 = por %p47, %p48
    %s50 = ssub.s32 %s16, %s23
    %p51 = scmp.eq.s32.totalorder %s50, 0
    %s53 = sadd.s32 %s52, 1
    %s54 = scalar_select %p51, %s52, %s53
    %p57 = pneg %p51
    %p58 = scmp.eq.s32.totalorder %s16, 1
    %p59 = por %p57, %p58
    %p60 = scmp.ne.s32.totalorder %s52, %s55
    %p61 = scmp.eq.s32.totalorder %s16, 0
    %p62 = por %p60, %p61
    %p63 = scmp.ne.s32.totalorder %s52, %s55
    %p64 = scmp.eq.s32.totalorder %s21, 1
    %p65 = por %p63, %p64
    %p66 = scmp.ne.s32.totalorder %s55, %s56
    %p67 = scmp.eq.s32.totalorder %s21, 0
    %p68 = por %p66, %p67
    %p69 = scmp.ne.s32.totalorder %s55, %s56
    %p70 = scmp.eq.s32.totalorder %s22, 1
    %p71 = por %p69, %p70
    %p73 = scmp.ne.s32.totalorder %s56, %s72
    %p74 = scmp.eq.s32.totalorder %s22, 0
    %p75 = por %p73, %p74
    %s76 = ssub.s32 %s16, %s23
    %p77 = scmp.eq.s32.totalorder %s76, 0
    %s79 = sadd.s32 %s78, 1
    %s80 = scalar_select %p77, %s78, %s79
    %p83 = pneg %p77
    %p84 = scmp.eq.s32.totalorder %s16, 1
    %p85 = por %p83, %p84
    %p86 = scmp.ne.s32.totalorder %s78, %s81
    %p87 = scmp.eq.s32.totalorder %s16, 0
    %p88 = por %p86, %p87
    %p89 = scmp.ne.s32.totalorder %s78, %s81
    %p90 = scmp.eq.s32.totalorder %s21, 1
    %p91 = por %p89, %p90
    %p92 = scmp.ne.s32.totalorder %s81, %s82
    %p93 = scmp.eq.s32.totalorder %s21, 0
    %p94 = por %p92, %p93
    %p95 = scmp.ne.s32.totalorder %s81, %s82
    %p96 = scmp.eq.s32.totalorder %s22, 1
    %p97 = por %p95, %p96
    %p99 = scmp.ne.s32.totalorder %s82, %s98
    %p100 = scmp.eq.s32.totalorder %s22, 0
    %p101 = por %p99, %p100
    %s102 = ssub.s32 %s16, %s23
    %p103 = scmp.eq.s32.totalorder %s102, 0
    %s105 = sadd.s32 %s104, 1
    %s106 = scalar_select %p103, %s104, %s105
    %p109 = pneg %p103
    %p110 = scmp.eq.s32.totalorder %s16, 1
    %p111 = por %p109, %p110
    %p112 = scmp.ne.s32.totalorder %s104, %s107
    %p113 = scmp.eq.s32.totalorder %s16, 0
    %p114 = por %p112, %p113
    %p115 = scmp.ne.s32.totalorder %s104, %s107
    %p116 = scmp.eq.s32.totalorder %s21, 1
    %p117 = por %p115, %p116
    %p118 = scmp.ne.s32.totalorder %s107, %s108
    %p119 = scmp.eq.s32.totalorder %s21, 0
    %p120 = por %p118, %p119
    %p121 = scmp.ne.s32.totalorder %s107, %s108
    %p122 = scmp.eq.s32.totalorder %s22, 1
    %p123 = por %p121, %p122
    %p125 = scmp.ne.s32.totalorder %s108, %s124
    %p126 = scmp.eq.s32.totalorder %s22, 0
    %p127 = por %p125, %p126
    %s129 = sadd.s32 %s128, 1
    %p132 = scmp.eq.s32.totalorder %s16, 1
    %p133 = scmp.ne.s32.totalorder %s128, %s130
    %p134 = scmp.eq.s32.totalorder %s16, 0
    %p135 = por %p133, %p134
    %p136 = scmp.ne.s32.totalorder %s128, %s130
    %p137 = scmp.eq.s32.totalorder %s21, 1
    %p138 = por %p136, %p137
    %p139 = scmp.ne.s32.totalorder %s130, %s131
    %p140 = scmp.eq.s32.totalorder %s21, 0
    %p141 = por %p139, %p140
    %p142 = scmp.ne.s32.totalorder %s130, %s131
    %p143 = scmp.eq.s32.totalorder %s22, 1
    %p144 = por %p142, %p143
    %p146 = scmp.ne.s32.totalorder %s131, %s145
    %p147 = scmp.eq.s32.totalorder %s22, 0
    %p148 = por %p146, %p147
    %s150 = sadd.s32 %s149, 1
    %p153 = scmp.eq.s32.totalorder %s16, 1
    %p154 = scmp.ne.s32.totalorder %s149, %s151
    %p155 = scmp.eq.s32.totalorder %s16, 0
    %p156 = por %p154, %p155
    %p157 = scmp.ne.s32.totalorder %s149, %s151
    %p158 = scmp.eq.s32.totalorder %s21, 1
    %p159 = por %p157, %p158
    %p160 = scmp.ne.s32.totalorder %s151, %s152
    %p161 = scmp.eq.s32.totalorder %s21, 0
    %p162 = por %p160, %p161
    %p163 = scmp.ne.s32.totalorder %s151, %s152
    %p164 = scmp.eq.s32.totalorder %s22, 1
    %p165 = por %p163, %p164
    %p167 = scmp.ne.s32.totalorder %s152, %s166
    %p168 = scmp.eq.s32.totalorder %s22, 0
    %p169 = por %p167, %p168
    %s171 = sadd.s32 %s170, 1
    %p174 = scmp.eq.s32.totalorder %s16, 1
    %p175 = scmp.ne.s32.totalorder %s170, %s172
    %p176 = scmp.eq.s32.totalorder %s16, 0
    %p177 = por %p175, %p176
    %p178 = scmp.ne.s32.totalorder %s170, %s172
    %p179 = scmp.eq.s32.totalorder %s21, 1
    %p180 = por %p178, %p179
    %p181 = scmp.ne.s32.totalorder %s172, %s173
    %p182 = scmp.eq.s32.totalorder %s21, 0
    %p183 = por %p181, %p182
    %p184 = scmp.ne.s32.totalorder %s172, %s173
    %p185 = scmp.eq.s32.totalorder %s22, 1
    %p186 = por %p184, %p185
    %p188 = scmp.ne.s32.totalorder %s173, %s187
    %p189 = scmp.eq.s32.totalorder %s22, 0
    %p190 = por %p188, %p189
    %s192 = sadd.s32 %s191, 1
    %p195 = scmp.eq.s32.totalorder %s16, 1
    %p196 = scmp.ne.s32.totalorder %s191, %s193
    %p197 = scmp.eq.s32.totalorder %s16, 0
    %p198 = por %p196, %p197
    %p199 = scmp.ne.s32.totalorder %s191, %s193
    %p200 = scmp.eq.s32.totalorder %s21, 1
    %p201 = por %p199, %p200
    %p202 = scmp.ne.s32.totalorder %s193, %s194
    %p203 = scmp.eq.s32.totalorder %s21, 0
    %p204 = por %p202, %p203
    %p205 = scmp.ne.s32.totalorder %s193, %s194
    %p206 = scmp.eq.s32.totalorder %s22, 1
    %p207 = por %p205, %p206
    %p209 = scmp.ne.s32.totalorder %s194, %s208
    %p210 = scmp.eq.s32.totalorder %s22, 0
    %p211 = por %p209, %p210
    %s212 = ssub.s32 %s16, %s23
    %p213 = scmp.eq.s32.totalorder %s212, 0
    %s215 = sadd.s32 %s214, 1
    %s216 = scalar_select %p213, %s214, %s215
    %p219 = pneg %p213
    %p220 = scmp.eq.s32.totalorder %s16, 1
    %p221 = por %p219, %p220
    %p222 = scmp.ne.s32.totalorder %s214, %s217
    %p223 = scmp.eq.s32.totalorder %s16, 0
    %p224 = por %p222, %p223
    %p225 = scmp.ne.s32.totalorder %s214, %s217
    %p226 = scmp.eq.s32.totalorder %s21, 1
    %p227 = por %p225, %p226
    %p228 = scmp.ne.s32.totalorder %s217, %s218
    %p229 = scmp.eq.s32.totalorder %s21, 0
    %p230 = por %p228, %p229
    %p231 = scmp.ne.s32.totalorder %s217, %s218
    %p232 = scmp.eq.s32.totalorder %s22, 1
    %p233 = por %p231, %p232
    %p235 = scmp.ne.s32.totalorder %s218, %s234
    %p236 = scmp.eq.s32.totalorder %s22, 0
    %p237 = por %p235, %p236
    %s238 = ssub.s32 %s16, %s23
    %p239 = scmp.eq.s32.totalorder %s238, 0
    %s241 = sadd.s32 %s240, 1
    %s242 = scalar_select %p239, %s240, %s241
    %p245 = pneg %p239
    %p246 = scmp.eq.s32.totalorder %s16, 1
    %p247 = por %p245, %p246
    %p248 = scmp.ne.s32.totalorder %s240, %s243
    %p249 = scmp.eq.s32.totalorder %s16, 0
    %p250 = por %p248, %p249
    %p251 = scmp.ne.s32.totalorder %s240, %s243
    %p252 = scmp.eq.s32.totalorder %s21, 1
    %p253 = por %p251, %p252
    %p254 = scmp.ne.s32.totalorder %s243, %s244
    %p255 = scmp.eq.s32.totalorder %s21, 0
    %p256 = por %p254, %p255
    %p257 = scmp.ne.s32.totalorder %s243, %s244
    %p258 = scmp.eq.s32.totalorder %s22, 1
    %p259 = por %p257, %p258
    %p261 = scmp.ne.s32.totalorder %s244, %s260
    %p262 = scmp.eq.s32.totalorder %s22, 0
    %p263 = por %p261, %p262
    %p264 = scmp.le.s32.totalorder 1, %s16
    %p265 = scmp.lt.s32.totalorder %s16, 3
    %p266 = pnand %p264, %p265
    %p267 = pneg %p266
    // Predicated region
    $region9: #{adj_encoder_forward.4} parent=5 // pred_check
      _
    $region10: #{adj_encoder_forward.4} parent=5 // pred_check_branch
      %269 = sbr.rel (%p266) target = $region12
    $region11: #{adj_encoder_forward.4} parent=5 // pred_region
      %s270 = ssub.s32 %s16, 1
      // Predicated region
      $region13: #{adj_encoder_forward.4} parent=11 // pred_check
        %p271 = pneg %p141
      $region14: #{adj_encoder_forward.4} parent=11 // pred_check_branch
        %273 = sbr.rel (%p271) target = $region16
      $region15: #{adj_encoder_forward.4} parent=11 // pred_region
        _
      $region16: #{adj_encoder_forward.4} parent=11 // pred_fallthru
        _
      // Predicated region
      $region17: #{adj_encoder_forward.4} parent=11 // pred_check
        %p274 = pneg %p162
      $region18: #{adj_encoder_forward.4} parent=11 // pred_check_branch
        %276 = sbr.rel (%p274) target = $region20
      $region19: #{adj_encoder_forward.4} parent=11 // pred_region
        _
      $region20: #{adj_encoder_forward.4} parent=11 // pred_fallthru
        _
      // Predicated region
      $region21: #{adj_encoder_forward.4} parent=11 // pred_check
        %p277 = pneg %p183
      $region22: #{adj_encoder_forward.4} parent=11 // pred_check_branch
        %279 = sbr.rel (%p277) target = $region24
      $region23: #{adj_encoder_forward.4} parent=11 // pred_region
        _
      $region24: #{adj_encoder_forward.4} parent=11 // pred_fallthru
        _
      // Predicated region
      $region25: #{adj_encoder_forward.4} parent=11 // pred_check
        %p280 = pneg %p204
      $region26: #{adj_encoder_forward.4} parent=11 // pred_check_branch
        %282 = sbr.rel (%p280) target = $region28
      $region27: #{adj_encoder_forward.4} parent=11 // pred_region
        _
      $region28: #{adj_encoder_forward.4} parent=11 // pred_fallthru
        _
    $region12: #{adj_encoder_forward.4} parent=5 // pred_fallthru
      _
    %p283 = scmp.lt.s32.totalorder %s16, 2
    // Predicated region
    $region29: #{adj_encoder_forward.4} parent=5 // pred_check
      %p284 = pneg %p283
    $region30: #{adj_encoder_forward.4} parent=5 // pred_check_branch
      %286 = sbr.rel (%p284) target = $region32
    $region31: #{adj_encoder_forward.4} parent=5 // pred_region
      // Predicated region
      $region33: #{adj_encoder_forward.4} parent=31 // pred_check
        %p287 = pneg %p36
      $region34: #{adj_encoder_forward.4} parent=31 // pred_check_branch
        %289 = sbr.rel (%p287) target = $region36
      $region35: #{adj_encoder_forward.4} parent=31 // pred_region
        %p290 = scmp.lt.s32.totalorder %s16, 1
        %s291 = scalar_select %p290, %s16, 1
        %s292 = smul.addr %s291, 32
        %s293 = smul.addr %s292, 4
        %s294 = scalar_lea.vmem %s0, %s293
      $region36: #{adj_encoder_forward.4} parent=31 // pred_fallthru
        _
      // Predicated region
      $region37: #{adj_encoder_forward.4} parent=31 // pred_check
        %p295 = pneg %p62
      $region38: #{adj_encoder_forward.4} parent=31 // pred_check_branch
        %297 = sbr.rel (%p295) target = $region40
      $region39: #{adj_encoder_forward.4} parent=31 // pred_region
        %p298 = scmp.lt.s32.totalorder %s16, 1
        %s299 = scalar_select %p298, %s16, 1
        %s300 = smul.addr %s299, 32
        %s301 = smul.addr %s300, 4
        %s302 = scalar_lea.vmem %s1, %s301
      $region40: #{adj_encoder_forward.4} parent=31 // pred_fallthru
        _
      // Predicated region
      $region41: #{adj_encoder_forward.4} parent=31 // pred_check
        %p303 = pneg %p88
      $region42: #{adj_encoder_forward.4} parent=31 // pred_check_branch
        %305 = sbr.rel (%p303) target = $region44
      $region43: #{adj_encoder_forward.4} parent=31 // pred_region
        %p306 = scmp.lt.s32.totalorder %s16, 1
        %s307 = scalar_select %p306, %s16, 1
        %s308 = smul.addr %s307, 32
        %s309 = smul.addr %s308, 4
        %s310 = scalar_lea.vmem %s2, %s309
      $region44: #{adj_encoder_forward.4} parent=31 // pred_fallthru
        _
      // Predicated region
      $region45: #{adj_encoder_forward.4} parent=31 // pred_check
        %p311 = pneg %p114
      $region46: #{adj_encoder_forward.4} parent=31 // pred_check_branch
        %313 = sbr.rel (%p311) target = $region48
      $region47: #{adj_encoder_forward.4} parent=31 // pred_region
        %p314 = scmp.lt.s32.totalorder %s16, 1
        %s315 = scalar_select %p314, %s16, 1
        %s316 = smul.addr %s315, 32
        %s317 = smul.addr %s316, 4
        %s318 = scalar_lea.vmem %s3, %s317
      $region48: #{adj_encoder_forward.4} parent=31 // pred_fallthru
        _
    $region32: #{adj_encoder_forward.4} parent=5 // pred_fallthru
      _
    %p319 = scmp.le.s32.totalorder 1, %s16
    %p320 = scmp.lt.s32.totalorder %s16, 3
    %p321 = pnand %p319, %p320
    %p322 = pneg %p321
    // Predicated region
    $region49: #{adj_encoder_forward.4} parent=5 // pred_check
      _
    $region50: #{adj_encoder_forward.4} parent=5 // pred_check_branch
      %324 = sbr.rel (%p321) target = $region52
    $region51: #{adj_encoder_forward.4} parent=5 // pred_region
      %s325 = ssub.s32 %s16, 1
      %p326 = scmp.lt.s32.totalorder %s21, 1
      %s327 = scalar_select %p326, %s21, 1
      %s328 = smul.addr %s327, 32
      %s329 = smul.addr %s328, 4
      %s330 = scalar_lea.vmem %s0, %s329
      %p331 = pneg %p42
      %p332 = pneg %p39
      %p333 = scmp.lt.s32.totalorder %s21, 1
      %s334 = scalar_select %p333, %s21, 1
      %s335 = smul.addr %s334, 32
      %s336 = smul.addr %s335, 4
      %s337 = scalar_lea.vmem %s1, %s336
      %p338 = pneg %p68
      %p339 = pneg %p65
      %p340 = scmp.lt.s32.totalorder %s21, 1
      %s341 = scalar_select %p340, %s21, 1
      %s342 = smul.addr %s341, 32
      %s343 = smul.addr %s342, 4
      %s344 = scalar_lea.vmem %s2, %s343
      %p345 = pneg %p94
      %p346 = pneg %p91
      %p347 = scmp.lt.s32.totalorder %s21, 1
      %s348 = scalar_select %p347, %s21, 1
      %s349 = smul.addr %s348, 32
      %s350 = smul.addr %s349, 4
      %s351 = scalar_lea.vmem %s3, %s350
      %p352 = pneg %p120
      %p353 = pneg %p117
      %p354 = pneg %p141
      %p355 = pneg %p138
      %p356 = pneg %p162
      %p357 = pneg %p159
      %p358 = pneg %p183
      %p359 = pneg %p180
      %p360 = pneg %p204
      %p361 = pneg %p201
      %p362 = pneg %p230
      %p363 = pneg %p227
      %p364 = scmp.lt.s32.totalorder %s21, 1
      %s365 = scalar_select %p364, %s21, 1
      %s366 = smul.addr %s365, 32
      %s367 = smul.addr %s366, 8
      %s368 = scalar_lea.vmem %s8, %s367
      %p369 = pneg %p256
      %p370 = pneg %p253
      %p371 = scmp.lt.s32.totalorder %s21, 1
      %s372 = scalar_select %p371, %s21, 1
      %s373 = smul.addr %s372, 2
      %s374 = scalar_lea.vmem %s9, %s373
      %p375 = scmp.lt.s32.totalorder %s21, 1
      %s376 = scalar_select %p375, %s21, 1
      %s377 = smul.addr %s376, 32
      %s378 = smul.addr %s377, 4
      %s379 = scalar_lea.vmem %s0, %s378
      %p380 = scmp.lt.s32.totalorder %s21, 1
      %s381 = scalar_select %p380, %s21, 1
      %s382 = smul.addr %s381, 32
      %s383 = smul.addr %s382, 4
      %s384 = scalar_lea.vmem %s1, %s383
      %p385 = scmp.lt.s32.totalorder %s21, 1
      %s386 = scalar_select %p385, %s21, 1
      %s387 = smul.addr %s386, 32
      %s388 = smul.addr %s387, 4
      %s389 = scalar_lea.vmem %s2, %s388
      %p390 = scmp.lt.s32.totalorder %s21, 1
      %s391 = scalar_select %p390, %s21, 1
      %s392 = smul.addr %s391, 32
      %s393 = smul.addr %s392, 4
      %s394 = scalar_lea.vmem %s3, %s393
      %p395 = scmp.lt.s32.totalorder %s21, 1
      %s396 = scalar_select %p395, %s21, 1
      %s397 = smul.addr %s396, 32
      %s398 = smul.addr %s397, 8
      %s399 = scalar_lea.vmem %s8, %s398
      %p400 = scmp.lt.s32.totalorder %s21, 1
      %s401 = scalar_select %p400, %s21, 1
      %s402 = smul.addr %s401, 2
      %s403 = scalar_lea.vmem %s9, %s402
      %v405 = vld [vmem:[%s379] sm:$0xf]
      %v406 = vld [vmem:[%s379 + $0x4] sm:$0xf]
      %v407 = vld [vmem:[%s379 + $0x8] sm:$0xf]
      %v408 = vld [vmem:[%s379 + $0xc] sm:$0xf]
      %v409 = vld [vmem:[%s379 + $0x10] sm:$0xf]
      %v410 = vld [vmem:[%s379 + $0x14] sm:$0xf]
      %v411 = vld [vmem:[%s379 + $0x18] sm:$0xf]
      %v412 = vld [vmem:[%s379 + $0x1c] sm:$0xf]
      %v413 = vld [vmem:[%s379 + $0x20] sm:$0xf]
      %v414 = vld [vmem:[%s379 + $0x24] sm:$0xf]
      %v415 = vld [vmem:[%s379 + $0x28] sm:$0xf]
      %v416 = vld [vmem:[%s379 + $0x2c] sm:$0xf]
      %v417 = vld [vmem:[%s379 + $0x30] sm:$0xf]
      %v418 = vld [vmem:[%s379 + $0x34] sm:$0xf]
      %v419 = vld [vmem:[%s379 + $0x38] sm:$0xf]
      %v420 = vld [vmem:[%s379 + $0x3c] sm:$0xf]
      %v421 = vld [vmem:[%s379 + $0x40] sm:$0xf]
      %v422 = vld [vmem:[%s379 + $0x44] sm:$0xf]
      %v423 = vld [vmem:[%s379 + $0x48] sm:$0xf]
      %v424 = vld [vmem:[%s379 + $0x4c] sm:$0xf]
      %v425 = vld [vmem:[%s379 + $0x50] sm:$0xf]
      %v426 = vld [vmem:[%s379 + $0x54] sm:$0xf]
      %v427 = vld [vmem:[%s379 + $0x58] sm:$0xf]
      %v428 = vld [vmem:[%s379 + $0x5c] sm:$0xf]
      %v429 = vld [vmem:[%s379 + $0x60] sm:$0xf]
      %v430 = vld [vmem:[%s379 + $0x64] sm:$0xf]
      %v431 = vld [vmem:[%s379 + $0x68] sm:$0xf]
      %v432 = vld [vmem:[%s379 + $0x6c] sm:$0xf]
      %v433 = vld [vmem:[%s379 + $0x70] sm:$0xf]
      %v434 = vld [vmem:[%s379 + $0x74] sm:$0xf]
      %v435 = vld [vmem:[%s379 + $0x78] sm:$0xf]
      %v436 = vld [vmem:[%s379 + $0x7c] sm:$0xf]
      %v437 = vld [vmem:[%s4] sm:$0xf]
      %v438 = vld [vmem:[%s4 + $0x4] sm:$0xf]
      %v439 = vld [vmem:[%s4 + $0x8] sm:$0xf]
      %v440 = vld [vmem:[%s4 + $0xc] sm:$0xf]
      %v441 = vld [vmem:[%s4 + $0x10] sm:$0xf]
      %v442 = vld [vmem:[%s4 + $0x14] sm:$0xf]
      %v443 = vld [vmem:[%s4 + $0x18] sm:$0xf]
      %v444 = vld [vmem:[%s4 + $0x1c] sm:$0xf]
      %v445 = vld [vmem:[%s384] sm:$0xf]
      %v446 = vld [vmem:[%s384 + $0x4] sm:$0xf]
      %v447 = vld [vmem:[%s384 + $0x8] sm:$0xf]
      %v448 = vld [vmem:[%s384 + $0xc] sm:$0xf]
      %v449 = vld [vmem:[%s384 + $0x10] sm:$0xf]
      %v450 = vld [vmem:[%s384 + $0x14] sm:$0xf]
      %v451 = vld [vmem:[%s384 + $0x18] sm:$0xf]
      %v452 = vld [vmem:[%s384 + $0x1c] sm:$0xf]
      %v453 = vld [vmem:[%s384 + $0x20] sm:$0xf]
      %v454 = vld [vmem:[%s384 + $0x24] sm:$0xf]
      %v455 = vld [vmem:[%s384 + $0x28] sm:$0xf]
      %v456 = vld [vmem:[%s384 + $0x2c] sm:$0xf]
      %v457 = vld [vmem:[%s384 + $0x30] sm:$0xf]
      %v458 = vld [vmem:[%s384 + $0x34] sm:$0xf]
      %v459 = vld [vmem:[%s384 + $0x38] sm:$0xf]
      %v460 = vld [vmem:[%s384 + $0x3c] sm:$0xf]
      %v461 = vld [vmem:[%s384 + $0x40] sm:$0xf]
      %v462 = vld [vmem:[%s384 + $0x44] sm:$0xf]
      %v463 = vld [vmem:[%s384 + $0x48] sm:$0xf]
      %v464 = vld [vmem:[%s384 + $0x4c] sm:$0xf]
      %v465 = vld [vmem:[%s384 + $0x50] sm:$0xf]
      %v466 = vld [vmem:[%s384 + $0x54] sm:$0xf]
      %v467 = vld [vmem:[%s384 + $0x58] sm:$0xf]
      %v468 = vld [vmem:[%s384 + $0x5c] sm:$0xf]
      %v469 = vld [vmem:[%s384 + $0x60] sm:$0xf]
      %v470 = vld [vmem:[%s384 + $0x64] sm:$0xf]
      %v471 = vld [vmem:[%s384 + $0x68] sm:$0xf]
      %v472 = vld [vmem:[%s384 + $0x6c] sm:$0xf]
      %v473 = vld [vmem:[%s384 + $0x70] sm:$0xf]
      %v474 = vld [vmem:[%s384 + $0x74] sm:$0xf]
      %v475 = vld [vmem:[%s384 + $0x78] sm:$0xf]
      %v476 = vld [vmem:[%s384 + $0x7c] sm:$0xf]
      %s477 = scalar_lea.vmem %s4, 32
      %v478 = vld [vmem:[%s477] sm:$0xf]
      %v479 = vld [vmem:[%s477 + $0x4] sm:$0xf]
      %v480 = vld [vmem:[%s477 + $0x8] sm:$0xf]
      %v481 = vld [vmem:[%s477 + $0xc] sm:$0xf]
      %v482 = vld [vmem:[%s477 + $0x10] sm:$0xf]
      %v483 = vld [vmem:[%s477 + $0x14] sm:$0xf]
      %v484 = vld [vmem:[%s477 + $0x18] sm:$0xf]
      %v485 = vld [vmem:[%s477 + $0x1c] sm:$0xf]
      %v518 = vunpack.c.l.b16 %v445
      %v519 = vunpack.c.l.b16 %v446
      %v520 = vunpack.c.l.b16 %v447
      %v521 = vunpack.c.l.b16 %v448
      %v522 = vunpack.c.l.b16 %v449
      %v523 = vunpack.c.l.b16 %v450
      %v524 = vunpack.c.l.b16 %v451
      %v525 = vunpack.c.l.b16 %v452
      %v526 = vunpack.c.l.b16 %v453
      %v527 = vunpack.c.l.b16 %v454
      %v528 = vunpack.c.l.b16 %v455
      %v529 = vunpack.c.l.b16 %v456
      %v530 = vunpack.c.l.b16 %v457
      %v531 = vunpack.c.l.b16 %v458
      %v532 = vunpack.c.l.b16 %v459
      %v533 = vunpack.c.l.b16 %v460
      %v534 = vunpack.c.l.b16 %v461
      %v535 = vunpack.c.l.b16 %v462
      %v536 = vunpack.c.l.b16 %v463
      %v537 = vunpack.c.l.b16 %v464
      %v538 = vunpack.c.l.b16 %v465
      %v539 = vunpack.c.l.b16 %v466
      %v540 = vunpack.c.l.b16 %v467
      %v541 = vunpack.c.l.b16 %v468
      %v542 = vunpack.c.l.b16 %v469
      %v543 = vunpack.c.l.b16 %v470
      %v544 = vunpack.c.l.b16 %v471
      %v545 = vunpack.c.l.b16 %v472
      %v546 = vunpack.c.l.b16 %v473
      %v547 = vunpack.c.l.b16 %v474
      %v548 = vunpack.c.l.b16 %v475
      %v549 = vunpack.c.l.b16 %v476
      %v550 = vpack.c.b16 %v519, %v518
      %v551 = vpack.c.b16 %v521, %v520
      %v552 = vpack.c.b16 %v523, %v522
      %v553 = vpack.c.b16 %v525, %v524
      %v554 = vpack.c.b16 %v527, %v526
      %v555 = vpack.c.b16 %v529, %v528
      %v556 = vpack.c.b16 %v531, %v530
      %v557 = vpack.c.b16 %v533, %v532
      %v558 = vpack.c.b16 %v535, %v534
      %v559 = vpack.c.b16 %v537, %v536
      %v560 = vpack.c.b16 %v539, %v538
      %v561 = vpack.c.b16 %v541, %v540
      %v562 = vpack.c.b16 %v543, %v542
      %v563 = vpack.c.b16 %v545, %v544
      %v564 = vpack.c.b16 %v547, %v546
      %v565 = vpack.c.b16 %v549, %v548
      %v574 = vunpack.c.l.b16 %v478
      %v575 = vunpack.c.l.b16 %v479
      %v576 = vunpack.c.l.b16 %v480
      %v577 = vunpack.c.l.b16 %v481
      %v578 = vunpack.c.l.b16 %v482
      %v579 = vunpack.c.l.b16 %v483
      %v580 = vunpack.c.l.b16 %v484
      %v581 = vunpack.c.l.b16 %v485
      %v582 = vpack.c.b16 %v575, %v574
      %v583 = vpack.c.b16 %v577, %v576
      %v584 = vpack.c.b16 %v579, %v578
      %v585 = vpack.c.b16 %v581, %v580
      %vm590 = vcmask 523264
      %v592 = vsel %vm590, %v550, 0
      %v595 = vsel %vm590, %v551, 0
      %v598 = vsel %vm590, %v552, 0
      %v601 = vsel %vm590, %v553, 0
      %v604 = vsel %vm590, %v554, 0
      %v607 = vsel %vm590, %v555, 0
      %v610 = vsel %vm590, %v556, 0
      %v613 = vsel %vm590, %v557, 0
      %v616 = vsel %vm590, %v558, 0
      %v619 = vsel %vm590, %v559, 0
      %v622 = vsel %vm590, %v560, 0
      %v625 = vsel %vm590, %v561, 0
      %v628 = vsel %vm590, %v562, 0
      %v631 = vsel %vm590, %v563, 0
      %v634 = vsel %vm590, %v564, 0
      %v637 = vsel %vm590, %v565, 0
      %639 = vmatprep.subr.bf16.mxu0 0
      %640 = vmatpush1.bf16.msra.mxu0 %v582
      %641 = vmatprep.subr.bf16.mxu0 0
      %642 = vmatpush1.bf16.msra.mxu0 %v583
      %643 = vmatprep.subr.bf16.mxu0 0
      %644 = vmatpush1.bf16.msra.mxu0 %v584
      %645 = vmatprep.subr.bf16.mxu0 0
      %646 = vmatpush1.bf16.msra.mxu0 %v585
      %647 = vmatprep.subr.bf16.mxu0 0
      %648 = vmatpush1.bf16.msra.mxu0 0
      %649 = vmatprep.subr.bf16.mxu0 0
      %650 = vmatpush1.bf16.msra.mxu0 0
      %651 = vmatprep.subr.bf16.mxu0 0
      %652 = vmatpush1.bf16.msra.mxu0 0
      %653 = vmatprep.subr.bf16.mxu0 0
      %654 = vmatpush1.bf16.msra.mxu0 0
      %655 = vmatprep.subr.bf16.mxu0 0
      %656 = vmatpush1.bf16.msra.mxu0 0
      %657 = vmatprep.subr.bf16.mxu0 0
      %658 = vmatpush1.bf16.msra.mxu0 0
      %659 = vmatprep.subr.bf16.mxu0 0
      %660 = vmatpush1.bf16.msra.mxu0 0
      %661 = vmatprep.subr.bf16.mxu0 0
      %662 = vmatpush1.bf16.msra.mxu0 0
      %663 = vmatprep.subr.bf16.mxu0 0
      %664 = vmatpush1.bf16.msra.mxu0 0
      %665 = vmatprep.subr.bf16.mxu0 0
      %666 = vmatpush1.bf16.msra.mxu0 0
      %667 = vmatprep.subr.bf16.mxu0 0
      %668 = vmatpush1.bf16.msra.mxu0 0
      %669 = vmatprep.subr.bf16.mxu0 0
      %670 = vmatpush1.bf16.msra.mxu0 0
      %671 = vmatprep.mubr.bf16.mxu0 0
      %672 = vmatmul.mubr.bf16.gmra.mrb[0].mxu0 %v592
      %v673 = vpop.f32.mrb[0].mxu0
      %v674 = vadd.f32 0.0, %v673
      %v675 = vpop.f32.mrb[0].mxu0
      %v676 = vpop.f32.mrb[0].mxu0
      %v677 = vadd.f32 0.0, %v676
      %v678 = vpop.f32.mrb[0].mxu0
      %679 = vmatprep.mubr.bf16.mxu0 0
      %680 = vmatmul.mubr.bf16.gmra.mrb[0].mxu0 %v595
      %v681 = vpop.f32.mrb[0].mxu0
      %v682 = vadd.f32 0.0, %v681
      %v683 = vpop.f32.mrb[0].mxu0
      %v684 = vpop.f32.mrb[0].mxu0
      %v685 = vadd.f32 0.0, %v684
      %v686 = vpop.f32.mrb[0].mxu0
      %687 = vmatprep.mubr.bf16.mxu0 0
      %688 = vmatmul.mubr.bf16.gmra.mrb[0].mxu0 %v598
      %v689 = vpop.f32.mrb[0].mxu0
      %v690 = vadd.f32 0.0, %v689
      %v691 = vpop.f32.mrb[0].mxu0
      %v692 = vpop.f32.mrb[0].mxu0
      %v693 = vadd.f32 0.0, %v692
      %v694 = vpop.f32.mrb[0].mxu0
      %695 = vmatprep.mubr.bf16.mxu0 0
      %696 = vmatmul.mubr.bf16.gmra.mrb[0].mxu0 %v601
      %v697 = vpop.f32.mrb[0].mxu0
      %v698 = vadd.f32 0.0, %v697
      %v699 = vpop.f32.mrb[0].mxu0
      %v700 = vpop.f32.mrb[0].mxu0
      %v701 = vadd.f32 0.0, %v700
      %v702 = vpop.f32.mrb[0].mxu0
      %703 = vmatprep.mubr.bf16.mxu0 0
      %704 = vmatmul.mubr.bf16.gmra.mrb[0].mxu0 %v604
      %v705 = vpop.f32.mrb[0].mxu0
      %v706 = vadd.f32 0.0, %v705
      %v707 = vpop.f32.mrb[0].mxu0
      %v708 = vpop.f32.mrb[0].mxu0
      %v709 = vadd.f32 0.0, %v708
      %v710 = vpop.f32.mrb[0].mxu0
      %711 = vmatprep.mubr.bf16.mxu0 0
      %712 = vmatmul.mubr.bf16.gmra.mrb[0].mxu0 %v607
      %v713 = vpop.f32.mrb[0].mxu0
      %v714 = vadd.f32 0.0, %v713
      %v715 = vpop.f32.mrb[0].mxu0
      %v716 = vpop.f32.mrb[0].mxu0
      %v717 = vadd.f32 0.0, %v716
      %v718 = vpop.f32.mrb[0].mxu0
      %719 = vmatprep.mubr.bf16.mxu0 0
      %720 = vmatmul.mubr.bf16.gmra.mrb[0].mxu0 %v610
      %v721 = vpop.f32.mrb[0].mxu0
      %v722 = vadd.f32 0.0, %v721
      %v723 = vpop.f32.mrb[0].mxu0
      %v724 = vpop.f32.mrb[0].mxu0
      %v725 = vadd.f32 0.0, %v724
      %v726 = vpop.f32.mrb[0].mxu0
      %727 = vmatprep.mubr.bf16.mxu0 0
      %728 = vmatmul.mubr.bf16.gmra.mrb[0].mxu0 %v613
      %v729 = vpop.f32.mrb[0].mxu0
      %v730 = vadd.f32 0.0, %v729
      %v731 = vpop.f32.mrb[0].mxu0
      %v732 = vpop.f32.mrb[0].mxu0
      %v733 = vadd.f32 0.0, %v732
      %v734 = vpop.f32.mrb[0].mxu0
      %735 = vmatprep.mubr.bf16.mxu0 0
      %736 = vmatmul.mubr.bf16.gmra.mrb[0].mxu0 %v616
      %v737 = vpop.f32.mrb[0].mxu0
      %v738 = vadd.f32 0.0, %v737
      %v739 = vpop.f32.mrb[0].mxu0
      %v740 = vpop.f32.mrb[0].mxu0
      %v741 = vadd.f32 0.0, %v740
      %v742 = vpop.f32.mrb[0].mxu0
      %743 = vmatprep.mubr.bf16.mxu0 0
      %744 = vmatmul.mubr.bf16.gmra.mrb[0].mxu0 %v619
      %v745 = vpop.f32.mrb[0].mxu0
      %v746 = vadd.f32 0.0, %v745
      %v747 = vpop.f32.mrb[0].mxu0
      %v748 = vpop.f32.mrb[0].mxu0
      %v749 = vadd.f32 0.0, %v748
      %v750 = vpop.f32.mrb[0].mxu0
      %751 = vmatprep.mubr.bf16.mxu0 0
      %752 = vmatmul.mubr.bf16.gmra.mrb[0].mxu0 %v622
      %v753 = vpop.f32.mrb[0].mxu0
      %v754 = vadd.f32 0.0, %v753
      %v755 = vpop.f32.mrb[0].mxu0
      %v756 = vpop.f32.mrb[0].mxu0
      %v757 = vadd.f32 0.0, %v756
      %v758 = vpop.f32.mrb[0].mxu0
      %759 = vmatprep.mubr.bf16.mxu0 0
      %760 = vmatmul.mubr.bf16.gmra.mrb[0].mxu0 %v625
      %v761 = vpop.f32.mrb[0].mxu0
      %v762 = vadd.f32 0.0, %v761
      %v763 = vpop.f32.mrb[0].mxu0
      %v764 = vpop.f32.mrb[0].mxu0
      %v765 = vadd.f32 0.0, %v764
      %v766 = vpop.f32.mrb[0].mxu0
      %767 = vmatprep.mubr.bf16.mxu0 0
      %768 = vmatmul.mubr.bf16.gmra.mrb[0].mxu0 %v628
      %v769 = vpop.f32.mrb[0].mxu0
      %v770 = vadd.f32 0.0, %v769
      %v771 = vpop.f32.mrb[0].mxu0
      %v772 = vpop.f32.mrb[0].mxu0
      %v773 = vadd.f32 0.0, %v772
      %v774 = vpop.f32.mrb[0].mxu0
      %775 = vmatprep.mubr.bf16.mxu0 0
      %776 = vmatmul.mubr.bf16.gmra.mrb[0].mxu0 %v631
      %v777 = vpop.f32.mrb[0].mxu0
      %v778 = vadd.f32 0.0, %v777
      %v779 = vpop.f32.mrb[0].mxu0
      %v780 = vpop.f32.mrb[0].mxu0
      %v781 = vadd.f32 0.0, %v780
      %v782 = vpop.f32.mrb[0].mxu0
      %783 = vmatprep.mubr.bf16.mxu0 0
      %784 = vmatmul.mubr.bf16.gmra.mrb[0].mxu0 %v634
      %v785 = vpop.f32.mrb[0].mxu0
      %v786 = vadd.f32 0.0, %v785
      %v787 = vpop.f32.mrb[0].mxu0
      %v788 = vpop.f32.mrb[0].mxu0
      %v789 = vadd.f32 0.0, %v788
      %v790 = vpop.f32.mrb[0].mxu0
      %791 = vmatprep.mubr.bf16.mxu0 0
      %792 = vmatmul.mubr.bf16.gmra.mrb[0].mxu0 %v637
      %v793 = vpop.f32.mrb[0].mxu0
      %v794 = vadd.f32 0.0, %v793
      %v795 = vpop.f32.mrb[0].mxu0
      %v796 = vpop.f32.mrb[0].mxu0
      %v797 = vadd.f32 0.0, %v796
      %v798 = vpop.f32.mrb[0].mxu0
      %799 = vdwg.mxu0
      %v832 = vunpack.c.l.b16 %v405
      %v833 = vunpack.c.l.b16 %v406
      %v834 = vunpack.c.l.b16 %v407
      %v835 = vunpack.c.l.b16 %v408
      %v836 = vunpack.c.l.b16 %v409
      %v837 = vunpack.c.l.b16 %v410
      %v838 = vunpack.c.l.b16 %v411
      %v839 = vunpack.c.l.b16 %v412
      %v840 = vunpack.c.l.b16 %v413
      %v841 = vunpack.c.l.b16 %v414
      %v842 = vunpack.c.l.b16 %v415
      %v843 = vunpack.c.l.b16 %v416
      %v844 = vunpack.c.l.b16 %v417
      %v845 = vunpack.c.l.b16 %v418
      %v846 = vunpack.c.l.b16 %v419
      %v847 = vunpack.c.l.b16 %v420
      %v848 = vunpack.c.l.b16 %v421
      %v849 = vunpack.c.l.b16 %v422
      %v850 = vunpack.c.l.b16 %v423
      %v851 = vunpack.c.l.b16 %v424
      %v852 = vunpack.c.l.b16 %v425
      %v853 = vunpack.c.l.b16 %v426
      %v854 = vunpack.c.l.b16 %v427
      %v855 = vunpack.c.l.b16 %v428
      %v856 = vunpack.c.l.b16 %v429
      %v857 = vunpack.c.l.b16 %v430
      %v858 = vunpack.c.l.b16 %v431
      %v859 = vunpack.c.l.b16 %v432
      %v860 = vunpack.c.l.b16 %v433
      %v861 = vunpack.c.l.b16 %v434
      %v862 = vunpack.c.l.b16 %v435
      %v863 = vunpack.c.l.b16 %v436
      %v864 = vpack.c.b16 %v833, %v832
      %v865 = vpack.c.b16 %v835, %v834
      %v866 = vpack.c.b16 %v837, %v836
      %v867 = vpack.c.b16 %v839, %v838
      %v868 = vpack.c.b16 %v841, %v840
      %v869 = vpack.c.b16 %v843, %v842
      %v870 = vpack.c.b16 %v845, %v844
      %v871 = vpack.c.b16 %v847, %v846
      %v872 = vpack.c.b16 %v849, %v848
      %v873 = vpack.c.b16 %v851, %v850
      %v874 = vpack.c.b16 %v853, %v852
      %v875 = vpack.c.b16 %v855, %v854
      %v876 = vpack.c.b16 %v857, %v856
      %v877 = vpack.c.b16 %v859, %v858
      %v878 = vpack.c.b16 %v861, %v860
      %v879 = vpack.c.b16 %v863, %v862
      %v888 = vunpack.c.l.b16 %v437
      %v889 = vunpack.c.l.b16 %v438
      %v890 = vunpack.c.l.b16 %v439
      %v891 = vunpack.c.l.b16 %v440
      %v892 = vunpack.c.l.b16 %v441
      %v893 = vunpack.c.l.b16 %v442
      %v894 = vunpack.c.l.b16 %v443
      %v895 = vunpack.c.l.b16 %v444
      %v896 = vpack.c.b16 %v889, %v888
      %v897 = vpack.c.b16 %v891, %v890
      %v898 = vpack.c.b16 %v893, %v892
      %v899 = vpack.c.b16 %v895, %v894
      %v905 = vsel %vm590, %v864, 0
      %v908 = vsel %vm590, %v865, 0
      %v911 = vsel %vm590, %v866, 0
      %v914 = vsel %vm590, %v867, 0
      %v917 = vsel %vm590, %v868, 0
      %v920 = vsel %vm590, %v869, 0
      %v923 = vsel %vm590, %v870, 0
      %v926 = vsel %vm590, %v871, 0
      %v929 = vsel %vm590, %v872, 0
      %v932 = vsel %vm590, %v873, 0
      %v935 = vsel %vm590, %v874, 0
      %v938 = vsel %vm590, %v875, 0
      %v941 = vsel %vm590, %v876, 0
      %v944 = vsel %vm590, %v877, 0
      %v947 = vsel %vm590, %v878, 0
      %v950 = vsel %vm590, %v879, 0
      %952 = vmatprep.subr.bf16.mxu0 0
      %953 = vmatpush1.bf16.msra.mxu0 %v896
      %954 = vmatprep.subr.bf16.mxu0 0
      %955 = vmatpush1.bf16.msra.mxu0 %v897
      %956 = vmatprep.subr.bf16.mxu0 0
      %957 = vmatpush1.bf16.msra.mxu0 %v898
      %958 = vmatprep.subr.bf16.mxu0 0
      %959 = vmatpush1.bf16.msra.mxu0 %v899
      %960 = vmatprep.subr.bf16.mxu0 0
      %961 = vmatpush1.bf16.msra.mxu0 0
      %962 = vmatprep.subr.bf16.mxu0 0
      %963 = vmatpush1.bf16.msra.mxu0 0
      %964 = vmatprep.subr.bf16.mxu0 0
      %965 = vmatpush1.bf16.msra.mxu0 0
      %966 = vmatprep.subr.bf16.mxu0 0
      %967 = vmatpush1.bf16.msra.mxu0 0
      %968 = vmatprep.subr.bf16.mxu0 0
      %969 = vmatpush1.bf16.msra.mxu0 0
      %970 = vmatprep.subr.bf16.mxu0 0
      %971 = vmatpush1.bf16.msra.mxu0 0
      %972 = vmatprep.subr.bf16.mxu0 0
      %973 = vmatpush1.bf16.msra.mxu0 0
      %974 = vmatprep.subr.bf16.mxu0 0
      %975 = vmatpush1.bf16.msra.mxu0 0
      %976 = vmatprep.subr.bf16.mxu0 0
      %977 = vmatpush1.bf16.msra.mxu0 0
      %978 = vmatprep.subr.bf16.mxu0 0
      %979 = vmatpush1.bf16.msra.mxu0 0
      %980 = vmatprep.subr.bf16.mxu0 0
      %981 = vmatpush1.bf16.msra.mxu0 0
      %982 = vmatprep.subr.bf16.mxu0 0
      %983 = vmatpush1.bf16.msra.mxu0 0
      %984 = vmatprep.mubr.bf16.mxu0 0
      %985 = vmatmul.mubr.bf16.gmra.mrb[0].mxu0 %v905
      %v986 = vpop.f32.mrb[0].mxu0
      %v987 = vadd.f32 %v674, %v986
      %v988 = vpop.f32.mrb[0].mxu0
      %v989 = vpop.f32.mrb[0].mxu0
      %v990 = vadd.f32 %v677, %v989
      %v991 = vpop.f32.mrb[0].mxu0
      %992 = vmatprep.mubr.bf16.mxu0 0
      %993 = vmatmul.mubr.bf16.gmra.mrb[0].mxu0 %v908
      %v994 = vpop.f32.mrb[0].mxu0
      %v995 = vadd.f32 %v682, %v994
      %v996 = vpop.f32.mrb[0].mxu0
      %v997 = vpop.f32.mrb[0].mxu0
      %v998 = vadd.f32 %v685, %v997
      %v999 = vpop.f32.mrb[0].mxu0
      %1000 = vmatprep.mubr.bf16.mxu0 0
      %1001 = vmatmul.mubr.bf16.gmra.mrb[0].mxu0 %v911
      %v1002 = vpop.f32.mrb[0].mxu0
      %v1003 = vadd.f32 %v690, %v1002
      %v1004 = vpop.f32.mrb[0].mxu0
      %v1005 = vpop.f32.mrb[0].mxu0
      %v1006 = vadd.f32 %v693, %v1005
      %v1007 = vpop.f32.mrb[0].mxu0
      %1008 = vmatprep.mubr.bf16.mxu0 0
      %1009 = vmatmul.mubr.bf16.gmra.mrb[0].mxu0 %v914
      %v1010 = vpop.f32.mrb[0].mxu0
      %v1011 = vadd.f32 %v698, %v1010
      %v1012 = vpop.f32.mrb[0].mxu0
      %v1013 = vpop.f32.mrb[0].mxu0
      %v1014 = vadd.f32 %v701, %v1013
      %v1015 = vpop.f32.mrb[0].mxu0
      %1016 = vmatprep.mubr.bf16.mxu0 0
      %1017 = vmatmul.mubr.bf16.gmra.mrb[0].mxu0 %v917
      %v1018 = vpop.f32.mrb[0].mxu0
      %v1019 = vadd.f32 %v706, %v1018
      %v1020 = vpop.f32.mrb[0].mxu0
      %v1021 = vpop.f32.mrb[0].mxu0
      %v1022 = vadd.f32 %v709, %v1021
      %v1023 = vpop.f32.mrb[0].mxu0
      %1024 = vmatprep.mubr.bf16.mxu0 0
      %1025 = vmatmul.mubr.bf16.gmra.mrb[0].mxu0 %v920
      %v1026 = vpop.f32.mrb[0].mxu0
      %v1027 = vadd.f32 %v714, %v1026
      %v1028 = vpop.f32.mrb[0].mxu0
      %v1029 = vpop.f32.mrb[0].mxu0
      %v1030 = vadd.f32 %v717, %v1029
      %v1031 = vpop.f32.mrb[0].mxu0
      %1032 = vmatprep.mubr.bf16.mxu0 0
      %1033 = vmatmul.mubr.bf16.gmra.mrb[0].mxu0 %v923
      %v1034 = vpop.f32.mrb[0].mxu0
      %v1035 = vadd.f32 %v722, %v1034
      %v1036 = vpop.f32.mrb[0].mxu0
      %v1037 = vpop.f32.mrb[0].mxu0
      %v1038 = vadd.f32 %v725, %v1037
      %v1039 = vpop.f32.mrb[0].mxu0
      %1040 = vmatprep.mubr.bf16.mxu0 0
      %1041 = vmatmul.mubr.bf16.gmra.mrb[0].mxu0 %v926
      %v1042 = vpop.f32.mrb[0].mxu0
      %v1043 = vadd.f32 %v730, %v1042
      %v1044 = vpop.f32.mrb[0].mxu0
      %v1045 = vpop.f32.mrb[0].mxu0
      %v1046 = vadd.f32 %v733, %v1045
      %v1047 = vpop.f32.mrb[0].mxu0
      %1048 = vmatprep.mubr.bf16.mxu0 0
      %1049 = vmatmul.mubr.bf16.gmra.mrb[0].mxu0 %v929
      %v1050 = vpop.f32.mrb[0].mxu0
      %v1051 = vadd.f32 %v738, %v1050
      %v1052 = vpop.f32.mrb[0].mxu0
      %v1053 = vpop.f32.mrb[0].mxu0
      %v1054 = vadd.f32 %v741, %v1053
      %v1055 = vpop.f32.mrb[0].mxu0
      %1056 = vmatprep.mubr.bf16.mxu0 0
      %1057 = vmatmul.mubr.bf16.gmra.mrb[0].mxu0 %v932
      %v1058 = vpop.f32.mrb[0].mxu0
      %v1059 = vadd.f32 %v746, %v1058
      %v1060 = vpop.f32.mrb[0].mxu0
      %v1061 = vpop.f32.mrb[0].mxu0
      %v1062 = vadd.f32 %v749, %v1061
      %v1063 = vpop.f32.mrb[0].mxu0
      %1064 = vmatprep.mubr.bf16.mxu0 0
      %1065 = vmatmul.mubr.bf16.gmra.mrb[0].mxu0 %v935
      %v1066 = vpop.f32.mrb[0].mxu0
      %v1067 = vadd.f32 %v754, %v1066
      %v1068 = vpop.f32.mrb[0].mxu0
      %v1069 = vpop.f32.mrb[0].mxu0
      %v1070 = vadd.f32 %v757, %v1069
      %v1071 = vpop.f32.mrb[0].mxu0
      %1072 = vmatprep.mubr.bf16.mxu0 0
      %1073 = vmatmul.mubr.bf16.gmra.mrb[0].mxu0 %v938
      %v1074 = vpop.f32.mrb[0].mxu0
      %v1075 = vadd.f32 %v762, %v1074
      %v1076 = vpop.f32.mrb[0].mxu0
      %v1077 = vpop.f32.mrb[0].mxu0
      %v1078 = vadd.f32 %v765, %v1077
      %v1079 = vpop.f32.mrb[0].mxu0
      %1080 = vmatprep.mubr.bf16.mxu0 0
      %1081 = vmatmul.mubr.bf16.gmra.mrb[0].mxu0 %v941
      %v1082 = vpop.f32.mrb[0].mxu0
      %v1083 = vadd.f32 %v770, %v1082
      %v1084 = vpop.f32.mrb[0].mxu0
      %v1085 = vpop.f32.mrb[0].mxu0
      %v1086 = vadd.f32 %v773, %v1085
      %v1087 = vpop.f32.mrb[0].mxu0
      %1088 = vmatprep.mubr.bf16.mxu0 0
      %1089 = vmatmul.mubr.bf16.gmra.mrb[0].mxu0 %v944
      %v1090 = vpop.f32.mrb[0].mxu0
      %v1091 = vadd.f32 %v778, %v1090
      %v1092 = vpop.f32.mrb[0].mxu0
      %v1093 = vpop.f32.mrb[0].mxu0
      %v1094 = vadd.f32 %v781, %v1093
      %v1095 = vpop.f32.mrb[0].mxu0
      %1096 = vmatprep.mubr.bf16.mxu0 0
      %1097 = vmatmul.mubr.bf16.gmra.mrb[0].mxu0 %v947
      %v1098 = vpop.f32.mrb[0].mxu0
      %v1099 = vadd.f32 %v786, %v1098
      %v1100 = vpop.f32.mrb[0].mxu0
      %v1101 = vpop.f32.mrb[0].mxu0
      %v1102 = vadd.f32 %v789, %v1101
      %v1103 = vpop.f32.mrb[0].mxu0
      %1104 = vmatprep.mubr.bf16.mxu0 0
      %1105 = vmatmul.mubr.bf16.gmra.mrb[0].mxu0 %v950
      %v1106 = vpop.f32.mrb[0].mxu0
      %v1107 = vadd.f32 %v794, %v1106
      %v1108 = vpop.f32.mrb[0].mxu0
      %v1109 = vpop.f32.mrb[0].mxu0
      %v1110 = vadd.f32 %v797, %v1109
      %v1111 = vpop.f32.mrb[0].mxu0
      %1112 = vdwg.mxu0
      %v1113 = vld [vmem:[%s389] sm:$0xf]
      %v1114 = vld [vmem:[%s389 + $0x4] sm:$0xf]
      %v1115 = vld [vmem:[%s389 + $0x8] sm:$0xf]
      %v1116 = vld [vmem:[%s389 + $0xc] sm:$0xf]
      %v1117 = vld [vmem:[%s389 + $0x10] sm:$0xf]
      %v1118 = vld [vmem:[%s389 + $0x14] sm:$0xf]
      %v1119 = vld [vmem:[%s389 + $0x18] sm:$0xf]
      %v1120 = vld [vmem:[%s389 + $0x1c] sm:$0xf]
      %v1121 = vld [vmem:[%s389 + $0x20] sm:$0xf]
      %v1122 = vld [vmem:[%s389 + $0x24] sm:$0xf]
      %v1123 = vld [vmem:[%s389 + $0x28] sm:$0xf]
      %v1124 = vld [vmem:[%s389 + $0x2c] sm:$0xf]
      %v1125 = vld [vmem:[%s389 + $0x30] sm:$0xf]
      %v1126 = vld [vmem:[%s389 + $0x34] sm:$0xf]
      %v1127 = vld [vmem:[%s389 + $0x38] sm:$0xf]
      %v1128 = vld [vmem:[%s389 + $0x3c] sm:$0xf]
      %v1129 = vld [vmem:[%s389 + $0x40] sm:$0xf]
      %v1130 = vld [vmem:[%s389 + $0x44] sm:$0xf]
      %v1131 = vld [vmem:[%s389 + $0x48] sm:$0xf]
      %v1132 = vld [vmem:[%s389 + $0x4c] sm:$0xf]
      %v1133 = vld [vmem:[%s389 + $0x50] sm:$0xf]
      %v1134 = vld [vmem:[%s389 + $0x54] sm:$0xf]
      %v1135 = vld [vmem:[%s389 + $0x58] sm:$0xf]
      %v1136 = vld [vmem:[%s389 + $0x5c] sm:$0xf]
      %v1137 = vld [vmem:[%s389 + $0x60] sm:$0xf]
      %v1138 = vld [vmem:[%s389 + $0x64] sm:$0xf]
      %v1139 = vld [vmem:[%s389 + $0x68] sm:$0xf]
      %v1140 = vld [vmem:[%s389 + $0x6c] sm:$0xf]
      %v1141 = vld [vmem:[%s389 + $0x70] sm:$0xf]
      %v1142 = vld [vmem:[%s389 + $0x74] sm:$0xf]
      %v1143 = vld [vmem:[%s389 + $0x78] sm:$0xf]
      %v1144 = vld [vmem:[%s389 + $0x7c] sm:$0xf]
      %s1145 = scalar_lea.vmem %s4, 64
      %v1146 = vld [vmem:[%s1145] sm:$0xf]
      %v1147 = vld [vmem:[%s1145 + $0x4] sm:$0xf]
      %v1148 = vld [vmem:[%s1145 + $0x8] sm:$0xf]
      %v1149 = vld [vmem:[%s1145 + $0xc] sm:$0xf]
      %v1150 = vld [vmem:[%s1145 + $0x10] sm:$0xf]
      %v1151 = vld [vmem:[%s1145 + $0x14] sm:$0xf]
      %v1152 = vld [vmem:[%s1145 + $0x18] sm:$0xf]
      %v1153 = vld [vmem:[%s1145 + $0x1c] sm:$0xf]
      %v1186 = vunpack.c.l.b16 %v1113
      %v1187 = vunpack.c.l.b16 %v1114
      %v1188 = vunpack.c.l.b16 %v1115
      %v1189 = vunpack.c.l.b16 %v1116
      %v1190 = vunpack.c.l.b16 %v1117
      %v1191 = vunpack.c.l.b16 %v1118
      %v1192 = vunpack.c.l.b16 %v1119
      %v1193 = vunpack.c.l.b16 %v1120
      %v1194 = vunpack.c.l.b16 %v1121
      %v1195 = vunpack.c.l.b16 %v1122
      %v1196 = vunpack.c.l.b16 %v1123
      %v1197 = vunpack.c.l.b16 %v1124
      %v1198 = vunpack.c.l.b16 %v1125
      %v1199 = vunpack.c.l.b16 %v1126
      %v1200 = vunpack.c.l.b16 %v1127
      %v1201 = vunpack.c.l.b16 %v1128
      %v1202 = vunpack.c.l.b16 %v1129
      %v1203 = vunpack.c.l.b16 %v1130
      %v1204 = vunpack.c.l.b16 %v1131
      %v1205 = vunpack.c.l.b16 %v1132
      %v1206 = vunpack.c.l.b16 %v1133
      %v1207 = vunpack.c.l.b16 %v1134
      %v1208 = vunpack.c.l.b16 %v1135
      %v1209 = vunpack.c.l.b16 %v1136
      %v1210 = vunpack.c.l.b16 %v1137
      %v1211 = vunpack.c.l.b16 %v1138
      %v1212 = vunpack.c.l.b16 %v1139
      %v1213 = vunpack.c.l.b16 %v1140
      %v1214 = vunpack.c.l.b16 %v1141
      %v1215 = vunpack.c.l.b16 %v1142
      %v1216 = vunpack.c.l.b16 %v1143
      %v1217 = vunpack.c.l.b16 %v1144
      %v1218 = vpack.c.b16 %v1187, %v1186
      %v1219 = vpack.c.b16 %v1189, %v1188
      %v1220 = vpack.c.b16 %v1191, %v1190
      %v1221 = vpack.c.b16 %v1193, %v1192
      %v1222 = vpack.c.b16 %v1195, %v1194
      %v1223 = vpack.c.b16 %v1197, %v1196
      %v1224 = vpack.c.b16 %v1199, %v1198
      %v1225 = vpack.c.b16 %v1201, %v1200
      %v1226 = vpack.c.b16 %v1203, %v1202
      %v1227 = vpack.c.b16 %v1205, %v1204
      %v1228 = vpack.c.b16 %v1207, %v1206
      %v1229 = vpack.c.b16 %v1209, %v1208
      %v1230 = vpack.c.b16 %v1211, %v1210
      %v1231 = vpack.c.b16 %v1213, %v1212
      %v1232 = vpack.c.b16 %v1215, %v1214
      %v1233 = vpack.c.b16 %v1217, %v1216
      %v1242 = vunpack.c.l.b16 %v1146
      %v1243 = vunpack.c.l.b16 %v1147
      %v1244 = vunpack.c.l.b16 %v1148
      %v1245 = vunpack.c.l.b16 %v1149
      %v1246 = vunpack.c.l.b16 %v1150
      %v1247 = vunpack.c.l.b16 %v1151
      %v1248 = vunpack.c.l.b16 %v1152
      %v1249 = vunpack.c.l.b16 %v1153
      %v1250 = vpack.c.b16 %v1243, %v1242
      %v1251 = vpack.c.b16 %v1245, %v1244
      %v1252 = vpack.c.b16 %v1247, %v1246
      %v1253 = vpack.c.b16 %v1249, %v1248
      %v1259 = vsel %vm590, %v1218, 0
      %v1262 = vsel %vm590, %v1219, 0
      %v1265 = vsel %vm590, %v1220, 0
      %v1268 = vsel %vm590, %v1221, 0
      %v1271 = vsel %vm590, %v1222, 0
      %v1274 = vsel %vm590, %v1223, 0
      %v1277 = vsel %vm590, %v1224, 0
      %v1280 = vsel %vm590, %v1225, 0
      %v1283 = vsel %vm590, %v1226, 0
      %v1286 = vsel %vm590, %v1227, 0
      %v1289 = vsel %vm590, %v1228, 0
      %v1292 = vsel %vm590, %v1229, 0
      %v1295 = vsel %vm590, %v1230, 0
      %v1298 = vsel %vm590, %v1231, 0
      %v1301 = vsel %vm590, %v1232, 0
      %v1304 = vsel %vm590, %v1233, 0
      %1306 = vmatprep.subr.bf16.mxu0 0
      %1307 = vmatpush1.bf16.msra.mxu0 %v1250
      %1308 = vmatprep.subr.bf16.mxu0 0
      %1309 = vmatpush1.bf16.msra.mxu0 %v1251
      %1310 = vmatprep.subr.bf16.mxu0 0
      %1311 = vmatpush1.bf16.msra.mxu0 %v1252
      %1312 = vmatprep.subr.bf16.mxu0 0
      %1313 = vmatpush1.bf16.msra.mxu0 %v1253
      %1314 = vmatprep.subr.bf16.mxu0 0
      %1315 = vmatpush1.bf16.msra.mxu0 0
      %1316 = vmatprep.subr.bf16.mxu0 0
      %1317 = vmatpush1.bf16.msra.mxu0 0
      %1318 = vmatprep.subr.bf16.mxu0 0
      %1319 = vmatpush1.bf16.msra.mxu0 0
      %1320 = vmatprep.subr.bf16.mxu0 0
      %1321 = vmatpush1.bf16.msra.mxu0 0
      %1322 = vmatprep.subr.bf16.mxu0 0
      %1323 = vmatpush1.bf16.msra.mxu0 0
      %1324 = vmatprep.subr.bf16.mxu0 0
      %1325 = vmatpush1.bf16.msra.mxu0 0
      %1326 = vmatprep.subr.bf16.mxu0 0
      %1327 = vmatpush1.bf16.msra.mxu0 0
      %1328 = vmatprep.subr.bf16.mxu0 0
      %1329 = vmatpush1.bf16.msra.mxu0 0
      %1330 = vmatprep.subr.bf16.mxu0 0
      %1331 = vmatpush1.bf16.msra.mxu0 0
      %1332 = vmatprep.subr.bf16.mxu0 0
      %1333 = vmatpush1.bf16.msra.mxu0 0
      %1334 = vmatprep.subr.bf16.mxu0 0
      %1335 = vmatpush1.bf16.msra.mxu0 0
      %1336 = vmatprep.subr.bf16.mxu0 0
      %1337 = vmatpush1.bf16.msra.mxu0 0
      %1338 = vmatprep.mubr.bf16.mxu0 0
      %1339 = vmatmul.mubr.bf16.gmra.mrb[0].mxu0 %v1259
      %v1340 = vpop.f32.mrb[0].mxu0
      %v1341 = vadd.f32 0.0, %v1340
      %v1342 = vpop.f32.mrb[0].mxu0
      %v1343 = vpop.f32.mrb[0].mxu0
      %v1344 = vadd.f32 0.0, %v1343
      %v1345 = vpop.f32.mrb[0].mxu0
      %1346 = vmatprep.mubr.bf16.mxu0 0
      %1347 = vmatmul.mubr.bf16.gmra.mrb[0].mxu0 %v1262
      %v1348 = vpop.f32.mrb[0].mxu0
      %v1349 = vadd.f32 0.0, %v1348
      %v1350 = vpop.f32.mrb[0].mxu0
      %v1351 = vpop.f32.mrb[0].mxu0
      %v1352 = vadd.f32 0.0, %v1351
      %v1353 = vpop.f32.mrb[0].mxu0
      %1354 = vmatprep.mubr.bf16.mxu0 0
      %1355 = vmatmul.mubr.bf16.gmra.mrb[0].mxu0 %v1265
      %v1356 = vpop.f32.mrb[0].mxu0
      %v1357 = vadd.f32 0.0, %v1356
      %v1358 = vpop.f32.mrb[0].mxu0
      %v1359 = vpop.f32.mrb[0].mxu0
      %v1360 = vadd.f32 0.0, %v1359
      %v1361 = vpop.f32.mrb[0].mxu0
      %1362 = vmatprep.mubr.bf16.mxu0 0
      %1363 = vmatmul.mubr.bf16.gmra.mrb[0].mxu0 %v1268
      %v1364 = vpop.f32.mrb[0].mxu0
      %v1365 = vadd.f32 0.0, %v1364
      %v1366 = vpop.f32.mrb[0].mxu0
      %v1367 = vpop.f32.mrb[0].mxu0
      %v1368 = vadd.f32 0.0, %v1367
      %v1369 = vpop.f32.mrb[0].mxu0
      %1370 = vmatprep.mubr.bf16.mxu0 0
      %1371 = vmatmul.mubr.bf16.gmra.mrb[0].mxu0 %v1271
      %v1372 = vpop.f32.mrb[0].mxu0
      %v1373 = vadd.f32 0.0, %v1372
      %v1374 = vpop.f32.mrb[0].mxu0
      %v1375 = vpop.f32.mrb[0].mxu0
      %v1376 = vadd.f32 0.0, %v1375
      %v1377 = vpop.f32.mrb[0].mxu0
      %1378 = vmatprep.mubr.bf16.mxu0 0
      %1379 = vmatmul.mubr.bf16.gmra.mrb[0].mxu0 %v1274
      %v1380 = vpop.f32.mrb[0].mxu0
      %v1381 = vadd.f32 0.0, %v1380
      %v1382 = vpop.f32.mrb[0].mxu0
      %v1383 = vpop.f32.mrb[0].mxu0
      %v1384 = vadd.f32 0.0, %v1383
      %v1385 = vpop.f32.mrb[0].mxu0
      %1386 = vmatprep.mubr.bf16.mxu0 0
      %1387 = vmatmul.mubr.bf16.gmra.mrb[0].mxu0 %v1277
      %v1388 = vpop.f32.mrb[0].mxu0
      %v1389 = vadd.f32 0.0, %v1388
      %v1390 = vpop.f32.mrb[0].mxu0
      %v1391 = vpop.f32.mrb[0].mxu0
      %v1392 = vadd.f32 0.0, %v1391
      %v1393 = vpop.f32.mrb[0].mxu0
      %1394 = vmatprep.mubr.bf16.mxu0 0
      %1395 = vmatmul.mubr.bf16.gmra.mrb[0].mxu0 %v1280
      %v1396 = vpop.f32.mrb[0].mxu0
      %v1397 = vadd.f32 0.0, %v1396
      %v1398 = vpop.f32.mrb[0].mxu0
      %v1399 = vpop.f32.mrb[0].mxu0
      %v1400 = vadd.f32 0.0, %v1399
      %v1401 = vpop.f32.mrb[0].mxu0
      %1402 = vmatprep.mubr.bf16.mxu0 0
      %1403 = vmatmul.mubr.bf16.gmra.mrb[0].mxu0 %v1283
      %v1404 = vpop.f32.mrb[0].mxu0
      %v1405 = vadd.f32 0.0, %v1404
      %v1406 = vpop.f32.mrb[0].mxu0
      %v1407 = vpop.f32.mrb[0].mxu0
      %v1408 = vadd.f32 0.0, %v1407
      %v1409 = vpop.f32.mrb[0].mxu0
      %1410 = vmatprep.mubr.bf16.mxu0 0
      %1411 = vmatmul.mubr.bf16.gmra.mrb[0].mxu0 %v1286
      %v1412 = vpop.f32.mrb[0].mxu0
      %v1413 = vadd.f32 0.0, %v1412
      %v1414 = vpop.f32.mrb[0].mxu0
      %v1415 = vpop.f32.mrb[0].mxu0
      %v1416 = vadd.f32 0.0, %v1415
      %v1417 = vpop.f32.mrb[0].mxu0
      %1418 = vmatprep.mubr.bf16.mxu0 0
      %1419 = vmatmul.mubr.bf16.gmra.mrb[0].mxu0 %v1289
      %v1420 = vpop.f32.mrb[0].mxu0
      %v1421 = vadd.f32 0.0, %v1420
      %v1422 = vpop.f32.mrb[0].mxu0
      %v1423 = vpop.f32.mrb[0].mxu0
      %v1424 = vadd.f32 0.0, %v1423
      %v1425 = vpop.f32.mrb[0].mxu0
      %1426 = vmatprep.mubr.bf16.mxu0 0
      %1427 = vmatmul.mubr.bf16.gmra.mrb[0].mxu0 %v1292
      %v1428 = vpop.f32.mrb[0].mxu0
      %v1429 = vadd.f32 0.0, %v1428
      %v1430 = vpop.f32.mrb[0].mxu0
      %v1431 = vpop.f32.mrb[0].mxu0
      %v1432 = vadd.f32 0.0, %v1431
      %v1433 = vpop.f32.mrb[0].mxu0
      %1434 = vmatprep.mubr.bf16.mxu0 0
      %1435 = vmatmul.mubr.bf16.gmra.mrb[0].mxu0 %v1295
      %v1436 = vpop.f32.mrb[0].mxu0
      %v1437 = vadd.f32 0.0, %v1436
      %v1438 = vpop.f32.mrb[0].mxu0
      %v1439 = vpop.f32.mrb[0].mxu0
      %v1440 = vadd.f32 0.0, %v1439
      %v1441 = vpop.f32.mrb[0].mxu0
      %1442 = vmatprep.mubr.bf16.mxu0 0
      %1443 = vmatmul.mubr.bf16.gmra.mrb[0].mxu0 %v1298
      %v1444 = vpop.f32.mrb[0].mxu0
      %v1445 = vadd.f32 0.0, %v1444
      %v1446 = vpop.f32.mrb[0].mxu0
      %v1447 = vpop.f32.mrb[0].mxu0
      %v1448 = vadd.f32 0.0, %v1447
      %v1449 = vpop.f32.mrb[0].mxu0
      %1450 = vmatprep.mubr.bf16.mxu0 0
      %1451 = vmatmul.mubr.bf16.gmra.mrb[0].mxu0 %v1301
      %v1452 = vpop.f32.mrb[0].mxu0
      %v1453 = vadd.f32 0.0, %v1452
      %v1454 = vpop.f32.mrb[0].mxu0
      %v1455 = vpop.f32.mrb[0].mxu0
      %v1456 = vadd.f32 0.0, %v1455
      %v1457 = vpop.f32.mrb[0].mxu0
      %1458 = vmatprep.mubr.bf16.mxu0 0
      %1459 = vmatmul.mubr.bf16.gmra.mrb[0].mxu0 %v1304
      %v1460 = vpop.f32.mrb[0].mxu0
      %v1461 = vadd.f32 0.0, %v1460
      %v1462 = vpop.f32.mrb[0].mxu0
      %v1463 = vpop.f32.mrb[0].mxu0
      %v1464 = vadd.f32 0.0, %v1463
      %v1465 = vpop.f32.mrb[0].mxu0
      %1466 = vdwg.mxu0
      %v1467 = vadd.f32 %v987, %v1341
      %v1468 = vadd.f32 %v990, %v1344
      %v1469 = vadd.f32 %v995, %v1349
      %v1470 = vadd.f32 %v998, %v1352
      %v1471 = vadd.f32 %v1003, %v1357
      %v1472 = vadd.f32 %v1006, %v1360
      %v1473 = vadd.f32 %v1011, %v1365
      %v1474 = vadd.f32 %v1014, %v1368
      %v1475 = vadd.f32 %v1019, %v1373
      %v1476 = vadd.f32 %v1022, %v1376
      %v1477 = vadd.f32 %v1027, %v1381
      %v1478 = vadd.f32 %v1030, %v1384
      %v1479 = vadd.f32 %v1035, %v1389
      %v1480 = vadd.f32 %v1038, %v1392
      %v1481 = vadd.f32 %v1043, %v1397
      %v1482 = vadd.f32 %v1046, %v1400
      %v1483 = vadd.f32 %v1051, %v1405
      %v1484 = vadd.f32 %v1054, %v1408
      %v1485 = vadd.f32 %v1059, %v1413
      %v1486 = vadd.f32 %v1062, %v1416
      %v1487 = vadd.f32 %v1067, %v1421
      %v1488 = vadd.f32 %v1070, %v1424
      %v1489 = vadd.f32 %v1075, %v1429
      %v1490 = vadd.f32 %v1078, %v1432
      %v1491 = vadd.f32 %v1083, %v1437
      %v1492 = vadd.f32 %v1086, %v1440
      %v1493 = vadd.f32 %v1091, %v1445
      %v1494 = vadd.f32 %v1094, %v1448
      %v1495 = vadd.f32 %v1099, %v1453
      %v1496 = vadd.f32 %v1102, %v1456
      %v1497 = vadd.f32 %v1107, %v1461
      %v1498 = vadd.f32 %v1110, %v1464
      %v1499 = vld [vmem:[%s394] sm:$0xf]
      %v1500 = vld [vmem:[%s394 + $0x4] sm:$0xf]
      %v1501 = vld [vmem:[%s394 + $0x8] sm:$0xf]
      %v1502 = vld [vmem:[%s394 + $0xc] sm:$0xf]
      %v1503 = vld [vmem:[%s394 + $0x10] sm:$0xf]
      %v1504 = vld [vmem:[%s394 + $0x14] sm:$0xf]
      %v1505 = vld [vmem:[%s394 + $0x18] sm:$0xf]
      %v1506 = vld [vmem:[%s394 + $0x1c] sm:$0xf]
      %v1507 = vld [vmem:[%s394 + $0x20] sm:$0xf]
      %v1508 = vld [vmem:[%s394 + $0x24] sm:$0xf]
      %v1509 = vld [vmem:[%s394 + $0x28] sm:$0xf]
      %v1510 = vld [vmem:[%s394 + $0x2c] sm:$0xf]
      %v1511 = vld [vmem:[%s394 + $0x30] sm:$0xf]
      %v1512 = vld [vmem:[%s394 + $0x34] sm:$0xf]
      %v1513 = vld [vmem:[%s394 + $0x38] sm:$0xf]
      %v1514 = vld [vmem:[%s394 + $0x3c] sm:$0xf]
      %v1515 = vld [vmem:[%s394 + $0x40] sm:$0xf]
      %v1516 = vld [vmem:[%s394 + $0x44] sm:$0xf]
      %v1517 = vld [vmem:[%s394 + $0x48] sm:$0xf]
      %v1518 = vld [vmem:[%s394 + $0x4c] sm:$0xf]
      %v1519 = vld [vmem:[%s394 + $0x50] sm:$0xf]
      %v1520 = vld [vmem:[%s394 + $0x54] sm:$0xf]
      %v1521 = vld [vmem:[%s394 + $0x58] sm:$0xf]
      %v1522 = vld [vmem:[%s394 + $0x5c] sm:$0xf]
      %v1523 = vld [vmem:[%s394 + $0x60] sm:$0xf]
      %v1524 = vld [vmem:[%s394 + $0x64] sm:$0xf]
      %v1525 = vld [vmem:[%s394 + $0x68] sm:$0xf]
      %v1526 = vld [vmem:[%s394 + $0x6c] sm:$0xf]
      %v1527 = vld [vmem:[%s394 + $0x70] sm:$0xf]
      %v1528 = vld [vmem:[%s394 + $0x74] sm:$0xf]
      %v1529 = vld [vmem:[%s394 + $0x78] sm:$0xf]
      %v1530 = vld [vmem:[%s394 + $0x7c] sm:$0xf]
      %s1531 = scalar_lea.vmem %s4, 96
      %v1532 = vld [vmem:[%s1531] sm:$0xf]
      %v1533 = vld [vmem:[%s1531 + $0x4] sm:$0xf]
      %v1534 = vld [vmem:[%s1531 + $0x8] sm:$0xf]
      %v1535 = vld [vmem:[%s1531 + $0xc] sm:$0xf]
      %v1536 = vld [vmem:[%s1531 + $0x10] sm:$0xf]
      %v1537 = vld [vmem:[%s1531 + $0x14] sm:$0xf]
      %v1538 = vld [vmem:[%s1531 + $0x18] sm:$0xf]
      %v1539 = vld [vmem:[%s1531 + $0x1c] sm:$0xf]
      %v1572 = vunpack.c.l.b16 %v1499
      %v1573 = vunpack.c.l.b16 %v1500
      %v1574 = vunpack.c.l.b16 %v1501
      %v1575 = vunpack.c.l.b16 %v1502
      %v1576 = vunpack.c.l.b16 %v1503
      %v1577 = vunpack.c.l.b16 %v1504
      %v1578 = vunpack.c.l.b16 %v1505
      %v1579 = vunpack.c.l.b16 %v1506
      %v1580 = vunpack.c.l.b16 %v1507
      %v1581 = vunpack.c.l.b16 %v1508
      %v1582 = vunpack.c.l.b16 %v1509
      %v1583 = vunpack.c.l.b16 %v1510
      %v1584 = vunpack.c.l.b16 %v1511
      %v1585 = vunpack.c.l.b16 %v1512
      %v1586 = vunpack.c.l.b16 %v1513
      %v1587 = vunpack.c.l.b16 %v1514
      %v1588 = vunpack.c.l.b16 %v1515
      %v1589 = vunpack.c.l.b16 %v1516
      %v1590 = vunpack.c.l.b16 %v1517
      %v1591 = vunpack.c.l.b16 %v1518
      %v1592 = vunpack.c.l.b16 %v1519
      %v1593 = vunpack.c.l.b16 %v1520
      %v1594 = vunpack.c.l.b16 %v1521
      %v1595 = vunpack.c.l.b16 %v1522
      %v1596 = vunpack.c.l.b16 %v1523
      %v1597 = vunpack.c.l.b16 %v1524
      %v1598 = vunpack.c.l.b16 %v1525
      %v1599 = vunpack.c.l.b16 %v1526
      %v1600 = vunpack.c.l.b16 %v1527
      %v1601 = vunpack.c.l.b16 %v1528
      %v1602 = vunpack.c.l.b16 %v1529
      %v1603 = vunpack.c.l.b16 %v1530
      %v1604 = vpack.c.b16 %v1573, %v1572
      %v1605 = vpack.c.b16 %v1575, %v1574
      %v1606 = vpack.c.b16 %v1577, %v1576
      %v1607 = vpack.c.b16 %v1579, %v1578
      %v1608 = vpack.c.b16 %v1581, %v1580
      %v1609 = vpack.c.b16 %v1583, %v1582
      %v1610 = vpack.c.b16 %v1585, %v1584
      %v1611 = vpack.c.b16 %v1587, %v1586
      %v1612 = vpack.c.b16 %v1589, %v1588
      %v1613 = vpack.c.b16 %v1591, %v1590
      %v1614 = vpack.c.b16 %v1593, %v1592
      %v1615 = vpack.c.b16 %v1595, %v1594
      %v1616 = vpack.c.b16 %v1597, %v1596
      %v1617 = vpack.c.b16 %v1599, %v1598
      %v1618 = vpack.c.b16 %v1601, %v1600
      %v1619 = vpack.c.b16 %v1603, %v1602
      %v1628 = vunpack.c.l.b16 %v1532
      %v1629 = vunpack.c.l.b16 %v1533
      %v1630 = vunpack.c.l.b16 %v1534
      %v1631 = vunpack.c.l.b16 %v1535
      %v1632 = vunpack.c.l.b16 %v1536
      %v1633 = vunpack.c.l.b16 %v1537
      %v1634 = vunpack.c.l.b16 %v1538
      %v1635 = vunpack.c.l.b16 %v1539
      %v1636 = vpack.c.b16 %v1629, %v1628
      %v1637 = vpack.c.b16 %v1631, %v1630
      %v1638 = vpack.c.b16 %v1633, %v1632
      %v1639 = vpack.c.b16 %v1635, %v1634
      %v1645 = vsel %vm590, %v1604, 0
      %v1648 = vsel %vm590, %v1605, 0
      %v1651 = vsel %vm590, %v1606, 0
      %v1654 = vsel %vm590, %v1607, 0
      %v1657 = vsel %vm590, %v1608, 0
      %v1660 = vsel %vm590, %v1609, 0
      %v1663 = vsel %vm590, %v1610, 0
      %v1666 = vsel %vm590, %v1611, 0
      %v1669 = vsel %vm590, %v1612, 0
      %v1672 = vsel %vm590, %v1613, 0
      %v1675 = vsel %vm590, %v1614, 0
      %v1678 = vsel %vm590, %v1615, 0
      %v1681 = vsel %vm590, %v1616, 0
      %v1684 = vsel %vm590, %v1617, 0
      %v1687 = vsel %vm590, %v1618, 0
      %v1690 = vsel %vm590, %v1619, 0
      %1692 = vmatprep.subr.bf16.mxu0 0
      %1693 = vmatpush1.bf16.msra.mxu0 %v1636
      %1694 = vmatprep.subr.bf16.mxu0 0
      %1695 = vmatpush1.bf16.msra.mxu0 %v1637
      %1696 = vmatprep.subr.bf16.mxu0 0
      %1697 = vmatpush1.bf16.msra.mxu0 %v1638
      %1698 = vmatprep.subr.bf16.mxu0 0
      %1699 = vmatpush1.bf16.msra.mxu0 %v1639
      %1700 = vmatprep.subr.bf16.mxu0 0
      %1701 = vmatpush1.bf16.msra.mxu0 0
      %1702 = vmatprep.subr.bf16.mxu0 0
      %1703 = vmatpush1.bf16.msra.mxu0 0
      %1704 = vmatprep.subr.bf16.mxu0 0
      %1705 = vmatpush1.bf16.msra.mxu0 0
      %1706 = vmatprep.subr.bf16.mxu0 0
      %1707 = vmatpush1.bf16.msra.mxu0 0
      %1708 = vmatprep.subr.bf16.mxu0 0
      %1709 = vmatpush1.bf16.msra.mxu0 0
      %1710 = vmatprep.subr.bf16.mxu0 0
      %1711 = vmatpush1.bf16.msra.mxu0 0
      %1712 = vmatprep.subr.bf16.mxu0 0
      %1713 = vmatpush1.bf16.msra.mxu0 0
      %1714 = vmatprep.subr.bf16.mxu0 0
      %1715 = vmatpush1.bf16.msra.mxu0 0
      %1716 = vmatprep.subr.bf16.mxu0 0
      %1717 = vmatpush1.bf16.msra.mxu0 0
      %1718 = vmatprep.subr.bf16.mxu0 0
      %1719 = vmatpush1.bf16.msra.mxu0 0
      %1720 = vmatprep.subr.bf16.mxu0 0
      %1721 = vmatpush1.bf16.msra.mxu0 0
      %1722 = vmatprep.subr.bf16.mxu0 0
      %1723 = vmatpush1.bf16.msra.mxu0 0
      %1724 = vmatprep.mubr.bf16.mxu0 0
      %1725 = vmatmul.mubr.bf16.gmra.mrb[0].mxu0 %v1645
      %v1726 = vpop.f32.mrb[0].mxu0
      %v1727 = vadd.f32 0.0, %v1726
      %v1728 = vpop.f32.mrb[0].mxu0
      %v1729 = vpop.f32.mrb[0].mxu0
      %v1730 = vadd.f32 0.0, %v1729
      %v1731 = vpop.f32.mrb[0].mxu0
      %1732 = vmatprep.mubr.bf16.mxu0 0
      %1733 = vmatmul.mubr.bf16.gmra.mrb[0].mxu0 %v1648
      %v1734 = vpop.f32.mrb[0].mxu0
      %v1735 = vadd.f32 0.0, %v1734
      %v1736 = vpop.f32.mrb[0].mxu0
      %v1737 = vpop.f32.mrb[0].mxu0
      %v1738 = vadd.f32 0.0, %v1737
      %v1739 = vpop.f32.mrb[0].mxu0
      %1740 = vmatprep.mubr.bf16.mxu0 0
      %1741 = vmatmul.mubr.bf16.gmra.mrb[0].mxu0 %v1651
      %v1742 = vpop.f32.mrb[0].mxu0
      %v1743 = vadd.f32 0.0, %v1742
      %v1744 = vpop.f32.mrb[0].mxu0
      %v1745 = vpop.f32.mrb[0].mxu0
      %v1746 = vadd.f32 0.0, %v1745
      %v1747 = vpop.f32.mrb[0].mxu0
      %1748 = vmatprep.mubr.bf16.mxu0 0
      %1749 = vmatmul.mubr.bf16.gmra.mrb[0].mxu0 %v1654
      %v1750 = vpop.f32.mrb[0].mxu0
      %v1751 = vadd.f32 0.0, %v1750
      %v1752 = vpop.f32.mrb[0].mxu0
      %v1753 = vpop.f32.mrb[0].mxu0
      %v1754 = vadd.f32 0.0, %v1753
      %v1755 = vpop.f32.mrb[0].mxu0
      %1756 = vmatprep.mubr.bf16.mxu0 0
      %1757 = vmatmul.mubr.bf16.gmra.mrb[0].mxu0 %v1657
      %v1758 = vpop.f32.mrb[0].mxu0
      %v1759 = vadd.f32 0.0, %v1758
      %v1760 = vpop.f32.mrb[0].mxu0
      %v1761 = vpop.f32.mrb[0].mxu0
      %v1762 = vadd.f32 0.0, %v1761
      %v1763 = vpop.f32.mrb[0].mxu0
      %1764 = vmatprep.mubr.bf16.mxu0 0
      %1765 = vmatmul.mubr.bf16.gmra.mrb[0].mxu0 %v1660
      %v1766 = vpop.f32.mrb[0].mxu0
      %v1767 = vadd.f32 0.0, %v1766
      %v1768 = vpop.f32.mrb[0].mxu0
      %v1769 = vpop.f32.mrb[0].mxu0
      %v1770 = vadd.f32 0.0, %v1769
      %v1771 = vpop.f32.mrb[0].mxu0
      %1772 = vmatprep.mubr.bf16.mxu0 0
      %1773 = vmatmul.mubr.bf16.gmra.mrb[0].mxu0 %v1663
      %v1774 = vpop.f32.mrb[0].mxu0
      %v1775 = vadd.f32 0.0, %v1774
      %v1776 = vpop.f32.mrb[0].mxu0
      %v1777 = vpop.f32.mrb[0].mxu0
      %v1778 = vadd.f32 0.0, %v1777
      %v1779 = vpop.f32.mrb[0].mxu0
      %1780 = vmatprep.mubr.bf16.mxu0 0
      %1781 = vmatmul.mubr.bf16.gmra.mrb[0].mxu0 %v1666
      %v1782 = vpop.f32.mrb[0].mxu0
      %v1783 = vadd.f32 0.0, %v1782
      %v1784 = vpop.f32.mrb[0].mxu0
      %v1785 = vpop.f32.mrb[0].mxu0
      %v1786 = vadd.f32 0.0, %v1785
      %v1787 = vpop.f32.mrb[0].mxu0
      %1788 = vmatprep.mubr.bf16.mxu0 0
      %1789 = vmatmul.mubr.bf16.gmra.mrb[0].mxu0 %v1669
      %v1790 = vpop.f32.mrb[0].mxu0
      %v1791 = vadd.f32 0.0, %v1790
      %v1792 = vpop.f32.mrb[0].mxu0
      %v1793 = vpop.f32.mrb[0].mxu0
      %v1794 = vadd.f32 0.0, %v1793
      %v1795 = vpop.f32.mrb[0].mxu0
      %1796 = vmatprep.mubr.bf16.mxu0 0
      %1797 = vmatmul.mubr.bf16.gmra.mrb[0].mxu0 %v1672
      %v1798 = vpop.f32.mrb[0].mxu0
      %v1799 = vadd.f32 0.0, %v1798
      %v1800 = vpop.f32.mrb[0].mxu0
      %v1801 = vpop.f32.mrb[0].mxu0
      %v1802 = vadd.f32 0.0, %v1801
      %v1803 = vpop.f32.mrb[0].mxu0
      %1804 = vmatprep.mubr.bf16.mxu0 0
      %1805 = vmatmul.mubr.bf16.gmra.mrb[0].mxu0 %v1675
      %v1806 = vpop.f32.mrb[0].mxu0
      %v1807 = vadd.f32 0.0, %v1806
      %v1808 = vpop.f32.mrb[0].mxu0
      %v1809 = vpop.f32.mrb[0].mxu0
      %v1810 = vadd.f32 0.0, %v1809
      %v1811 = vpop.f32.mrb[0].mxu0
      %1812 = vmatprep.mubr.bf16.mxu0 0
      %1813 = vmatmul.mubr.bf16.gmra.mrb[0].mxu0 %v1678
      %v1814 = vpop.f32.mrb[0].mxu0
      %v1815 = vadd.f32 0.0, %v1814
      %v1816 = vpop.f32.mrb[0].mxu0
      %v1817 = vpop.f32.mrb[0].mxu0
      %v1818 = vadd.f32 0.0, %v1817
      %v1819 = vpop.f32.mrb[0].mxu0
      %1820 = vmatprep.mubr.bf16.mxu0 0
      %1821 = vmatmul.mubr.bf16.gmra.mrb[0].mxu0 %v1681
      %v1822 = vpop.f32.mrb[0].mxu0
      %v1823 = vadd.f32 0.0, %v1822
      %v1824 = vpop.f32.mrb[0].mxu0
      %v1825 = vpop.f32.mrb[0].mxu0
      %v1826 = vadd.f32 0.0, %v1825
      %v1827 = vpop.f32.mrb[0].mxu0
      %1828 = vmatprep.mubr.bf16.mxu0 0
      %1829 = vmatmul.mubr.bf16.gmra.mrb[0].mxu0 %v1684
      %v1830 = vpop.f32.mrb[0].mxu0
      %v1831 = vadd.f32 0.0, %v1830
      %v1832 = vpop.f32.mrb[0].mxu0
      %v1833 = vpop.f32.mrb[0].mxu0
      %v1834 = vadd.f32 0.0, %v1833
      %v1835 = vpop.f32.mrb[0].mxu0
      %1836 = vmatprep.mubr.bf16.mxu0 0
      %1837 = vmatmul.mubr.bf16.gmra.mrb[0].mxu0 %v1687
      %v1838 = vpop.f32.mrb[0].mxu0
      %v1839 = vadd.f32 0.0, %v1838
      %v1840 = vpop.f32.mrb[0].mxu0
      %v1841 = vpop.f32.mrb[0].mxu0
      %v1842 = vadd.f32 0.0, %v1841
      %v1843 = vpop.f32.mrb[0].mxu0
      %1844 = vmatprep.mubr.bf16.mxu0 0
      %1845 = vmatmul.mubr.bf16.gmra.mrb[0].mxu0 %v1690
      %v1846 = vpop.f32.mrb[0].mxu0
      %v1847 = vadd.f32 0.0, %v1846
      %v1848 = vpop.f32.mrb[0].mxu0
      %v1849 = vpop.f32.mrb[0].mxu0
      %v1850 = vadd.f32 0.0, %v1849
      %v1851 = vpop.f32.mrb[0].mxu0
      %1852 = vdwg.mxu0
      %v1853 = vadd.f32 %v1467, %v1727
      %v1854 = vadd.f32 %v1468, %v1730
      %v1855 = vadd.f32 %v1469, %v1735
      %v1856 = vadd.f32 %v1470, %v1738
      %v1857 = vadd.f32 %v1471, %v1743
      %v1858 = vadd.f32 %v1472, %v1746
      %v1859 = vadd.f32 %v1473, %v1751
      %v1860 = vadd.f32 %v1474, %v1754
      %v1861 = vadd.f32 %v1475, %v1759
      %v1862 = vadd.f32 %v1476, %v1762
      %v1863 = vadd.f32 %v1477, %v1767
      %v1864 = vadd.f32 %v1478, %v1770
      %v1865 = vadd.f32 %v1479, %v1775
      %v1866 = vadd.f32 %v1480, %v1778
      %v1867 = vadd.f32 %v1481, %v1783
      %v1868 = vadd.f32 %v1482, %v1786
      %v1869 = vadd.f32 %v1483, %v1791
      %v1870 = vadd.f32 %v1484, %v1794
      %v1871 = vadd.f32 %v1485, %v1799
      %v1872 = vadd.f32 %v1486, %v1802
      %v1873 = vadd.f32 %v1487, %v1807
      %v1874 = vadd.f32 %v1488, %v1810
      %v1875 = vadd.f32 %v1489, %v1815
      %v1876 = vadd.f32 %v1490, %v1818
      %v1877 = vadd.f32 %v1491, %v1823
      %v1878 = vadd.f32 %v1492, %v1826
      %v1879 = vadd.f32 %v1493, %v1831
      %v1880 = vadd.f32 %v1494, %v1834
      %v1881 = vadd.f32 %v1495, %v1839
      %v1882 = vadd.f32 %v1496, %v1842
      %v1883 = vadd.f32 %v1497, %v1847
      %v1884 = vadd.f32 %v1498, %v1850
      %v1885 = vld [vmem:[%s5] sm:$0x1]
      %v1887 = vlaneseq
      %v1888 = vshrl.u32 %v1887, 7
      %v1889 = vsub.s32 0, %v1888
      %v1890 = vrot.slane %v1885, %v1889
      %v1892 = vadd.f32 %v1853, %v1890
      %v1893 = vadd.f32 %v1854, %v1890
      %v1894 = vadd.f32 %v1855, %v1890
      %v1895 = vadd.f32 %v1856, %v1890
      %v1896 = vadd.f32 %v1857, %v1890
      %v1897 = vadd.f32 %v1858, %v1890
      %v1898 = vadd.f32 %v1859, %v1890
      %v1899 = vadd.f32 %v1860, %v1890
      %v1900 = vadd.f32 %v1861, %v1890
      %v1901 = vadd.f32 %v1862, %v1890
      %v1902 = vadd.f32 %v1863, %v1890
      %v1903 = vadd.f32 %v1864, %v1890
      %v1904 = vadd.f32 %v1865, %v1890
      %v1905 = vadd.f32 %v1866, %v1890
      %v1906 = vadd.f32 %v1867, %v1890
      %v1907 = vadd.f32 %v1868, %v1890
      %v1908 = vadd.f32 %v1869, %v1890
      %v1909 = vadd.f32 %v1870, %v1890
      %v1910 = vadd.f32 %v1871, %v1890
      %v1911 = vadd.f32 %v1872, %v1890
      %v1912 = vadd.f32 %v1873, %v1890
      %v1913 = vadd.f32 %v1874, %v1890
      %v1914 = vadd.f32 %v1875, %v1890
      %v1915 = vadd.f32 %v1876, %v1890
      %v1916 = vadd.f32 %v1877, %v1890
      %v1917 = vadd.f32 %v1878, %v1890
      %v1918 = vadd.f32 %v1879, %v1890
      %v1919 = vadd.f32 %v1880, %v1890
      %v1920 = vadd.f32 %v1881, %v1890
      %v1921 = vadd.f32 %v1882, %v1890
      %v1922 = vadd.f32 %v1883, %v1890
      %v1923 = vadd.f32 %v1884, %v1890
      %v1924 = vmax.f32 %v1892, 0.0
      %v1925 = vmax.f32 %v1893, 0.0
      %v1926 = vmax.f32 %v1894, 0.0
      %v1927 = vmax.f32 %v1895, 0.0
      %v1928 = vmax.f32 %v1896, 0.0
      %v1929 = vmax.f32 %v1897, 0.0
      %v1930 = vmax.f32 %v1898, 0.0
      %v1931 = vmax.f32 %v1899, 0.0
      %v1932 = vmax.f32 %v1900, 0.0
      %v1933 = vmax.f32 %v1901, 0.0
      %v1934 = vmax.f32 %v1902, 0.0
      %v1935 = vmax.f32 %v1903, 0.0
      %v1936 = vmax.f32 %v1904, 0.0
      %v1937 = vmax.f32 %v1905, 0.0
      %v1938 = vmax.f32 %v1906, 0.0
      %v1939 = vmax.f32 %v1907, 0.0
      %v1940 = vmax.f32 %v1908, 0.0
      %v1941 = vmax.f32 %v1909, 0.0
      %v1942 = vmax.f32 %v1910, 0.0
      %v1943 = vmax.f32 %v1911, 0.0
      %v1944 = vmax.f32 %v1912, 0.0
      %v1945 = vmax.f32 %v1913, 0.0
      %v1946 = vmax.f32 %v1914, 0.0
      %v1947 = vmax.f32 %v1915, 0.0
      %v1948 = vmax.f32 %v1916, 0.0
      %v1949 = vmax.f32 %v1917, 0.0
      %v1950 = vmax.f32 %v1918, 0.0
      %v1951 = vmax.f32 %v1919, 0.0
      %v1952 = vmax.f32 %v1920, 0.0
      %v1953 = vmax.f32 %v1921, 0.0
      %v1954 = vmax.f32 %v1922, 0.0
      %v1955 = vmax.f32 %v1923, 0.0
      %1956 = vst [vmem:[#allocation2] sm:$0xf] 0
      %1957 = vst [vmem:[#allocation2 + $0x4] sm:$0xf] 0
      %1958 = vst [vmem:[#allocation2 + $0x8] sm:$0x1] 0
      %1959 = vst [vmem:[#allocation2 + $0xc] sm:$0xf] 0
      %1960 = vst [vmem:[#allocation2 + $0x10] sm:$0xf] 0
      %1961 = vst [vmem:[#allocation2 + $0x14] sm:$0x1] 0
      %1962 = vst [vmem:[#allocation2 + $0x18] sm:$0xf] 0
      %1963 = vst [vmem:[#allocation2 + $0x1c] sm:$0xf] 0
      %1964 = vst [vmem:[#allocation2 + $0x20] sm:$0x1] 0
      %1965 = vst [vmem:[#allocation2 + $0x24] sm:$0xf] 0
      %1966 = vst [vmem:[#allocation2 + $0x28] sm:$0xf] 0
      %1967 = vst [vmem:[#allocation2 + $0x2c] sm:$0x1] 0
      %1968 = vst [vmem:[#allocation2 + $0x30] sm:$0xf] 0
      %1969 = vst [vmem:[#allocation2 + $0x34] sm:$0xf] 0
      %1970 = vst [vmem:[#allocation2 + $0x38] sm:$0x1] 0
      %1971 = vst [vmem:[#allocation2 + $0x3c] sm:$0xf] 0
      %1972 = vst [vmem:[#allocation2 + $0x40] sm:$0xf] 0
      %1973 = vst [vmem:[#allocation2 + $0x44] sm:$0x1] 0
      %1974 = vst [vmem:[#allocation2 + $0x48] sm:$0xf] 0
      %1975 = vst [vmem:[#allocation2 + $0x4c] sm:$0xf] 0
      %1976 = vst [vmem:[#allocation2 + $0x50] sm:$0x1] 0
      %1977 = vst [vmem:[#allocation2 + $0x54] sm:$0xf] 0
      %1978 = vst [vmem:[#allocation2 + $0x58] sm:$0xf] 0
      %1979 = vst [vmem:[#allocation2 + $0x5c] sm:$0x1] 0
      %1980 = vst [vmem:[#allocation2 + $0x60] sm:$0xf] 0
      %1981 = vst [vmem:[#allocation2 + $0x64] sm:$0xf] 0
      %1982 = vst [vmem:[#allocation2 + $0x68] sm:$0x1] 0
      %1983 = vst [vmem:[#allocation2 + $0x6c] sm:$0xf] 0
      %1984 = vst [vmem:[#allocation2 + $0x70] sm:$0xf] 0
      %1985 = vst [vmem:[#allocation2 + $0x74] sm:$0x1] 0
      %1986 = vst [vmem:[#allocation2 + $0x78] sm:$0xf] 0
      %1987 = vst [vmem:[#allocation2 + $0x7c] sm:$0xf] 0
      %1988 = vst [vmem:[#allocation2 + $0x80] sm:$0x1] 0
      %1989 = vst [vmem:[#allocation2 + $0x84] sm:$0xf] 0
      %1990 = vst [vmem:[#allocation2 + $0x88] sm:$0xf] 0
      %1991 = vst [vmem:[#allocation2 + $0x8c] sm:$0x1] 0
      %1992 = vst [vmem:[#allocation2 + $0x90] sm:$0xf] 0
      %1993 = vst [vmem:[#allocation2 + $0x94] sm:$0xf] 0
      %1994 = vst [vmem:[#allocation2 + $0x98] sm:$0x1] 0
      %1995 = vst [vmem:[#allocation2 + $0x9c] sm:$0xf] 0
      %1996 = vst [vmem:[#allocation2 + $0xa0] sm:$0xf] 0
      %1997 = vst [vmem:[#allocation2 + $0xa4] sm:$0x1] 0
      %1998 = vst [vmem:[#allocation2 + $0xa8] sm:$0xf] 0
      %1999 = vst [vmem:[#allocation2 + $0xac] sm:$0xf] 0
      %2000 = vst [vmem:[#allocation2 + $0xb0] sm:$0x1] 0
      %2001 = vst [vmem:[#allocation2 + $0xb4] sm:$0xf] 0
      %2002 = vst [vmem:[#allocation2 + $0xb8] sm:$0xf] 0
      %2003 = vst [vmem:[#allocation2 + $0xbc] sm:$0x1] 0
      %2004 = vst [vmem:[#allocation2 + $0xc0] sm:$0xf] 0
      %2005 = vst [vmem:[#allocation2 + $0xc4] sm:$0xf] 0
      %2006 = vst [vmem:[#allocation2 + $0xc8] sm:$0x1] 0
      %2007 = vst [vmem:[#allocation2 + $0xcc] sm:$0xf] 0
      %2008 = vst [vmem:[#allocation2 + $0xd0] sm:$0xf] 0
      %2009 = vst [vmem:[#allocation2 + $0xd4] sm:$0x1] 0
      %v2010 = vpack.c.bf16 %v1925, %v1924
      %v2011 = vpack.c.bf16 %v1927, %v1926
      %v2012 = vpack.c.bf16 %v1929, %v1928
      %v2013 = vpack.c.bf16 %v1931, %v1930
      %v2014 = vpack.c.bf16 %v1933, %v1932
      %v2015 = vpack.c.bf16 %v1935, %v1934
      %v2016 = vpack.c.bf16 %v1937, %v1936
      %v2017 = vpack.c.bf16 %v1939, %v1938
      %v2018 = vpack.c.bf16 %v1941, %v1940
      %v2019 = vpack.c.bf16 %v1943, %v1942
      %v2020 = vpack.c.bf16 %v1945, %v1944
      %v2021 = vpack.c.bf16 %v1947, %v1946
      %v2022 = vpack.c.bf16 %v1949, %v1948
      %v2023 = vpack.c.bf16 %v1951, %v1950
      %v2024 = vpack.c.bf16 %v1953, %v1952
      %v2025 = vpack.c.bf16 %v1955, %v1954
      %v2042 = vunpack.c.l.b16 %v2010
      %v2043 = vunpack.c.h.b16 %v2010
      %v2044 = vunpack.c.l.b16 %v2011
      %v2045 = vunpack.c.h.b16 %v2011
      %v2046 = vunpack.c.l.b16 %v2012
      %v2047 = vunpack.c.h.b16 %v2012
      %v2048 = vunpack.c.l.b16 %v2013
      %v2049 = vunpack.c.h.b16 %v2013
      %v2050 = vunpack.c.l.b16 %v2014
      %v2051 = vunpack.c.h.b16 %v2014
      %v2052 = vunpack.c.l.b16 %v2015
      %v2053 = vunpack.c.h.b16 %v2015
      %v2054 = vunpack.c.l.b16 %v2016
      %v2055 = vunpack.c.h.b16 %v2016
      %v2056 = vunpack.c.l.b16 %v2017
      %v2057 = vunpack.c.h.b16 %v2017
      %v2058 = vunpack.c.l.b16 %v2018
      %v2059 = vunpack.c.h.b16 %v2018
      %v2060 = vunpack.c.l.b16 %v2019
      %v2061 = vunpack.c.h.b16 %v2019
      %v2062 = vunpack.c.l.b16 %v2020
      %v2063 = vunpack.c.h.b16 %v2020
      %v2064 = vunpack.c.l.b16 %v2021
      %v2065 = vunpack.c.h.b16 %v2021
      %v2066 = vunpack.c.l.b16 %v2022
      %v2067 = vunpack.c.h.b16 %v2022
      %v2068 = vunpack.c.l.b16 %v2023
      %v2069 = vunpack.c.h.b16 %v2023
      %v2070 = vunpack.c.l.b16 %v2024
      %v2071 = vunpack.c.h.b16 %v2024
      %v2072 = vunpack.c.l.b16 %v2025
      %v2073 = vunpack.c.h.b16 %v2025
      %v2074 = vpack.c.b16 %v2042, %v2042
      %v2075 = vpack.c.b16 %v2043, %v2043
      %v2076 = vpack.c.b16 %v2044, %v2044
      %v2077 = vpack.c.b16 %v2045, %v2045
      %v2078 = vpack.c.b16 %v2046, %v2046
      %v2079 = vpack.c.b16 %v2047, %v2047
      %v2080 = vpack.c.b16 %v2048, %v2048
      %v2081 = vpack.c.b16 %v2049, %v2049
      %v2082 = vpack.c.b16 %v2050, %v2050
      %v2083 = vpack.c.b16 %v2051, %v2051
      %v2084 = vpack.c.b16 %v2052, %v2052
      %v2085 = vpack.c.b16 %v2053, %v2053
      %v2086 = vpack.c.b16 %v2054, %v2054
      %v2087 = vpack.c.b16 %v2055, %v2055
      %v2088 = vpack.c.b16 %v2056, %v2056
      %v2089 = vpack.c.b16 %v2057, %v2057
      %v2090 = vpack.c.b16 %v2058, %v2058
      %v2091 = vpack.c.b16 %v2059, %v2059
      %v2092 = vpack.c.b16 %v2060, %v2060
      %v2093 = vpack.c.b16 %v2061, %v2061
      %v2094 = vpack.c.b16 %v2062, %v2062
      %v2095 = vpack.c.b16 %v2063, %v2063
      %v2096 = vpack.c.b16 %v2064, %v2064
      %v2097 = vpack.c.b16 %v2065, %v2065
      %v2098 = vpack.c.b16 %v2066, %v2066
      %v2099 = vpack.c.b16 %v2067, %v2067
      %v2100 = vpack.c.b16 %v2068, %v2068
      %v2101 = vpack.c.b16 %v2069, %v2069
      %v2102 = vpack.c.b16 %v2070, %v2070
      %v2103 = vpack.c.b16 %v2071, %v2071
      %v2104 = vpack.c.b16 %v2072, %v2072
      %v2105 = vpack.c.b16 %v2073, %v2073
      %vm2106 = vsmask.f32 256
      %vm2107 = vsmask.f32 4368
      %vm2108 = vmor %vm2106, %vm2107
      %v2110 = vshrl.u32 %v2074, 16
      %v2112 = vrot.slane %v2110, 7
      %v2113 = vshll.u32 %v2074, 16
      %v2115 = vor.u32 %v2112, %v2113
      %v2116 = vrot.slane %v2112, 4
      %v2118 = vshrl.u32 %v2075, 16
      %v2120 = vrot.slane %v2118, 7
      %v2121 = vshll.u32 %v2075, 16
      %v2123 = vor.u32 %v2120, %v2121
      %v2124 = vsel %vm2108, %v2116, %v2123
      %v2125 = vrot.slane %v2120, 4
      %v2127 = vshrl.u32 %v2076, 16
      %v2129 = vrot.slane %v2127, 7
      %v2130 = vshll.u32 %v2076, 16
      %v2132 = vor.u32 %v2129, %v2130
      %v2133 = vrot.slane %v2129, 4
      %v2135 = vshrl.u32 %v2077, 16
      %v2137 = vrot.slane %v2135, 7
      %v2138 = vshll.u32 %v2077, 16
      %v2140 = vor.u32 %v2137, %v2138
      %v2141 = vsel %vm2108, %v2133, %v2140
      %v2142 = vrot.slane %v2137, 4
      %v2144 = vshrl.u32 %v2078, 16
      %v2146 = vrot.slane %v2144, 7
      %v2147 = vshll.u32 %v2078, 16
      %v2149 = vor.u32 %v2146, %v2147
      %v2150 = vrot.slane %v2146, 4
      %v2152 = vshrl.u32 %v2079, 16
      %v2154 = vrot.slane %v2152, 7
      %v2155 = vshll.u32 %v2079, 16
      %v2157 = vor.u32 %v2154, %v2155
      %v2158 = vsel %vm2108, %v2150, %v2157
      %v2159 = vrot.slane %v2154, 4
      %v2161 = vshrl.u32 %v2080, 16
      %v2163 = vrot.slane %v2161, 7
      %v2164 = vshll.u32 %v2080, 16
      %v2166 = vor.u32 %v2163, %v2164
      %v2167 = vrot.slane %v2163, 4
      %v2169 = vshrl.u32 %v2081, 16
      %v2171 = vrot.slane %v2169, 7
      %v2172 = vshll.u32 %v2081, 16
      %v2174 = vor.u32 %v2171, %v2172
      %v2175 = vsel %vm2108, %v2167, %v2174
      %v2176 = vrot.slane %v2171, 4
      %v2178 = vshrl.u32 %v2082, 16
      %v2180 = vrot.slane %v2178, 7
      %v2181 = vshll.u32 %v2082, 16
      %v2183 = vor.u32 %v2180, %v2181
      %v2184 = vrot.slane %v2180, 4
      %v2186 = vshrl.u32 %v2083, 16
      %v2188 = vrot.slane %v2186, 7
      %v2189 = vshll.u32 %v2083, 16
      %v2191 = vor.u32 %v2188, %v2189
      %v2192 = vsel %vm2108, %v2184, %v2191
      %v2193 = vrot.slane %v2188, 4
      %v2195 = vshrl.u32 %v2084, 16
      %v2197 = vrot.slane %v2195, 7
      %v2198 = vshll.u32 %v2084, 16
      %v2200 = vor.u32 %v2197, %v2198
      %v2201 = vrot.slane %v2197, 4
      %v2203 = vshrl.u32 %v2085, 16
      %v2205 = vrot.slane %v2203, 7
      %v2206 = vshll.u32 %v2085, 16
      %v2208 = vor.u32 %v2205, %v2206
      %v2209 = vsel %vm2108, %v2201, %v2208
      %v2210 = vrot.slane %v2205, 4
      %v2212 = vshrl.u32 %v2086, 16
      %v2214 = vrot.slane %v2212, 7
      %v2215 = vshll.u32 %v2086, 16
      %v2217 = vor.u32 %v2214, %v2215
      %v2218 = vrot.slane %v2214, 4
      %v2220 = vshrl.u32 %v2087, 16
      %v2222 = vrot.slane %v2220, 7
      %v2223 = vshll.u32 %v2087, 16
      %v2225 = vor.u32 %v2222, %v2223
      %v2226 = vsel %vm2108, %v2218, %v2225
      %v2227 = vrot.slane %v2222, 4
      %v2229 = vshrl.u32 %v2088, 16
      %v2231 = vrot.slane %v2229, 7
      %v2232 = vshll.u32 %v2088, 16
      %v2234 = vor.u32 %v2231, %v2232
      %v2235 = vrot.slane %v2231, 4
      %v2237 = vshrl.u32 %v2089, 16
      %v2239 = vrot.slane %v2237, 7
      %v2240 = vshll.u32 %v2089, 16
      %v2242 = vor.u32 %v2239, %v2240
      %v2243 = vsel %vm2108, %v2235, %v2242
      %v2244 = vrot.slane %v2239, 4
      %v2246 = vshrl.u32 %v2090, 16
      %v2248 = vrot.slane %v2246, 7
      %v2249 = vshll.u32 %v2090, 16
      %v2251 = vor.u32 %v2248, %v2249
      %v2252 = vrot.slane %v2248, 4
      %v2254 = vshrl.u32 %v2091, 16
      %v2256 = vrot.slane %v2254, 7
      %v2257 = vshll.u32 %v2091, 16
      %v2259 = vor.u32 %v2256, %v2257
      %v2260 = vsel %vm2108, %v2252, %v2259
      %v2261 = vrot.slane %v2256, 4
      %v2263 = vshrl.u32 %v2092, 16
      %v2265 = vrot.slane %v2263, 7
      %v2266 = vshll.u32 %v2092, 16
      %v2268 = vor.u32 %v2265, %v2266
      %v2269 = vrot.slane %v2265, 4
      %v2271 = vshrl.u32 %v2093, 16
      %v2273 = vrot.slane %v2271, 7
      %v2274 = vshll.u32 %v2093, 16
      %v2276 = vor.u32 %v2273, %v2274
      %v2277 = vsel %vm2108, %v2269, %v2276
      %v2278 = vrot.slane %v2273, 4
      %v2280 = vshrl.u32 %v2094, 16
      %v2282 = vrot.slane %v2280, 7
      %v2283 = vshll.u32 %v2094, 16
      %v2285 = vor.u32 %v2282, %v2283
      %v2286 = vrot.slane %v2282, 4
      %v2288 = vshrl.u32 %v2095, 16
      %v2290 = vrot.slane %v2288, 7
      %v2291 = vshll.u32 %v2095, 16
      %v2293 = vor.u32 %v2290, %v2291
      %v2294 = vsel %vm2108, %v2286, %v2293
      %v2295 = vrot.slane %v2290, 4
      %v2297 = vshrl.u32 %v2096, 16
      %v2299 = vrot.slane %v2297, 7
      %v2300 = vshll.u32 %v2096, 16
      %v2302 = vor.u32 %v2299, %v2300
      %v2303 = vrot.slane %v2299, 4
      %v2305 = vshrl.u32 %v2097, 16
      %v2307 = vrot.slane %v2305, 7
      %v2308 = vshll.u32 %v2097, 16
      %v2310 = vor.u32 %v2307, %v2308
      %v2311 = vsel %vm2108, %v2303, %v2310
      %v2312 = vrot.slane %v2307, 4
      %v2314 = vshrl.u32 %v2098, 16
      %v2316 = vrot.slane %v2314, 7
      %v2317 = vshll.u32 %v2098, 16
      %v2319 = vor.u32 %v2316, %v2317
      %v2320 = vrot.slane %v2316, 4
      %v2322 = vshrl.u32 %v2099, 16
      %v2324 = vrot.slane %v2322, 7
      %v2325 = vshll.u32 %v2099, 16
      %v2327 = vor.u32 %v2324, %v2325
      %v2328 = vsel %vm2108, %v2320, %v2327
      %v2329 = vrot.slane %v2324, 4
      %v2331 = vshrl.u32 %v2100, 16
      %v2333 = vrot.slane %v2331, 7
      %v2334 = vshll.u32 %v2100, 16
      %v2336 = vor.u32 %v2333, %v2334
      %v2337 = vrot.slane %v2333, 4
      %v2339 = vshrl.u32 %v2101, 16
      %v2341 = vrot.slane %v2339, 7
      %v2342 = vshll.u32 %v2101, 16
      %v2344 = vor.u32 %v2341, %v2342
      %v2345 = vsel %vm2108, %v2337, %v2344
      %v2346 = vrot.slane %v2341, 4
      %v2348 = vshrl.u32 %v2102, 16
      %v2350 = vrot.slane %v2348, 7
      %v2351 = vshll.u32 %v2102, 16
      %v2353 = vor.u32 %v2350, %v2351
      %v2354 = vrot.slane %v2350, 4
      %v2356 = vshrl.u32 %v2103, 16
      %v2358 = vrot.slane %v2356, 7
      %v2359 = vshll.u32 %v2103, 16
      %v2361 = vor.u32 %v2358, %v2359
      %v2362 = vsel %vm2108, %v2354, %v2361
      %v2363 = vrot.slane %v2358, 4
      %v2365 = vshrl.u32 %v2104, 16
      %v2367 = vrot.slane %v2365, 7
      %v2368 = vshll.u32 %v2104, 16
      %v2370 = vor.u32 %v2367, %v2368
      %v2371 = vrot.slane %v2367, 4
      %v2373 = vshrl.u32 %v2105, 16
      %v2375 = vrot.slane %v2373, 7
      %v2376 = vshll.u32 %v2105, 16
      %v2378 = vor.u32 %v2375, %v2376
      %v2379 = vsel %vm2108, %v2371, %v2378
      %v2380 = vrot.slane %v2375, 4
      %s2429 = scalar_lea.vmem [#allocation2], 12
      %vm2430 = vcmask 1043456
      %vm2431 = vsmask.f32 7938
      %vm2432 = vmand %vm2430, %vm2431
      %v2433 = vld [vmem:[%s2429] sm:$0xf]
      %v2434 = vsel %vm2432, %v2115, %v2433
      %2435 = vst [vmem:[%s2429] sm:$0xf] %v2434
      %2436 = vst [vmem:[%s2429 + $0x4] sm:$0xf] %v2124
      %vm2437 = vcmask 1040384
      %vm2438 = vmand %vm2437, %vm2106
      %v2439 = vld [vmem:[%s2429 + $0x8] sm:$0x1]
      %v2440 = vsel %vm2438, %v2125, %v2439
      %2441 = vst [vmem:[%s2429 + $0x8] sm:$0x1] %v2440
      %v2442 = vld [vmem:[%s2429 + $0xc] sm:$0xf]
      %v2443 = vsel %vm2432, %v2132, %v2442
      %2444 = vst [vmem:[%s2429 + $0xc] sm:$0xf] %v2443
      %2445 = vst [vmem:[%s2429 + $0x10] sm:$0xf] %v2141
      %v2446 = vld [vmem:[%s2429 + $0x14] sm:$0x1]
      %v2447 = vsel %vm2438, %v2142, %v2446
      %2448 = vst [vmem:[%s2429 + $0x14] sm:$0x1] %v2447
      %v2449 = vld [vmem:[%s2429 + $0x18] sm:$0xf]
      %v2450 = vsel %vm2432, %v2149, %v2449
      %2451 = vst [vmem:[%s2429 + $0x18] sm:$0xf] %v2450
      %2452 = vst [vmem:[%s2429 + $0x1c] sm:$0xf] %v2158
      %v2453 = vld [vmem:[%s2429 + $0x20] sm:$0x1]
      %v2454 = vsel %vm2438, %v2159, %v2453
      %2455 = vst [vmem:[%s2429 + $0x20] sm:$0x1] %v2454
      %v2456 = vld [vmem:[%s2429 + $0x24] sm:$0xf]
      %v2457 = vsel %vm2432, %v2166, %v2456
      %2458 = vst [vmem:[%s2429 + $0x24] sm:$0xf] %v2457
      %2459 = vst [vmem:[%s2429 + $0x28] sm:$0xf] %v2175
      %v2460 = vld [vmem:[%s2429 + $0x2c] sm:$0x1]
      %v2461 = vsel %vm2438, %v2176, %v2460
      %2462 = vst [vmem:[%s2429 + $0x2c] sm:$0x1] %v2461
      %v2463 = vld [vmem:[%s2429 + $0x30] sm:$0xf]
      %v2464 = vsel %vm2432, %v2183, %v2463
      %2465 = vst [vmem:[%s2429 + $0x30] sm:$0xf] %v2464
      %2466 = vst [vmem:[%s2429 + $0x34] sm:$0xf] %v2192
      %v2467 = vld [vmem:[%s2429 + $0x38] sm:$0x1]
      %v2468 = vsel %vm2438, %v2193, %v2467
      %2469 = vst [vmem:[%s2429 + $0x38] sm:$0x1] %v2468
      %v2470 = vld [vmem:[%s2429 + $0x3c] sm:$0xf]
      %v2471 = vsel %vm2432, %v2200, %v2470
      %2472 = vst [vmem:[%s2429 + $0x3c] sm:$0xf] %v2471
      %2473 = vst [vmem:[%s2429 + $0x40] sm:$0xf] %v2209
      %v2474 = vld [vmem:[%s2429 + $0x44] sm:$0x1]
      %v2475 = vsel %vm2438, %v2210, %v2474
      %2476 = vst [vmem:[%s2429 + $0x44] sm:$0x1] %v2475
      %v2477 = vld [vmem:[%s2429 + $0x48] sm:$0xf]
      %v2478 = vsel %vm2432, %v2217, %v2477
      %2479 = vst [vmem:[%s2429 + $0x48] sm:$0xf] %v2478
      %2480 = vst [vmem:[%s2429 + $0x4c] sm:$0xf] %v2226
      %v2481 = vld [vmem:[%s2429 + $0x50] sm:$0x1]
      %v2482 = vsel %vm2438, %v2227, %v2481
      %2483 = vst [vmem:[%s2429 + $0x50] sm:$0x1] %v2482
      %v2484 = vld [vmem:[%s2429 + $0x54] sm:$0xf]
      %v2485 = vsel %vm2432, %v2234, %v2484
      %2486 = vst [vmem:[%s2429 + $0x54] sm:$0xf] %v2485
      %2487 = vst [vmem:[%s2429 + $0x58] sm:$0xf] %v2243
      %v2488 = vld [vmem:[%s2429 + $0x5c] sm:$0x1]
      %v2489 = vsel %vm2438, %v2244, %v2488
      %2490 = vst [vmem:[%s2429 + $0x5c] sm:$0x1] %v2489
      %v2491 = vld [vmem:[%s2429 + $0x60] sm:$0xf]
      %v2492 = vsel %vm2432, %v2251, %v2491
      %2493 = vst [vmem:[%s2429 + $0x60] sm:$0xf] %v2492
      %2494 = vst [vmem:[%s2429 + $0x64] sm:$0xf] %v2260
      %v2495 = vld [vmem:[%s2429 + $0x68] sm:$0x1]
      %v2496 = vsel %vm2438, %v2261, %v2495
      %2497 = vst [vmem:[%s2429 + $0x68] sm:$0x1] %v2496
      %v2498 = vld [vmem:[%s2429 + $0x6c] sm:$0xf]
      %v2499 = vsel %vm2432, %v2268, %v2498
      %2500 = vst [vmem:[%s2429 + $0x6c] sm:$0xf] %v2499
      %2501 = vst [vmem:[%s2429 + $0x70] sm:$0xf] %v2277
      %v2502 = vld [vmem:[%s2429 + $0x74] sm:$0x1]
      %v2503 = vsel %vm2438, %v2278, %v2502
      %2504 = vst [vmem:[%s2429 + $0x74] sm:$0x1] %v2503
      %v2505 = vld [vmem:[%s2429 + $0x78] sm:$0xf]
      %v2506 = vsel %vm2432, %v2285, %v2505
      %2507 = vst [vmem:[%s2429 + $0x78] sm:$0xf] %v2506
      %2508 = vst [vmem:[%s2429 + $0x7c] sm:$0xf] %v2294
      %v2509 = vld [vmem:[%s2429 + $0x80] sm:$0x1]
      %v2510 = vsel %vm2438, %v2295, %v2509
      %2511 = vst [vmem:[%s2429 + $0x80] sm:$0x1] %v2510
      %v2512 = vld [vmem:[%s2429 + $0x84] sm:$0xf]
      %v2513 = vsel %vm2432, %v2302, %v2512
      %2514 = vst [vmem:[%s2429 + $0x84] sm:$0xf] %v2513
      %2515 = vst [vmem:[%s2429 + $0x88] sm:$0xf] %v2311
      %v2516 = vld [vmem:[%s2429 + $0x8c] sm:$0x1]
      %v2517 = vsel %vm2438, %v2312, %v2516
      %2518 = vst [vmem:[%s2429 + $0x8c] sm:$0x1] %v2517
      %v2519 = vld [vmem:[%s2429 + $0x90] sm:$0xf]
      %v2520 = vsel %vm2432, %v2319, %v2519
      %2521 = vst [vmem:[%s2429 + $0x90] sm:$0xf] %v2520
      %2522 = vst [vmem:[%s2429 + $0x94] sm:$0xf] %v2328
      %v2523 = vld [vmem:[%s2429 + $0x98] sm:$0x1]
      %v2524 = vsel %vm2438, %v2329, %v2523
      %2525 = vst [vmem:[%s2429 + $0x98] sm:$0x1] %v2524
      %v2526 = vld [vmem:[%s2429 + $0x9c] sm:$0xf]
      %v2527 = vsel %vm2432, %v2336, %v2526
      %2528 = vst [vmem:[%s2429 + $0x9c] sm:$0xf] %v2527
      %2529 = vst [vmem:[%s2429 + $0xa0] sm:$0xf] %v2345
      %v2530 = vld [vmem:[%s2429 + $0xa4] sm:$0x1]
      %v2531 = vsel %vm2438, %v2346, %v2530
      %2532 = vst [vmem:[%s2429 + $0xa4] sm:$0x1] %v2531
      %v2533 = vld [vmem:[%s2429 + $0xa8] sm:$0xf]
      %v2534 = vsel %vm2432, %v2353, %v2533
      %2535 = vst [vmem:[%s2429 + $0xa8] sm:$0xf] %v2534
      %2536 = vst [vmem:[%s2429 + $0xac] sm:$0xf] %v2362
      %v2537 = vld [vmem:[%s2429 + $0xb0] sm:$0x1]
      %v2538 = vsel %vm2438, %v2363, %v2537
      %2539 = vst [vmem:[%s2429 + $0xb0] sm:$0x1] %v2538
      %v2540 = vld [vmem:[%s2429 + $0xb4] sm:$0xf]
      %v2541 = vsel %vm2432, %v2370, %v2540
      %2542 = vst [vmem:[%s2429 + $0xb4] sm:$0xf] %v2541
      %2543 = vst [vmem:[%s2429 + $0xb8] sm:$0xf] %v2379
      %v2544 = vld [vmem:[%s2429 + $0xbc] sm:$0x1]
      %v2545 = vsel %vm2438, %v2380, %v2544
      %2546 = vst [vmem:[%s2429 + $0xbc] sm:$0x1] %v2545
      %v2547 = vld [vmem:[#allocation2] sm:$0xf]
      %v2548 = vld [vmem:[#allocation2 + $0x4] sm:$0xf]
      %v2549 = vld [vmem:[#allocation2 + $0xc] sm:$0xf]
      %v2550 = vld [vmem:[#allocation2 + $0x10] sm:$0xf]
      %v2551 = vld [vmem:[#allocation2 + $0x18] sm:$0xf]
      %v2552 = vld [vmem:[#allocation2 + $0x1c] sm:$0xf]
      %v2553 = vld [vmem:[#allocation2 + $0x24] sm:$0xf]
      %v2554 = vld [vmem:[#allocation2 + $0x28] sm:$0xf]
      %v2555 = vld [vmem:[#allocation2 + $0x30] sm:$0xf]
      %v2556 = vld [vmem:[#allocation2 + $0x34] sm:$0xf]
      %v2557 = vld [vmem:[#allocation2 + $0x3c] sm:$0xf]
      %v2558 = vld [vmem:[#allocation2 + $0x40] sm:$0xf]
      %v2559 = vld [vmem:[#allocation2 + $0x48] sm:$0xf]
      %v2560 = vld [vmem:[#allocation2 + $0x4c] sm:$0xf]
      %v2561 = vld [vmem:[#allocation2 + $0x54] sm:$0xf]
      %v2562 = vld [vmem:[#allocation2 + $0x58] sm:$0xf]
      %v2563 = vld [vmem:[#allocation2 + $0x60] sm:$0xf]
      %v2564 = vld [vmem:[#allocation2 + $0x64] sm:$0xf]
      %v2565 = vld [vmem:[#allocation2 + $0x6c] sm:$0xf]
      %v2566 = vld [vmem:[#allocation2 + $0x70] sm:$0xf]
      %v2567 = vld [vmem:[#allocation2 + $0x78] sm:$0xf]
      %v2568 = vld [vmem:[#allocation2 + $0x7c] sm:$0xf]
      %v2569 = vld [vmem:[#allocation2 + $0x84] sm:$0xf]
      %v2570 = vld [vmem:[#allocation2 + $0x88] sm:$0xf]
      %v2571 = vld [vmem:[#allocation2 + $0x90] sm:$0xf]
      %v2572 = vld [vmem:[#allocation2 + $0x94] sm:$0xf]
      %v2573 = vld [vmem:[#allocation2 + $0x9c] sm:$0xf]
      %v2574 = vld [vmem:[#allocation2 + $0xa0] sm:$0xf]
      %v2575 = vld [vmem:[#allocation2 + $0xa8] sm:$0xf]
      %v2576 = vld [vmem:[#allocation2 + $0xac] sm:$0xf]
      %v2577 = vld [vmem:[#allocation2 + $0xb4] sm:$0xf]
      %v2578 = vld [vmem:[#allocation2 + $0xb8] sm:$0xf]
      %v2611 = vunpack.c.l.b16 %v2547
      %v2612 = vunpack.c.l.b16 %v2548
      %v2613 = vunpack.c.l.b16 %v2549
      %v2614 = vunpack.c.l.b16 %v2550
      %v2615 = vunpack.c.l.b16 %v2551
      %v2616 = vunpack.c.l.b16 %v2552
      %v2617 = vunpack.c.l.b16 %v2553
      %v2618 = vunpack.c.l.b16 %v2554
      %v2619 = vunpack.c.l.b16 %v2555
      %v2620 = vunpack.c.l.b16 %v2556
      %v2621 = vunpack.c.l.b16 %v2557
      %v2622 = vunpack.c.l.b16 %v2558
      %v2623 = vunpack.c.l.b16 %v2559
      %v2624 = vunpack.c.l.b16 %v2560
      %v2625 = vunpack.c.l.b16 %v2561
      %v2626 = vunpack.c.l.b16 %v2562
      %v2627 = vunpack.c.l.b16 %v2563
      %v2628 = vunpack.c.l.b16 %v2564
      %v2629 = vunpack.c.l.b16 %v2565
      %v2630 = vunpack.c.l.b16 %v2566
      %v2631 = vunpack.c.l.b16 %v2567
      %v2632 = vunpack.c.l.b16 %v2568
      %v2633 = vunpack.c.l.b16 %v2569
      %v2634 = vunpack.c.l.b16 %v2570
      %v2635 = vunpack.c.l.b16 %v2571
      %v2636 = vunpack.c.l.b16 %v2572
      %v2637 = vunpack.c.l.b16 %v2573
      %v2638 = vunpack.c.l.b16 %v2574
      %v2639 = vunpack.c.l.b16 %v2575
      %v2640 = vunpack.c.l.b16 %v2576
      %v2641 = vunpack.c.l.b16 %v2577
      %v2642 = vunpack.c.l.b16 %v2578
      %v2643 = vpack.c.b16 %v2612, %v2611
      %v2644 = vpack.c.b16 %v2614, %v2613
      %v2645 = vpack.c.b16 %v2616, %v2615
      %v2646 = vpack.c.b16 %v2618, %v2617
      %v2647 = vpack.c.b16 %v2620, %v2619
      %v2648 = vpack.c.b16 %v2622, %v2621
      %v2649 = vpack.c.b16 %v2624, %v2623
      %v2650 = vpack.c.b16 %v2626, %v2625
      %v2651 = vpack.c.b16 %v2628, %v2627
      %v2652 = vpack.c.b16 %v2630, %v2629
      %v2653 = vpack.c.b16 %v2632, %v2631
      %v2654 = vpack.c.b16 %v2634, %v2633
      %v2655 = vpack.c.b16 %v2636, %v2635
      %v2656 = vpack.c.b16 %v2638, %v2637
      %v2657 = vpack.c.b16 %v2640, %v2639
      %v2658 = vpack.c.b16 %v2642, %v2641
      %2675 = vst [vmem:[#allocation3] sm:$0xff] %v2643
      %2676 = vst [vmem:[#allocation3 + $0x48] sm:$0xff] %v2644
      %2677 = vst [vmem:[#allocation3 + $0x90] sm:$0xff] %v2645
      %2678 = vst [vmem:[#allocation3 + $0xd8] sm:$0xff] %v2646
      %2679 = vst [vmem:[#allocation3 + $0x120] sm:$0xff] %v2647
      %2680 = vst [vmem:[#allocation3 + $0x168] sm:$0xff] %v2648
      %2681 = vst [vmem:[#allocation3 + $0x1b0] sm:$0xff] %v2649
      %2682 = vst [vmem:[#allocation3 + $0x1f8] sm:$0xff] %v2650
      %2683 = vst [vmem:[#allocation3 + $0x240] sm:$0xff] %v2651
      %2684 = vst [vmem:[#allocation3 + $0x288] sm:$0xff] %v2652
      %2685 = vst [vmem:[#allocation3 + $0x2d0] sm:$0xff] %v2653
      %2686 = vst [vmem:[#allocation3 + $0x318] sm:$0xff] %v2654
      %2687 = vst [vmem:[#allocation3 + $0x360] sm:$0xff] %v2655
      %2688 = vst [vmem:[#allocation3 + $0x3a8] sm:$0xff] %v2656
      %2689 = vst [vmem:[#allocation3 + $0x3f0] sm:$0xff] %v2657
      %2690 = vst [vmem:[#allocation3 + $0x438] sm:$0xff] %v2658
      %v2691 = vld [vmem:[#allocation2] sm:$0xf]
      %v2692 = vld [vmem:[#allocation2 + $0x4] sm:$0xf]
      %v2693 = vld [vmem:[#allocation2 + $0x8] sm:$0x1]
      %v2694 = vld [vmem:[#allocation2 + $0xc] sm:$0xf]
      %v2695 = vld [vmem:[#allocation2 + $0x10] sm:$0xf]
      %v2696 = vld [vmem:[#allocation2 + $0x14] sm:$0x1]
      %v2697 = vld [vmem:[#allocation2 + $0x18] sm:$0xf]
      %v2698 = vld [vmem:[#allocation2 + $0x1c] sm:$0xf]
      %v2699 = vld [vmem:[#allocation2 + $0x20] sm:$0x1]
      %v2700 = vld [vmem:[#allocation2 + $0x24] sm:$0xf]
      %v2701 = vld [vmem:[#allocation2 + $0x28] sm:$0xf]
      %v2702 = vld [vmem:[#allocation2 + $0x2c] sm:$0x1]
      %v2703 = vld [vmem:[#allocation2 + $0x30] sm:$0xf]
      %v2704 = vld [vmem:[#allocation2 + $0x34] sm:$0xf]
      %v2705 = vld [vmem:[#allocation2 + $0x38] sm:$0x1]
      %v2706 = vld [vmem:[#allocation2 + $0x3c] sm:$0xf]
      %v2707 = vld [vmem:[#allocation2 + $0x40] sm:$0xf]
      %v2708 = vld [vmem:[#allocation2 + $0x44] sm:$0x1]
      %v2709 = vld [vmem:[#allocation2 + $0x48] sm:$0xf]
      %v2710 = vld [vmem:[#allocation2 + $0x4c] sm:$0xf]
      %v2711 = vld [vmem:[#allocation2 + $0x50] sm:$0x1]
      %v2712 = vld [vmem:[#allocation2 + $0x54] sm:$0xf]
      %v2713 = vld [vmem:[#allocation2 + $0x58] sm:$0xf]
      %v2714 = vld [vmem:[#allocation2 + $0x5c] sm:$0x1]
      %v2715 = vld [vmem:[#allocation2 + $0x60] sm:$0xf]
      %v2716 = vld [vmem:[#allocation2 + $0x64] sm:$0xf]
      %v2717 = vld [vmem:[#allocation2 + $0x68] sm:$0x1]
      %v2718 = vld [vmem:[#allocation2 + $0x6c] sm:$0xf]
      %v2719 = vld [vmem:[#allocation2 + $0x70] sm:$0xf]
      %v2720 = vld [vmem:[#allocation2 + $0x74] sm:$0x1]
      %v2721 = vld [vmem:[#allocation2 + $0x78] sm:$0xf]
      %v2722 = vld [vmem:[#allocation2 + $0x7c] sm:$0xf]
      %v2723 = vld [vmem:[#allocation2 + $0x80] sm:$0x1]
      %v2724 = vld [vmem:[#allocation2 + $0x84] sm:$0xf]
      %v2725 = vld [vmem:[#allocation2 + $0x88] sm:$0xf]
      %v2726 = vld [vmem:[#allocation2 + $0x8c] sm:$0x1]
      %v2727 = vld [vmem:[#allocation2 + $0x90] sm:$0xf]
      %v2728 = vld [vmem:[#allocation2 + $0x94] sm:$0xf]
      %v2729 = vld [vmem:[#allocation2 + $0x98] sm:$0x1]
      %v2730 = vld [vmem:[#allocation2 + $0x9c] sm:$0xf]
      %v2731 = vld [vmem:[#allocation2 + $0xa0] sm:$0xf]
      %v2732 = vld [vmem:[#allocation2 + $0xa4] sm:$0x1]
      %v2733 = vld [vmem:[#allocation2 + $0xa8] sm:$0xf]
      %v2734 = vld [vmem:[#allocation2 + $0xac] sm:$0xf]
      %v2735 = vld [vmem:[#allocation2 + $0xb0] sm:$0x1]
      %v2736 = vld [vmem:[#allocation2 + $0xb4] sm:$0xf]
      %v2737 = vld [vmem:[#allocation2 + $0xb8] sm:$0xf]
      %v2738 = vld [vmem:[#allocation2 + $0xbc] sm:$0x1]
      %vm2739 = vsmask.f32 3328
      %vm2740 = vsmask.f32 7440
      %vm2741 = vmor %vm2739, %vm2740
      %v2743 = vshrl.u32 %v2691, 16
      %v2745 = vrot.slane %v2743, 4
      %v2746 = vshll.u32 %v2691, 16
      %v2748 = vrot.slane %v2746, 5
      %v2749 = vor.u32 %v2745, %v2748
      %v2750 = vrot.slane %v2749, 4
      %v2752 = vshll.u32 %v2692, 16
      %v2754 = vrot.slane %v2752, 5
      %v2755 = vsel %vm2741, %v2750, %v2754
      %v2756 = vshrl.u32 %v2692, 16
      %v2758 = vrot.slane %v2756, 4
      %v2759 = vor.u32 %v2758, %v2754
      %v2760 = vrot.slane %v2759, 4
      %v2762 = vshll.u32 %v2693, 16
      %v2764 = vrot.slane %v2762, 5
      %v2765 = vsel %vm2741, %v2760, %v2764
      %v2767 = vshrl.u32 %v2694, 16
      %v2769 = vrot.slane %v2767, 4
      %v2770 = vshll.u32 %v2694, 16
      %v2772 = vrot.slane %v2770, 5
      %v2773 = vor.u32 %v2769, %v2772
      %v2774 = vrot.slane %v2773, 4
      %v2776 = vshll.u32 %v2695, 16
      %v2778 = vrot.slane %v2776, 5
      %v2779 = vsel %vm2741, %v2774, %v2778
      %v2780 = vshrl.u32 %v2695, 16
      %v2782 = vrot.slane %v2780, 4
      %v2783 = vor.u32 %v2782, %v2778
      %v2784 = vrot.slane %v2783, 4
      %v2786 = vshll.u32 %v2696, 16
      %v2788 = vrot.slane %v2786, 5
      %v2789 = vsel %vm2741, %v2784, %v2788
      %v2791 = vshrl.u32 %v2697, 16
      %v2793 = vrot.slane %v2791, 4
      %v2794 = vshll.u32 %v2697, 16
      %v2796 = vrot.slane %v2794, 5
      %v2797 = vor.u32 %v2793, %v2796
      %v2798 = vrot.slane %v2797, 4
      %v2800 = vshll.u32 %v2698, 16
      %v2802 = vrot.slane %v2800, 5
      %v2803 = vsel %vm2741, %v2798, %v2802
      %v2804 = vshrl.u32 %v2698, 16
      %v2806 = vrot.slane %v2804, 4
      %v2807 = vor.u32 %v2806, %v2802
      %v2808 = vrot.slane %v2807, 4
      %v2810 = vshll.u32 %v2699, 16
      %v2812 = vrot.slane %v2810, 5
      %v2813 = vsel %vm2741, %v2808, %v2812
      %v2815 = vshrl.u32 %v2700, 16
      %v2817 = vrot.slane %v2815, 4
      %v2818 = vshll.u32 %v2700, 16
      %v2820 = vrot.slane %v2818, 5
      %v2821 = vor.u32 %v2817, %v2820
      %v2822 = vrot.slane %v2821, 4
      %v2824 = vshll.u32 %v2701, 16
      %v2826 = vrot.slane %v2824, 5
      %v2827 = vsel %vm2741, %v2822, %v2826
      %v2828 = vshrl.u32 %v2701, 16
      %v2830 = vrot.slane %v2828, 4
      %v2831 = vor.u32 %v2830, %v2826
      %v2832 = vrot.slane %v2831, 4
      %v2834 = vshll.u32 %v2702, 16
      %v2836 = vrot.slane %v2834, 5
      %v2837 = vsel %vm2741, %v2832, %v2836
      %v2839 = vshrl.u32 %v2703, 16
      %v2841 = vrot.slane %v2839, 4
      %v2842 = vshll.u32 %v2703, 16
      %v2844 = vrot.slane %v2842, 5
      %v2845 = vor.u32 %v2841, %v2844
      %v2846 = vrot.slane %v2845, 4
      %v2848 = vshll.u32 %v2704, 16
      %v2850 = vrot.slane %v2848, 5
      %v2851 = vsel %vm2741, %v2846, %v2850
      %v2852 = vshrl.u32 %v2704, 16
      %v2854 = vrot.slane %v2852, 4
      %v2855 = vor.u32 %v2854, %v2850
      %v2856 = vrot.slane %v2855, 4
      %v2858 = vshll.u32 %v2705, 16
      %v2860 = vrot.slane %v2858, 5
      %v2861 = vsel %vm2741, %v2856, %v2860
      %v2863 = vshrl.u32 %v2706, 16
      %v2865 = vrot.slane %v2863, 4
      %v2866 = vshll.u32 %v2706, 16
      %v2868 = vrot.slane %v2866, 5
      %v2869 = vor.u32 %v2865, %v2868
      %v2870 = vrot.slane %v2869, 4
      %v2872 = vshll.u32 %v2707, 16
      %v2874 = vrot.slane %v2872, 5
      %v2875 = vsel %vm2741, %v2870, %v2874
      %v2876 = vshrl.u32 %v2707, 16
      %v2878 = vrot.slane %v2876, 4
      %v2879 = vor.u32 %v2878, %v2874
      %v2880 = vrot.slane %v2879, 4
      %v2882 = vshll.u32 %v2708, 16
      %v2884 = vrot.slane %v2882, 5
      %v2885 = vsel %vm2741, %v2880, %v2884
      %v2887 = vshrl.u32 %v2709, 16
      %v2889 = vrot.slane %v2887, 4
      %v2890 = vshll.u32 %v2709, 16
      %v2892 = vrot.slane %v2890, 5
      %v2893 = vor.u32 %v2889, %v2892
      %v2894 = vrot.slane %v2893, 4
      %v2896 = vshll.u32 %v2710, 16
      %v2898 = vrot.slane %v2896, 5
      %v2899 = vsel %vm2741, %v2894, %v2898
      %v2900 = vshrl.u32 %v2710, 16
      %v2902 = vrot.slane %v2900, 4
      %v2903 = vor.u32 %v2902, %v2898
      %v2904 = vrot.slane %v2903, 4
      %v2906 = vshll.u32 %v2711, 16
      %v2908 = vrot.slane %v2906, 5
      %v2909 = vsel %vm2741, %v2904, %v2908
      %v2911 = vshrl.u32 %v2712, 16
      %v2913 = vrot.slane %v2911, 4
      %v2914 = vshll.u32 %v2712, 16
      %v2916 = vrot.slane %v2914, 5
      %v2917 = vor.u32 %v2913, %v2916
      %v2918 = vrot.slane %v2917, 4
      %v2920 = vshll.u32 %v2713, 16
      %v2922 = vrot.slane %v2920, 5
      %v2923 = vsel %vm2741, %v2918, %v2922
      %v2924 = vshrl.u32 %v2713, 16
      %v2926 = vrot.slane %v2924, 4
      %v2927 = vor.u32 %v2926, %v2922
      %v2928 = vrot.slane %v2927, 4
      %v2930 = vshll.u32 %v2714, 16
      %v2932 = vrot.slane %v2930, 5
      %v2933 = vsel %vm2741, %v2928, %v2932
      %v2935 = vshrl.u32 %v2715, 16
      %v2937 = vrot.slane %v2935, 4
      %v2938 = vshll.u32 %v2715, 16
      %v2940 = vrot.slane %v2938, 5
      %v2941 = vor.u32 %v2937, %v2940
      %v2942 = vrot.slane %v2941, 4
      %v2944 = vshll.u32 %v2716, 16
      %v2946 = vrot.slane %v2944, 5
      %v2947 = vsel %vm2741, %v2942, %v2946
      %v2948 = vshrl.u32 %v2716, 16
      %v2950 = vrot.slane %v2948, 4
      %v2951 = vor.u32 %v2950, %v2946
      %v2952 = vrot.slane %v2951, 4
      %v2954 = vshll.u32 %v2717, 16
      %v2956 = vrot.slane %v2954, 5
      %v2957 = vsel %vm2741, %v2952, %v2956
      %v2959 = vshrl.u32 %v2718, 16
      %v2961 = vrot.slane %v2959, 4
      %v2962 = vshll.u32 %v2718, 16
      %v2964 = vrot.slane %v2962, 5
      %v2965 = vor.u32 %v2961, %v2964
      %v2966 = vrot.slane %v2965, 4
      %v2968 = vshll.u32 %v2719, 16
      %v2970 = vrot.slane %v2968, 5
      %v2971 = vsel %vm2741, %v2966, %v2970
      %v2972 = vshrl.u32 %v2719, 16
      %v2974 = vrot.slane %v2972, 4
      %v2975 = vor.u32 %v2974, %v2970
      %v2976 = vrot.slane %v2975, 4
      %v2978 = vshll.u32 %v2720, 16
      %v2980 = vrot.slane %v2978, 5
      %v2981 = vsel %vm2741, %v2976, %v2980
      %v2983 = vshrl.u32 %v2721, 16
      %v2985 = vrot.slane %v2983, 4
      %v2986 = vshll.u32 %v2721, 16
      %v2988 = vrot.slane %v2986, 5
      %v2989 = vor.u32 %v2985, %v2988
      %v2990 = vrot.slane %v2989, 4
      %v2992 = vshll.u32 %v2722, 16
      %v2994 = vrot.slane %v2992, 5
      %v2995 = vsel %vm2741, %v2990, %v2994
      %v2996 = vshrl.u32 %v2722, 16
      %v2998 = vrot.slane %v2996, 4
      %v2999 = vor.u32 %v2998, %v2994
      %v3000 = vrot.slane %v2999, 4
      %v3002 = vshll.u32 %v2723, 16
      %v3004 = vrot.slane %v3002, 5
      %v3005 = vsel %vm2741, %v3000, %v3004
      %v3007 = vshrl.u32 %v2724, 16
      %v3009 = vrot.slane %v3007, 4
      %v3010 = vshll.u32 %v2724, 16
      %v3012 = vrot.slane %v3010, 5
      %v3013 = vor.u32 %v3009, %v3012
      %v3014 = vrot.slane %v3013, 4
      %v3016 = vshll.u32 %v2725, 16
      %v3018 = vrot.slane %v3016, 5
      %v3019 = vsel %vm2741, %v3014, %v3018
      %v3020 = vshrl.u32 %v2725, 16
      %v3022 = vrot.slane %v3020, 4
      %v3023 = vor.u32 %v3022, %v3018
      %v3024 = vrot.slane %v3023, 4
      %v3026 = vshll.u32 %v2726, 16
      %v3028 = vrot.slane %v3026, 5
      %v3029 = vsel %vm2741, %v3024, %v3028
      %v3031 = vshrl.u32 %v2727, 16
      %v3033 = vrot.slane %v3031, 4
      %v3034 = vshll.u32 %v2727, 16
      %v3036 = vrot.slane %v3034, 5
      %v3037 = vor.u32 %v3033, %v3036
      %v3038 = vrot.slane %v3037, 4
      %v3040 = vshll.u32 %v2728, 16
      %v3042 = vrot.slane %v3040, 5
      %v3043 = vsel %vm2741, %v3038, %v3042
      %v3044 = vshrl.u32 %v2728, 16
      %v3046 = vrot.slane %v3044, 4
      %v3047 = vor.u32 %v3046, %v3042
      %v3048 = vrot.slane %v3047, 4
      %v3050 = vshll.u32 %v2729, 16
      %v3052 = vrot.slane %v3050, 5
      %v3053 = vsel %vm2741, %v3048, %v3052
      %v3055 = vshrl.u32 %v2730, 16
      %v3057 = vrot.slane %v3055, 4
      %v3058 = vshll.u32 %v2730, 16
      %v3060 = vrot.slane %v3058, 5
      %v3061 = vor.u32 %v3057, %v3060
      %v3062 = vrot.slane %v3061, 4
      %v3064 = vshll.u32 %v2731, 16
      %v3066 = vrot.slane %v3064, 5
      %v3067 = vsel %vm2741, %v3062, %v3066
      %v3068 = vshrl.u32 %v2731, 16
      %v3070 = vrot.slane %v3068, 4
      %v3071 = vor.u32 %v3070, %v3066
      %v3072 = vrot.slane %v3071, 4
      %v3074 = vshll.u32 %v2732, 16
      %v3076 = vrot.slane %v3074, 5
      %v3077 = vsel %vm2741, %v3072, %v3076
      %v3079 = vshrl.u32 %v2733, 16
      %v3081 = vrot.slane %v3079, 4
      %v3082 = vshll.u32 %v2733, 16
      %v3084 = vrot.slane %v3082, 5
      %v3085 = vor.u32 %v3081, %v3084
      %v3086 = vrot.slane %v3085, 4
      %v3088 = vshll.u32 %v2734, 16
      %v3090 = vrot.slane %v3088, 5
      %v3091 = vsel %vm2741, %v3086, %v3090
      %v3092 = vshrl.u32 %v2734, 16
      %v3094 = vrot.slane %v3092, 4
      %v3095 = vor.u32 %v3094, %v3090
      %v3096 = vrot.slane %v3095, 4
      %v3098 = vshll.u32 %v2735, 16
      %v3100 = vrot.slane %v3098, 5
      %v3101 = vsel %vm2741, %v3096, %v3100
      %v3103 = vshrl.u32 %v2736, 16
      %v3105 = vrot.slane %v3103, 4
      %v3106 = vshll.u32 %v2736, 16
      %v3108 = vrot.slane %v3106, 5
      %v3109 = vor.u32 %v3105, %v3108
      %v3110 = vrot.slane %v3109, 4
      %v3112 = vshll.u32 %v2737, 16
      %v3114 = vrot.slane %v3112, 5
      %v3115 = vsel %vm2741, %v3110, %v3114
      %v3116 = vshrl.u32 %v2737, 16
      %v3118 = vrot.slane %v3116, 4
      %v3119 = vor.u32 %v3118, %v3114
      %v3120 = vrot.slane %v3119, 4
      %v3122 = vshll.u32 %v2738, 16
      %v3124 = vrot.slane %v3122, 5
      %v3125 = vsel %vm2741, %v3120, %v3124
      %v3126 = vunpack.c.l.b16 %v2755
      %v3127 = vunpack.c.l.b16 %v2765
      %v3128 = vunpack.c.l.b16 %v2779
      %v3129 = vunpack.c.l.b16 %v2789
      %v3130 = vunpack.c.l.b16 %v2803
      %v3131 = vunpack.c.l.b16 %v2813
      %v3132 = vunpack.c.l.b16 %v2827
      %v3133 = vunpack.c.l.b16 %v2837
      %v3134 = vunpack.c.l.b16 %v2851
      %v3135 = vunpack.c.l.b16 %v2861
      %v3136 = vunpack.c.l.b16 %v2875
      %v3137 = vunpack.c.l.b16 %v2885
      %v3138 = vunpack.c.l.b16 %v2899
      %v3139 = vunpack.c.l.b16 %v2909
      %v3140 = vunpack.c.l.b16 %v2923
      %v3141 = vunpack.c.l.b16 %v2933
      %v3142 = vunpack.c.l.b16 %v2947
      %v3143 = vunpack.c.l.b16 %v2957
      %v3144 = vunpack.c.l.b16 %v2971
      %v3145 = vunpack.c.l.b16 %v2981
      %v3146 = vunpack.c.l.b16 %v2995
      %v3147 = vunpack.c.l.b16 %v3005
      %v3148 = vunpack.c.l.b16 %v3019
      %v3149 = vunpack.c.l.b16 %v3029
      %v3150 = vunpack.c.l.b16 %v3043
      %v3151 = vunpack.c.l.b16 %v3053
      %v3152 = vunpack.c.l.b16 %v3067
      %v3153 = vunpack.c.l.b16 %v3077
      %v3154 = vunpack.c.l.b16 %v3091
      %v3155 = vunpack.c.l.b16 %v3101
      %v3156 = vunpack.c.l.b16 %v3115
      %v3157 = vunpack.c.l.b16 %v3125
      %v3158 = vpack.c.b16 %v3127, %v3126
      %v3159 = vpack.c.b16 %v3129, %v3128
      %v3160 = vpack.c.b16 %v3131, %v3130
      %v3161 = vpack.c.b16 %v3133, %v3132
      %v3162 = vpack.c.b16 %v3135, %v3134
      %v3163 = vpack.c.b16 %v3137, %v3136
      %v3164 = vpack.c.b16 %v3139, %v3138
      %v3165 = vpack.c.b16 %v3141, %v3140
      %v3166 = vpack.c.b16 %v3143, %v3142
      %v3167 = vpack.c.b16 %v3145, %v3144
      %v3168 = vpack.c.b16 %v3147, %v3146
      %v3169 = vpack.c.b16 %v3149, %v3148
      %v3170 = vpack.c.b16 %v3151, %v3150
      %v3171 = vpack.c.b16 %v3153, %v3152
      %v3172 = vpack.c.b16 %v3155, %v3154
      %v3173 = vpack.c.b16 %v3157, %v3156
      %3190 = vst [vmem:[#allocation3 + $0x8] sm:$0xff] %v3158
      %3191 = vst [vmem:[#allocation3 + $0x50] sm:$0xff] %v3159
      %3192 = vst [vmem:[#allocation3 + $0x98] sm:$0xff] %v3160
      %3193 = vst [vmem:[#allocation3 + $0xe0] sm:$0xff] %v3161
      %3194 = vst [vmem:[#allocation3 + $0x128] sm:$0xff] %v3162
      %3195 = vst [vmem:[#allocation3 + $0x170] sm:$0xff] %v3163
      %3196 = vst [vmem:[#allocation3 + $0x1b8] sm:$0xff] %v3164
      %3197 = vst [vmem:[#allocation3 + $0x200] sm:$0xff] %v3165
      %3198 = vst [vmem:[#allocation3 + $0x248] sm:$0xff] %v3166
      %3199 = vst [vmem:[#allocation3 + $0x290] sm:$0xff] %v3167
      %3200 = vst [vmem:[#allocation3 + $0x2d8] sm:$0xff] %v3168
      %3201 = vst [vmem:[#allocation3 + $0x320] sm:$0xff] %v3169
      %3202 = vst [vmem:[#allocation3 + $0x368] sm:$0xff] %v3170
      %3203 = vst [vmem:[#allocation3 + $0x3b0] sm:$0xff] %v3171
      %3204 = vst [vmem:[#allocation3 + $0x3f8] sm:$0xff] %v3172
      %3205 = vst [vmem:[#allocation3 + $0x440] sm:$0xff] %v3173
      %v3206 = vld [vmem:[#allocation2] sm:$0xe]
      %v3207 = vld [vmem:[#allocation2 + $0x4] sm:$0xf]
      %v3208 = vld [vmem:[#allocation2 + $0x8] sm:$0x1]
      %v3209 = vld [vmem:[#allocation2 + $0xc] sm:$0xe]
      %v3210 = vld [vmem:[#allocation2 + $0x10] sm:$0xf]
      %v3211 = vld [vmem:[#allocation2 + $0x14] sm:$0x1]
      %v3212 = vld [vmem:[#allocation2 + $0x18] sm:$0xe]
      %v3213 = vld [vmem:[#allocation2 + $0x1c] sm:$0xf]
      %v3214 = vld [vmem:[#allocation2 + $0x20] sm:$0x1]
      %v3215 = vld [vmem:[#allocation2 + $0x24] sm:$0xe]
      %v3216 = vld [vmem:[#allocation2 + $0x28] sm:$0xf]
      %v3217 = vld [vmem:[#allocation2 + $0x2c] sm:$0x1]
      %v3218 = vld [vmem:[#allocation2 + $0x30] sm:$0xe]
      %v3219 = vld [vmem:[#allocation2 + $0x34] sm:$0xf]
      %v3220 = vld [vmem:[#allocation2 + $0x38] sm:$0x1]
      %v3221 = vld [vmem:[#allocation2 + $0x3c] sm:$0xe]
      %v3222 = vld [vmem:[#allocation2 + $0x40] sm:$0xf]
      %v3223 = vld [vmem:[#allocation2 + $0x44] sm:$0x1]
      %v3224 = vld [vmem:[#allocation2 + $0x48] sm:$0xe]
      %v3225 = vld [vmem:[#allocation2 + $0x4c] sm:$0xf]
      %v3226 = vld [vmem:[#allocation2 + $0x50] sm:$0x1]
      %v3227 = vld [vmem:[#allocation2 + $0x54] sm:$0xe]
      %v3228 = vld [vmem:[#allocation2 + $0x58] sm:$0xf]
      %v3229 = vld [vmem:[#allocation2 + $0x5c] sm:$0x1]
      %v3230 = vld [vmem:[#allocation2 + $0x60] sm:$0xe]
      %v3231 = vld [vmem:[#allocation2 + $0x64] sm:$0xf]
      %v3232 = vld [vmem:[#allocation2 + $0x68] sm:$0x1]
      %v3233 = vld [vmem:[#allocation2 + $0x6c] sm:$0xe]
      %v3234 = vld [vmem:[#allocation2 + $0x70] sm:$0xf]
      %v3235 = vld [vmem:[#allocation2 + $0x74] sm:$0x1]
      %v3236 = vld [vmem:[#allocation2 + $0x78] sm:$0xe]
      %v3237 = vld [vmem:[#allocation2 + $0x7c] sm:$0xf]
      %v3238 = vld [vmem:[#allocation2 + $0x80] sm:$0x1]
      %v3239 = vld [vmem:[#allocation2 + $0x84] sm:$0xe]
      %v3240 = vld [vmem:[#allocation2 + $0x88] sm:$0xf]
      %v3241 = vld [vmem:[#allocation2 + $0x8c] sm:$0x1]
      %v3242 = vld [vmem:[#allocation2 + $0x90] sm:$0xe]
      %v3243 = vld [vmem:[#allocation2 + $0x94] sm:$0xf]
      %v3244 = vld [vmem:[#allocation2 + $0x98] sm:$0x1]
      %v3245 = vld [vmem:[#allocation2 + $0x9c] sm:$0xe]
      %v3246 = vld [vmem:[#allocation2 + $0xa0] sm:$0xf]
      %v3247 = vld [vmem:[#allocation2 + $0xa4] sm:$0x1]
      %v3248 = vld [vmem:[#allocation2 + $0xa8] sm:$0xe]
      %v3249 = vld [vmem:[#allocation2 + $0xac] sm:$0xf]
      %v3250 = vld [vmem:[#allocation2 + $0xb0] sm:$0x1]
      %v3251 = vld [vmem:[#allocation2 + $0xb4] sm:$0xe]
      %v3252 = vld [vmem:[#allocation2 + $0xb8] sm:$0xf]
      %v3253 = vld [vmem:[#allocation2 + $0xbc] sm:$0x1]
      %vm3302 = vcmask 1042432
      %vm3303 = vcmask 1046532
      %vm3304 = vmor %vm3302, %vm3303
      %v3305 = vrot.slane %v3206, 5
      %v3306 = vrot.slane %v3305, 4
      %v3307 = vrot.slane %v3207, 5
      %v3308 = vsel %vm3304, %v3306, %v3307
      %v3309 = vrot.slane %v3307, 4
      %v3310 = vrot.slane %v3208, 5
      %v3311 = vsel %vm3304, %v3309, %v3310
      %v3312 = vrot.slane %v3209, 5
      %v3313 = vrot.slane %v3312, 4
      %v3314 = vrot.slane %v3210, 5
      %v3315 = vsel %vm3304, %v3313, %v3314
      %v3316 = vrot.slane %v3314, 4
      %v3317 = vrot.slane %v3211, 5
      %v3318 = vsel %vm3304, %v3316, %v3317
      %v3319 = vrot.slane %v3212, 5
      %v3320 = vrot.slane %v3319, 4
      %v3321 = vrot.slane %v3213, 5
      %v3322 = vsel %vm3304, %v3320, %v3321
      %v3323 = vrot.slane %v3321, 4
      %v3324 = vrot.slane %v3214, 5
      %v3325 = vsel %vm3304, %v3323, %v3324
      %v3326 = vrot.slane %v3215, 5
      %v3327 = vrot.slane %v3326, 4
      %v3328 = vrot.slane %v3216, 5
      %v3329 = vsel %vm3304, %v3327, %v3328
      %v3330 = vrot.slane %v3328, 4
      %v3331 = vrot.slane %v3217, 5
      %v3332 = vsel %vm3304, %v3330, %v3331
      %v3333 = vrot.slane %v3218, 5
      %v3334 = vrot.slane %v3333, 4
      %v3335 = vrot.slane %v3219, 5
      %v3336 = vsel %vm3304, %v3334, %v3335
      %v3337 = vrot.slane %v3335, 4
      %v3338 = vrot.slane %v3220, 5
      %v3339 = vsel %vm3304, %v3337, %v3338
      %v3340 = vrot.slane %v3221, 5
      %v3341 = vrot.slane %v3340, 4
      %v3342 = vrot.slane %v3222, 5
      %v3343 = vsel %vm3304, %v3341, %v3342
      %v3344 = vrot.slane %v3342, 4
      %v3345 = vrot.slane %v3223, 5
      %v3346 = vsel %vm3304, %v3344, %v3345
      %v3347 = vrot.slane %v3224, 5
      %v3348 = vrot.slane %v3347, 4
      %v3349 = vrot.slane %v3225, 5
      %v3350 = vsel %vm3304, %v3348, %v3349
      %v3351 = vrot.slane %v3349, 4
      %v3352 = vrot.slane %v3226, 5
      %v3353 = vsel %vm3304, %v3351, %v3352
      %v3354 = vrot.slane %v3227, 5
      %v3355 = vrot.slane %v3354, 4
      %v3356 = vrot.slane %v3228, 5
      %v3357 = vsel %vm3304, %v3355, %v3356
      %v3358 = vrot.slane %v3356, 4
      %v3359 = vrot.slane %v3229, 5
      %v3360 = vsel %vm3304, %v3358, %v3359
      %v3361 = vrot.slane %v3230, 5
      %v3362 = vrot.slane %v3361, 4
      %v3363 = vrot.slane %v3231, 5
      %v3364 = vsel %vm3304, %v3362, %v3363
      %v3365 = vrot.slane %v3363, 4
      %v3366 = vrot.slane %v3232, 5
      %v3367 = vsel %vm3304, %v3365, %v3366
      %v3368 = vrot.slane %v3233, 5
      %v3369 = vrot.slane %v3368, 4
      %v3370 = vrot.slane %v3234, 5
      %v3371 = vsel %vm3304, %v3369, %v3370
      %v3372 = vrot.slane %v3370, 4
      %v3373 = vrot.slane %v3235, 5
      %v3374 = vsel %vm3304, %v3372, %v3373
      %v3375 = vrot.slane %v3236, 5
      %v3376 = vrot.slane %v3375, 4
      %v3377 = vrot.slane %v3237, 5
      %v3378 = vsel %vm3304, %v3376, %v3377
      %v3379 = vrot.slane %v3377, 4
      %v3380 = vrot.slane %v3238, 5
      %v3381 = vsel %vm3304, %v3379, %v3380
      %v3382 = vrot.slane %v3239, 5
      %v3383 = vrot.slane %v3382, 4
      %v3384 = vrot.slane %v3240, 5
      %v3385 = vsel %vm3304, %v3383, %v3384
      %v3386 = vrot.slane %v3384, 4
      %v3387 = vrot.slane %v3241, 5
      %v3388 = vsel %vm3304, %v3386, %v3387
      %v3389 = vrot.slane %v3242, 5
      %v3390 = vrot.slane %v3389, 4
      %v3391 = vrot.slane %v3243, 5
      %v3392 = vsel %vm3304, %v3390, %v3391
      %v3393 = vrot.slane %v3391, 4
      %v3394 = vrot.slane %v3244, 5
      %v3395 = vsel %vm3304, %v3393, %v3394
      %v3396 = vrot.slane %v3245, 5
      %v3397 = vrot.slane %v3396, 4
      %v3398 = vrot.slane %v3246, 5
      %v3399 = vsel %vm3304, %v3397, %v3398
      %v3400 = vrot.slane %v3398, 4
      %v3401 = vrot.slane %v3247, 5
      %v3402 = vsel %vm3304, %v3400, %v3401
      %v3403 = vrot.slane %v3248, 5
      %v3404 = vrot.slane %v3403, 4
      %v3405 = vrot.slane %v3249, 5
      %v3406 = vsel %vm3304, %v3404, %v3405
      %v3407 = vrot.slane %v3405, 4
      %v3408 = vrot.slane %v3250, 5
      %v3409 = vsel %vm3304, %v3407, %v3408
      %v3410 = vrot.slane %v3251, 5
      %v3411 = vrot.slane %v3410, 4
      %v3412 = vrot.slane %v3252, 5
      %v3413 = vsel %vm3304, %v3411, %v3412
      %v3414 = vrot.slane %v3412, 4
      %v3415 = vrot.slane %v3253, 5
      %v3416 = vsel %vm3304, %v3414, %v3415
      %v3417 = vunpack.c.l.b16 %v3308
      %v3418 = vunpack.c.l.b16 %v3311
      %v3419 = vunpack.c.l.b16 %v3315
      %v3420 = vunpack.c.l.b16 %v3318
      %v3421 = vunpack.c.l.b16 %v3322
      %v3422 = vunpack.c.l.b16 %v3325
      %v3423 = vunpack.c.l.b16 %v3329
      %v3424 = vunpack.c.l.b16 %v3332
      %v3425 = vunpack.c.l.b16 %v3336
      %v3426 = vunpack.c.l.b16 %v3339
      %v3427 = vunpack.c.l.b16 %v3343
      %v3428 = vunpack.c.l.b16 %v3346
      %v3429 = vunpack.c.l.b16 %v3350
      %v3430 = vunpack.c.l.b16 %v3353
      %v3431 = vunpack.c.l.b16 %v3357
      %v3432 = vunpack.c.l.b16 %v3360
      %v3433 = vunpack.c.l.b16 %v3364
      %v3434 = vunpack.c.l.b16 %v3367
      %v3435 = vunpack.c.l.b16 %v3371
      %v3436 = vunpack.c.l.b16 %v3374
      %v3437 = vunpack.c.l.b16 %v3378
      %v3438 = vunpack.c.l.b16 %v3381
      %v3439 = vunpack.c.l.b16 %v3385
      %v3440 = vunpack.c.l.b16 %v3388
      %v3441 = vunpack.c.l.b16 %v3392
      %v3442 = vunpack.c.l.b16 %v3395
      %v3443 = vunpack.c.l.b16 %v3399
      %v3444 = vunpack.c.l.b16 %v3402
      %v3445 = vunpack.c.l.b16 %v3406
      %v3446 = vunpack.c.l.b16 %v3409
      %v3447 = vunpack.c.l.b16 %v3413
      %v3448 = vunpack.c.l.b16 %v3416
      %v3449 = vpack.c.b16 %v3418, %v3417
      %v3450 = vpack.c.b16 %v3420, %v3419
      %v3451 = vpack.c.b16 %v3422, %v3421
      %v3452 = vpack.c.b16 %v3424, %v3423
      %v3453 = vpack.c.b16 %v3426, %v3425
      %v3454 = vpack.c.b16 %v3428, %v3427
      %v3455 = vpack.c.b16 %v3430, %v3429
      %v3456 = vpack.c.b16 %v3432, %v3431
      %v3457 = vpack.c.b16 %v3434, %v3433
      %v3458 = vpack.c.b16 %v3436, %v3435
      %v3459 = vpack.c.b16 %v3438, %v3437
      %v3460 = vpack.c.b16 %v3440, %v3439
      %v3461 = vpack.c.b16 %v3442, %v3441
      %v3462 = vpack.c.b16 %v3444, %v3443
      %v3463 = vpack.c.b16 %v3446, %v3445
      %v3464 = vpack.c.b16 %v3448, %v3447
      %3481 = vst [vmem:[#allocation3 + $0x10] sm:$0xff] %v3449
      %3482 = vst [vmem:[#allocation3 + $0x58] sm:$0xff] %v3450
      %3483 = vst [vmem:[#allocation3 + $0xa0] sm:$0xff] %v3451
      %3484 = vst [vmem:[#allocation3 + $0xe8] sm:$0xff] %v3452
      %3485 = vst [vmem:[#allocation3 + $0x130] sm:$0xff] %v3453
      %3486 = vst [vmem:[#allocation3 + $0x178] sm:$0xff] %v3454
      %3487 = vst [vmem:[#allocation3 + $0x1c0] sm:$0xff] %v3455
      %3488 = vst [vmem:[#allocation3 + $0x208] sm:$0xff] %v3456
      %3489 = vst [vmem:[#allocation3 + $0x250] sm:$0xff] %v3457
      %3490 = vst [vmem:[#allocation3 + $0x298] sm:$0xff] %v3458
      %3491 = vst [vmem:[#allocation3 + $0x2e0] sm:$0xff] %v3459
      %3492 = vst [vmem:[#allocation3 + $0x328] sm:$0xff] %v3460
      %3493 = vst [vmem:[#allocation3 + $0x370] sm:$0xff] %v3461
      %3494 = vst [vmem:[#allocation3 + $0x3b8] sm:$0xff] %v3462
      %3495 = vst [vmem:[#allocation3 + $0x400] sm:$0xff] %v3463
      %3496 = vst [vmem:[#allocation3 + $0x448] sm:$0xff] %v3464
      %v3497 = vld [vmem:[%s2429] sm:$0xf]
      %v3498 = vld [vmem:[%s2429 + $0x4] sm:$0xf]
      %v3499 = vld [vmem:[%s2429 + $0xc] sm:$0xf]
      %v3500 = vld [vmem:[%s2429 + $0x10] sm:$0xf]
      %v3501 = vld [vmem:[%s2429 + $0x18] sm:$0xf]
      %v3502 = vld [vmem:[%s2429 + $0x1c] sm:$0xf]
      %v3503 = vld [vmem:[%s2429 + $0x24] sm:$0xf]
      %v3504 = vld [vmem:[%s2429 + $0x28] sm:$0xf]
      %v3505 = vld [vmem:[%s2429 + $0x30] sm:$0xf]
      %v3506 = vld [vmem:[%s2429 + $0x34] sm:$0xf]
      %v3507 = vld [vmem:[%s2429 + $0x3c] sm:$0xf]
      %v3508 = vld [vmem:[%s2429 + $0x40] sm:$0xf]
      %v3509 = vld [vmem:[%s2429 + $0x48] sm:$0xf]
      %v3510 = vld [vmem:[%s2429 + $0x4c] sm:$0xf]
      %v3511 = vld [vmem:[%s2429 + $0x54] sm:$0xf]
      %v3512 = vld [vmem:[%s2429 + $0x58] sm:$0xf]
      %v3513 = vld [vmem:[%s2429 + $0x60] sm:$0xf]
      %v3514 = vld [vmem:[%s2429 + $0x64] sm:$0xf]
      %v3515 = vld [vmem:[%s2429 + $0x6c] sm:$0xf]
      %v3516 = vld [vmem:[%s2429 + $0x70] sm:$0xf]
      %v3517 = vld [vmem:[%s2429 + $0x78] sm:$0xf]
      %v3518 = vld [vmem:[%s2429 + $0x7c] sm:$0xf]
      %v3519 = vld [vmem:[%s2429 + $0x84] sm:$0xf]
      %v3520 = vld [vmem:[%s2429 + $0x88] sm:$0xf]
      %v3521 = vld [vmem:[%s2429 + $0x90] sm:$0xf]
      %v3522 = vld [vmem:[%s2429 + $0x94] sm:$0xf]
      %v3523 = vld [vmem:[%s2429 + $0x9c] sm:$0xf]
      %v3524 = vld [vmem:[%s2429 + $0xa0] sm:$0xf]
      %v3525 = vld [vmem:[%s2429 + $0xa8] sm:$0xf]
      %v3526 = vld [vmem:[%s2429 + $0xac] sm:$0xf]
      %v3527 = vld [vmem:[%s2429 + $0xb4] sm:$0xf]
      %v3528 = vld [vmem:[%s2429 + $0xb8] sm:$0xf]
      %v3561 = vunpack.c.l.b16 %v3497
      %v3562 = vunpack.c.l.b16 %v3498
      %v3563 = vunpack.c.l.b16 %v3499
      %v3564 = vunpack.c.l.b16 %v3500
      %v3565 = vunpack.c.l.b16 %v3501
      %v3566 = vunpack.c.l.b16 %v3502
      %v3567 = vunpack.c.l.b16 %v3503
      %v3568 = vunpack.c.l.b16 %v3504
      %v3569 = vunpack.c.l.b16 %v3505
      %v3570 = vunpack.c.l.b16 %v3506
      %v3571 = vunpack.c.l.b16 %v3507
      %v3572 = vunpack.c.l.b16 %v3508
      %v3573 = vunpack.c.l.b16 %v3509
      %v3574 = vunpack.c.l.b16 %v3510
      %v3575 = vunpack.c.l.b16 %v3511
      %v3576 = vunpack.c.l.b16 %v3512
      %v3577 = vunpack.c.l.b16 %v3513
      %v3578 = vunpack.c.l.b16 %v3514
      %v3579 = vunpack.c.l.b16 %v3515
      %v3580 = vunpack.c.l.b16 %v3516
      %v3581 = vunpack.c.l.b16 %v3517
      %v3582 = vunpack.c.l.b16 %v3518
      %v3583 = vunpack.c.l.b16 %v3519
      %v3584 = vunpack.c.l.b16 %v3520
      %v3585 = vunpack.c.l.b16 %v3521
      %v3586 = vunpack.c.l.b16 %v3522
      %v3587 = vunpack.c.l.b16 %v3523
      %v3588 = vunpack.c.l.b16 %v3524
      %v3589 = vunpack.c.l.b16 %v3525
      %v3590 = vunpack.c.l.b16 %v3526
      %v3591 = vunpack.c.l.b16 %v3527
      %v3592 = vunpack.c.l.b16 %v3528
      %v3593 = vpack.c.b16 %v3562, %v3561
      %v3594 = vpack.c.b16 %v3564, %v3563
      %v3595 = vpack.c.b16 %v3566, %v3565
      %v3596 = vpack.c.b16 %v3568, %v3567
      %v3597 = vpack.c.b16 %v3570, %v3569
      %v3598 = vpack.c.b16 %v3572, %v3571
      %v3599 = vpack.c.b16 %v3574, %v3573
      %v3600 = vpack.c.b16 %v3576, %v3575
      %v3601 = vpack.c.b16 %v3578, %v3577
      %v3602 = vpack.c.b16 %v3580, %v3579
      %v3603 = vpack.c.b16 %v3582, %v3581
      %v3604 = vpack.c.b16 %v3584, %v3583
      %v3605 = vpack.c.b16 %v3586, %v3585
      %v3606 = vpack.c.b16 %v3588, %v3587
      %v3607 = vpack.c.b16 %v3590, %v3589
      %v3608 = vpack.c.b16 %v3592, %v3591
      %3625 = vst [vmem:[#allocation3 + $0x18] sm:$0xff] %v3593
      %3626 = vst [vmem:[#allocation3 + $0x60] sm:$0xff] %v3594
      %3627 = vst [vmem:[#allocation3 + $0xa8] sm:$0xff] %v3595
      %3628 = vst [vmem:[#allocation3 + $0xf0] sm:$0xff] %v3596
      %3629 = vst [vmem:[#allocation3 + $0x138] sm:$0xff] %v3597
      %3630 = vst [vmem:[#allocation3 + $0x180] sm:$0xff] %v3598
      %3631 = vst [vmem:[#allocation3 + $0x1c8] sm:$0xff] %v3599
      %3632 = vst [vmem:[#allocation3 + $0x210] sm:$0xff] %v3600
      %3633 = vst [vmem:[#allocation3 + $0x258] sm:$0xff] %v3601
      %3634 = vst [vmem:[#allocation3 + $0x2a0] sm:$0xff] %v3602
      %3635 = vst [vmem:[#allocation3 + $0x2e8] sm:$0xff] %v3603
      %3636 = vst [vmem:[#allocation3 + $0x330] sm:$0xff] %v3604
      %3637 = vst [vmem:[#allocation3 + $0x378] sm:$0xff] %v3605
      %3638 = vst [vmem:[#allocation3 + $0x3c0] sm:$0xff] %v3606
      %3639 = vst [vmem:[#allocation3 + $0x408] sm:$0xff] %v3607
      %3640 = vst [vmem:[#allocation3 + $0x450] sm:$0xff] %v3608
      %v3641 = vld [vmem:[%s2429] sm:$0xf]
      %v3642 = vld [vmem:[%s2429 + $0x4] sm:$0xf]
      %v3643 = vld [vmem:[%s2429 + $0x8] sm:$0x1]
      %v3644 = vld [vmem:[%s2429 + $0xc] sm:$0xf]
      %v3645 = vld [vmem:[%s2429 + $0x10] sm:$0xf]
      %v3646 = vld [vmem:[%s2429 + $0x14] sm:$0x1]
      %v3647 = vld [vmem:[%s2429 + $0x18] sm:$0xf]
      %v3648 = vld [vmem:[%s2429 + $0x1c] sm:$0xf]
      %v3649 = vld [vmem:[%s2429 + $0x20] sm:$0x1]
      %v3650 = vld [vmem:[%s2429 + $0x24] sm:$0xf]
      %v3651 = vld [vmem:[%s2429 + $0x28] sm:$0xf]
      %v3652 = vld [vmem:[%s2429 + $0x2c] sm:$0x1]
      %v3653 = vld [vmem:[%s2429 + $0x30] sm:$0xf]
      %v3654 = vld [vmem:[%s2429 + $0x34] sm:$0xf]
      %v3655 = vld [vmem:[%s2429 + $0x38] sm:$0x1]
      %v3656 = vld [vmem:[%s2429 + $0x3c] sm:$0xf]
      %v3657 = vld [vmem:[%s2429 + $0x40] sm:$0xf]
      %v3658 = vld [vmem:[%s2429 + $0x44] sm:$0x1]
      %v3659 = vld [vmem:[%s2429 + $0x48] sm:$0xf]
      %v3660 = vld [vmem:[%s2429 + $0x4c] sm:$0xf]
      %v3661 = vld [vmem:[%s2429 + $0x50] sm:$0x1]
      %v3662 = vld [vmem:[%s2429 + $0x54] sm:$0xf]
      %v3663 = vld [vmem:[%s2429 + $0x58] sm:$0xf]
      %v3664 = vld [vmem:[%s2429 + $0x5c] sm:$0x1]
      %v3665 = vld [vmem:[%s2429 + $0x60] sm:$0xf]
      %v3666 = vld [vmem:[%s2429 + $0x64] sm:$0xf]
      %v3667 = vld [vmem:[%s2429 + $0x68] sm:$0x1]
      %v3668 = vld [vmem:[%s2429 + $0x6c] sm:$0xf]
      %v3669 = vld [vmem:[%s2429 + $0x70] sm:$0xf]
      %v3670 = vld [vmem:[%s2429 + $0x74] sm:$0x1]
      %v3671 = vld [vmem:[%s2429 + $0x78] sm:$0xf]
      %v3672 = vld [vmem:[%s2429 + $0x7c] sm:$0xf]
      %v3673 = vld [vmem:[%s2429 + $0x80] sm:$0x1]
      %v3674 = vld [vmem:[%s2429 + $0x84] sm:$0xf]
      %v3675 = vld [vmem:[%s2429 + $0x88] sm:$0xf]
      %v3676 = vld [vmem:[%s2429 + $0x8c] sm:$0x1]
      %v3677 = vld [vmem:[%s2429 + $0x90] sm:$0xf]
      %v3678 = vld [vmem:[%s2429 + $0x94] sm:$0xf]
      %v3679 = vld [vmem:[%s2429 + $0x98] sm:$0x1]
      %v3680 = vld [vmem:[%s2429 + $0x9c] sm:$0xf]
      %v3681 = vld [vmem:[%s2429 + $0xa0] sm:$0xf]
      %v3682 = vld [vmem:[%s2429 + $0xa4] sm:$0x1]
      %v3683 = vld [vmem:[%s2429 + $0xa8] sm:$0xf]
      %v3684 = vld [vmem:[%s2429 + $0xac] sm:$0xf]
      %v3685 = vld [vmem:[%s2429 + $0xb0] sm:$0x1]
      %v3686 = vld [vmem:[%s2429 + $0xb4] sm:$0xf]
      %v3687 = vld [vmem:[%s2429 + $0xb8] sm:$0xf]
      %v3688 = vld [vmem:[%s2429 + $0xbc] sm:$0x1]
      %v3690 = vshrl.u32 %v3641, 16
      %v3692 = vrot.slane %v3690, 4
      %v3693 = vshll.u32 %v3641, 16
      %v3695 = vrot.slane %v3693, 5
      %v3696 = vor.u32 %v3692, %v3695
      %v3697 = vrot.slane %v3696, 4
      %v3699 = vshll.u32 %v3642, 16
      %v3701 = vrot.slane %v3699, 5
      %v3702 = vsel %vm2741, %v3697, %v3701
      %v3703 = vshrl.u32 %v3642, 16
      %v3705 = vrot.slane %v3703, 4
      %v3706 = vor.u32 %v3705, %v3701
      %v3707 = vrot.slane %v3706, 4
      %v3709 = vshll.u32 %v3643, 16
      %v3711 = vrot.slane %v3709, 5
      %v3712 = vsel %vm2741, %v3707, %v3711
      %v3714 = vshrl.u32 %v3644, 16
      %v3716 = vrot.slane %v3714, 4
      %v3717 = vshll.u32 %v3644, 16
      %v3719 = vrot.slane %v3717, 5
      %v3720 = vor.u32 %v3716, %v3719
      %v3721 = vrot.slane %v3720, 4
      %v3723 = vshll.u32 %v3645, 16
      %v3725 = vrot.slane %v3723, 5
      %v3726 = vsel %vm2741, %v3721, %v3725
      %v3727 = vshrl.u32 %v3645, 16
      %v3729 = vrot.slane %v3727, 4
      %v3730 = vor.u32 %v3729, %v3725
      %v3731 = vrot.slane %v3730, 4
      %v3733 = vshll.u32 %v3646, 16
      %v3735 = vrot.slane %v3733, 5
      %v3736 = vsel %vm2741, %v3731, %v3735
      %v3738 = vshrl.u32 %v3647, 16
      %v3740 = vrot.slane %v3738, 4
      %v3741 = vshll.u32 %v3647, 16
      %v3743 = vrot.slane %v3741, 5
      %v3744 = vor.u32 %v3740, %v3743
      %v3745 = vrot.slane %v3744, 4
      %v3747 = vshll.u32 %v3648, 16
      %v3749 = vrot.slane %v3747, 5
      %v3750 = vsel %vm2741, %v3745, %v3749
      %v3751 = vshrl.u32 %v3648, 16
      %v3753 = vrot.slane %v3751, 4
      %v3754 = vor.u32 %v3753, %v3749
      %v3755 = vrot.slane %v3754, 4
      %v3757 = vshll.u32 %v3649, 16
      %v3759 = vrot.slane %v3757, 5
      %v3760 = vsel %vm2741, %v3755, %v3759
      %v3762 = vshrl.u32 %v3650, 16
      %v3764 = vrot.slane %v3762, 4
      %v3765 = vshll.u32 %v3650, 16
      %v3767 = vrot.slane %v3765, 5
      %v3768 = vor.u32 %v3764, %v3767
      %v3769 = vrot.slane %v3768, 4
      %v3771 = vshll.u32 %v3651, 16
      %v3773 = vrot.slane %v3771, 5
      %v3774 = vsel %vm2741, %v3769, %v3773
      %v3775 = vshrl.u32 %v3651, 16
      %v3777 = vrot.slane %v3775, 4
      %v3778 = vor.u32 %v3777, %v3773
      %v3779 = vrot.slane %v3778, 4
      %v3781 = vshll.u32 %v3652, 16
      %v3783 = vrot.slane %v3781, 5
      %v3784 = vsel %vm2741, %v3779, %v3783
      %v3786 = vshrl.u32 %v3653, 16
      %v3788 = vrot.slane %v3786, 4
      %v3789 = vshll.u32 %v3653, 16
      %v3791 = vrot.slane %v3789, 5
      %v3792 = vor.u32 %v3788, %v3791
      %v3793 = vrot.slane %v3792, 4
      %v3795 = vshll.u32 %v3654, 16
      %v3797 = vrot.slane %v3795, 5
      %v3798 = vsel %vm2741, %v3793, %v3797
      %v3799 = vshrl.u32 %v3654, 16
      %v3801 = vrot.slane %v3799, 4
      %v3802 = vor.u32 %v3801, %v3797
      %v3803 = vrot.slane %v3802, 4
      %v3805 = vshll.u32 %v3655, 16
      %v3807 = vrot.slane %v3805, 5
      %v3808 = vsel %vm2741, %v3803, %v3807
      %v3810 = vshrl.u32 %v3656, 16
      %v3812 = vrot.slane %v3810, 4
      %v3813 = vshll.u32 %v3656, 16
      %v3815 = vrot.slane %v3813, 5
      %v3816 = vor.u32 %v3812, %v3815
      %v3817 = vrot.slane %v3816, 4
      %v3819 = vshll.u32 %v3657, 16
      %v3821 = vrot.slane %v3819, 5
      %v3822 = vsel %vm2741, %v3817, %v3821
      %v3823 = vshrl.u32 %v3657, 16
      %v3825 = vrot.slane %v3823, 4
      %v3826 = vor.u32 %v3825, %v3821
      %v3827 = vrot.slane %v3826, 4
      %v3829 = vshll.u32 %v3658, 16
      %v3831 = vrot.slane %v3829, 5
      %v3832 = vsel %vm2741, %v3827, %v3831
      %v3834 = vshrl.u32 %v3659, 16
      %v3836 = vrot.slane %v3834, 4
      %v3837 = vshll.u32 %v3659, 16
      %v3839 = vrot.slane %v3837, 5
      %v3840 = vor.u32 %v3836, %v3839
      %v3841 = vrot.slane %v3840, 4
      %v3843 = vshll.u32 %v3660, 16
      %v3845 = vrot.slane %v3843, 5
      %v3846 = vsel %vm2741, %v3841, %v3845
      %v3847 = vshrl.u32 %v3660, 16
      %v3849 = vrot.slane %v3847, 4
      %v3850 = vor.u32 %v3849, %v3845
      %v3851 = vrot.slane %v3850, 4
      %v3853 = vshll.u32 %v3661, 16
      %v3855 = vrot.slane %v3853, 5
      %v3856 = vsel %vm2741, %v3851, %v3855
      %v3858 = vshrl.u32 %v3662, 16
      %v3860 = vrot.slane %v3858, 4
      %v3861 = vshll.u32 %v3662, 16
      %v3863 = vrot.slane %v3861, 5
      %v3864 = vor.u32 %v3860, %v3863
      %v3865 = vrot.slane %v3864, 4
      %v3867 = vshll.u32 %v3663, 16
      %v3869 = vrot.slane %v3867, 5
      %v3870 = vsel %vm2741, %v3865, %v3869
      %v3871 = vshrl.u32 %v3663, 16
      %v3873 = vrot.slane %v3871, 4
      %v3874 = vor.u32 %v3873, %v3869
      %v3875 = vrot.slane %v3874, 4
      %v3877 = vshll.u32 %v3664, 16
      %v3879 = vrot.slane %v3877, 5
      %v3880 = vsel %vm2741, %v3875, %v3879
      %v3882 = vshrl.u32 %v3665, 16
      %v3884 = vrot.slane %v3882, 4
      %v3885 = vshll.u32 %v3665, 16
      %v3887 = vrot.slane %v3885, 5
      %v3888 = vor.u32 %v3884, %v3887
      %v3889 = vrot.slane %v3888, 4
      %v3891 = vshll.u32 %v3666, 16
      %v3893 = vrot.slane %v3891, 5
      %v3894 = vsel %vm2741, %v3889, %v3893
      %v3895 = vshrl.u32 %v3666, 16
      %v3897 = vrot.slane %v3895, 4
      %v3898 = vor.u32 %v3897, %v3893
      %v3899 = vrot.slane %v3898, 4
      %v3901 = vshll.u32 %v3667, 16
      %v3903 = vrot.slane %v3901, 5
      %v3904 = vsel %vm2741, %v3899, %v3903
      %v3906 = vshrl.u32 %v3668, 16
      %v3908 = vrot.slane %v3906, 4
      %v3909 = vshll.u32 %v3668, 16
      %v3911 = vrot.slane %v3909, 5
      %v3912 = vor.u32 %v3908, %v3911
      %v3913 = vrot.slane %v3912, 4
      %v3915 = vshll.u32 %v3669, 16
      %v3917 = vrot.slane %v3915, 5
      %v3918 = vsel %vm2741, %v3913, %v3917
      %v3919 = vshrl.u32 %v3669, 16
      %v3921 = vrot.slane %v3919, 4
      %v3922 = vor.u32 %v3921, %v3917
      %v3923 = vrot.slane %v3922, 4
      %v3925 = vshll.u32 %v3670, 16
      %v3927 = vrot.slane %v3925, 5
      %v3928 = vsel %vm2741, %v3923, %v3927
      %v3930 = vshrl.u32 %v3671, 16
      %v3932 = vrot.slane %v3930, 4
      %v3933 = vshll.u32 %v3671, 16
      %v3935 = vrot.slane %v3933, 5
      %v3936 = vor.u32 %v3932, %v3935
      %v3937 = vrot.slane %v3936, 4
      %v3939 = vshll.u32 %v3672, 16
      %v3941 = vrot.slane %v3939, 5
      %v3942 = vsel %vm2741, %v3937, %v3941
      %v3943 = vshrl.u32 %v3672, 16
      %v3945 = vrot.slane %v3943, 4
      %v3946 = vor.u32 %v3945, %v3941
      %v3947 = vrot.slane %v3946, 4
      %v3949 = vshll.u32 %v3673, 16
      %v3951 = vrot.slane %v3949, 5
      %v3952 = vsel %vm2741, %v3947, %v3951
      %v3954 = vshrl.u32 %v3674, 16
      %v3956 = vrot.slane %v3954, 4
      %v3957 = vshll.u32 %v3674, 16
      %v3959 = vrot.slane %v3957, 5
      %v3960 = vor.u32 %v3956, %v3959
      %v3961 = vrot.slane %v3960, 4
      %v3963 = vshll.u32 %v3675, 16
      %v3965 = vrot.slane %v3963, 5
      %v3966 = vsel %vm2741, %v3961, %v3965
      %v3967 = vshrl.u32 %v3675, 16
      %v3969 = vrot.slane %v3967, 4
      %v3970 = vor.u32 %v3969, %v3965
      %v3971 = vrot.slane %v3970, 4
      %v3973 = vshll.u32 %v3676, 16
      %v3975 = vrot.slane %v3973, 5
      %v3976 = vsel %vm2741, %v3971, %v3975
      %v3978 = vshrl.u32 %v3677, 16
      %v3980 = vrot.slane %v3978, 4
      %v3981 = vshll.u32 %v3677, 16
      %v3983 = vrot.slane %v3981, 5
      %v3984 = vor.u32 %v3980, %v3983
      %v3985 = vrot.slane %v3984, 4
      %v3987 = vshll.u32 %v3678, 16
      %v3989 = vrot.slane %v3987, 5
      %v3990 = vsel %vm2741, %v3985, %v3989
      %v3991 = vshrl.u32 %v3678, 16
      %v3993 = vrot.slane %v3991, 4
      %v3994 = vor.u32 %v3993, %v3989
      %v3995 = vrot.slane %v3994, 4
      %v3997 = vshll.u32 %v3679, 16
      %v3999 = vrot.slane %v3997, 5
      %v4000 = vsel %vm2741, %v3995, %v3999
      %v4002 = vshrl.u32 %v3680, 16
      %v4004 = vrot.slane %v4002, 4
      %v4005 = vshll.u32 %v3680, 16
      %v4007 = vrot.slane %v4005, 5
      %v4008 = vor.u32 %v4004, %v4007
      %v4009 = vrot.slane %v4008, 4
      %v4011 = vshll.u32 %v3681, 16
      %v4013 = vrot.slane %v4011, 5
      %v4014 = vsel %vm2741, %v4009, %v4013
      %v4015 = vshrl.u32 %v3681, 16
      %v4017 = vrot.slane %v4015, 4
      %v4018 = vor.u32 %v4017, %v4013
      %v4019 = vrot.slane %v4018, 4
      %v4021 = vshll.u32 %v3682, 16
      %v4023 = vrot.slane %v4021, 5
      %v4024 = vsel %vm2741, %v4019, %v4023
      %v4026 = vshrl.u32 %v3683, 16
      %v4028 = vrot.slane %v4026, 4
      %v4029 = vshll.u32 %v3683, 16
      %v4031 = vrot.slane %v4029, 5
      %v4032 = vor.u32 %v4028, %v4031
      %v4033 = vrot.slane %v4032, 4
      %v4035 = vshll.u32 %v3684, 16
      %v4037 = vrot.slane %v4035, 5
      %v4038 = vsel %vm2741, %v4033, %v4037
      %v4039 = vshrl.u32 %v3684, 16
      %v4041 = vrot.slane %v4039, 4
      %v4042 = vor.u32 %v4041, %v4037
      %v4043 = vrot.slane %v4042, 4
      %v4045 = vshll.u32 %v3685, 16
      %v4047 = vrot.slane %v4045, 5
      %v4048 = vsel %vm2741, %v4043, %v4047
      %v4050 = vshrl.u32 %v3686, 16
      %v4052 = vrot.slane %v4050, 4
      %v4053 = vshll.u32 %v3686, 16
      %v4055 = vrot.slane %v4053, 5
      %v4056 = vor.u32 %v4052, %v4055
      %v4057 = vrot.slane %v4056, 4
      %v4059 = vshll.u32 %v3687, 16
      %v4061 = vrot.slane %v4059, 5
      %v4062 = vsel %vm2741, %v4057, %v4061
      %v4063 = vshrl.u32 %v3687, 16
      %v4065 = vrot.slane %v4063, 4
      %v4066 = vor.u32 %v4065, %v4061
      %v4067 = vrot.slane %v4066, 4
      %v4069 = vshll.u32 %v3688, 16
      %v4071 = vrot.slane %v4069, 5
      %v4072 = vsel %vm2741, %v4067, %v4071
      %v4073 = vunpack.c.l.b16 %v3702
      %v4074 = vunpack.c.l.b16 %v3712
      %v4075 = vunpack.c.l.b16 %v3726
      %v4076 = vunpack.c.l.b16 %v3736
      %v4077 = vunpack.c.l.b16 %v3750
      %v4078 = vunpack.c.l.b16 %v3760
      %v4079 = vunpack.c.l.b16 %v3774
      %v4080 = vunpack.c.l.b16 %v3784
      %v4081 = vunpack.c.l.b16 %v3798
      %v4082 = vunpack.c.l.b16 %v3808
      %v4083 = vunpack.c.l.b16 %v3822
      %v4084 = vunpack.c.l.b16 %v3832
      %v4085 = vunpack.c.l.b16 %v3846
      %v4086 = vunpack.c.l.b16 %v3856
      %v4087 = vunpack.c.l.b16 %v3870
      %v4088 = vunpack.c.l.b16 %v3880
      %v4089 = vunpack.c.l.b16 %v3894
      %v4090 = vunpack.c.l.b16 %v3904
      %v4091 = vunpack.c.l.b16 %v3918
      %v4092 = vunpack.c.l.b16 %v3928
      %v4093 = vunpack.c.l.b16 %v3942
      %v4094 = vunpack.c.l.b16 %v3952
      %v4095 = vunpack.c.l.b16 %v3966
      %v4096 = vunpack.c.l.b16 %v3976
      %v4097 = vunpack.c.l.b16 %v3990
      %v4098 = vunpack.c.l.b16 %v4000
      %v4099 = vunpack.c.l.b16 %v4014
      %v4100 = vunpack.c.l.b16 %v4024
      %v4101 = vunpack.c.l.b16 %v4038
      %v4102 = vunpack.c.l.b16 %v4048
      %v4103 = vunpack.c.l.b16 %v4062
      %v4104 = vunpack.c.l.b16 %v4072
      %v4105 = vpack.c.b16 %v4074, %v4073
      %v4106 = vpack.c.b16 %v4076, %v4075
      %v4107 = vpack.c.b16 %v4078, %v4077
      %v4108 = vpack.c.b16 %v4080, %v4079
      %v4109 = vpack.c.b16 %v4082, %v4081
      %v4110 = vpack.c.b16 %v4084, %v4083
      %v4111 = vpack.c.b16 %v4086, %v4085
      %v4112 = vpack.c.b16 %v4088, %v4087
      %v4113 = vpack.c.b16 %v4090, %v4089
      %v4114 = vpack.c.b16 %v4092, %v4091
      %v4115 = vpack.c.b16 %v4094, %v4093
      %v4116 = vpack.c.b16 %v4096, %v4095
      %v4117 = vpack.c.b16 %v4098, %v4097
      %v4118 = vpack.c.b16 %v4100, %v4099
      %v4119 = vpack.c.b16 %v4102, %v4101
      %v4120 = vpack.c.b16 %v4104, %v4103
      %4137 = vst [vmem:[#allocation3 + $0x20] sm:$0xff] %v4105
      %4138 = vst [vmem:[#allocation3 + $0x68] sm:$0xff] %v4106
      %4139 = vst [vmem:[#allocation3 + $0xb0] sm:$0xff] %v4107
      %4140 = vst [vmem:[#allocation3 + $0xf8] sm:$0xff] %v4108
      %4141 = vst [vmem:[#allocation3 + $0x140] sm:$0xff] %v4109
      %4142 = vst [vmem:[#allocation3 + $0x188] sm:$0xff] %v4110
      %4143 = vst [vmem:[#allocation3 + $0x1d0] sm:$0xff] %v4111
      %4144 = vst [vmem:[#allocation3 + $0x218] sm:$0xff] %v4112
      %4145 = vst [vmem:[#allocation3 + $0x260] sm:$0xff] %v4113
      %4146 = vst [vmem:[#allocation3 + $0x2a8] sm:$0xff] %v4114
      %4147 = vst [vmem:[#allocation3 + $0x2f0] sm:$0xff] %v4115
      %4148 = vst [vmem:[#allocation3 + $0x338] sm:$0xff] %v4116
      %4149 = vst [vmem:[#allocation3 + $0x380] sm:$0xff] %v4117
      %4150 = vst [vmem:[#allocation3 + $0x3c8] sm:$0xff] %v4118
      %4151 = vst [vmem:[#allocation3 + $0x410] sm:$0xff] %v4119
      %4152 = vst [vmem:[#allocation3 + $0x458] sm:$0xff] %v4120
      %v4153 = vld [vmem:[%s2429] sm:$0xe]
      %v4154 = vld [vmem:[%s2429 + $0x4] sm:$0xf]
      %v4155 = vld [vmem:[%s2429 + $0x8] sm:$0x1]
      %v4156 = vld [vmem:[%s2429 + $0xc] sm:$0xe]
      %v4157 = vld [vmem:[%s2429 + $0x10] sm:$0xf]
      %v4158 = vld [vmem:[%s2429 + $0x14] sm:$0x1]
      %v4159 = vld [vmem:[%s2429 + $0x18] sm:$0xe]
      %v4160 = vld [vmem:[%s2429 + $0x1c] sm:$0xf]
      %v4161 = vld [vmem:[%s2429 + $0x20] sm:$0x1]
      %v4162 = vld [vmem:[%s2429 + $0x24] sm:$0xe]
      %v4163 = vld [vmem:[%s2429 + $0x28] sm:$0xf]
      %v4164 = vld [vmem:[%s2429 + $0x2c] sm:$0x1]
      %v4165 = vld [vmem:[%s2429 + $0x30] sm:$0xe]
      %v4166 = vld [vmem:[%s2429 + $0x34] sm:$0xf]
      %v4167 = vld [vmem:[%s2429 + $0x38] sm:$0x1]
      %v4168 = vld [vmem:[%s2429 + $0x3c] sm:$0xe]
      %v4169 = vld [vmem:[%s2429 + $0x40] sm:$0xf]
      %v4170 = vld [vmem:[%s2429 + $0x44] sm:$0x1]
      %v4171 = vld [vmem:[%s2429 + $0x48] sm:$0xe]
      %v4172 = vld [vmem:[%s2429 + $0x4c] sm:$0xf]
      %v4173 = vld [vmem:[%s2429 + $0x50] sm:$0x1]
      %v4174 = vld [vmem:[%s2429 + $0x54] sm:$0xe]
      %v4175 = vld [vmem:[%s2429 + $0x58] sm:$0xf]
      %v4176 = vld [vmem:[%s2429 + $0x5c] sm:$0x1]
      %v4177 = vld [vmem:[%s2429 + $0x60] sm:$0xe]
      %v4178 = vld [vmem:[%s2429 + $0x64] sm:$0xf]
      %v4179 = vld [vmem:[%s2429 + $0x68] sm:$0x1]
      %v4180 = vld [vmem:[%s2429 + $0x6c] sm:$0xe]
      %v4181 = vld [vmem:[%s2429 + $0x70] sm:$0xf]
      %v4182 = vld [vmem:[%s2429 + $0x74] sm:$0x1]
      %v4183 = vld [vmem:[%s2429 + $0x78] sm:$0xe]
      %v4184 = vld [vmem:[%s2429 + $0x7c] sm:$0xf]
      %v4185 = vld [vmem:[%s2429 + $0x80] sm:$0x1]
      %v4186 = vld [vmem:[%s2429 + $0x84] sm:$0xe]
      %v4187 = vld [vmem:[%s2429 + $0x88] sm:$0xf]
      %v4188 = vld [vmem:[%s2429 + $0x8c] sm:$0x1]
      %v4189 = vld [vmem:[%s2429 + $0x90] sm:$0xe]
      %v4190 = vld [vmem:[%s2429 + $0x94] sm:$0xf]
      %v4191 = vld [vmem:[%s2429 + $0x98] sm:$0x1]
      %v4192 = vld [vmem:[%s2429 + $0x9c] sm:$0xe]
      %v4193 = vld [vmem:[%s2429 + $0xa0] sm:$0xf]
      %v4194 = vld [vmem:[%s2429 + $0xa4] sm:$0x1]
      %v4195 = vld [vmem:[%s2429 + $0xa8] sm:$0xe]
      %v4196 = vld [vmem:[%s2429 + $0xac] sm:$0xf]
      %v4197 = vld [vmem:[%s2429 + $0xb0] sm:$0x1]
      %v4198 = vld [vmem:[%s2429 + $0xb4] sm:$0xe]
      %v4199 = vld [vmem:[%s2429 + $0xb8] sm:$0xf]
      %v4200 = vld [vmem:[%s2429 + $0xbc] sm:$0x1]
      %v4249 = vrot.slane %v4153, 5
      %v4250 = vrot.slane %v4249, 4
      %v4251 = vrot.slane %v4154, 5
      %v4252 = vsel %vm3304, %v4250, %v4251
      %v4253 = vrot.slane %v4251, 4
      %v4254 = vrot.slane %v4155, 5
      %v4255 = vsel %vm3304, %v4253, %v4254
      %v4256 = vrot.slane %v4156, 5
      %v4257 = vrot.slane %v4256, 4
      %v4258 = vrot.slane %v4157, 5
      %v4259 = vsel %vm3304, %v4257, %v4258
      %v4260 = vrot.slane %v4258, 4
      %v4261 = vrot.slane %v4158, 5
      %v4262 = vsel %vm3304, %v4260, %v4261
      %v4263 = vrot.slane %v4159, 5
      %v4264 = vrot.slane %v4263, 4
      %v4265 = vrot.slane %v4160, 5
      %v4266 = vsel %vm3304, %v4264, %v4265
      %v4267 = vrot.slane %v4265, 4
      %v4268 = vrot.slane %v4161, 5
      %v4269 = vsel %vm3304, %v4267, %v4268
      %v4270 = vrot.slane %v4162, 5
      %v4271 = vrot.slane %v4270, 4
      %v4272 = vrot.slane %v4163, 5
      %v4273 = vsel %vm3304, %v4271, %v4272
      %v4274 = vrot.slane %v4272, 4
      %v4275 = vrot.slane %v4164, 5
      %v4276 = vsel %vm3304, %v4274, %v4275
      %v4277 = vrot.slane %v4165, 5
      %v4278 = vrot.slane %v4277, 4
      %v4279 = vrot.slane %v4166, 5
      %v4280 = vsel %vm3304, %v4278, %v4279
      %v4281 = vrot.slane %v4279, 4
      %v4282 = vrot.slane %v4167, 5
      %v4283 = vsel %vm3304, %v4281, %v4282
      %v4284 = vrot.slane %v4168, 5
      %v4285 = vrot.slane %v4284, 4
      %v4286 = vrot.slane %v4169, 5
      %v4287 = vsel %vm3304, %v4285, %v4286
      %v4288 = vrot.slane %v4286, 4
      %v4289 = vrot.slane %v4170, 5
      %v4290 = vsel %vm3304, %v4288, %v4289
      %v4291 = vrot.slane %v4171, 5
      %v4292 = vrot.slane %v4291, 4
      %v4293 = vrot.slane %v4172, 5
      %v4294 = vsel %vm3304, %v4292, %v4293
      %v4295 = vrot.slane %v4293, 4
      %v4296 = vrot.slane %v4173, 5
      %v4297 = vsel %vm3304, %v4295, %v4296
      %v4298 = vrot.slane %v4174, 5
      %v4299 = vrot.slane %v4298, 4
      %v4300 = vrot.slane %v4175, 5
      %v4301 = vsel %vm3304, %v4299, %v4300
      %v4302 = vrot.slane %v4300, 4
      %v4303 = vrot.slane %v4176, 5
      %v4304 = vsel %vm3304, %v4302, %v4303
      %v4305 = vrot.slane %v4177, 5
      %v4306 = vrot.slane %v4305, 4
      %v4307 = vrot.slane %v4178, 5
      %v4308 = vsel %vm3304, %v4306, %v4307
      %v4309 = vrot.slane %v4307, 4
      %v4310 = vrot.slane %v4179, 5
      %v4311 = vsel %vm3304, %v4309, %v4310
      %v4312 = vrot.slane %v4180, 5
      %v4313 = vrot.slane %v4312, 4
      %v4314 = vrot.slane %v4181, 5
      %v4315 = vsel %vm3304, %v4313, %v4314
      %v4316 = vrot.slane %v4314, 4
      %v4317 = vrot.slane %v4182, 5
      %v4318 = vsel %vm3304, %v4316, %v4317
      %v4319 = vrot.slane %v4183, 5
      %v4320 = vrot.slane %v4319, 4
      %v4321 = vrot.slane %v4184, 5
      %v4322 = vsel %vm3304, %v4320, %v4321
      %v4323 = vrot.slane %v4321, 4
      %v4324 = vrot.slane %v4185, 5
      %v4325 = vsel %vm3304, %v4323, %v4324
      %v4326 = vrot.slane %v4186, 5
      %v4327 = vrot.slane %v4326, 4
      %v4328 = vrot.slane %v4187, 5
      %v4329 = vsel %vm3304, %v4327, %v4328
      %v4330 = vrot.slane %v4328, 4
      %v4331 = vrot.slane %v4188, 5
      %v4332 = vsel %vm3304, %v4330, %v4331
      %v4333 = vrot.slane %v4189, 5
      %v4334 = vrot.slane %v4333, 4
      %v4335 = vrot.slane %v4190, 5
      %v4336 = vsel %vm3304, %v4334, %v4335
      %v4337 = vrot.slane %v4335, 4
      %v4338 = vrot.slane %v4191, 5
      %v4339 = vsel %vm3304, %v4337, %v4338
      %v4340 = vrot.slane %v4192, 5
      %v4341 = vrot.slane %v4340, 4
      %v4342 = vrot.slane %v4193, 5
      %v4343 = vsel %vm3304, %v4341, %v4342
      %v4344 = vrot.slane %v4342, 4
      %v4345 = vrot.slane %v4194, 5
      %v4346 = vsel %vm3304, %v4344, %v4345
      %v4347 = vrot.slane %v4195, 5
      %v4348 = vrot.slane %v4347, 4
      %v4349 = vrot.slane %v4196, 5
      %v4350 = vsel %vm3304, %v4348, %v4349
      %v4351 = vrot.slane %v4349, 4
      %v4352 = vrot.slane %v4197, 5
      %v4353 = vsel %vm3304, %v4351, %v4352
      %v4354 = vrot.slane %v4198, 5
      %v4355 = vrot.slane %v4354, 4
      %v4356 = vrot.slane %v4199, 5
      %v4357 = vsel %vm3304, %v4355, %v4356
      %v4358 = vrot.slane %v4356, 4
      %v4359 = vrot.slane %v4200, 5
      %v4360 = vsel %vm3304, %v4358, %v4359
      %v4361 = vunpack.c.l.b16 %v4252
      %v4362 = vunpack.c.l.b16 %v4255
      %v4363 = vunpack.c.l.b16 %v4259
      %v4364 = vunpack.c.l.b16 %v4262
      %v4365 = vunpack.c.l.b16 %v4266
      %v4366 = vunpack.c.l.b16 %v4269
      %v4367 = vunpack.c.l.b16 %v4273
      %v4368 = vunpack.c.l.b16 %v4276
      %v4369 = vunpack.c.l.b16 %v4280
      %v4370 = vunpack.c.l.b16 %v4283
      %v4371 = vunpack.c.l.b16 %v4287
      %v4372 = vunpack.c.l.b16 %v4290
      %v4373 = vunpack.c.l.b16 %v4294
      %v4374 = vunpack.c.l.b16 %v4297
      %v4375 = vunpack.c.l.b16 %v4301
      %v4376 = vunpack.c.l.b16 %v4304
      %v4377 = vunpack.c.l.b16 %v4308
      %v4378 = vunpack.c.l.b16 %v4311
      %v4379 = vunpack.c.l.b16 %v4315
      %v4380 = vunpack.c.l.b16 %v4318
      %v4381 = vunpack.c.l.b16 %v4322
      %v4382 = vunpack.c.l.b16 %v4325
      %v4383 = vunpack.c.l.b16 %v4329
      %v4384 = vunpack.c.l.b16 %v4332
      %v4385 = vunpack.c.l.b16 %v4336
      %v4386 = vunpack.c.l.b16 %v4339
      %v4387 = vunpack.c.l.b16 %v4343
      %v4388 = vunpack.c.l.b16 %v4346
      %v4389 = vunpack.c.l.b16 %v4350
      %v4390 = vunpack.c.l.b16 %v4353
      %v4391 = vunpack.c.l.b16 %v4357
      %v4392 = vunpack.c.l.b16 %v4360
      %v4393 = vpack.c.b16 %v4362, %v4361
      %v4394 = vpack.c.b16 %v4364, %v4363
      %v4395 = vpack.c.b16 %v4366, %v4365
      %v4396 = vpack.c.b16 %v4368, %v4367
      %v4397 = vpack.c.b16 %v4370, %v4369
      %v4398 = vpack.c.b16 %v4372, %v4371
      %v4399 = vpack.c.b16 %v4374, %v4373
      %v4400 = vpack.c.b16 %v4376, %v4375
      %v4401 = vpack.c.b16 %v4378, %v4377
      %v4402 = vpack.c.b16 %v4380, %v4379
      %v4403 = vpack.c.b16 %v4382, %v4381
      %v4404 = vpack.c.b16 %v4384, %v4383
      %v4405 = vpack.c.b16 %v4386, %v4385
      %v4406 = vpack.c.b16 %v4388, %v4387
      %v4407 = vpack.c.b16 %v4390, %v4389
      %v4408 = vpack.c.b16 %v4392, %v4391
      %4425 = vst [vmem:[#allocation3 + $0x28] sm:$0xff] %v4393
      %4426 = vst [vmem:[#allocation3 + $0x70] sm:$0xff] %v4394
      %4427 = vst [vmem:[#allocation3 + $0xb8] sm:$0xff] %v4395
      %4428 = vst [vmem:[#allocation3 + $0x100] sm:$0xff] %v4396
      %4429 = vst [vmem:[#allocation3 + $0x148] sm:$0xff] %v4397
      %4430 = vst [vmem:[#allocation3 + $0x190] sm:$0xff] %v4398
      %4431 = vst [vmem:[#allocation3 + $0x1d8] sm:$0xff] %v4399
      %4432 = vst [vmem:[#allocation3 + $0x220] sm:$0xff] %v4400
      %4433 = vst [vmem:[#allocation3 + $0x268] sm:$0xff] %v4401
      %4434 = vst [vmem:[#allocation3 + $0x2b0] sm:$0xff] %v4402
      %4435 = vst [vmem:[#allocation3 + $0x2f8] sm:$0xff] %v4403
      %4436 = vst [vmem:[#allocation3 + $0x340] sm:$0xff] %v4404
      %4437 = vst [vmem:[#allocation3 + $0x388] sm:$0xff] %v4405
      %4438 = vst [vmem:[#allocation3 + $0x3d0] sm:$0xff] %v4406
      %4439 = vst [vmem:[#allocation3 + $0x418] sm:$0xff] %v4407
      %4440 = vst [vmem:[#allocation3 + $0x460] sm:$0xff] %v4408
      %s4441 = scalar_lea.vmem [#allocation2], 24
      %v4442 = vld [vmem:[%s4441] sm:$0xf]
      %v4443 = vld [vmem:[%s4441 + $0x4] sm:$0xf]
      %v4444 = vld [vmem:[%s4441 + $0xc] sm:$0xf]
      %v4445 = vld [vmem:[%s4441 + $0x10] sm:$0xf]
      %v4446 = vld [vmem:[%s4441 + $0x18] sm:$0xf]
      %v4447 = vld [vmem:[%s4441 + $0x1c] sm:$0xf]
      %v4448 = vld [vmem:[%s4441 + $0x24] sm:$0xf]
      %v4449 = vld [vmem:[%s4441 + $0x28] sm:$0xf]
      %v4450 = vld [vmem:[%s4441 + $0x30] sm:$0xf]
      %v4451 = vld [vmem:[%s4441 + $0x34] sm:$0xf]
      %v4452 = vld [vmem:[%s4441 + $0x3c] sm:$0xf]
      %v4453 = vld [vmem:[%s4441 + $0x40] sm:$0xf]
      %v4454 = vld [vmem:[%s4441 + $0x48] sm:$0xf]
      %v4455 = vld [vmem:[%s4441 + $0x4c] sm:$0xf]
      %v4456 = vld [vmem:[%s4441 + $0x54] sm:$0xf]
      %v4457 = vld [vmem:[%s4441 + $0x58] sm:$0xf]
      %v4458 = vld [vmem:[%s4441 + $0x60] sm:$0xf]
      %v4459 = vld [vmem:[%s4441 + $0x64] sm:$0xf]
      %v4460 = vld [vmem:[%s4441 + $0x6c] sm:$0xf]
      %v4461 = vld [vmem:[%s4441 + $0x70] sm:$0xf]
      %v4462 = vld [vmem:[%s4441 + $0x78] sm:$0xf]
      %v4463 = vld [vmem:[%s4441 + $0x7c] sm:$0xf]
      %v4464 = vld [vmem:[%s4441 + $0x84] sm:$0xf]
      %v4465 = vld [vmem:[%s4441 + $0x88] sm:$0xf]
      %v4466 = vld [vmem:[%s4441 + $0x90] sm:$0xf]
      %v4467 = vld [vmem:[%s4441 + $0x94] sm:$0xf]
      %v4468 = vld [vmem:[%s4441 + $0x9c] sm:$0xf]
      %v4469 = vld [vmem:[%s4441 + $0xa0] sm:$0xf]
      %v4470 = vld [vmem:[%s4441 + $0xa8] sm:$0xf]
      %v4471 = vld [vmem:[%s4441 + $0xac] sm:$0xf]
      %v4472 = vld [vmem:[%s4441 + $0xb4] sm:$0xf]
      %v4473 = vld [vmem:[%s4441 + $0xb8] sm:$0xf]
      %v4506 = vunpack.c.l.b16 %v4442
      %v4507 = vunpack.c.l.b16 %v4443
      %v4508 = vunpack.c.l.b16 %v4444
      %v4509 = vunpack.c.l.b16 %v4445
      %v4510 = vunpack.c.l.b16 %v4446
      %v4511 = vunpack.c.l.b16 %v4447
      %v4512 = vunpack.c.l.b16 %v4448
      %v4513 = vunpack.c.l.b16 %v4449
      %v4514 = vunpack.c.l.b16 %v4450
      %v4515 = vunpack.c.l.b16 %v4451
      %v4516 = vunpack.c.l.b16 %v4452
      %v4517 = vunpack.c.l.b16 %v4453
      %v4518 = vunpack.c.l.b16 %v4454
      %v4519 = vunpack.c.l.b16 %v4455
      %v4520 = vunpack.c.l.b16 %v4456
      %v4521 = vunpack.c.l.b16 %v4457
      %v4522 = vunpack.c.l.b16 %v4458
      %v4523 = vunpack.c.l.b16 %v4459
      %v4524 = vunpack.c.l.b16 %v4460
      %v4525 = vunpack.c.l.b16 %v4461
      %v4526 = vunpack.c.l.b16 %v4462
      %v4527 = vunpack.c.l.b16 %v4463
      %v4528 = vunpack.c.l.b16 %v4464
      %v4529 = vunpack.c.l.b16 %v4465
      %v4530 = vunpack.c.l.b16 %v4466
      %v4531 = vunpack.c.l.b16 %v4467
      %v4532 = vunpack.c.l.b16 %v4468
      %v4533 = vunpack.c.l.b16 %v4469
      %v4534 = vunpack.c.l.b16 %v4470
      %v4535 = vunpack.c.l.b16 %v4471
      %v4536 = vunpack.c.l.b16 %v4472
      %v4537 = vunpack.c.l.b16 %v4473
      %v4538 = vpack.c.b16 %v4507, %v4506
      %v4539 = vpack.c.b16 %v4509, %v4508
      %v4540 = vpack.c.b16 %v4511, %v4510
      %v4541 = vpack.c.b16 %v4513, %v4512
      %v4542 = vpack.c.b16 %v4515, %v4514
      %v4543 = vpack.c.b16 %v4517, %v4516
      %v4544 = vpack.c.b16 %v4519, %v4518
      %v4545 = vpack.c.b16 %v4521, %v4520
      %v4546 = vpack.c.b16 %v4523, %v4522
      %v4547 = vpack.c.b16 %v4525, %v4524
      %v4548 = vpack.c.b16 %v4527, %v4526
      %v4549 = vpack.c.b16 %v4529, %v4528
      %v4550 = vpack.c.b16 %v4531, %v4530
      %v4551 = vpack.c.b16 %v4533, %v4532
      %v4552 = vpack.c.b16 %v4535, %v4534
      %v4553 = vpack.c.b16 %v4537, %v4536
      %4570 = vst [vmem:[#allocation3 + $0x30] sm:$0xff] %v4538
      %4571 = vst [vmem:[#allocation3 + $0x78] sm:$0xff] %v4539
      %4572 = vst [vmem:[#allocation3 + $0xc0] sm:$0xff] %v4540
      %4573 = vst [vmem:[#allocation3 + $0x108] sm:$0xff] %v4541
      %4574 = vst [vmem:[#allocation3 + $0x150] sm:$0xff] %v4542
      %4575 = vst [vmem:[#allocation3 + $0x198] sm:$0xff] %v4543
      %4576 = vst [vmem:[#allocation3 + $0x1e0] sm:$0xff] %v4544
      %4577 = vst [vmem:[#allocation3 + $0x228] sm:$0xff] %v4545
      %4578 = vst [vmem:[#allocation3 + $0x270] sm:$0xff] %v4546
      %4579 = vst [vmem:[#allocation3 + $0x2b8] sm:$0xff] %v4547
      %4580 = vst [vmem:[#allocation3 + $0x300] sm:$0xff] %v4548
      %4581 = vst [vmem:[#allocation3 + $0x348] sm:$0xff] %v4549
      %4582 = vst [vmem:[#allocation3 + $0x390] sm:$0xff] %v4550
      %4583 = vst [vmem:[#allocation3 + $0x3d8] sm:$0xff] %v4551
      %4584 = vst [vmem:[#allocation3 + $0x420] sm:$0xff] %v4552
      %4585 = vst [vmem:[#allocation3 + $0x468] sm:$0xff] %v4553
      %v4586 = vld [vmem:[%s4441] sm:$0xf]
      %v4587 = vld [vmem:[%s4441 + $0x4] sm:$0xf]
      %v4588 = vld [vmem:[%s4441 + $0x8] sm:$0x1]
      %v4589 = vld [vmem:[%s4441 + $0xc] sm:$0xf]
      %v4590 = vld [vmem:[%s4441 + $0x10] sm:$0xf]
      %v4591 = vld [vmem:[%s4441 + $0x14] sm:$0x1]
      %v4592 = vld [vmem:[%s4441 + $0x18] sm:$0xf]
      %v4593 = vld [vmem:[%s4441 + $0x1c] sm:$0xf]
      %v4594 = vld [vmem:[%s4441 + $0x20] sm:$0x1]
      %v4595 = vld [vmem:[%s4441 + $0x24] sm:$0xf]
      %v4596 = vld [vmem:[%s4441 + $0x28] sm:$0xf]
      %v4597 = vld [vmem:[%s4441 + $0x2c] sm:$0x1]
      %v4598 = vld [vmem:[%s4441 + $0x30] sm:$0xf]
      %v4599 = vld [vmem:[%s4441 + $0x34] sm:$0xf]
      %v4600 = vld [vmem:[%s4441 + $0x38] sm:$0x1]
      %v4601 = vld [vmem:[%s4441 + $0x3c] sm:$0xf]
      %v4602 = vld [vmem:[%s4441 + $0x40] sm:$0xf]
      %v4603 = vld [vmem:[%s4441 + $0x44] sm:$0x1]
      %v4604 = vld [vmem:[%s4441 + $0x48] sm:$0xf]
      %v4605 = vld [vmem:[%s4441 + $0x4c] sm:$0xf]
      %v4606 = vld [vmem:[%s4441 + $0x50] sm:$0x1]
      %v4607 = vld [vmem:[%s4441 + $0x54] sm:$0xf]
      %v4608 = vld [vmem:[%s4441 + $0x58] sm:$0xf]
      %v4609 = vld [vmem:[%s4441 + $0x5c] sm:$0x1]
      %v4610 = vld [vmem:[%s4441 + $0x60] sm:$0xf]
      %v4611 = vld [vmem:[%s4441 + $0x64] sm:$0xf]
      %v4612 = vld [vmem:[%s4441 + $0x68] sm:$0x1]
      %v4613 = vld [vmem:[%s4441 + $0x6c] sm:$0xf]
      %v4614 = vld [vmem:[%s4441 + $0x70] sm:$0xf]
      %v4615 = vld [vmem:[%s4441 + $0x74] sm:$0x1]
      %v4616 = vld [vmem:[%s4441 + $0x78] sm:$0xf]
      %v4617 = vld [vmem:[%s4441 + $0x7c] sm:$0xf]
      %v4618 = vld [vmem:[%s4441 + $0x80] sm:$0x1]
      %v4619 = vld [vmem:[%s4441 + $0x84] sm:$0xf]
      %v4620 = vld [vmem:[%s4441 + $0x88] sm:$0xf]
      %v4621 = vld [vmem:[%s4441 + $0x8c] sm:$0x1]
      %v4622 = vld [vmem:[%s4441 + $0x90] sm:$0xf]
      %v4623 = vld [vmem:[%s4441 + $0x94] sm:$0xf]
      %v4624 = vld [vmem:[%s4441 + $0x98] sm:$0x1]
      %v4625 = vld [vmem:[%s4441 + $0x9c] sm:$0xf]
      %v4626 = vld [vmem:[%s4441 + $0xa0] sm:$0xf]
      %v4627 = vld [vmem:[%s4441 + $0xa4] sm:$0x1]
      %v4628 = vld [vmem:[%s4441 + $0xa8] sm:$0xf]
      %v4629 = vld [vmem:[%s4441 + $0xac] sm:$0xf]
      %v4630 = vld [vmem:[%s4441 + $0xb0] sm:$0x1]
      %v4631 = vld [vmem:[%s4441 + $0xb4] sm:$0xf]
      %v4632 = vld [vmem:[%s4441 + $0xb8] sm:$0xf]
      %v4633 = vld [vmem:[%s4441 + $0xbc] sm:$0x1]
      %v4635 = vshrl.u32 %v4586, 16
      %v4637 = vrot.slane %v4635, 4
      %v4638 = vshll.u32 %v4586, 16
      %v4640 = vrot.slane %v4638, 5
      %v4641 = vor.u32 %v4637, %v4640
      %v4642 = vrot.slane %v4641, 4
      %v4644 = vshll.u32 %v4587, 16
      %v4646 = vrot.slane %v4644, 5
      %v4647 = vsel %vm2741, %v4642, %v4646
      %v4648 = vshrl.u32 %v4587, 16
      %v4650 = vrot.slane %v4648, 4
      %v4651 = vor.u32 %v4650, %v4646
      %v4652 = vrot.slane %v4651, 4
      %v4654 = vshll.u32 %v4588, 16
      %v4656 = vrot.slane %v4654, 5
      %v4657 = vsel %vm2741, %v4652, %v4656
      %v4659 = vshrl.u32 %v4589, 16
      %v4661 = vrot.slane %v4659, 4
      %v4662 = vshll.u32 %v4589, 16
      %v4664 = vrot.slane %v4662, 5
      %v4665 = vor.u32 %v4661, %v4664
      %v4666 = vrot.slane %v4665, 4
      %v4668 = vshll.u32 %v4590, 16
      %v4670 = vrot.slane %v4668, 5
      %v4671 = vsel %vm2741, %v4666, %v4670
      %v4672 = vshrl.u32 %v4590, 16
      %v4674 = vrot.slane %v4672, 4
      %v4675 = vor.u32 %v4674, %v4670
      %v4676 = vrot.slane %v4675, 4
      %v4678 = vshll.u32 %v4591, 16
      %v4680 = vrot.slane %v4678, 5
      %v4681 = vsel %vm2741, %v4676, %v4680
      %v4683 = vshrl.u32 %v4592, 16
      %v4685 = vrot.slane %v4683, 4
      %v4686 = vshll.u32 %v4592, 16
      %v4688 = vrot.slane %v4686, 5
      %v4689 = vor.u32 %v4685, %v4688
      %v4690 = vrot.slane %v4689, 4
      %v4692 = vshll.u32 %v4593, 16
      %v4694 = vrot.slane %v4692, 5
      %v4695 = vsel %vm2741, %v4690, %v4694
      %v4696 = vshrl.u32 %v4593, 16
      %v4698 = vrot.slane %v4696, 4
      %v4699 = vor.u32 %v4698, %v4694
      %v4700 = vrot.slane %v4699, 4
      %v4702 = vshll.u32 %v4594, 16
      %v4704 = vrot.slane %v4702, 5
      %v4705 = vsel %vm2741, %v4700, %v4704
      %v4707 = vshrl.u32 %v4595, 16
      %v4709 = vrot.slane %v4707, 4
      %v4710 = vshll.u32 %v4595, 16
      %v4712 = vrot.slane %v4710, 5
      %v4713 = vor.u32 %v4709, %v4712
      %v4714 = vrot.slane %v4713, 4
      %v4716 = vshll.u32 %v4596, 16
      %v4718 = vrot.slane %v4716, 5
      %v4719 = vsel %vm2741, %v4714, %v4718
      %v4720 = vshrl.u32 %v4596, 16
      %v4722 = vrot.slane %v4720, 4
      %v4723 = vor.u32 %v4722, %v4718
      %v4724 = vrot.slane %v4723, 4
      %v4726 = vshll.u32 %v4597, 16
      %v4728 = vrot.slane %v4726, 5
      %v4729 = vsel %vm2741, %v4724, %v4728
      %v4731 = vshrl.u32 %v4598, 16
      %v4733 = vrot.slane %v4731, 4
      %v4734 = vshll.u32 %v4598, 16
      %v4736 = vrot.slane %v4734, 5
      %v4737 = vor.u32 %v4733, %v4736
      %v4738 = vrot.slane %v4737, 4
      %v4740 = vshll.u32 %v4599, 16
      %v4742 = vrot.slane %v4740, 5
      %v4743 = vsel %vm2741, %v4738, %v4742
      %v4744 = vshrl.u32 %v4599, 16
      %v4746 = vrot.slane %v4744, 4
      %v4747 = vor.u32 %v4746, %v4742
      %v4748 = vrot.slane %v4747, 4
      %v4750 = vshll.u32 %v4600, 16
      %v4752 = vrot.slane %v4750, 5
      %v4753 = vsel %vm2741, %v4748, %v4752
      %v4755 = vshrl.u32 %v4601, 16
      %v4757 = vrot.slane %v4755, 4
      %v4758 = vshll.u32 %v4601, 16
      %v4760 = vrot.slane %v4758, 5
      %v4761 = vor.u32 %v4757, %v4760
      %v4762 = vrot.slane %v4761, 4
      %v4764 = vshll.u32 %v4602, 16
      %v4766 = vrot.slane %v4764, 5
      %v4767 = vsel %vm2741, %v4762, %v4766
      %v4768 = vshrl.u32 %v4602, 16
      %v4770 = vrot.slane %v4768, 4
      %v4771 = vor.u32 %v4770, %v4766
      %v4772 = vrot.slane %v4771, 4
      %v4774 = vshll.u32 %v4603, 16
      %v4776 = vrot.slane %v4774, 5
      %v4777 = vsel %vm2741, %v4772, %v4776
      %v4779 = vshrl.u32 %v4604, 16
      %v4781 = vrot.slane %v4779, 4
      %v4782 = vshll.u32 %v4604, 16
      %v4784 = vrot.slane %v4782, 5
      %v4785 = vor.u32 %v4781, %v4784
      %v4786 = vrot.slane %v4785, 4
      %v4788 = vshll.u32 %v4605, 16
      %v4790 = vrot.slane %v4788, 5
      %v4791 = vsel %vm2741, %v4786, %v4790
      %v4792 = vshrl.u32 %v4605, 16
      %v4794 = vrot.slane %v4792, 4
      %v4795 = vor.u32 %v4794, %v4790
      %v4796 = vrot.slane %v4795, 4
      %v4798 = vshll.u32 %v4606, 16
      %v4800 = vrot.slane %v4798, 5
      %v4801 = vsel %vm2741, %v4796, %v4800
      %v4803 = vshrl.u32 %v4607, 16
      %v4805 = vrot.slane %v4803, 4
      %v4806 = vshll.u32 %v4607, 16
      %v4808 = vrot.slane %v4806, 5
      %v4809 = vor.u32 %v4805, %v4808
      %v4810 = vrot.slane %v4809, 4
      %v4812 = vshll.u32 %v4608, 16
      %v4814 = vrot.slane %v4812, 5
      %v4815 = vsel %vm2741, %v4810, %v4814
      %v4816 = vshrl.u32 %v4608, 16
      %v4818 = vrot.slane %v4816, 4
      %v4819 = vor.u32 %v4818, %v4814
      %v4820 = vrot.slane %v4819, 4
      %v4822 = vshll.u32 %v4609, 16
      %v4824 = vrot.slane %v4822, 5
      %v4825 = vsel %vm2741, %v4820, %v4824
      %v4827 = vshrl.u32 %v4610, 16
      %v4829 = vrot.slane %v4827, 4
      %v4830 = vshll.u32 %v4610, 16
      %v4832 = vrot.slane %v4830, 5
      %v4833 = vor.u32 %v4829, %v4832
      %v4834 = vrot.slane %v4833, 4
      %v4836 = vshll.u32 %v4611, 16
      %v4838 = vrot.slane %v4836, 5
      %v4839 = vsel %vm2741, %v4834, %v4838
      %v4840 = vshrl.u32 %v4611, 16
      %v4842 = vrot.slane %v4840, 4
      %v4843 = vor.u32 %v4842, %v4838
      %v4844 = vrot.slane %v4843, 4
      %v4846 = vshll.u32 %v4612, 16
      %v4848 = vrot.slane %v4846, 5
      %v4849 = vsel %vm2741, %v4844, %v4848
      %v4851 = vshrl.u32 %v4613, 16
      %v4853 = vrot.slane %v4851, 4
      %v4854 = vshll.u32 %v4613, 16
      %v4856 = vrot.slane %v4854, 5
      %v4857 = vor.u32 %v4853, %v4856
      %v4858 = vrot.slane %v4857, 4
      %v4860 = vshll.u32 %v4614, 16
      %v4862 = vrot.slane %v4860, 5
      %v4863 = vsel %vm2741, %v4858, %v4862
      %v4864 = vshrl.u32 %v4614, 16
      %v4866 = vrot.slane %v4864, 4
      %v4867 = vor.u32 %v4866, %v4862
      %v4868 = vrot.slane %v4867, 4
      %v4870 = vshll.u32 %v4615, 16
      %v4872 = vrot.slane %v4870, 5
      %v4873 = vsel %vm2741, %v4868, %v4872
      %v4875 = vshrl.u32 %v4616, 16
      %v4877 = vrot.slane %v4875, 4
      %v4878 = vshll.u32 %v4616, 16
      %v4880 = vrot.slane %v4878, 5
      %v4881 = vor.u32 %v4877, %v4880
      %v4882 = vrot.slane %v4881, 4
      %v4884 = vshll.u32 %v4617, 16
      %v4886 = vrot.slane %v4884, 5
      %v4887 = vsel %vm2741, %v4882, %v4886
      %v4888 = vshrl.u32 %v4617, 16
      %v4890 = vrot.slane %v4888, 4
      %v4891 = vor.u32 %v4890, %v4886
      %v4892 = vrot.slane %v4891, 4
      %v4894 = vshll.u32 %v4618, 16
      %v4896 = vrot.slane %v4894, 5
      %v4897 = vsel %vm2741, %v4892, %v4896
      %v4899 = vshrl.u32 %v4619, 16
      %v4901 = vrot.slane %v4899, 4
      %v4902 = vshll.u32 %v4619, 16
      %v4904 = vrot.slane %v4902, 5
      %v4905 = vor.u32 %v4901, %v4904
      %v4906 = vrot.slane %v4905, 4
      %v4908 = vshll.u32 %v4620, 16
      %v4910 = vrot.slane %v4908, 5
      %v4911 = vsel %vm2741, %v4906, %v4910
      %v4912 = vshrl.u32 %v4620, 16
      %v4914 = vrot.slane %v4912, 4
      %v4915 = vor.u32 %v4914, %v4910
      %v4916 = vrot.slane %v4915, 4
      %v4918 = vshll.u32 %v4621, 16
      %v4920 = vrot.slane %v4918, 5
      %v4921 = vsel %vm2741, %v4916, %v4920
      %v4923 = vshrl.u32 %v4622, 16
      %v4925 = vrot.slane %v4923, 4
      %v4926 = vshll.u32 %v4622, 16
      %v4928 = vrot.slane %v4926, 5
      %v4929 = vor.u32 %v4925, %v4928
      %v4930 = vrot.slane %v4929, 4
      %v4932 = vshll.u32 %v4623, 16
      %v4934 = vrot.slane %v4932, 5
      %v4935 = vsel %vm2741, %v4930, %v4934
      %v4936 = vshrl.u32 %v4623, 16
      %v4938 = vrot.slane %v4936, 4
      %v4939 = vor.u32 %v4938, %v4934
      %v4940 = vrot.slane %v4939, 4
      %v4942 = vshll.u32 %v4624, 16
      %v4944 = vrot.slane %v4942, 5
      %v4945 = vsel %vm2741, %v4940, %v4944
      %v4947 = vshrl.u32 %v4625, 16
      %v4949 = vrot.slane %v4947, 4
      %v4950 = vshll.u32 %v4625, 16
      %v4952 = vrot.slane %v4950, 5
      %v4953 = vor.u32 %v4949, %v4952
      %v4954 = vrot.slane %v4953, 4
      %v4956 = vshll.u32 %v4626, 16
      %v4958 = vrot.slane %v4956, 5
      %v4959 = vsel %vm2741, %v4954, %v4958
      %v4960 = vshrl.u32 %v4626, 16
      %v4962 = vrot.slane %v4960, 4
      %v4963 = vor.u32 %v4962, %v4958
      %v4964 = vrot.slane %v4963, 4
      %v4966 = vshll.u32 %v4627, 16
      %v4968 = vrot.slane %v4966, 5
      %v4969 = vsel %vm2741, %v4964, %v4968
      %v4971 = vshrl.u32 %v4628, 16
      %v4973 = vrot.slane %v4971, 4
      %v4974 = vshll.u32 %v4628, 16
      %v4976 = vrot.slane %v4974, 5
      %v4977 = vor.u32 %v4973, %v4976
      %v4978 = vrot.slane %v4977, 4
      %v4980 = vshll.u32 %v4629, 16
      %v4982 = vrot.slane %v4980, 5
      %v4983 = vsel %vm2741, %v4978, %v4982
      %v4984 = vshrl.u32 %v4629, 16
      %v4986 = vrot.slane %v4984, 4
      %v4987 = vor.u32 %v4986, %v4982
      %v4988 = vrot.slane %v4987, 4
      %v4990 = vshll.u32 %v4630, 16
      %v4992 = vrot.slane %v4990, 5
      %v4993 = vsel %vm2741, %v4988, %v4992
      %v4995 = vshrl.u32 %v4631, 16
      %v4997 = vrot.slane %v4995, 4
      %v4998 = vshll.u32 %v4631, 16
      %v5000 = vrot.slane %v4998, 5
      %v5001 = vor.u32 %v4997, %v5000
      %v5002 = vrot.slane %v5001, 4
      %v5004 = vshll.u32 %v4632, 16
      %v5006 = vrot.slane %v5004, 5
      %v5007 = vsel %vm2741, %v5002, %v5006
      %v5008 = vshrl.u32 %v4632, 16
      %v5010 = vrot.slane %v5008, 4
      %v5011 = vor.u32 %v5010, %v5006
      %v5012 = vrot.slane %v5011, 4
      %v5014 = vshll.u32 %v4633, 16
      %v5016 = vrot.slane %v5014, 5
      %v5017 = vsel %vm2741, %v5012, %v5016
      %v5018 = vunpack.c.l.b16 %v4647
      %v5019 = vunpack.c.l.b16 %v4657
      %v5020 = vunpack.c.l.b16 %v4671
      %v5021 = vunpack.c.l.b16 %v4681
      %v5022 = vunpack.c.l.b16 %v4695
      %v5023 = vunpack.c.l.b16 %v4705
      %v5024 = vunpack.c.l.b16 %v4719
      %v5025 = vunpack.c.l.b16 %v4729
      %v5026 = vunpack.c.l.b16 %v4743
      %v5027 = vunpack.c.l.b16 %v4753
      %v5028 = vunpack.c.l.b16 %v4767
      %v5029 = vunpack.c.l.b16 %v4777
      %v5030 = vunpack.c.l.b16 %v4791
      %v5031 = vunpack.c.l.b16 %v4801
      %v5032 = vunpack.c.l.b16 %v4815
      %v5033 = vunpack.c.l.b16 %v4825
      %v5034 = vunpack.c.l.b16 %v4839
      %v5035 = vunpack.c.l.b16 %v4849
      %v5036 = vunpack.c.l.b16 %v4863
      %v5037 = vunpack.c.l.b16 %v4873
      %v5038 = vunpack.c.l.b16 %v4887
      %v5039 = vunpack.c.l.b16 %v4897
      %v5040 = vunpack.c.l.b16 %v4911
      %v5041 = vunpack.c.l.b16 %v4921
      %v5042 = vunpack.c.l.b16 %v4935
      %v5043 = vunpack.c.l.b16 %v4945
      %v5044 = vunpack.c.l.b16 %v4959
      %v5045 = vunpack.c.l.b16 %v4969
      %v5046 = vunpack.c.l.b16 %v4983
      %v5047 = vunpack.c.l.b16 %v4993
      %v5048 = vunpack.c.l.b16 %v5007
      %v5049 = vunpack.c.l.b16 %v5017
      %v5050 = vpack.c.b16 %v5019, %v5018
      %v5051 = vpack.c.b16 %v5021, %v5020
      %v5052 = vpack.c.b16 %v5023, %v5022
      %v5053 = vpack.c.b16 %v5025, %v5024
      %v5054 = vpack.c.b16 %v5027, %v5026
      %v5055 = vpack.c.b16 %v5029, %v5028
      %v5056 = vpack.c.b16 %v5031, %v5030
      %v5057 = vpack.c.b16 %v5033, %v5032
      %v5058 = vpack.c.b16 %v5035, %v5034
      %v5059 = vpack.c.b16 %v5037, %v5036
      %v5060 = vpack.c.b16 %v5039, %v5038
      %v5061 = vpack.c.b16 %v5041, %v5040
      %v5062 = vpack.c.b16 %v5043, %v5042
      %v5063 = vpack.c.b16 %v5045, %v5044
      %v5064 = vpack.c.b16 %v5047, %v5046
      %v5065 = vpack.c.b16 %v5049, %v5048
      %5082 = vst [vmem:[#allocation3 + $0x38] sm:$0xff] %v5050
      %5083 = vst [vmem:[#allocation3 + $0x80] sm:$0xff] %v5051
      %5084 = vst [vmem:[#allocation3 + $0xc8] sm:$0xff] %v5052
      %5085 = vst [vmem:[#allocation3 + $0x110] sm:$0xff] %v5053
      %5086 = vst [vmem:[#allocation3 + $0x158] sm:$0xff] %v5054
      %5087 = vst [vmem:[#allocation3 + $0x1a0] sm:$0xff] %v5055
      %5088 = vst [vmem:[#allocation3 + $0x1e8] sm:$0xff] %v5056
      %5089 = vst [vmem:[#allocation3 + $0x230] sm:$0xff] %v5057
      %5090 = vst [vmem:[#allocation3 + $0x278] sm:$0xff] %v5058
      %5091 = vst [vmem:[#allocation3 + $0x2c0] sm:$0xff] %v5059
      %5092 = vst [vmem:[#allocation3 + $0x308] sm:$0xff] %v5060
      %5093 = vst [vmem:[#allocation3 + $0x350] sm:$0xff] %v5061
      %5094 = vst [vmem:[#allocation3 + $0x398] sm:$0xff] %v5062
      %5095 = vst [vmem:[#allocation3 + $0x3e0] sm:$0xff] %v5063
      %5096 = vst [vmem:[#allocation3 + $0x428] sm:$0xff] %v5064
      %5097 = vst [vmem:[#allocation3 + $0x470] sm:$0xff] %v5065
      %v5098 = vld [vmem:[%s4441] sm:$0xe]
      %v5099 = vld [vmem:[%s4441 + $0x4] sm:$0xf]
      %v5100 = vld [vmem:[%s4441 + $0x8] sm:$0x1]
      %v5101 = vld [vmem:[%s4441 + $0xc] sm:$0xe]
      %v5102 = vld [vmem:[%s4441 + $0x10] sm:$0xf]
      %v5103 = vld [vmem:[%s4441 + $0x14] sm:$0x1]
      %v5104 = vld [vmem:[%s4441 + $0x18] sm:$0xe]
      %v5105 = vld [vmem:[%s4441 + $0x1c] sm:$0xf]
      %v5106 = vld [vmem:[%s4441 + $0x20] sm:$0x1]
      %v5107 = vld [vmem:[%s4441 + $0x24] sm:$0xe]
      %v5108 = vld [vmem:[%s4441 + $0x28] sm:$0xf]
      %v5109 = vld [vmem:[%s4441 + $0x2c] sm:$0x1]
      %v5110 = vld [vmem:[%s4441 + $0x30] sm:$0xe]
      %v5111 = vld [vmem:[%s4441 + $0x34] sm:$0xf]
      %v5112 = vld [vmem:[%s4441 + $0x38] sm:$0x1]
      %v5113 = vld [vmem:[%s4441 + $0x3c] sm:$0xe]
      %v5114 = vld [vmem:[%s4441 + $0x40] sm:$0xf]
      %v5115 = vld [vmem:[%s4441 + $0x44] sm:$0x1]
      %v5116 = vld [vmem:[%s4441 + $0x48] sm:$0xe]
      %v5117 = vld [vmem:[%s4441 + $0x4c] sm:$0xf]
      %v5118 = vld [vmem:[%s4441 + $0x50] sm:$0x1]
      %v5119 = vld [vmem:[%s4441 + $0x54] sm:$0xe]
      %v5120 = vld [vmem:[%s4441 + $0x58] sm:$0xf]
      %v5121 = vld [vmem:[%s4441 + $0x5c] sm:$0x1]
      %v5122 = vld [vmem:[%s4441 + $0x60] sm:$0xe]
      %v5123 = vld [vmem:[%s4441 + $0x64] sm:$0xf]
      %v5124 = vld [vmem:[%s4441 + $0x68] sm:$0x1]
      %v5125 = vld [vmem:[%s4441 + $0x6c] sm:$0xe]
      %v5126 = vld [vmem:[%s4441 + $0x70] sm:$0xf]
      %v5127 = vld [vmem:[%s4441 + $0x74] sm:$0x1]
      %v5128 = vld [vmem:[%s4441 + $0x78] sm:$0xe]
      %v5129 = vld [vmem:[%s4441 + $0x7c] sm:$0xf]
      %v5130 = vld [vmem:[%s4441 + $0x80] sm:$0x1]
      %v5131 = vld [vmem:[%s4441 + $0x84] sm:$0xe]
      %v5132 = vld [vmem:[%s4441 + $0x88] sm:$0xf]
      %v5133 = vld [vmem:[%s4441 + $0x8c] sm:$0x1]
      %v5134 = vld [vmem:[%s4441 + $0x90] sm:$0xe]
      %v5135 = vld [vmem:[%s4441 + $0x94] sm:$0xf]
      %v5136 = vld [vmem:[%s4441 + $0x98] sm:$0x1]
      %v5137 = vld [vmem:[%s4441 + $0x9c] sm:$0xe]
      %v5138 = vld [vmem:[%s4441 + $0xa0] sm:$0xf]
      %v5139 = vld [vmem:[%s4441 + $0xa4] sm:$0x1]
      %v5140 = vld [vmem:[%s4441 + $0xa8] sm:$0xe]
      %v5141 = vld [vmem:[%s4441 + $0xac] sm:$0xf]
      %v5142 = vld [vmem:[%s4441 + $0xb0] sm:$0x1]
      %v5143 = vld [vmem:[%s4441 + $0xb4] sm:$0xe]
      %v5144 = vld [vmem:[%s4441 + $0xb8] sm:$0xf]
      %v5145 = vld [vmem:[%s4441 + $0xbc] sm:$0x1]
      %v5194 = vrot.slane %v5098, 5
      %v5195 = vrot.slane %v5194, 4
      %v5196 = vrot.slane %v5099, 5
      %v5197 = vsel %vm3304, %v5195, %v5196
      %v5198 = vrot.slane %v5196, 4
      %v5199 = vrot.slane %v5100, 5
      %v5200 = vsel %vm3304, %v5198, %v5199
      %v5201 = vrot.slane %v5101, 5
      %v5202 = vrot.slane %v5201, 4
      %v5203 = vrot.slane %v5102, 5
      %v5204 = vsel %vm3304, %v5202, %v5203
      %v5205 = vrot.slane %v5203, 4
      %v5206 = vrot.slane %v5103, 5
      %v5207 = vsel %vm3304, %v5205, %v5206
      %v5208 = vrot.slane %v5104, 5
      %v5209 = vrot.slane %v5208, 4
      %v5210 = vrot.slane %v5105, 5
      %v5211 = vsel %vm3304, %v5209, %v5210
      %v5212 = vrot.slane %v5210, 4
      %v5213 = vrot.slane %v5106, 5
      %v5214 = vsel %vm3304, %v5212, %v5213
      %v5215 = vrot.slane %v5107, 5
      %v5216 = vrot.slane %v5215, 4
      %v5217 = vrot.slane %v5108, 5
      %v5218 = vsel %vm3304, %v5216, %v5217
      %v5219 = vrot.slane %v5217, 4
      %v5220 = vrot.slane %v5109, 5
      %v5221 = vsel %vm3304, %v5219, %v5220
      %v5222 = vrot.slane %v5110, 5
      %v5223 = vrot.slane %v5222, 4
      %v5224 = vrot.slane %v5111, 5
      %v5225 = vsel %vm3304, %v5223, %v5224
      %v5226 = vrot.slane %v5224, 4
      %v5227 = vrot.slane %v5112, 5
      %v5228 = vsel %vm3304, %v5226, %v5227
      %v5229 = vrot.slane %v5113, 5
      %v5230 = vrot.slane %v5229, 4
      %v5231 = vrot.slane %v5114, 5
      %v5232 = vsel %vm3304, %v5230, %v5231
      %v5233 = vrot.slane %v5231, 4
      %v5234 = vrot.slane %v5115, 5
      %v5235 = vsel %vm3304, %v5233, %v5234
      %v5236 = vrot.slane %v5116, 5
      %v5237 = vrot.slane %v5236, 4
      %v5238 = vrot.slane %v5117, 5
      %v5239 = vsel %vm3304, %v5237, %v5238
      %v5240 = vrot.slane %v5238, 4
      %v5241 = vrot.slane %v5118, 5
      %v5242 = vsel %vm3304, %v5240, %v5241
      %v5243 = vrot.slane %v5119, 5
      %v5244 = vrot.slane %v5243, 4
      %v5245 = vrot.slane %v5120, 5
      %v5246 = vsel %vm3304, %v5244, %v5245
      %v5247 = vrot.slane %v5245, 4
      %v5248 = vrot.slane %v5121, 5
      %v5249 = vsel %vm3304, %v5247, %v5248
      %v5250 = vrot.slane %v5122, 5
      %v5251 = vrot.slane %v5250, 4
      %v5252 = vrot.slane %v5123, 5
      %v5253 = vsel %vm3304, %v5251, %v5252
      %v5254 = vrot.slane %v5252, 4
      %v5255 = vrot.slane %v5124, 5
      %v5256 = vsel %vm3304, %v5254, %v5255
      %v5257 = vrot.slane %v5125, 5
      %v5258 = vrot.slane %v5257, 4
      %v5259 = vrot.slane %v5126, 5
      %v5260 = vsel %vm3304, %v5258, %v5259
      %v5261 = vrot.slane %v5259, 4
      %v5262 = vrot.slane %v5127, 5
      %v5263 = vsel %vm3304, %v5261, %v5262
      %v5264 = vrot.slane %v5128, 5
      %v5265 = vrot.slane %v5264, 4
      %v5266 = vrot.slane %v5129, 5
      %v5267 = vsel %vm3304, %v5265, %v5266
      %v5268 = vrot.slane %v5266, 4
      %v5269 = vrot.slane %v5130, 5
      %v5270 = vsel %vm3304, %v5268, %v5269
      %v5271 = vrot.slane %v5131, 5
      %v5272 = vrot.slane %v5271, 4
      %v5273 = vrot.slane %v5132, 5
      %v5274 = vsel %vm3304, %v5272, %v5273
      %v5275 = vrot.slane %v5273, 4
      %v5276 = vrot.slane %v5133, 5
      %v5277 = vsel %vm3304, %v5275, %v5276
      %v5278 = vrot.slane %v5134, 5
      %v5279 = vrot.slane %v5278, 4
      %v5280 = vrot.slane %v5135, 5
      %v5281 = vsel %vm3304, %v5279, %v5280
      %v5282 = vrot.slane %v5280, 4
      %v5283 = vrot.slane %v5136, 5
      %v5284 = vsel %vm3304, %v5282, %v5283
      %v5285 = vrot.slane %v5137, 5
      %v5286 = vrot.slane %v5285, 4
      %v5287 = vrot.slane %v5138, 5
      %v5288 = vsel %vm3304, %v5286, %v5287
      %v5289 = vrot.slane %v5287, 4
      %v5290 = vrot.slane %v5139, 5
      %v5291 = vsel %vm3304, %v5289, %v5290
      %v5292 = vrot.slane %v5140, 5
      %v5293 = vrot.slane %v5292, 4
      %v5294 = vrot.slane %v5141, 5
      %v5295 = vsel %vm3304, %v5293, %v5294
      %v5296 = vrot.slane %v5294, 4
      %v5297 = vrot.slane %v5142, 5
      %v5298 = vsel %vm3304, %v5296, %v5297
      %v5299 = vrot.slane %v5143, 5
      %v5300 = vrot.slane %v5299, 4
      %v5301 = vrot.slane %v5144, 5
      %v5302 = vsel %vm3304, %v5300, %v5301
      %v5303 = vrot.slane %v5301, 4
      %v5304 = vrot.slane %v5145, 5
      %v5305 = vsel %vm3304, %v5303, %v5304
      %v5306 = vunpack.c.l.b16 %v5197
      %v5307 = vunpack.c.l.b16 %v5200
      %v5308 = vunpack.c.l.b16 %v5204
      %v5309 = vunpack.c.l.b16 %v5207
      %v5310 = vunpack.c.l.b16 %v5211
      %v5311 = vunpack.c.l.b16 %v5214
      %v5312 = vunpack.c.l.b16 %v5218
      %v5313 = vunpack.c.l.b16 %v5221
      %v5314 = vunpack.c.l.b16 %v5225
      %v5315 = vunpack.c.l.b16 %v5228
      %v5316 = vunpack.c.l.b16 %v5232
      %v5317 = vunpack.c.l.b16 %v5235
      %v5318 = vunpack.c.l.b16 %v5239
      %v5319 = vunpack.c.l.b16 %v5242
      %v5320 = vunpack.c.l.b16 %v5246
      %v5321 = vunpack.c.l.b16 %v5249
      %v5322 = vunpack.c.l.b16 %v5253
      %v5323 = vunpack.c.l.b16 %v5256
      %v5324 = vunpack.c.l.b16 %v5260
      %v5325 = vunpack.c.l.b16 %v5263
      %v5326 = vunpack.c.l.b16 %v5267
      %v5327 = vunpack.c.l.b16 %v5270
      %v5328 = vunpack.c.l.b16 %v5274
      %v5329 = vunpack.c.l.b16 %v5277
      %v5330 = vunpack.c.l.b16 %v5281
      %v5331 = vunpack.c.l.b16 %v5284
      %v5332 = vunpack.c.l.b16 %v5288
      %v5333 = vunpack.c.l.b16 %v5291
      %v5334 = vunpack.c.l.b16 %v5295
      %v5335 = vunpack.c.l.b16 %v5298
      %v5336 = vunpack.c.l.b16 %v5302
      %v5337 = vunpack.c.l.b16 %v5305
      %v5338 = vpack.c.b16 %v5307, %v5306
      %v5339 = vpack.c.b16 %v5309, %v5308
      %v5340 = vpack.c.b16 %v5311, %v5310
      %v5341 = vpack.c.b16 %v5313, %v5312
      %v5342 = vpack.c.b16 %v5315, %v5314
      %v5343 = vpack.c.b16 %v5317, %v5316
      %v5344 = vpack.c.b16 %v5319, %v5318
      %v5345 = vpack.c.b16 %v5321, %v5320
      %v5346 = vpack.c.b16 %v5323, %v5322
      %v5347 = vpack.c.b16 %v5325, %v5324
      %v5348 = vpack.c.b16 %v5327, %v5326
      %v5349 = vpack.c.b16 %v5329, %v5328
      %v5350 = vpack.c.b16 %v5331, %v5330
      %v5351 = vpack.c.b16 %v5333, %v5332
      %v5352 = vpack.c.b16 %v5335, %v5334
      %v5353 = vpack.c.b16 %v5337, %v5336
      %5370 = vst [vmem:[#allocation3 + $0x40] sm:$0xff] %v5338
      %5371 = vst [vmem:[#allocation3 + $0x88] sm:$0xff] %v5339
      %5372 = vst [vmem:[#allocation3 + $0xd0] sm:$0xff] %v5340
      %5373 = vst [vmem:[#allocation3 + $0x118] sm:$0xff] %v5341
      %5374 = vst [vmem:[#allocation3 + $0x160] sm:$0xff] %v5342
      %5375 = vst [vmem:[#allocation3 + $0x1a8] sm:$0xff] %v5343
      %5376 = vst [vmem:[#allocation3 + $0x1f0] sm:$0xff] %v5344
      %5377 = vst [vmem:[#allocation3 + $0x238] sm:$0xff] %v5345
      %5378 = vst [vmem:[#allocation3 + $0x280] sm:$0xff] %v5346
      %5379 = vst [vmem:[#allocation3 + $0x2c8] sm:$0xff] %v5347
      %5380 = vst [vmem:[#allocation3 + $0x310] sm:$0xff] %v5348
      %5381 = vst [vmem:[#allocation3 + $0x358] sm:$0xff] %v5349
      %5382 = vst [vmem:[#allocation3 + $0x3a0] sm:$0xff] %v5350
      %5383 = vst [vmem:[#allocation3 + $0x3e8] sm:$0xff] %v5351
      %5384 = vst [vmem:[#allocation3 + $0x430] sm:$0xff] %v5352
      %5385 = vst [vmem:[#allocation3 + $0x478] sm:$0xff] %v5353
      %v5386 = vld [vmem:[#allocation3] sm:$0xff]
      %v5387 = vld [vmem:[#allocation3 + $0x8] sm:$0xff]
      %v5388 = vld [vmem:[#allocation3 + $0x10] sm:$0xff]
      %v5389 = vld [vmem:[#allocation3 + $0x18] sm:$0xff]
      %v5390 = vld [vmem:[#allocation3 + $0x20] sm:$0xff]
      %v5391 = vld [vmem:[#allocation3 + $0x28] sm:$0xff]
      %v5392 = vld [vmem:[#allocation3 + $0x30] sm:$0xff]
      %v5393 = vld [vmem:[#allocation3 + $0x38] sm:$0xff]
      %v5394 = vld [vmem:[#allocation3 + $0x40] sm:$0xff]
      %v5395 = vld [vmem:[#allocation3 + $0x48] sm:$0xff]
      %v5396 = vld [vmem:[#allocation3 + $0x50] sm:$0xff]
      %v5397 = vld [vmem:[#allocation3 + $0x58] sm:$0xff]
      %v5398 = vld [vmem:[#allocation3 + $0x60] sm:$0xff]
      %v5399 = vld [vmem:[#allocation3 + $0x68] sm:$0xff]
      %v5400 = vld [vmem:[#allocation3 + $0x70] sm:$0xff]
      %v5401 = vld [vmem:[#allocation3 + $0x78] sm:$0xff]
      %v5402 = vld [vmem:[#allocation3 + $0x80] sm:$0xff]
      %v5403 = vld [vmem:[#allocation3 + $0x88] sm:$0xff]
      %v5404 = vld [vmem:[#allocation3 + $0x90] sm:$0xff]
      %v5405 = vld [vmem:[#allocation3 + $0x98] sm:$0xff]
      %v5406 = vld [vmem:[#allocation3 + $0xa0] sm:$0xff]
      %v5407 = vld [vmem:[#allocation3 + $0xa8] sm:$0xff]
      %v5408 = vld [vmem:[#allocation3 + $0xb0] sm:$0xff]
      %v5409 = vld [vmem:[#allocation3 + $0xb8] sm:$0xff]
      %v5410 = vld [vmem:[#allocation3 + $0xc0] sm:$0xff]
      %v5411 = vld [vmem:[#allocation3 + $0xc8] sm:$0xff]
      %v5412 = vld [vmem:[#allocation3 + $0xd0] sm:$0xff]
      %v5413 = vld [vmem:[#allocation3 + $0xd8] sm:$0xff]
      %v5414 = vld [vmem:[#allocation3 + $0xe0] sm:$0xff]
      %v5415 = vld [vmem:[#allocation3 + $0xe8] sm:$0xff]
      %v5416 = vld [vmem:[#allocation3 + $0xf0] sm:$0xff]
      %v5417 = vld [vmem:[#allocation3 + $0xf8] sm:$0xff]
      %v5418 = vld [vmem:[#allocation3 + $0x100] sm:$0xff]
      %v5419 = vld [vmem:[#allocation3 + $0x108] sm:$0xff]
      %v5420 = vld [vmem:[#allocation3 + $0x110] sm:$0xff]
      %v5421 = vld [vmem:[#allocation3 + $0x118] sm:$0xff]
      %v5422 = vld [vmem:[#allocation3 + $0x120] sm:$0xff]
      %v5423 = vld [vmem:[#allocation3 + $0x128] sm:$0xff]
      %v5424 = vld [vmem:[#allocation3 + $0x130] sm:$0xff]
      %v5425 = vld [vmem:[#allocation3 + $0x138] sm:$0xff]
      %v5426 = vld [vmem:[#allocation3 + $0x140] sm:$0xff]
      %v5427 = vld [vmem:[#allocation3 + $0x148] sm:$0xff]
      %v5428 = vld [vmem:[#allocation3 + $0x150] sm:$0xff]
      %v5429 = vld [vmem:[#allocation3 + $0x158] sm:$0xff]
      %v5430 = vld [vmem:[#allocation3 + $0x160] sm:$0xff]
      %v5431 = vld [vmem:[#allocation3 + $0x168] sm:$0xff]
      %v5432 = vld [vmem:[#allocation3 + $0x170] sm:$0xff]
      %v5433 = vld [vmem:[#allocation3 + $0x178] sm:$0xff]
      %v5434 = vld [vmem:[#allocation3 + $0x180] sm:$0xff]
      %v5435 = vld [vmem:[#allocation3 + $0x188] sm:$0xff]
      %v5436 = vld [vmem:[#allocation3 + $0x190] sm:$0xff]
      %v5437 = vld [vmem:[#allocation3 + $0x198] sm:$0xff]
      %v5438 = vld [vmem:[#allocation3 + $0x1a0] sm:$0xff]
      %v5439 = vld [vmem:[#allocation3 + $0x1a8] sm:$0xff]
      %v5440 = vld [vmem:[#allocation3 + $0x1b0] sm:$0xff]
      %v5441 = vld [vmem:[#allocation3 + $0x1b8] sm:$0xff]
      %v5442 = vld [vmem:[#allocation3 + $0x1c0] sm:$0xff]
      %v5443 = vld [vmem:[#allocation3 + $0x1c8] sm:$0xff]
      %v5444 = vld [vmem:[#allocation3 + $0x1d0] sm:$0xff]
      %v5445 = vld [vmem:[#allocation3 + $0x1d8] sm:$0xff]
      %v5446 = vld [vmem:[#allocation3 + $0x1e0] sm:$0xff]
      %v5447 = vld [vmem:[#allocation3 + $0x1e8] sm:$0xff]
      %v5448 = vld [vmem:[#allocation3 + $0x1f0] sm:$0xff]
      %v5449 = vld [vmem:[#allocation3 + $0x1f8] sm:$0xff]
      %v5450 = vld [vmem:[#allocation3 + $0x200] sm:$0xff]
      %v5451 = vld [vmem:[#allocation3 + $0x208] sm:$0xff]
      %v5452 = vld [vmem:[#allocation3 + $0x210] sm:$0xff]
      %v5453 = vld [vmem:[#allocation3 + $0x218] sm:$0xff]
      %v5454 = vld [vmem:[#allocation3 + $0x220] sm:$0xff]
      %v5455 = vld [vmem:[#allocation3 + $0x228] sm:$0xff]
      %v5456 = vld [vmem:[#allocation3 + $0x230] sm:$0xff]
      %v5457 = vld [vmem:[#allocation3 + $0x238] sm:$0xff]
      %v5458 = vld [vmem:[#allocation3 + $0x240] sm:$0xff]
      %v5459 = vld [vmem:[#allocation3 + $0x248] sm:$0xff]
      %v5460 = vld [vmem:[#allocation3 + $0x250] sm:$0xff]
      %v5461 = vld [vmem:[#allocation3 + $0x258] sm:$0xff]
      %v5462 = vld [vmem:[#allocation3 + $0x260] sm:$0xff]
      %v5463 = vld [vmem:[#allocation3 + $0x268] sm:$0xff]
      %v5464 = vld [vmem:[#allocation3 + $0x270] sm:$0xff]
      %v5465 = vld [vmem:[#allocation3 + $0x278] sm:$0xff]
      %v5466 = vld [vmem:[#allocation3 + $0x280] sm:$0xff]
      %v5467 = vld [vmem:[#allocation3 + $0x288] sm:$0xff]
      %v5468 = vld [vmem:[#allocation3 + $0x290] sm:$0xff]
      %v5469 = vld [vmem:[#allocation3 + $0x298] sm:$0xff]
      %v5470 = vld [vmem:[#allocation3 + $0x2a0] sm:$0xff]
      %v5471 = vld [vmem:[#allocation3 + $0x2a8] sm:$0xff]
      %v5472 = vld [vmem:[#allocation3 + $0x2b0] sm:$0xff]
      %v5473 = vld [vmem:[#allocation3 + $0x2b8] sm:$0xff]
      %v5474 = vld [vmem:[#allocation3 + $0x2c0] sm:$0xff]
      %v5475 = vld [vmem:[#allocation3 + $0x2c8] sm:$0xff]
      %v5476 = vld [vmem:[#allocation3 + $0x2d0] sm:$0xff]
      %v5477 = vld [vmem:[#allocation3 + $0x2d8] sm:$0xff]
      %v5478 = vld [vmem:[#allocation3 + $0x2e0] sm:$0xff]
      %v5479 = vld [vmem:[#allocation3 + $0x2e8] sm:$0xff]
      %v5480 = vld [vmem:[#allocation3 + $0x2f0] sm:$0xff]
      %v5481 = vld [vmem:[#allocation3 + $0x2f8] sm:$0xff]
      %v5482 = vld [vmem:[#allocation3 + $0x300] sm:$0xff]
      %v5483 = vld [vmem:[#allocation3 + $0x308] sm:$0xff]
      %v5484 = vld [vmem:[#allocation3 + $0x310] sm:$0xff]
      %v5485 = vld [vmem:[#allocation3 + $0x318] sm:$0xff]
      %v5486 = vld [vmem:[#allocation3 + $0x320] sm:$0xff]
      %v5487 = vld [vmem:[#allocation3 + $0x328] sm:$0xff]
      %v5488 = vld [vmem:[#allocation3 + $0x330] sm:$0xff]
      %v5489 = vld [vmem:[#allocation3 + $0x338] sm:$0xff]
      %v5490 = vld [vmem:[#allocation3 + $0x340] sm:$0xff]
      %v5491 = vld [vmem:[#allocation3 + $0x348] sm:$0xff]
      %v5492 = vld [vmem:[#allocation3 + $0x350] sm:$0xff]
      %v5493 = vld [vmem:[#allocation3 + $0x358] sm:$0xff]
      %v5494 = vld [vmem:[#allocation3 + $0x360] sm:$0xff]
      %v5495 = vld [vmem:[#allocation3 + $0x368] sm:$0xff]
      %v5496 = vld [vmem:[#allocation3 + $0x370] sm:$0xff]
      %v5497 = vld [vmem:[#allocation3 + $0x378] sm:$0xff]
      %v5498 = vld [vmem:[#allocation3 + $0x380] sm:$0xff]
      %v5499 = vld [vmem:[#allocation3 + $0x388] sm:$0xff]
      %v5500 = vld [vmem:[#allocation3 + $0x390] sm:$0xff]
      %v5501 = vld [vmem:[#allocation3 + $0x398] sm:$0xff]
      %v5502 = vld [vmem:[#allocation3 + $0x3a0] sm:$0xff]
      %v5503 = vld [vmem:[#allocation3 + $0x3a8] sm:$0xff]
      %v5504 = vld [vmem:[#allocation3 + $0x3b0] sm:$0xff]
      %v5505 = vld [vmem:[#allocation3 + $0x3b8] sm:$0xff]
      %v5506 = vld [vmem:[#allocation3 + $0x3c0] sm:$0xff]
      %v5507 = vld [vmem:[#allocation3 + $0x3c8] sm:$0xff]
      %v5508 = vld [vmem:[#allocation3 + $0x3d0] sm:$0xff]
      %v5509 = vld [vmem:[#allocation3 + $0x3d8] sm:$0xff]
      %v5510 = vld [vmem:[#allocation3 + $0x3e0] sm:$0xff]
      %v5511 = vld [vmem:[#allocation3 + $0x3e8] sm:$0xff]
      %v5512 = vld [vmem:[#allocation3 + $0x3f0] sm:$0xff]
      %v5513 = vld [vmem:[#allocation3 + $0x3f8] sm:$0xff]
      %v5514 = vld [vmem:[#allocation3 + $0x400] sm:$0xff]
      %v5515 = vld [vmem:[#allocation3 + $0x408] sm:$0xff]
      %v5516 = vld [vmem:[#allocation3 + $0x410] sm:$0xff]
      %v5517 = vld [vmem:[#allocation3 + $0x418] sm:$0xff]
      %v5518 = vld [vmem:[#allocation3 + $0x420] sm:$0xff]
      %v5519 = vld [vmem:[#allocation3 + $0x428] sm:$0xff]
      %v5520 = vld [vmem:[#allocation3 + $0x430] sm:$0xff]
      %v5521 = vld [vmem:[#allocation3 + $0x438] sm:$0xff]
      %v5522 = vld [vmem:[#allocation3 + $0x440] sm:$0xff]
      %v5523 = vld [vmem:[#allocation3 + $0x448] sm:$0xff]
      %v5524 = vld [vmem:[#allocation3 + $0x450] sm:$0xff]
      %v5525 = vld [vmem:[#allocation3 + $0x458] sm:$0xff]
      %v5526 = vld [vmem:[#allocation3 + $0x460] sm:$0xff]
      %v5527 = vld [vmem:[#allocation3 + $0x468] sm:$0xff]
      %v5528 = vld [vmem:[#allocation3 + $0x470] sm:$0xff]
      %v5529 = vld [vmem:[#allocation3 + $0x478] sm:$0xff]
      %v5530 = vld [vmem:[%s6] sm:$0xf]
      %v5531 = vld [vmem:[%s6 + $0x4] sm:$0xf]
      %v5532 = vld [vmem:[%s6 + $0x8] sm:$0xf]
      %v5533 = vld [vmem:[%s6 + $0xc] sm:$0xf]
      %v5534 = vld [vmem:[%s6 + $0x10] sm:$0xf]
      %v5535 = vld [vmem:[%s6 + $0x14] sm:$0xf]
      %v5536 = vld [vmem:[%s6 + $0x18] sm:$0xf]
      %v5537 = vld [vmem:[%s6 + $0x1c] sm:$0xf]
      %v5538 = vld [vmem:[%s6 + $0x20] sm:$0xf]
      %v5539 = vld [vmem:[%s6 + $0x24] sm:$0xf]
      %v5540 = vld [vmem:[%s6 + $0x28] sm:$0xf]
      %v5541 = vld [vmem:[%s6 + $0x2c] sm:$0xf]
      %v5542 = vld [vmem:[%s6 + $0x30] sm:$0xf]
      %v5543 = vld [vmem:[%s6 + $0x34] sm:$0xf]
      %v5544 = vld [vmem:[%s6 + $0x38] sm:$0xf]
      %v5545 = vld [vmem:[%s6 + $0x3c] sm:$0xf]
      %v5546 = vld [vmem:[%s6 + $0x40] sm:$0xf]
      %v5547 = vld [vmem:[%s6 + $0x44] sm:$0xf]
      %v5548 = vld [vmem:[%s6 + $0x48] sm:$0xf]
      %v5549 = vld [vmem:[%s6 + $0x4c] sm:$0xf]
      %v5550 = vld [vmem:[%s6 + $0x50] sm:$0xf]
      %v5551 = vld [vmem:[%s6 + $0x54] sm:$0xf]
      %v5552 = vld [vmem:[%s6 + $0x58] sm:$0xf]
      %v5553 = vld [vmem:[%s6 + $0x5c] sm:$0xf]
      %v5554 = vld [vmem:[%s6 + $0x60] sm:$0xf]
      %v5555 = vld [vmem:[%s6 + $0x64] sm:$0xf]
      %v5556 = vld [vmem:[%s6 + $0x68] sm:$0xf]
      %v5557 = vld [vmem:[%s6 + $0x6c] sm:$0xf]
      %v5558 = vld [vmem:[%s6 + $0x70] sm:$0xf]
      %v5559 = vld [vmem:[%s6 + $0x74] sm:$0xf]
      %v5560 = vld [vmem:[%s6 + $0x78] sm:$0xf]
      %v5561 = vld [vmem:[%s6 + $0x7c] sm:$0xf]
      %v5562 = vld [vmem:[%s6 + $0x80] sm:$0xf]
      %v5563 = vld [vmem:[%s6 + $0x84] sm:$0xf]
      %v5564 = vld [vmem:[%s6 + $0x88] sm:$0xf]
      %v5565 = vld [vmem:[%s6 + $0x8c] sm:$0xf]
      %v5566 = vld [vmem:[%s6 + $0x90] sm:$0xf]
      %v5567 = vld [vmem:[%s6 + $0x94] sm:$0xf]
      %v5568 = vld [vmem:[%s6 + $0x98] sm:$0xf]
      %v5569 = vld [vmem:[%s6 + $0x9c] sm:$0xf]
      %v5570 = vld [vmem:[%s6 + $0xa0] sm:$0xf]
      %v5571 = vld [vmem:[%s6 + $0xa4] sm:$0xf]
      %v5572 = vld [vmem:[%s6 + $0xa8] sm:$0xf]
      %v5573 = vld [vmem:[%s6 + $0xac] sm:$0xf]
      %v5574 = vld [vmem:[%s6 + $0xb0] sm:$0xf]
      %v5575 = vld [vmem:[%s6 + $0xb4] sm:$0xf]
      %v5576 = vld [vmem:[%s6 + $0xb8] sm:$0xf]
      %v5577 = vld [vmem:[%s6 + $0xbc] sm:$0xf]
      %v5578 = vld [vmem:[%s6 + $0xc0] sm:$0xf]
      %v5579 = vld [vmem:[%s6 + $0xc4] sm:$0xf]
      %v5580 = vld [vmem:[%s6 + $0xc8] sm:$0xf]
      %v5581 = vld [vmem:[%s6 + $0xcc] sm:$0xf]
      %v5582 = vld [vmem:[%s6 + $0xd0] sm:$0xf]
      %v5583 = vld [vmem:[%s6 + $0xd4] sm:$0xf]
      %v5584 = vld [vmem:[%s6 + $0xd8] sm:$0xf]
      %v5585 = vld [vmem:[%s6 + $0xdc] sm:$0xf]
      %v5586 = vld [vmem:[%s6 + $0xe0] sm:$0xf]
      %v5587 = vld [vmem:[%s6 + $0xe4] sm:$0xf]
      %v5588 = vld [vmem:[%s6 + $0xe8] sm:$0xf]
      %v5589 = vld [vmem:[%s6 + $0xec] sm:$0xf]
      %v5590 = vld [vmem:[%s6 + $0xf0] sm:$0xf]
      %v5591 = vld [vmem:[%s6 + $0xf4] sm:$0xf]
      %v5592 = vld [vmem:[%s6 + $0xf8] sm:$0xf]
      %v5593 = vld [vmem:[%s6 + $0xfc] sm:$0xf]
      %v5594 = vld [vmem:[%s6 + $0x100] sm:$0xf]
      %v5595 = vld [vmem:[%s6 + $0x104] sm:$0xf]
      %v5596 = vld [vmem:[%s6 + $0x108] sm:$0xf]
      %v5597 = vld [vmem:[%s6 + $0x10c] sm:$0xf]
      %v5598 = vld [vmem:[%s6 + $0x110] sm:$0xf]
      %v5599 = vld [vmem:[%s6 + $0x114] sm:$0xf]
      %v5600 = vld [vmem:[%s6 + $0x118] sm:$0xf]
      %v5601 = vld [vmem:[%s6 + $0x11c] sm:$0xf]
      %v5602 = vld [vmem:[%s6 + $0x120] sm:$0xf]
      %v5603 = vld [vmem:[%s6 + $0x124] sm:$0xf]
      %v5604 = vld [vmem:[%s6 + $0x128] sm:$0xf]
      %v5605 = vld [vmem:[%s6 + $0x12c] sm:$0xf]
      %v5606 = vld [vmem:[%s6 + $0x130] sm:$0xf]
      %v5607 = vld [vmem:[%s6 + $0x134] sm:$0xf]
      %v5608 = vld [vmem:[%s6 + $0x138] sm:$0xf]
      %v5609 = vld [vmem:[%s6 + $0x13c] sm:$0xf]
      %v5610 = vld [vmem:[%s6 + $0x140] sm:$0xf]
      %v5611 = vld [vmem:[%s6 + $0x144] sm:$0xf]
      %v5612 = vld [vmem:[%s6 + $0x148] sm:$0xf]
      %v5613 = vld [vmem:[%s6 + $0x14c] sm:$0xf]
      %v5614 = vld [vmem:[%s6 + $0x150] sm:$0xf]
      %v5615 = vld [vmem:[%s6 + $0x154] sm:$0xf]
      %v5616 = vld [vmem:[%s6 + $0x158] sm:$0xf]
      %v5617 = vld [vmem:[%s6 + $0x15c] sm:$0xf]
      %v5618 = vld [vmem:[%s6 + $0x160] sm:$0xf]
      %v5619 = vld [vmem:[%s6 + $0x164] sm:$0xf]
      %v5620 = vld [vmem:[%s6 + $0x168] sm:$0xf]
      %v5621 = vld [vmem:[%s6 + $0x16c] sm:$0xf]
      %v5622 = vld [vmem:[%s6 + $0x170] sm:$0xf]
      %v5623 = vld [vmem:[%s6 + $0x174] sm:$0xf]
      %v5624 = vld [vmem:[%s6 + $0x178] sm:$0xf]
      %v5625 = vld [vmem:[%s6 + $0x17c] sm:$0xf]
      %v5626 = vld [vmem:[%s6 + $0x180] sm:$0xf]
      %v5627 = vld [vmem:[%s6 + $0x184] sm:$0xf]
      %v5628 = vld [vmem:[%s6 + $0x188] sm:$0xf]
      %v5629 = vld [vmem:[%s6 + $0x18c] sm:$0xf]
      %v5630 = vld [vmem:[%s6 + $0x190] sm:$0xf]
      %v5631 = vld [vmem:[%s6 + $0x194] sm:$0xf]
      %v5632 = vld [vmem:[%s6 + $0x198] sm:$0xf]
      %v5633 = vld [vmem:[%s6 + $0x19c] sm:$0xf]
      %v5634 = vld [vmem:[%s6 + $0x1a0] sm:$0xf]
      %v5635 = vld [vmem:[%s6 + $0x1a4] sm:$0xf]
      %v5636 = vld [vmem:[%s6 + $0x1a8] sm:$0xf]
      %v5637 = vld [vmem:[%s6 + $0x1ac] sm:$0xf]
      %v5638 = vld [vmem:[%s6 + $0x1b0] sm:$0xf]
      %v5639 = vld [vmem:[%s6 + $0x1b4] sm:$0xf]
      %v5640 = vld [vmem:[%s6 + $0x1b8] sm:$0xf]
      %v5641 = vld [vmem:[%s6 + $0x1bc] sm:$0xf]
      %v5642 = vld [vmem:[%s6 + $0x1c0] sm:$0xf]
      %v5643 = vld [vmem:[%s6 + $0x1c4] sm:$0xf]
      %v5644 = vld [vmem:[%s6 + $0x1c8] sm:$0xf]
      %v5645 = vld [vmem:[%s6 + $0x1cc] sm:$0xf]
      %v5646 = vld [vmem:[%s6 + $0x1d0] sm:$0xf]
      %v5647 = vld [vmem:[%s6 + $0x1d4] sm:$0xf]
      %v5648 = vld [vmem:[%s6 + $0x1d8] sm:$0xf]
      %v5649 = vld [vmem:[%s6 + $0x1dc] sm:$0xf]
      %v5650 = vld [vmem:[%s6 + $0x1e0] sm:$0xf]
      %v5651 = vld [vmem:[%s6 + $0x1e4] sm:$0xf]
      %v5652 = vld [vmem:[%s6 + $0x1e8] sm:$0xf]
      %v5653 = vld [vmem:[%s6 + $0x1ec] sm:$0xf]
      %v5654 = vld [vmem:[%s6 + $0x1f0] sm:$0xf]
      %v5655 = vld [vmem:[%s6 + $0x1f4] sm:$0xf]
      %v5656 = vld [vmem:[%s6 + $0x1f8] sm:$0xf]
      %v5657 = vld [vmem:[%s6 + $0x1fc] sm:$0xf]
      %v5658 = vld [vmem:[%s6 + $0x200] sm:$0xf]
      %v5659 = vld [vmem:[%s6 + $0x204] sm:$0xf]
      %v5660 = vld [vmem:[%s6 + $0x208] sm:$0xf]
      %v5661 = vld [vmem:[%s6 + $0x20c] sm:$0xf]
      %v5662 = vld [vmem:[%s6 + $0x210] sm:$0xf]
      %v5663 = vld [vmem:[%s6 + $0x214] sm:$0xf]
      %v5664 = vld [vmem:[%s6 + $0x218] sm:$0xf]
      %v5665 = vld [vmem:[%s6 + $0x21c] sm:$0xf]
      %v5666 = vld [vmem:[%s6 + $0x220] sm:$0xf]
      %v5667 = vld [vmem:[%s6 + $0x224] sm:$0xf]
      %v5668 = vld [vmem:[%s6 + $0x228] sm:$0xf]
      %v5669 = vld [vmem:[%s6 + $0x22c] sm:$0xf]
      %v5670 = vld [vmem:[%s6 + $0x230] sm:$0xf]
      %v5671 = vld [vmem:[%s6 + $0x234] sm:$0xf]
      %v5672 = vld [vmem:[%s6 + $0x238] sm:$0xf]
      %v5673 = vld [vmem:[%s6 + $0x23c] sm:$0xf]
      %v5674 = vld [vmem:[%s7] sm:$0x1]
      %v5676 = vlaneseq
      %v5677 = vshrl.u32 %v5676, 7
      %v5678 = vsub.s32 0, %v5677
      %v5679 = vrot.slane %v5674, %v5678
      %v5825 = vunpack.c.l.b16 %v5530
      %v5826 = vunpack.c.l.b16 %v5531
      %v5827 = vunpack.c.l.b16 %v5532
      %v5828 = vunpack.c.l.b16 %v5533
      %v5829 = vunpack.c.l.b16 %v5534
      %v5830 = vunpack.c.l.b16 %v5535
      %v5831 = vunpack.c.l.b16 %v5536
      %v5832 = vunpack.c.l.b16 %v5537
      %v5833 = vunpack.c.l.b16 %v5538
      %v5834 = vunpack.c.l.b16 %v5539
      %v5835 = vunpack.c.l.b16 %v5540
      %v5836 = vunpack.c.l.b16 %v5541
      %v5837 = vunpack.c.l.b16 %v5542
      %v5838 = vunpack.c.l.b16 %v5543
      %v5839 = vunpack.c.l.b16 %v5544
      %v5840 = vunpack.c.l.b16 %v5545
      %v5841 = vunpack.c.l.b16 %v5546
      %v5842 = vunpack.c.l.b16 %v5547
      %v5843 = vunpack.c.l.b16 %v5548
      %v5844 = vunpack.c.l.b16 %v5549
      %v5845 = vunpack.c.l.b16 %v5550
      %v5846 = vunpack.c.l.b16 %v5551
      %v5847 = vunpack.c.l.b16 %v5552
      %v5848 = vunpack.c.l.b16 %v5553
      %v5849 = vunpack.c.l.b16 %v5554
      %v5850 = vunpack.c.l.b16 %v5555
      %v5851 = vunpack.c.l.b16 %v5556
      %v5852 = vunpack.c.l.b16 %v5557
      %v5853 = vunpack.c.l.b16 %v5558
      %v5854 = vunpack.c.l.b16 %v5559
      %v5855 = vunpack.c.l.b16 %v5560
      %v5856 = vunpack.c.l.b16 %v5561
      %v5857 = vunpack.c.l.b16 %v5562
      %v5858 = vunpack.c.l.b16 %v5563
      %v5859 = vunpack.c.l.b16 %v5564
      %v5860 = vunpack.c.l.b16 %v5565
      %v5861 = vunpack.c.l.b16 %v5566
      %v5862 = vunpack.c.l.b16 %v5567
      %v5863 = vunpack.c.l.b16 %v5568
      %v5864 = vunpack.c.l.b16 %v5569
      %v5865 = vunpack.c.l.b16 %v5570
      %v5866 = vunpack.c.l.b16 %v5571
      %v5867 = vunpack.c.l.b16 %v5572
      %v5868 = vunpack.c.l.b16 %v5573
      %v5869 = vunpack.c.l.b16 %v5574
      %v5870 = vunpack.c.l.b16 %v5575
      %v5871 = vunpack.c.l.b16 %v5576
      %v5872 = vunpack.c.l.b16 %v5577
      %v5873 = vunpack.c.l.b16 %v5578
      %v5874 = vunpack.c.l.b16 %v5579
      %v5875 = vunpack.c.l.b16 %v5580
      %v5876 = vunpack.c.l.b16 %v5581
      %v5877 = vunpack.c.l.b16 %v5582
      %v5878 = vunpack.c.l.b16 %v5583
      %v5879 = vunpack.c.l.b16 %v5584
      %v5880 = vunpack.c.l.b16 %v5585
      %v5881 = vunpack.c.l.b16 %v5586
      %v5882 = vunpack.c.l.b16 %v5587
      %v5883 = vunpack.c.l.b16 %v5588
      %v5884 = vunpack.c.l.b16 %v5589
      %v5885 = vunpack.c.l.b16 %v5590
      %v5886 = vunpack.c.l.b16 %v5591
      %v5887 = vunpack.c.l.b16 %v5592
      %v5888 = vunpack.c.l.b16 %v5593
      %v5889 = vunpack.c.l.b16 %v5594
      %v5890 = vunpack.c.l.b16 %v5595
      %v5891 = vunpack.c.l.b16 %v5596
      %v5892 = vunpack.c.l.b16 %v5597
      %v5893 = vunpack.c.l.b16 %v5598
      %v5894 = vunpack.c.l.b16 %v5599
      %v5895 = vunpack.c.l.b16 %v5600
      %v5896 = vunpack.c.l.b16 %v5601
      %v5897 = vunpack.c.l.b16 %v5602
      %v5898 = vunpack.c.l.b16 %v5603
      %v5899 = vunpack.c.l.b16 %v5604
      %v5900 = vunpack.c.l.b16 %v5605
      %v5901 = vunpack.c.l.b16 %v5606
      %v5902 = vunpack.c.l.b16 %v5607
      %v5903 = vunpack.c.l.b16 %v5608
      %v5904 = vunpack.c.l.b16 %v5609
      %v5905 = vunpack.c.l.b16 %v5610
      %v5906 = vunpack.c.l.b16 %v5611
      %v5907 = vunpack.c.l.b16 %v5612
      %v5908 = vunpack.c.l.b16 %v5613
      %v5909 = vunpack.c.l.b16 %v5614
      %v5910 = vunpack.c.l.b16 %v5615
      %v5911 = vunpack.c.l.b16 %v5616
      %v5912 = vunpack.c.l.b16 %v5617
      %v5913 = vunpack.c.l.b16 %v5618
      %v5914 = vunpack.c.l.b16 %v5619
      %v5915 = vunpack.c.l.b16 %v5620
      %v5916 = vunpack.c.l.b16 %v5621
      %v5917 = vunpack.c.l.b16 %v5622
      %v5918 = vunpack.c.l.b16 %v5623
      %v5919 = vunpack.c.l.b16 %v5624
      %v5920 = vunpack.c.l.b16 %v5625
      %v5921 = vunpack.c.l.b16 %v5626
      %v5922 = vunpack.c.l.b16 %v5627
      %v5923 = vunpack.c.l.b16 %v5628
      %v5924 = vunpack.c.l.b16 %v5629
      %v5925 = vunpack.c.l.b16 %v5630
      %v5926 = vunpack.c.l.b16 %v5631
      %v5927 = vunpack.c.l.b16 %v5632
      %v5928 = vunpack.c.l.b16 %v5633
      %v5929 = vunpack.c.l.b16 %v5634
      %v5930 = vunpack.c.l.b16 %v5635
      %v5931 = vunpack.c.l.b16 %v5636
      %v5932 = vunpack.c.l.b16 %v5637
      %v5933 = vunpack.c.l.b16 %v5638
      %v5934 = vunpack.c.l.b16 %v5639
      %v5935 = vunpack.c.l.b16 %v5640
      %v5936 = vunpack.c.l.b16 %v5641
      %v5937 = vunpack.c.l.b16 %v5642
      %v5938 = vunpack.c.l.b16 %v5643
      %v5939 = vunpack.c.l.b16 %v5644
      %v5940 = vunpack.c.l.b16 %v5645
      %v5941 = vunpack.c.l.b16 %v5646
      %v5942 = vunpack.c.l.b16 %v5647
      %v5943 = vunpack.c.l.b16 %v5648
      %v5944 = vunpack.c.l.b16 %v5649
      %v5945 = vunpack.c.l.b16 %v5650
      %v5946 = vunpack.c.l.b16 %v5651
      %v5947 = vunpack.c.l.b16 %v5652
      %v5948 = vunpack.c.l.b16 %v5653
      %v5949 = vunpack.c.l.b16 %v5654
      %v5950 = vunpack.c.l.b16 %v5655
      %v5951 = vunpack.c.l.b16 %v5656
      %v5952 = vunpack.c.l.b16 %v5657
      %v5953 = vunpack.c.l.b16 %v5658
      %v5954 = vunpack.c.l.b16 %v5659
      %v5955 = vunpack.c.l.b16 %v5660
      %v5956 = vunpack.c.l.b16 %v5661
      %v5957 = vunpack.c.l.b16 %v5662
      %v5958 = vunpack.c.l.b16 %v5663
      %v5959 = vunpack.c.l.b16 %v5664
      %v5960 = vunpack.c.l.b16 %v5665
      %v5961 = vunpack.c.l.b16 %v5666
      %v5962 = vunpack.c.l.b16 %v5667
      %v5963 = vunpack.c.l.b16 %v5668
      %v5964 = vunpack.c.l.b16 %v5669
      %v5965 = vunpack.c.l.b16 %v5670
      %v5966 = vunpack.c.l.b16 %v5671
      %v5967 = vunpack.c.l.b16 %v5672
      %v5968 = vunpack.c.l.b16 %v5673
      %v5969 = vpack.c.b16 %v5826, %v5825
      %v5970 = vpack.c.b16 %v5828, %v5827
      %v5971 = vpack.c.b16 %v5830, %v5829
      %v5972 = vpack.c.b16 %v5832, %v5831
      %v5973 = vpack.c.b16 %v5834, %v5833
      %v5974 = vpack.c.b16 %v5836, %v5835
      %v5975 = vpack.c.b16 %v5838, %v5837
      %v5976 = vpack.c.b16 %v5840, %v5839
      %v5977 = vpack.c.b16 %v5842, %v5841
      %v5978 = vpack.c.b16 %v5844, %v5843
      %v5979 = vpack.c.b16 %v5846, %v5845
      %v5980 = vpack.c.b16 %v5848, %v5847
      %v5981 = vpack.c.b16 %v5850, %v5849
      %v5982 = vpack.c.b16 %v5852, %v5851
      %v5983 = vpack.c.b16 %v5854, %v5853
      %v5984 = vpack.c.b16 %v5856, %v5855
      %v5985 = vpack.c.b16 %v5858, %v5857
      %v5986 = vpack.c.b16 %v5860, %v5859
      %v5987 = vpack.c.b16 %v5862, %v5861
      %v5988 = vpack.c.b16 %v5864, %v5863
      %v5989 = vpack.c.b16 %v5866, %v5865
      %v5990 = vpack.c.b16 %v5868, %v5867
      %v5991 = vpack.c.b16 %v5870, %v5869
      %v5992 = vpack.c.b16 %v5872, %v5871
      %v5993 = vpack.c.b16 %v5874, %v5873
      %v5994 = vpack.c.b16 %v5876, %v5875
      %v5995 = vpack.c.b16 %v5878, %v5877
      %v5996 = vpack.c.b16 %v5880, %v5879
      %v5997 = vpack.c.b16 %v5882, %v5881
      %v5998 = vpack.c.b16 %v5884, %v5883
      %v5999 = vpack.c.b16 %v5886, %v5885
      %v6000 = vpack.c.b16 %v5888, %v5887
      %v6001 = vpack.c.b16 %v5890, %v5889
      %v6002 = vpack.c.b16 %v5892, %v5891
      %v6003 = vpack.c.b16 %v5894, %v5893
      %v6004 = vpack.c.b16 %v5896, %v5895
      %v6005 = vpack.c.b16 %v5898, %v5897
      %v6006 = vpack.c.b16 %v5900, %v5899
      %v6007 = vpack.c.b16 %v5902, %v5901
      %v6008 = vpack.c.b16 %v5904, %v5903
      %v6009 = vpack.c.b16 %v5906, %v5905
      %v6010 = vpack.c.b16 %v5908, %v5907
      %v6011 = vpack.c.b16 %v5910, %v5909
      %v6012 = vpack.c.b16 %v5912, %v5911
      %v6013 = vpack.c.b16 %v5914, %v5913
      %v6014 = vpack.c.b16 %v5916, %v5915
      %v6015 = vpack.c.b16 %v5918, %v5917
      %v6016 = vpack.c.b16 %v5920, %v5919
      %v6017 = vpack.c.b16 %v5922, %v5921
      %v6018 = vpack.c.b16 %v5924, %v5923
      %v6019 = vpack.c.b16 %v5926, %v5925
      %v6020 = vpack.c.b16 %v5928, %v5927
      %v6021 = vpack.c.b16 %v5930, %v5929
      %v6022 = vpack.c.b16 %v5932, %v5931
      %v6023 = vpack.c.b16 %v5934, %v5933
      %v6024 = vpack.c.b16 %v5936, %v5935
      %v6025 = vpack.c.b16 %v5938, %v5937
      %v6026 = vpack.c.b16 %v5940, %v5939
      %v6027 = vpack.c.b16 %v5942, %v5941
      %v6028 = vpack.c.b16 %v5944, %v5943
      %v6029 = vpack.c.b16 %v5946, %v5945
      %v6030 = vpack.c.b16 %v5948, %v5947
      %v6031 = vpack.c.b16 %v5950, %v5949
      %v6032 = vpack.c.b16 %v5952, %v5951
      %v6033 = vpack.c.b16 %v5954, %v5953
      %v6034 = vpack.c.b16 %v5956, %v5955
      %v6035 = vpack.c.b16 %v5958, %v5957
      %v6036 = vpack.c.b16 %v5960, %v5959
      %v6037 = vpack.c.b16 %v5962, %v5961
      %v6038 = vpack.c.b16 %v5964, %v5963
      %v6039 = vpack.c.b16 %v5966, %v5965
      %v6040 = vpack.c.b16 %v5968, %v5967
      %6113 = vmatprep.subr.bf16.mxu0 0
      %6114 = vmatpush1.bf16.msra.mxu0 %v5969
      %6115 = vmatprep.subr.bf16.mxu0 0
      %6116 = vmatpush1.bf16.msra.mxu0 %v5970
      %6117 = vmatprep.subr.bf16.mxu0 0
      %6118 = vmatpush1.bf16.msra.mxu0 %v5971
      %6119 = vmatprep.subr.bf16.mxu0 0
      %6120 = vmatpush1.bf16.msra.mxu0 %v5972
      %6121 = vmatprep.subr.bf16.mxu0 0
      %6122 = vmatpush1.bf16.msra.mxu0 %v5973
      %6123 = vmatprep.subr.bf16.mxu0 0
      %6124 = vmatpush1.bf16.msra.mxu0 %v5974
      %6125 = vmatprep.subr.bf16.mxu0 0
      %6126 = vmatpush1.bf16.msra.mxu0 %v5975
      %6127 = vmatprep.subr.bf16.mxu0 0
      %6128 = vmatpush1.bf16.msra.mxu0 %v5976
      %6129 = vmatprep.subr.bf16.mxu0 0
      %6130 = vmatpush1.bf16.msra.mxu0 %v5977
      %6131 = vmatprep.subr.bf16.mxu0 0
      %6132 = vmatpush1.bf16.msra.mxu0 %v5978
      %6133 = vmatprep.subr.bf16.mxu0 0
      %6134 = vmatpush1.bf16.msra.mxu0 %v5979
      %6135 = vmatprep.subr.bf16.mxu0 0
      %6136 = vmatpush1.bf16.msra.mxu0 %v5980
      %6137 = vmatprep.subr.bf16.mxu0 0
      %6138 = vmatpush1.bf16.msra.mxu0 %v5981
      %6139 = vmatprep.subr.bf16.mxu0 0
      %6140 = vmatpush1.bf16.msra.mxu0 %v5982
      %6141 = vmatprep.subr.bf16.mxu0 0
      %6142 = vmatpush1.bf16.msra.mxu0 %v5983
      %6143 = vmatprep.subr.bf16.mxu0 0
      %6144 = vmatpush1.bf16.msra.mxu0 %v5984
      %6145 = vmatprep.mubr.bf16.mxu0 %v5387
      %6146 = vmatmul.mubr.bf16.gmra.mrb[0].mxu0 %v5386
      %v6147 = vpop.f32.mrb[0].mxu0
      %v6148 = vadd.f32 %v5679, %v6147
      %v6149 = vpop.f32.mrb[0].mxu0
      %v6150 = vpop.f32.mrb[0].mxu0
      %v6151 = vadd.f32 %v5679, %v6150
      %v6152 = vpop.f32.mrb[0].mxu0
      %6153 = vmatprep.mubr.bf16.mxu0 %v5396
      %6154 = vmatmul.mubr.bf16.gmra.mrb[0].mxu0 %v5395
      %v6155 = vpop.f32.mrb[0].mxu0
      %v6156 = vadd.f32 %v5679, %v6155
      %v6157 = vpop.f32.mrb[0].mxu0
      %v6158 = vpop.f32.mrb[0].mxu0
      %v6159 = vadd.f32 %v5679, %v6158
      %v6160 = vpop.f32.mrb[0].mxu0
      %6161 = vmatprep.mubr.bf16.mxu0 %v5405
      %6162 = vmatmul.mubr.bf16.gmra.mrb[0].mxu0 %v5404
      %v6163 = vpop.f32.mrb[0].mxu0
      %v6164 = vadd.f32 %v5679, %v6163
      %v6165 = vpop.f32.mrb[0].mxu0
      %v6166 = vpop.f32.mrb[0].mxu0
      %v6167 = vadd.f32 %v5679, %v6166
      %v6168 = vpop.f32.mrb[0].mxu0
      %6169 = vmatprep.mubr.bf16.mxu0 %v5414
      %6170 = vmatmul.mubr.bf16.gmra.mrb[0].mxu0 %v5413
      %v6171 = vpop.f32.mrb[0].mxu0
      %v6172 = vadd.f32 %v5679, %v6171
      %v6173 = vpop.f32.mrb[0].mxu0
      %v6174 = vpop.f32.mrb[0].mxu0
      %v6175 = vadd.f32 %v5679, %v6174
      %v6176 = vpop.f32.mrb[0].mxu0
      %6177 = vmatprep.mubr.bf16.mxu0 %v5423
      %6178 = vmatmul.mubr.bf16.gmra.mrb[0].mxu0 %v5422
      %v6179 = vpop.f32.mrb[0].mxu0
      %v6180 = vadd.f32 %v5679, %v6179
      %v6181 = vpop.f32.mrb[0].mxu0
      %v6182 = vpop.f32.mrb[0].mxu0
      %v6183 = vadd.f32 %v5679, %v6182
      %v6184 = vpop.f32.mrb[0].mxu0
      %6185 = vmatprep.mubr.bf16.mxu0 %v5432
      %6186 = vmatmul.mubr.bf16.gmra.mrb[0].mxu0 %v5431
      %v6187 = vpop.f32.mrb[0].mxu0
      %v6188 = vadd.f32 %v5679, %v6187
      %v6189 = vpop.f32.mrb[0].mxu0
      %v6190 = vpop.f32.mrb[0].mxu0
      %v6191 = vadd.f32 %v5679, %v6190
      %v6192 = vpop.f32.mrb[0].mxu0
      %6193 = vmatprep.mubr.bf16.mxu0 %v5441
      %6194 = vmatmul.mubr.bf16.gmra.mrb[0].mxu0 %v5440
      %v6195 = vpop.f32.mrb[0].mxu0
      %v6196 = vadd.f32 %v5679, %v6195
      %v6197 = vpop.f32.mrb[0].mxu0
      %v6198 = vpop.f32.mrb[0].mxu0
      %v6199 = vadd.f32 %v5679, %v6198
      %v6200 = vpop.f32.mrb[0].mxu0
      %6201 = vmatprep.mubr.bf16.mxu0 %v5450
      %6202 = vmatmul.mubr.bf16.gmra.mrb[0].mxu0 %v5449
      %v6203 = vpop.f32.mrb[0].mxu0
      %v6204 = vadd.f32 %v5679, %v6203
      %v6205 = vpop.f32.mrb[0].mxu0
      %v6206 = vpop.f32.mrb[0].mxu0
      %v6207 = vadd.f32 %v5679, %v6206
      %v6208 = vpop.f32.mrb[0].mxu0
      %6209 = vmatprep.mubr.bf16.mxu0 %v5459
      %6210 = vmatmul.mubr.bf16.gmra.mrb[0].mxu0 %v5458
      %v6211 = vpop.f32.mrb[0].mxu0
      %v6212 = vadd.f32 %v5679, %v6211
      %v6213 = vpop.f32.mrb[0].mxu0
      %v6214 = vpop.f32.mrb[0].mxu0
      %v6215 = vadd.f32 %v5679, %v6214
      %v6216 = vpop.f32.mrb[0].mxu0
      %6217 = vmatprep.mubr.bf16.mxu0 %v5468
      %6218 = vmatmul.mubr.bf16.gmra.mrb[0].mxu0 %v5467
      %v6219 = vpop.f32.mrb[0].mxu0
      %v6220 = vadd.f32 %v5679, %v6219
      %v6221 = vpop.f32.mrb[0].mxu0
      %v6222 = vpop.f32.mrb[0].mxu0
      %v6223 = vadd.f32 %v5679, %v6222
      %v6224 = vpop.f32.mrb[0].mxu0
      %6225 = vmatprep.mubr.bf16.mxu0 %v5477
      %6226 = vmatmul.mubr.bf16.gmra.mrb[0].mxu0 %v5476
      %v6227 = vpop.f32.mrb[0].mxu0
      %v6228 = vadd.f32 %v5679, %v6227
      %v6229 = vpop.f32.mrb[0].mxu0
      %v6230 = vpop.f32.mrb[0].mxu0
      %v6231 = vadd.f32 %v5679, %v6230
      %v6232 = vpop.f32.mrb[0].mxu0
      %6233 = vmatprep.mubr.bf16.mxu0 %v5486
      %6234 = vmatmul.mubr.bf16.gmra.mrb[0].mxu0 %v5485
      %v6235 = vpop.f32.mrb[0].mxu0
      %v6236 = vadd.f32 %v5679, %v6235
      %v6237 = vpop.f32.mrb[0].mxu0
      %v6238 = vpop.f32.mrb[0].mxu0
      %v6239 = vadd.f32 %v5679, %v6238
      %v6240 = vpop.f32.mrb[0].mxu0
      %6241 = vmatprep.mubr.bf16.mxu0 %v5495
      %6242 = vmatmul.mubr.bf16.gmra.mrb[0].mxu0 %v5494
      %v6243 = vpop.f32.mrb[0].mxu0
      %v6244 = vadd.f32 %v5679, %v6243
      %v6245 = vpop.f32.mrb[0].mxu0
      %v6246 = vpop.f32.mrb[0].mxu0
      %v6247 = vadd.f32 %v5679, %v6246
      %v6248 = vpop.f32.mrb[0].mxu0
      %6249 = vmatprep.mubr.bf16.mxu0 %v5504
      %6250 = vmatmul.mubr.bf16.gmra.mrb[0].mxu0 %v5503
      %v6251 = vpop.f32.mrb[0].mxu0
      %v6252 = vadd.f32 %v5679, %v6251
      %v6253 = vpop.f32.mrb[0].mxu0
      %v6254 = vpop.f32.mrb[0].mxu0
      %v6255 = vadd.f32 %v5679, %v6254
      %v6256 = vpop.f32.mrb[0].mxu0
      %6257 = vmatprep.mubr.bf16.mxu0 %v5513
      %6258 = vmatmul.mubr.bf16.gmra.mrb[0].mxu0 %v5512
      %v6259 = vpop.f32.mrb[0].mxu0
      %v6260 = vadd.f32 %v5679, %v6259
      %v6261 = vpop.f32.mrb[0].mxu0
      %v6262 = vpop.f32.mrb[0].mxu0
      %v6263 = vadd.f32 %v5679, %v6262
      %v6264 = vpop.f32.mrb[0].mxu0
      %6265 = vmatprep.mubr.bf16.mxu0 %v5522
      %6266 = vmatmul.mubr.bf16.gmra.mrb[0].mxu0 %v5521
      %v6267 = vpop.f32.mrb[0].mxu0
      %v6268 = vadd.f32 %v5679, %v6267
      %v6269 = vpop.f32.mrb[0].mxu0
      %v6270 = vpop.f32.mrb[0].mxu0
      %v6271 = vadd.f32 %v5679, %v6270
      %v6272 = vpop.f32.mrb[0].mxu0
      %6273 = vdwg.mxu0
      %6274 = vmatprep.subr.bf16.mxu0 0
      %6275 = vmatpush1.bf16.msra.mxu0 %v5985
      %6276 = vmatprep.subr.bf16.mxu0 0
      %6277 = vmatpush1.bf16.msra.mxu0 %v5986
      %6278 = vmatprep.subr.bf16.mxu0 0
      %6279 = vmatpush1.bf16.msra.mxu0 %v5987
      %6280 = vmatprep.subr.bf16.mxu0 0
      %6281 = vmatpush1.bf16.msra.mxu0 %v5988
      %6282 = vmatprep.subr.bf16.mxu0 0
      %6283 = vmatpush1.bf16.msra.mxu0 %v5989
      %6284 = vmatprep.subr.bf16.mxu0 0
      %6285 = vmatpush1.bf16.msra.mxu0 %v5990
      %6286 = vmatprep.subr.bf16.mxu0 0
      %6287 = vmatpush1.bf16.msra.mxu0 %v5991
      %6288 = vmatprep.subr.bf16.mxu0 0
      %6289 = vmatpush1.bf16.msra.mxu0 %v5992
      %6290 = vmatprep.subr.bf16.mxu0 0
      %6291 = vmatpush1.bf16.msra.mxu0 %v5993
      %6292 = vmatprep.subr.bf16.mxu0 0
      %6293 = vmatpush1.bf16.msra.mxu0 %v5994
      %6294 = vmatprep.subr.bf16.mxu0 0
      %6295 = vmatpush1.bf16.msra.mxu0 %v5995
      %6296 = vmatprep.subr.bf16.mxu0 0
      %6297 = vmatpush1.bf16.msra.mxu0 %v5996
      %6298 = vmatprep.subr.bf16.mxu0 0
      %6299 = vmatpush1.bf16.msra.mxu0 %v5997
      %6300 = vmatprep.subr.bf16.mxu0 0
      %6301 = vmatpush1.bf16.msra.mxu0 %v5998
      %6302 = vmatprep.subr.bf16.mxu0 0
      %6303 = vmatpush1.bf16.msra.mxu0 %v5999
      %6304 = vmatprep.subr.bf16.mxu0 0
      %6305 = vmatpush1.bf16.msra.mxu0 %v6000
      %6306 = vmatprep.mubr.bf16.mxu0 %v5389
      %6307 = vmatmul.mubr.bf16.gmra.mrb[0].mxu0 %v5388
      %v6308 = vpop.f32.mrb[0].mxu0
      %v6309 = vadd.f32 %v6148, %v6308
      %v6310 = vpop.f32.mrb[0].mxu0
      %v6311 = vpop.f32.mrb[0].mxu0
      %v6312 = vadd.f32 %v6151, %v6311
      %v6313 = vpop.f32.mrb[0].mxu0
      %6314 = vmatprep.mubr.bf16.mxu0 %v5398
      %6315 = vmatmul.mubr.bf16.gmra.mrb[0].mxu0 %v5397
      %v6316 = vpop.f32.mrb[0].mxu0
      %v6317 = vadd.f32 %v6156, %v6316
      %v6318 = vpop.f32.mrb[0].mxu0
      %v6319 = vpop.f32.mrb[0].mxu0
      %v6320 = vadd.f32 %v6159, %v6319
      %v6321 = vpop.f32.mrb[0].mxu0
      %6322 = vmatprep.mubr.bf16.mxu0 %v5407
      %6323 = vmatmul.mubr.bf16.gmra.mrb[0].mxu0 %v5406
      %v6324 = vpop.f32.mrb[0].mxu0
      %v6325 = vadd.f32 %v6164, %v6324
      %v6326 = vpop.f32.mrb[0].mxu0
      %v6327 = vpop.f32.mrb[0].mxu0
      %v6328 = vadd.f32 %v6167, %v6327
      %v6329 = vpop.f32.mrb[0].mxu0
      %6330 = vmatprep.mubr.bf16.mxu0 %v5416
      %6331 = vmatmul.mubr.bf16.gmra.mrb[0].mxu0 %v5415
      %v6332 = vpop.f32.mrb[0].mxu0
      %v6333 = vadd.f32 %v6172, %v6332
      %v6334 = vpop.f32.mrb[0].mxu0
      %v6335 = vpop.f32.mrb[0].mxu0
      %v6336 = vadd.f32 %v6175, %v6335
      %v6337 = vpop.f32.mrb[0].mxu0
      %6338 = vmatprep.mubr.bf16.mxu0 %v5425
      %6339 = vmatmul.mubr.bf16.gmra.mrb[0].mxu0 %v5424
      %v6340 = vpop.f32.mrb[0].mxu0
      %v6341 = vadd.f32 %v6180, %v6340
      %v6342 = vpop.f32.mrb[0].mxu0
      %v6343 = vpop.f32.mrb[0].mxu0
      %v6344 = vadd.f32 %v6183, %v6343
      %v6345 = vpop.f32.mrb[0].mxu0
      %6346 = vmatprep.mubr.bf16.mxu0 %v5434
      %6347 = vmatmul.mubr.bf16.gmra.mrb[0].mxu0 %v5433
      %v6348 = vpop.f32.mrb[0].mxu0
      %v6349 = vadd.f32 %v6188, %v6348
      %v6350 = vpop.f32.mrb[0].mxu0
      %v6351 = vpop.f32.mrb[0].mxu0
      %v6352 = vadd.f32 %v6191, %v6351
      %v6353 = vpop.f32.mrb[0].mxu0
      %6354 = vmatprep.mubr.bf16.mxu0 %v5443
      %6355 = vmatmul.mubr.bf16.gmra.mrb[0].mxu0 %v5442
      %v6356 = vpop.f32.mrb[0].mxu0
      %v6357 = vadd.f32 %v6196, %v6356
      %v6358 = vpop.f32.mrb[0].mxu0
      %v6359 = vpop.f32.mrb[0].mxu0
      %v6360 = vadd.f32 %v6199, %v6359
      %v6361 = vpop.f32.mrb[0].mxu0
      %6362 = vmatprep.mubr.bf16.mxu0 %v5452
      %6363 = vmatmul.mubr.bf16.gmra.mrb[0].mxu0 %v5451
      %v6364 = vpop.f32.mrb[0].mxu0
      %v6365 = vadd.f32 %v6204, %v6364
      %v6366 = vpop.f32.mrb[0].mxu0
      %v6367 = vpop.f32.mrb[0].mxu0
      %v6368 = vadd.f32 %v6207, %v6367
      %v6369 = vpop.f32.mrb[0].mxu0
      %6370 = vmatprep.mubr.bf16.mxu0 %v5461
      %6371 = vmatmul.mubr.bf16.gmra.mrb[0].mxu0 %v5460
      %v6372 = vpop.f32.mrb[0].mxu0
      %v6373 = vadd.f32 %v6212, %v6372
      %v6374 = vpop.f32.mrb[0].mxu0
      %v6375 = vpop.f32.mrb[0].mxu0
      %v6376 = vadd.f32 %v6215, %v6375
      %v6377 = vpop.f32.mrb[0].mxu0
      %6378 = vmatprep.mubr.bf16.mxu0 %v5470
      %6379 = vmatmul.mubr.bf16.gmra.mrb[0].mxu0 %v5469
      %v6380 = vpop.f32.mrb[0].mxu0
      %v6381 = vadd.f32 %v6220, %v6380
      %v6382 = vpop.f32.mrb[0].mxu0
      %v6383 = vpop.f32.mrb[0].mxu0
      %v6384 = vadd.f32 %v6223, %v6383
      %v6385 = vpop.f32.mrb[0].mxu0
      %6386 = vmatprep.mubr.bf16.mxu0 %v5479
      %6387 = vmatmul.mubr.bf16.gmra.mrb[0].mxu0 %v5478
      %v6388 = vpop.f32.mrb[0].mxu0
      %v6389 = vadd.f32 %v6228, %v6388
      %v6390 = vpop.f32.mrb[0].mxu0
      %v6391 = vpop.f32.mrb[0].mxu0
      %v6392 = vadd.f32 %v6231, %v6391
      %v6393 = vpop.f32.mrb[0].mxu0
      %6394 = vmatprep.mubr.bf16.mxu0 %v5488
      %6395 = vmatmul.mubr.bf16.gmra.mrb[0].mxu0 %v5487
      %v6396 = vpop.f32.mrb[0].mxu0
      %v6397 = vadd.f32 %v6236, %v6396
      %v6398 = vpop.f32.mrb[0].mxu0
      %v6399 = vpop.f32.mrb[0].mxu0
      %v6400 = vadd.f32 %v6239, %v6399
      %v6401 = vpop.f32.mrb[0].mxu0
      %6402 = vmatprep.mubr.bf16.mxu0 %v5497
      %6403 = vmatmul.mubr.bf16.gmra.mrb[0].mxu0 %v5496
      %v6404 = vpop.f32.mrb[0].mxu0
      %v6405 = vadd.f32 %v6244, %v6404
      %v6406 = vpop.f32.mrb[0].mxu0
      %v6407 = vpop.f32.mrb[0].mxu0
      %v6408 = vadd.f32 %v6247, %v6407
      %v6409 = vpop.f32.mrb[0].mxu0
      %6410 = vmatprep.mubr.bf16.mxu0 %v5506
      %6411 = vmatmul.mubr.bf16.gmra.mrb[0].mxu0 %v5505
      %v6412 = vpop.f32.mrb[0].mxu0
      %v6413 = vadd.f32 %v6252, %v6412
      %v6414 = vpop.f32.mrb[0].mxu0
      %v6415 = vpop.f32.mrb[0].mxu0
      %v6416 = vadd.f32 %v6255, %v6415
      %v6417 = vpop.f32.mrb[0].mxu0
      %6418 = vmatprep.mubr.bf16.mxu0 %v5515
      %6419 = vmatmul.mubr.bf16.gmra.mrb[0].mxu0 %v5514
      %v6420 = vpop.f32.mrb[0].mxu0
      %v6421 = vadd.f32 %v6260, %v6420
      %v6422 = vpop.f32.mrb[0].mxu0
      %v6423 = vpop.f32.mrb[0].mxu0
      %v6424 = vadd.f32 %v6263, %v6423
      %v6425 = vpop.f32.mrb[0].mxu0
      %6426 = vmatprep.mubr.bf16.mxu0 %v5524
      %6427 = vmatmul.mubr.bf16.gmra.mrb[0].mxu0 %v5523
      %v6428 = vpop.f32.mrb[0].mxu0
      %v6429 = vadd.f32 %v6268, %v6428
      %v6430 = vpop.f32.mrb[0].mxu0
      %v6431 = vpop.f32.mrb[0].mxu0
      %v6432 = vadd.f32 %v6271, %v6431
      %v6433 = vpop.f32.mrb[0].mxu0
      %6434 = vdwg.mxu0
      %6435 = vmatprep.subr.bf16.mxu0 0
      %6436 = vmatpush1.bf16.msra.mxu0 %v6001
      %6437 = vmatprep.subr.bf16.mxu0 0
      %6438 = vmatpush1.bf16.msra.mxu0 %v6002
      %6439 = vmatprep.subr.bf16.mxu0 0
      %6440 = vmatpush1.bf16.msra.mxu0 %v6003
      %6441 = vmatprep.subr.bf16.mxu0 0
      %6442 = vmatpush1.bf16.msra.mxu0 %v6004
      %6443 = vmatprep.subr.bf16.mxu0 0
      %6444 = vmatpush1.bf16.msra.mxu0 %v6005
      %6445 = vmatprep.subr.bf16.mxu0 0
      %6446 = vmatpush1.bf16.msra.mxu0 %v6006
      %6447 = vmatprep.subr.bf16.mxu0 0
      %6448 = vmatpush1.bf16.msra.mxu0 %v6007
      %6449 = vmatprep.subr.bf16.mxu0 0
      %6450 = vmatpush1.bf16.msra.mxu0 %v6008
      %6451 = vmatprep.subr.bf16.mxu0 0
      %6452 = vmatpush1.bf16.msra.mxu0 %v6009
      %6453 = vmatprep.subr.bf16.mxu0 0
      %6454 = vmatpush1.bf16.msra.mxu0 %v6010
      %6455 = vmatprep.subr.bf16.mxu0 0
      %6456 = vmatpush1.bf16.msra.mxu0 %v6011
      %6457 = vmatprep.subr.bf16.mxu0 0
      %6458 = vmatpush1.bf16.msra.mxu0 %v6012
      %6459 = vmatprep.subr.bf16.mxu0 0
      %6460 = vmatpush1.bf16.msra.mxu0 %v6013
      %6461 = vmatprep.subr.bf16.mxu0 0
      %6462 = vmatpush1.bf16.msra.mxu0 %v6014
      %6463 = vmatprep.subr.bf16.mxu0 0
      %6464 = vmatpush1.bf16.msra.mxu0 %v6015
      %6465 = vmatprep.subr.bf16.mxu0 0
      %6466 = vmatpush1.bf16.msra.mxu0 %v6016
      %6467 = vmatprep.mubr.bf16.mxu0 %v5391
      %6468 = vmatmul.mubr.bf16.gmra.mrb[0].mxu0 %v5390
      %v6469 = vpop.f32.mrb[0].mxu0
      %v6470 = vadd.f32 %v6309, %v6469
      %v6471 = vpop.f32.mrb[0].mxu0
      %v6472 = vpop.f32.mrb[0].mxu0
      %v6473 = vadd.f32 %v6312, %v6472
      %v6474 = vpop.f32.mrb[0].mxu0
      %6475 = vmatprep.mubr.bf16.mxu0 %v5400
      %6476 = vmatmul.mubr.bf16.gmra.mrb[0].mxu0 %v5399
      %v6477 = vpop.f32.mrb[0].mxu0
      %v6478 = vadd.f32 %v6317, %v6477
      %v6479 = vpop.f32.mrb[0].mxu0
      %v6480 = vpop.f32.mrb[0].mxu0
      %v6481 = vadd.f32 %v6320, %v6480
      %v6482 = vpop.f32.mrb[0].mxu0
      %6483 = vmatprep.mubr.bf16.mxu0 %v5409
      %6484 = vmatmul.mubr.bf16.gmra.mrb[0].mxu0 %v5408
      %v6485 = vpop.f32.mrb[0].mxu0
      %v6486 = vadd.f32 %v6325, %v6485
      %v6487 = vpop.f32.mrb[0].mxu0
      %v6488 = vpop.f32.mrb[0].mxu0
      %v6489 = vadd.f32 %v6328, %v6488
      %v6490 = vpop.f32.mrb[0].mxu0
      %6491 = vmatprep.mubr.bf16.mxu0 %v5418
      %6492 = vmatmul.mubr.bf16.gmra.mrb[0].mxu0 %v5417
      %v6493 = vpop.f32.mrb[0].mxu0
      %v6494 = vadd.f32 %v6333, %v6493
      %v6495 = vpop.f32.mrb[0].mxu0
      %v6496 = vpop.f32.mrb[0].mxu0
      %v6497 = vadd.f32 %v6336, %v6496
      %v6498 = vpop.f32.mrb[0].mxu0
      %6499 = vmatprep.mubr.bf16.mxu0 %v5427
      %6500 = vmatmul.mubr.bf16.gmra.mrb[0].mxu0 %v5426
      %v6501 = vpop.f32.mrb[0].mxu0
      %v6502 = vadd.f32 %v6341, %v6501
      %v6503 = vpop.f32.mrb[0].mxu0
      %v6504 = vpop.f32.mrb[0].mxu0
      %v6505 = vadd.f32 %v6344, %v6504
      %v6506 = vpop.f32.mrb[0].mxu0
      %6507 = vmatprep.mubr.bf16.mxu0 %v5436
      %6508 = vmatmul.mubr.bf16.gmra.mrb[0].mxu0 %v5435
      %v6509 = vpop.f32.mrb[0].mxu0
      %v6510 = vadd.f32 %v6349, %v6509
      %v6511 = vpop.f32.mrb[0].mxu0
      %v6512 = vpop.f32.mrb[0].mxu0
      %v6513 = vadd.f32 %v6352, %v6512
      %v6514 = vpop.f32.mrb[0].mxu0
      %6515 = vmatprep.mubr.bf16.mxu0 %v5445
      %6516 = vmatmul.mubr.bf16.gmra.mrb[0].mxu0 %v5444
      %v6517 = vpop.f32.mrb[0].mxu0
      %v6518 = vadd.f32 %v6357, %v6517
      %v6519 = vpop.f32.mrb[0].mxu0
      %v6520 = vpop.f32.mrb[0].mxu0
      %v6521 = vadd.f32 %v6360, %v6520
      %v6522 = vpop.f32.mrb[0].mxu0
      %6523 = vmatprep.mubr.bf16.mxu0 %v5454
      %6524 = vmatmul.mubr.bf16.gmra.mrb[0].mxu0 %v5453
      %v6525 = vpop.f32.mrb[0].mxu0
      %v6526 = vadd.f32 %v6365, %v6525
      %v6527 = vpop.f32.mrb[0].mxu0
      %v6528 = vpop.f32.mrb[0].mxu0
      %v6529 = vadd.f32 %v6368, %v6528
      %v6530 = vpop.f32.mrb[0].mxu0
      %6531 = vmatprep.mubr.bf16.mxu0 %v5463
      %6532 = vmatmul.mubr.bf16.gmra.mrb[0].mxu0 %v5462
      %v6533 = vpop.f32.mrb[0].mxu0
      %v6534 = vadd.f32 %v6373, %v6533
      %v6535 = vpop.f32.mrb[0].mxu0
      %v6536 = vpop.f32.mrb[0].mxu0
      %v6537 = vadd.f32 %v6376, %v6536
      %v6538 = vpop.f32.mrb[0].mxu0
      %6539 = vmatprep.mubr.bf16.mxu0 %v5472
      %6540 = vmatmul.mubr.bf16.gmra.mrb[0].mxu0 %v5471
      %v6541 = vpop.f32.mrb[0].mxu0
      %v6542 = vadd.f32 %v6381, %v6541
      %v6543 = vpop.f32.mrb[0].mxu0
      %v6544 = vpop.f32.mrb[0].mxu0
      %v6545 = vadd.f32 %v6384, %v6544
      %v6546 = vpop.f32.mrb[0].mxu0
      %6547 = vmatprep.mubr.bf16.mxu0 %v5481
      %6548 = vmatmul.mubr.bf16.gmra.mrb[0].mxu0 %v5480
      %v6549 = vpop.f32.mrb[0].mxu0
      %v6550 = vadd.f32 %v6389, %v6549
      %v6551 = vpop.f32.mrb[0].mxu0
      %v6552 = vpop.f32.mrb[0].mxu0
      %v6553 = vadd.f32 %v6392, %v6552
      %v6554 = vpop.f32.mrb[0].mxu0
      %6555 = vmatprep.mubr.bf16.mxu0 %v5490
      %6556 = vmatmul.mubr.bf16.gmra.mrb[0].mxu0 %v5489
      %v6557 = vpop.f32.mrb[0].mxu0
      %v6558 = vadd.f32 %v6397, %v6557
      %v6559 = vpop.f32.mrb[0].mxu0
      %v6560 = vpop.f32.mrb[0].mxu0
      %v6561 = vadd.f32 %v6400, %v6560
      %v6562 = vpop.f32.mrb[0].mxu0
      %6563 = vmatprep.mubr.bf16.mxu0 %v5499
      %6564 = vmatmul.mubr.bf16.gmra.mrb[0].mxu0 %v5498
      %v6565 = vpop.f32.mrb[0].mxu0
      %v6566 = vadd.f32 %v6405, %v6565
      %v6567 = vpop.f32.mrb[0].mxu0
      %v6568 = vpop.f32.mrb[0].mxu0
      %v6569 = vadd.f32 %v6408, %v6568
      %v6570 = vpop.f32.mrb[0].mxu0
      %6571 = vmatprep.mubr.bf16.mxu0 %v5508
      %6572 = vmatmul.mubr.bf16.gmra.mrb[0].mxu0 %v5507
      %v6573 = vpop.f32.mrb[0].mxu0
      %v6574 = vadd.f32 %v6413, %v6573
      %v6575 = vpop.f32.mrb[0].mxu0
      %v6576 = vpop.f32.mrb[0].mxu0
      %v6577 = vadd.f32 %v6416, %v6576
      %v6578 = vpop.f32.mrb[0].mxu0
      %6579 = vmatprep.mubr.bf16.mxu0 %v5517
      %6580 = vmatmul.mubr.bf16.gmra.mrb[0].mxu0 %v5516
      %v6581 = vpop.f32.mrb[0].mxu0
      %v6582 = vadd.f32 %v6421, %v6581
      %v6583 = vpop.f32.mrb[0].mxu0
      %v6584 = vpop.f32.mrb[0].mxu0
      %v6585 = vadd.f32 %v6424, %v6584
      %v6586 = vpop.f32.mrb[0].mxu0
      %6587 = vmatprep.mubr.bf16.mxu0 %v5526
      %6588 = vmatmul.mubr.bf16.gmra.mrb[0].mxu0 %v5525
      %v6589 = vpop.f32.mrb[0].mxu0
      %v6590 = vadd.f32 %v6429, %v6589
      %v6591 = vpop.f32.mrb[0].mxu0
      %v6592 = vpop.f32.mrb[0].mxu0
      %v6593 = vadd.f32 %v6432, %v6592
      %v6594 = vpop.f32.mrb[0].mxu0
      %6595 = vdwg.mxu0
      %6596 = vmatprep.subr.bf16.mxu0 0
      %6597 = vmatpush1.bf16.msra.mxu0 %v6017
      %6598 = vmatprep.subr.bf16.mxu0 0
      %6599 = vmatpush1.bf16.msra.mxu0 %v6018
      %6600 = vmatprep.subr.bf16.mxu0 0
      %6601 = vmatpush1.bf16.msra.mxu0 %v6019
      %6602 = vmatprep.subr.bf16.mxu0 0
      %6603 = vmatpush1.bf16.msra.mxu0 %v6020
      %6604 = vmatprep.subr.bf16.mxu0 0
      %6605 = vmatpush1.bf16.msra.mxu0 %v6021
      %6606 = vmatprep.subr.bf16.mxu0 0
      %6607 = vmatpush1.bf16.msra.mxu0 %v6022
      %6608 = vmatprep.subr.bf16.mxu0 0
      %6609 = vmatpush1.bf16.msra.mxu0 %v6023
      %6610 = vmatprep.subr.bf16.mxu0 0
      %6611 = vmatpush1.bf16.msra.mxu0 %v6024
      %6612 = vmatprep.subr.bf16.mxu0 0
      %6613 = vmatpush1.bf16.msra.mxu0 %v6025
      %6614 = vmatprep.subr.bf16.mxu0 0
      %6615 = vmatpush1.bf16.msra.mxu0 %v6026
      %6616 = vmatprep.subr.bf16.mxu0 0
      %6617 = vmatpush1.bf16.msra.mxu0 %v6027
      %6618 = vmatprep.subr.bf16.mxu0 0
      %6619 = vmatpush1.bf16.msra.mxu0 %v6028
      %6620 = vmatprep.subr.bf16.mxu0 0
      %6621 = vmatpush1.bf16.msra.mxu0 %v6029
      %6622 = vmatprep.subr.bf16.mxu0 0
      %6623 = vmatpush1.bf16.msra.mxu0 %v6030
      %6624 = vmatprep.subr.bf16.mxu0 0
      %6625 = vmatpush1.bf16.msra.mxu0 %v6031
      %6626 = vmatprep.subr.bf16.mxu0 0
      %6627 = vmatpush1.bf16.msra.mxu0 %v6032
      %6628 = vmatprep.mubr.bf16.mxu0 %v5393
      %6629 = vmatmul.mubr.bf16.gmra.mrb[0].mxu0 %v5392
      %v6630 = vpop.f32.mrb[0].mxu0
      %v6631 = vadd.f32 %v6470, %v6630
      %v6632 = vpop.f32.mrb[0].mxu0
      %v6633 = vpop.f32.mrb[0].mxu0
      %v6634 = vadd.f32 %v6473, %v6633
      %v6635 = vpop.f32.mrb[0].mxu0
      %6636 = vmatprep.mubr.bf16.mxu0 %v5402
      %6637 = vmatmul.mubr.bf16.gmra.mrb[0].mxu0 %v5401
      %v6638 = vpop.f32.mrb[0].mxu0
      %v6639 = vadd.f32 %v6478, %v6638
      %v6640 = vpop.f32.mrb[0].mxu0
      %v6641 = vpop.f32.mrb[0].mxu0
      %v6642 = vadd.f32 %v6481, %v6641
      %v6643 = vpop.f32.mrb[0].mxu0
      %6644 = vmatprep.mubr.bf16.mxu0 %v5411
      %6645 = vmatmul.mubr.bf16.gmra.mrb[0].mxu0 %v5410
      %v6646 = vpop.f32.mrb[0].mxu0
      %v6647 = vadd.f32 %v6486, %v6646
      %v6648 = vpop.f32.mrb[0].mxu0
      %v6649 = vpop.f32.mrb[0].mxu0
      %v6650 = vadd.f32 %v6489, %v6649
      %v6651 = vpop.f32.mrb[0].mxu0
      %6652 = vmatprep.mubr.bf16.mxu0 %v5420
      %6653 = vmatmul.mubr.bf16.gmra.mrb[0].mxu0 %v5419
      %v6654 = vpop.f32.mrb[0].mxu0
      %v6655 = vadd.f32 %v6494, %v6654
      %v6656 = vpop.f32.mrb[0].mxu0
      %v6657 = vpop.f32.mrb[0].mxu0
      %v6658 = vadd.f32 %v6497, %v6657
      %v6659 = vpop.f32.mrb[0].mxu0
      %6660 = vmatprep.mubr.bf16.mxu0 %v5429
      %6661 = vmatmul.mubr.bf16.gmra.mrb[0].mxu0 %v5428
      %v6662 = vpop.f32.mrb[0].mxu0
      %v6663 = vadd.f32 %v6502, %v6662
      %v6664 = vpop.f32.mrb[0].mxu0
      %v6665 = vpop.f32.mrb[0].mxu0
      %v6666 = vadd.f32 %v6505, %v6665
      %v6667 = vpop.f32.mrb[0].mxu0
      %6668 = vmatprep.mubr.bf16.mxu0 %v5438
      %6669 = vmatmul.mubr.bf16.gmra.mrb[0].mxu0 %v5437
      %v6670 = vpop.f32.mrb[0].mxu0
      %v6671 = vadd.f32 %v6510, %v6670
      %v6672 = vpop.f32.mrb[0].mxu0
      %v6673 = vpop.f32.mrb[0].mxu0
      %v6674 = vadd.f32 %v6513, %v6673
      %v6675 = vpop.f32.mrb[0].mxu0
      %6676 = vmatprep.mubr.bf16.mxu0 %v5447
      %6677 = vmatmul.mubr.bf16.gmra.mrb[0].mxu0 %v5446
      %v6678 = vpop.f32.mrb[0].mxu0
      %v6679 = vadd.f32 %v6518, %v6678
      %v6680 = vpop.f32.mrb[0].mxu0
      %v6681 = vpop.f32.mrb[0].mxu0
      %v6682 = vadd.f32 %v6521, %v6681
      %v6683 = vpop.f32.mrb[0].mxu0
      %6684 = vmatprep.mubr.bf16.mxu0 %v5456
      %6685 = vmatmul.mubr.bf16.gmra.mrb[0].mxu0 %v5455
      %v6686 = vpop.f32.mrb[0].mxu0
      %v6687 = vadd.f32 %v6526, %v6686
      %v6688 = vpop.f32.mrb[0].mxu0
      %v6689 = vpop.f32.mrb[0].mxu0
      %v6690 = vadd.f32 %v6529, %v6689
      %v6691 = vpop.f32.mrb[0].mxu0
      %6692 = vmatprep.mubr.bf16.mxu0 %v5465
      %6693 = vmatmul.mubr.bf16.gmra.mrb[0].mxu0 %v5464
      %v6694 = vpop.f32.mrb[0].mxu0
      %v6695 = vadd.f32 %v6534, %v6694
      %v6696 = vpop.f32.mrb[0].mxu0
      %v6697 = vpop.f32.mrb[0].mxu0
      %v6698 = vadd.f32 %v6537, %v6697
      %v6699 = vpop.f32.mrb[0].mxu0
      %6700 = vmatprep.mubr.bf16.mxu0 %v5474
      %6701 = vmatmul.mubr.bf16.gmra.mrb[0].mxu0 %v5473
      %v6702 = vpop.f32.mrb[0].mxu0
      %v6703 = vadd.f32 %v6542, %v6702
      %v6704 = vpop.f32.mrb[0].mxu0
      %v6705 = vpop.f32.mrb[0].mxu0
      %v6706 = vadd.f32 %v6545, %v6705
      %v6707 = vpop.f32.mrb[0].mxu0
      %6708 = vmatprep.mubr.bf16.mxu0 %v5483
      %6709 = vmatmul.mubr.bf16.gmra.mrb[0].mxu0 %v5482
      %v6710 = vpop.f32.mrb[0].mxu0
      %v6711 = vadd.f32 %v6550, %v6710
      %v6712 = vpop.f32.mrb[0].mxu0
      %v6713 = vpop.f32.mrb[0].mxu0
      %v6714 = vadd.f32 %v6553, %v6713
      %v6715 = vpop.f32.mrb[0].mxu0
      %6716 = vmatprep.mubr.bf16.mxu0 %v5492
      %6717 = vmatmul.mubr.bf16.gmra.mrb[0].mxu0 %v5491
      %v6718 = vpop.f32.mrb[0].mxu0
      %v6719 = vadd.f32 %v6558, %v6718
      %v6720 = vpop.f32.mrb[0].mxu0
      %v6721 = vpop.f32.mrb[0].mxu0
      %v6722 = vadd.f32 %v6561, %v6721
      %v6723 = vpop.f32.mrb[0].mxu0
      %6724 = vmatprep.mubr.bf16.mxu0 %v5501
      %6725 = vmatmul.mubr.bf16.gmra.mrb[0].mxu0 %v5500
      %v6726 = vpop.f32.mrb[0].mxu0
      %v6727 = vadd.f32 %v6566, %v6726
      %v6728 = vpop.f32.mrb[0].mxu0
      %v6729 = vpop.f32.mrb[0].mxu0
      %v6730 = vadd.f32 %v6569, %v6729
      %v6731 = vpop.f32.mrb[0].mxu0
      %6732 = vmatprep.mubr.bf16.mxu0 %v5510
      %6733 = vmatmul.mubr.bf16.gmra.mrb[0].mxu0 %v5509
      %v6734 = vpop.f32.mrb[0].mxu0
      %v6735 = vadd.f32 %v6574, %v6734
      %v6736 = vpop.f32.mrb[0].mxu0
      %v6737 = vpop.f32.mrb[0].mxu0
      %v6738 = vadd.f32 %v6577, %v6737
      %v6739 = vpop.f32.mrb[0].mxu0
      %6740 = vmatprep.mubr.bf16.mxu0 %v5519
      %6741 = vmatmul.mubr.bf16.gmra.mrb[0].mxu0 %v5518
      %v6742 = vpop.f32.mrb[0].mxu0
      %v6743 = vadd.f32 %v6582, %v6742
      %v6744 = vpop.f32.mrb[0].mxu0
      %v6745 = vpop.f32.mrb[0].mxu0
      %v6746 = vadd.f32 %v6585, %v6745
      %v6747 = vpop.f32.mrb[0].mxu0
      %6748 = vmatprep.mubr.bf16.mxu0 %v5528
      %6749 = vmatmul.mubr.bf16.gmra.mrb[0].mxu0 %v5527
      %v6750 = vpop.f32.mrb[0].mxu0
      %v6751 = vadd.f32 %v6590, %v6750
      %v6752 = vpop.f32.mrb[0].mxu0
      %v6753 = vpop.f32.mrb[0].mxu0
      %v6754 = vadd.f32 %v6593, %v6753
      %v6755 = vpop.f32.mrb[0].mxu0
      %6756 = vdwg.mxu0
      %6757 = vmatprep.subr.bf16.mxu0 0
      %6758 = vmatpush1.bf16.msra.mxu0 %v6033
      %6759 = vmatprep.subr.bf16.mxu0 0
      %6760 = vmatpush1.bf16.msra.mxu0 %v6034
      %6761 = vmatprep.subr.bf16.mxu0 0
      %6762 = vmatpush1.bf16.msra.mxu0 %v6035
      %6763 = vmatprep.subr.bf16.mxu0 0
      %6764 = vmatpush1.bf16.msra.mxu0 %v6036
      %6765 = vmatprep.subr.bf16.mxu0 0
      %6766 = vmatpush1.bf16.msra.mxu0 %v6037
      %6767 = vmatprep.subr.bf16.mxu0 0
      %6768 = vmatpush1.bf16.msra.mxu0 %v6038
      %6769 = vmatprep.subr.bf16.mxu0 0
      %6770 = vmatpush1.bf16.msra.mxu0 %v6039
      %6771 = vmatprep.subr.bf16.mxu0 0
      %6772 = vmatpush1.bf16.msra.mxu0 %v6040
      %6773 = vmatprep.subr.bf16.mxu0 0
      %6774 = vmatpush1.bf16.msra.mxu0 0
      %6775 = vmatprep.subr.bf16.mxu0 0
      %6776 = vmatpush1.bf16.msra.mxu0 0
      %6777 = vmatprep.subr.bf16.mxu0 0
      %6778 = vmatpush1.bf16.msra.mxu0 0
      %6779 = vmatprep.subr.bf16.mxu0 0
      %6780 = vmatpush1.bf16.msra.mxu0 0
      %6781 = vmatprep.subr.bf16.mxu0 0
      %6782 = vmatpush1.bf16.msra.mxu0 0
      %6783 = vmatprep.subr.bf16.mxu0 0
      %6784 = vmatpush1.bf16.msra.mxu0 0
      %6785 = vmatprep.subr.bf16.mxu0 0
      %6786 = vmatpush1.bf16.msra.mxu0 0
      %6787 = vmatprep.subr.bf16.mxu0 0
      %6788 = vmatpush1.bf16.msra.mxu0 0
      %6789 = vmatprep.mubr.bf16.mxu0 0
      %6790 = vmatmul.mubr.bf16.gmra.mrb[0].mxu0 %v5394
      %v6791 = vpop.f32.mrb[0].mxu0
      %v6792 = vadd.f32 %v6631, %v6791
      %v6793 = vpop.f32.mrb[0].mxu0
      %v6794 = vpop.f32.mrb[0].mxu0
      %v6795 = vadd.f32 %v6634, %v6794
      %v6796 = vpop.f32.mrb[0].mxu0
      %6797 = vmatprep.mubr.bf16.mxu0 0
      %6798 = vmatmul.mubr.bf16.gmra.mrb[0].mxu0 %v5403
      %v6799 = vpop.f32.mrb[0].mxu0
      %v6800 = vadd.f32 %v6639, %v6799
      %v6801 = vpop.f32.mrb[0].mxu0
      %v6802 = vpop.f32.mrb[0].mxu0
      %v6803 = vadd.f32 %v6642, %v6802
      %v6804 = vpop.f32.mrb[0].mxu0
      %6805 = vmatprep.mubr.bf16.mxu0 0
      %6806 = vmatmul.mubr.bf16.gmra.mrb[0].mxu0 %v5412
      %v6807 = vpop.f32.mrb[0].mxu0
      %v6808 = vadd.f32 %v6647, %v6807
      %v6809 = vpop.f32.mrb[0].mxu0
      %v6810 = vpop.f32.mrb[0].mxu0
      %v6811 = vadd.f32 %v6650, %v6810
      %v6812 = vpop.f32.mrb[0].mxu0
      %6813 = vmatprep.mubr.bf16.mxu0 0
      %6814 = vmatmul.mubr.bf16.gmra.mrb[0].mxu0 %v5421
      %v6815 = vpop.f32.mrb[0].mxu0
      %v6816 = vadd.f32 %v6655, %v6815
      %v6817 = vpop.f32.mrb[0].mxu0
      %v6818 = vpop.f32.mrb[0].mxu0
      %v6819 = vadd.f32 %v6658, %v6818
      %v6820 = vpop.f32.mrb[0].mxu0
      %6821 = vmatprep.mubr.bf16.mxu0 0
      %6822 = vmatmul.mubr.bf16.gmra.mrb[0].mxu0 %v5430
      %v6823 = vpop.f32.mrb[0].mxu0
      %v6824 = vadd.f32 %v6663, %v6823
      %v6825 = vpop.f32.mrb[0].mxu0
      %v6826 = vpop.f32.mrb[0].mxu0
      %v6827 = vadd.f32 %v6666, %v6826
      %v6828 = vpop.f32.mrb[0].mxu0
      %6829 = vmatprep.mubr.bf16.mxu0 0
      %6830 = vmatmul.mubr.bf16.gmra.mrb[0].mxu0 %v5439
      %v6831 = vpop.f32.mrb[0].mxu0
      %v6832 = vadd.f32 %v6671, %v6831
      %v6833 = vpop.f32.mrb[0].mxu0
      %v6834 = vpop.f32.mrb[0].mxu0
      %v6835 = vadd.f32 %v6674, %v6834
      %v6836 = vpop.f32.mrb[0].mxu0
      %6837 = vmatprep.mubr.bf16.mxu0 0
      %6838 = vmatmul.mubr.bf16.gmra.mrb[0].mxu0 %v5448
      %v6839 = vpop.f32.mrb[0].mxu0
      %v6840 = vadd.f32 %v6679, %v6839
      %v6841 = vpop.f32.mrb[0].mxu0
      %v6842 = vpop.f32.mrb[0].mxu0
      %v6843 = vadd.f32 %v6682, %v6842
      %v6844 = vpop.f32.mrb[0].mxu0
      %6845 = vmatprep.mubr.bf16.mxu0 0
      %6846 = vmatmul.mubr.bf16.gmra.mrb[0].mxu0 %v5457
      %v6847 = vpop.f32.mrb[0].mxu0
      %v6848 = vadd.f32 %v6687, %v6847
      %v6849 = vpop.f32.mrb[0].mxu0
      %v6850 = vpop.f32.mrb[0].mxu0
      %v6851 = vadd.f32 %v6690, %v6850
      %v6852 = vpop.f32.mrb[0].mxu0
      %6853 = vmatprep.mubr.bf16.mxu0 0
      %6854 = vmatmul.mubr.bf16.gmra.mrb[0].mxu0 %v5466
      %v6855 = vpop.f32.mrb[0].mxu0
      %v6856 = vadd.f32 %v6695, %v6855
      %v6857 = vpop.f32.mrb[0].mxu0
      %v6858 = vpop.f32.mrb[0].mxu0
      %v6859 = vadd.f32 %v6698, %v6858
      %v6860 = vpop.f32.mrb[0].mxu0
      %6861 = vmatprep.mubr.bf16.mxu0 0
      %6862 = vmatmul.mubr.bf16.gmra.mrb[0].mxu0 %v5475
      %v6863 = vpop.f32.mrb[0].mxu0
      %v6864 = vadd.f32 %v6703, %v6863
      %v6865 = vpop.f32.mrb[0].mxu0
      %v6866 = vpop.f32.mrb[0].mxu0
      %v6867 = vadd.f32 %v6706, %v6866
      %v6868 = vpop.f32.mrb[0].mxu0
      %6869 = vmatprep.mubr.bf16.mxu0 0
      %6870 = vmatmul.mubr.bf16.gmra.mrb[0].mxu0 %v5484
      %v6871 = vpop.f32.mrb[0].mxu0
      %v6872 = vadd.f32 %v6711, %v6871
      %v6873 = vpop.f32.mrb[0].mxu0
      %v6874 = vpop.f32.mrb[0].mxu0
      %v6875 = vadd.f32 %v6714, %v6874
      %v6876 = vpop.f32.mrb[0].mxu0
      %6877 = vmatprep.mubr.bf16.mxu0 0
      %6878 = vmatmul.mubr.bf16.gmra.mrb[0].mxu0 %v5493
      %v6879 = vpop.f32.mrb[0].mxu0
      %v6880 = vadd.f32 %v6719, %v6879
      %v6881 = vpop.f32.mrb[0].mxu0
      %v6882 = vpop.f32.mrb[0].mxu0
      %v6883 = vadd.f32 %v6722, %v6882
      %v6884 = vpop.f32.mrb[0].mxu0
      %6885 = vmatprep.mubr.bf16.mxu0 0
      %6886 = vmatmul.mubr.bf16.gmra.mrb[0].mxu0 %v5502
      %v6887 = vpop.f32.mrb[0].mxu0
      %v6888 = vadd.f32 %v6727, %v6887
      %v6889 = vpop.f32.mrb[0].mxu0
      %v6890 = vpop.f32.mrb[0].mxu0
      %v6891 = vadd.f32 %v6730, %v6890
      %v6892 = vpop.f32.mrb[0].mxu0
      %6893 = vmatprep.mubr.bf16.mxu0 0
      %6894 = vmatmul.mubr.bf16.gmra.mrb[0].mxu0 %v5511
      %v6895 = vpop.f32.mrb[0].mxu0
      %v6896 = vadd.f32 %v6735, %v6895
      %v6897 = vpop.f32.mrb[0].mxu0
      %v6898 = vpop.f32.mrb[0].mxu0
      %v6899 = vadd.f32 %v6738, %v6898
      %v6900 = vpop.f32.mrb[0].mxu0
      %6901 = vmatprep.mubr.bf16.mxu0 0
      %6902 = vmatmul.mubr.bf16.gmra.mrb[0].mxu0 %v5520
      %v6903 = vpop.f32.mrb[0].mxu0
      %v6904 = vadd.f32 %v6743, %v6903
      %v6905 = vpop.f32.mrb[0].mxu0
      %v6906 = vpop.f32.mrb[0].mxu0
      %v6907 = vadd.f32 %v6746, %v6906
      %v6908 = vpop.f32.mrb[0].mxu0
      %6909 = vmatprep.mubr.bf16.mxu0 0
      %6910 = vmatmul.mubr.bf16.gmra.mrb[0].mxu0 %v5529
      %v6911 = vpop.f32.mrb[0].mxu0
      %v6912 = vadd.f32 %v6751, %v6911
      %v6913 = vpop.f32.mrb[0].mxu0
      %v6914 = vpop.f32.mrb[0].mxu0
      %v6915 = vadd.f32 %v6754, %v6914
      %v6916 = vpop.f32.mrb[0].mxu0
      %6917 = vdwg.mxu0
      %6918 = vst.msk [vmem:[%s399] sm:$0xff] %vm590, %v6792
      %6919 = vst.msk [vmem:[%s399 + $0x8] sm:$0xff] %vm590, %v6795
      %6920 = vst.msk [vmem:[%s399 + $0x10] sm:$0xff] %vm590, %v6800
      %6921 = vst.msk [vmem:[%s399 + $0x18] sm:$0xff] %vm590, %v6803
      %6922 = vst.msk [vmem:[%s399 + $0x20] sm:$0xff] %vm590, %v6808
      %6923 = vst.msk [vmem:[%s399 + $0x28] sm:$0xff] %vm590, %v6811
      %6924 = vst.msk [vmem:[%s399 + $0x30] sm:$0xff] %vm590, %v6816
      %6925 = vst.msk [vmem:[%s399 + $0x38] sm:$0xff] %vm590, %v6819
      %6926 = vst.msk [vmem:[%s399 + $0x40] sm:$0xff] %vm590, %v6824
      %6927 = vst.msk [vmem:[%s399 + $0x48] sm:$0xff] %vm590, %v6827
      %6928 = vst.msk [vmem:[%s399 + $0x50] sm:$0xff] %vm590, %v6832
      %6929 = vst.msk [vmem:[%s399 + $0x58] sm:$0xff] %vm590, %v6835
      %6930 = vst.msk [vmem:[%s399 + $0x60] sm:$0xff] %vm590, %v6840
      %6931 = vst.msk [vmem:[%s399 + $0x68] sm:$0xff] %vm590, %v6843
      %6932 = vst.msk [vmem:[%s399 + $0x70] sm:$0xff] %vm590, %v6848
      %6933 = vst.msk [vmem:[%s399 + $0x78] sm:$0xff] %vm590, %v6851
      %6934 = vst.msk [vmem:[%s399 + $0x80] sm:$0xff] %vm590, %v6856
      %6935 = vst.msk [vmem:[%s399 + $0x88] sm:$0xff] %vm590, %v6859
      %6936 = vst.msk [vmem:[%s399 + $0x90] sm:$0xff] %vm590, %v6864
      %6937 = vst.msk [vmem:[%s399 + $0x98] sm:$0xff] %vm590, %v6867
      %6938 = vst.msk [vmem:[%s399 + $0xa0] sm:$0xff] %vm590, %v6872
      %6939 = vst.msk [vmem:[%s399 + $0xa8] sm:$0xff] %vm590, %v6875
      %6940 = vst.msk [vmem:[%s399 + $0xb0] sm:$0xff] %vm590, %v6880
      %6941 = vst.msk [vmem:[%s399 + $0xb8] sm:$0xff] %vm590, %v6883
      %6942 = vst.msk [vmem:[%s399 + $0xc0] sm:$0xff] %vm590, %v6888
      %6943 = vst.msk [vmem:[%s399 + $0xc8] sm:$0xff] %vm590, %v6891
      %6944 = vst.msk [vmem:[%s399 + $0xd0] sm:$0xff] %vm590, %v6896
      %6945 = vst.msk [vmem:[%s399 + $0xd8] sm:$0xff] %vm590, %v6899
      %6946 = vst.msk [vmem:[%s399 + $0xe0] sm:$0xff] %vm590, %v6904
      %6947 = vst.msk [vmem:[%s399 + $0xe8] sm:$0xff] %vm590, %v6907
      %6948 = vst.msk [vmem:[%s399 + $0xf0] sm:$0xff] %vm590, %v6912
      %6949 = vst.msk [vmem:[%s399 + $0xf8] sm:$0xff] %vm590, %v6915
      %v6950 = vsel %vm590, %v6792, 0.0
      %v6951 = vsel %vm590, %v6795, 0.0
      %v6952 = vadd.f32 %v6950, %v6951
      %v6953 = vsel %vm590, %v6800, 0.0
      %v6954 = vadd.f32 %v6952, %v6953
      %v6955 = vsel %vm590, %v6803, 0.0
      %v6956 = vadd.f32 %v6954, %v6955
      %v6957 = vsel %vm590, %v6808, 0.0
      %v6958 = vadd.f32 %v6956, %v6957
      %v6959 = vsel %vm590, %v6811, 0.0
      %v6960 = vadd.f32 %v6958, %v6959
      %v6961 = vsel %vm590, %v6816, 0.0
      %v6962 = vadd.f32 %v6960, %v6961
      %v6963 = vsel %vm590, %v6819, 0.0
      %v6964 = vadd.f32 %v6962, %v6963
      %v6965 = vsel %vm590, %v6824, 0.0
      %v6966 = vadd.f32 %v6964, %v6965
      %v6967 = vsel %vm590, %v6827, 0.0
      %v6968 = vadd.f32 %v6966, %v6967
      %v6969 = vsel %vm590, %v6832, 0.0
      %v6970 = vadd.f32 %v6968, %v6969
      %v6971 = vsel %vm590, %v6835, 0.0
      %v6972 = vadd.f32 %v6970, %v6971
      %v6973 = vsel %vm590, %v6840, 0.0
      %v6974 = vadd.f32 %v6972, %v6973
      %v6975 = vsel %vm590, %v6843, 0.0
      %v6976 = vadd.f32 %v6974, %v6975
      %v6977 = vsel %vm590, %v6848, 0.0
      %v6978 = vadd.f32 %v6976, %v6977
      %v6979 = vsel %vm590, %v6851, 0.0
      %v6980 = vadd.f32 %v6978, %v6979
      %v6981 = vsel %vm590, %v6856, 0.0
      %v6982 = vadd.f32 %v6980, %v6981
      %v6983 = vsel %vm590, %v6859, 0.0
      %v6984 = vadd.f32 %v6982, %v6983
      %v6985 = vsel %vm590, %v6864, 0.0
      %v6986 = vadd.f32 %v6984, %v6985
      %v6987 = vsel %vm590, %v6867, 0.0
      %v6988 = vadd.f32 %v6986, %v6987
      %v6989 = vsel %vm590, %v6872, 0.0
      %v6990 = vadd.f32 %v6988, %v6989
      %v6991 = vsel %vm590, %v6875, 0.0
      %v6992 = vadd.f32 %v6990, %v6991
      %v6993 = vsel %vm590, %v6880, 0.0
      %v6994 = vadd.f32 %v6992, %v6993
      %v6995 = vsel %vm590, %v6883, 0.0
      %v6996 = vadd.f32 %v6994, %v6995
      %v6997 = vsel %vm590, %v6888, 0.0
      %v6998 = vadd.f32 %v6996, %v6997
      %v6999 = vsel %vm590, %v6891, 0.0
      %v7000 = vadd.f32 %v6998, %v6999
      %v7001 = vsel %vm590, %v6896, 0.0
      %v7002 = vadd.f32 %v7000, %v7001
      %v7003 = vsel %vm590, %v6899, 0.0
      %v7004 = vadd.f32 %v7002, %v7003
      %v7005 = vsel %vm590, %v6904, 0.0
      %v7006 = vadd.f32 %v7004, %v7005
      %v7007 = vsel %vm590, %v6907, 0.0
      %v7008 = vadd.f32 %v7006, %v7007
      %v7009 = vsel %vm590, %v6912, 0.0
      %v7010 = vadd.f32 %v7008, %v7009
      %v7011 = vsel %vm590, %v6915, 0.0
      %v7012 = vadd.f32 %v7010, %v7011
      %v7013 = vrot.slane %v7012, 4
      %v7014 = vadd.f32 %v7012, %v7013
      %v7015 = vrot.slane %v7014, 2
      %v7016 = vadd.f32 %v7014, %v7015
      %v7017 = vrot.slane %v7016, 1
      %v7018 = vadd.f32 %v7016, %v7017
      %vm7019 = vcmask 516096
      %7020 = vst.msk [vmem:[%s403] sm:$0x1] %vm7019, %v7018
      %v7021 = vmul.f32 %v6792, %v6792
      %v7022 = vmul.f32 %v6795, %v6795
      %v7023 = vmul.f32 %v6800, %v6800
      %v7024 = vmul.f32 %v6803, %v6803
      %v7025 = vmul.f32 %v6808, %v6808
      %v7026 = vmul.f32 %v6811, %v6811
      %v7027 = vmul.f32 %v6816, %v6816
      %v7028 = vmul.f32 %v6819, %v6819
      %v7029 = vmul.f32 %v6824, %v6824
      %v7030 = vmul.f32 %v6827, %v6827
      %v7031 = vmul.f32 %v6832, %v6832
      %v7032 = vmul.f32 %v6835, %v6835
      %v7033 = vmul.f32 %v6840, %v6840
      %v7034 = vmul.f32 %v6843, %v6843
      %v7035 = vmul.f32 %v6848, %v6848
      %v7036 = vmul.f32 %v6851, %v6851
      %v7037 = vmul.f32 %v6856, %v6856
      %v7038 = vmul.f32 %v6859, %v6859
      %v7039 = vmul.f32 %v6864, %v6864
      %v7040 = vmul.f32 %v6867, %v6867
      %v7041 = vmul.f32 %v6872, %v6872
      %v7042 = vmul.f32 %v6875, %v6875
      %v7043 = vmul.f32 %v6880, %v6880
      %v7044 = vmul.f32 %v6883, %v6883
      %v7045 = vmul.f32 %v6888, %v6888
      %v7046 = vmul.f32 %v6891, %v6891
      %v7047 = vmul.f32 %v6896, %v6896
      %v7048 = vmul.f32 %v6899, %v6899
      %v7049 = vmul.f32 %v6904, %v6904
      %v7050 = vmul.f32 %v6907, %v6907
      %v7051 = vmul.f32 %v6912, %v6912
      %v7052 = vmul.f32 %v6915, %v6915
      %v7053 = vsel %vm590, %v7021, 0.0
      %v7054 = vsel %vm590, %v7022, 0.0
      %v7055 = vadd.f32 %v7053, %v7054
      %v7056 = vsel %vm590, %v7023, 0.0
      %v7057 = vadd.f32 %v7055, %v7056
      %v7058 = vsel %vm590, %v7024, 0.0
      %v7059 = vadd.f32 %v7057, %v7058
      %v7060 = vsel %vm590, %v7025, 0.0
      %v7061 = vadd.f32 %v7059, %v7060
      %v7062 = vsel %vm590, %v7026, 0.0
      %v7063 = vadd.f32 %v7061, %v7062
      %v7064 = vsel %vm590, %v7027, 0.0
      %v7065 = vadd.f32 %v7063, %v7064
      %v7066 = vsel %vm590, %v7028, 0.0
      %v7067 = vadd.f32 %v7065, %v7066
      %v7068 = vsel %vm590, %v7029, 0.0
      %v7069 = vadd.f32 %v7067, %v7068
      %v7070 = vsel %vm590, %v7030, 0.0
      %v7071 = vadd.f32 %v7069, %v7070
      %v7072 = vsel %vm590, %v7031, 0.0
      %v7073 = vadd.f32 %v7071, %v7072
      %v7074 = vsel %vm590, %v7032, 0.0
      %v7075 = vadd.f32 %v7073, %v7074
      %v7076 = vsel %vm590, %v7033, 0.0
      %v7077 = vadd.f32 %v7075, %v7076
      %v7078 = vsel %vm590, %v7034, 0.0
      %v7079 = vadd.f32 %v7077, %v7078
      %v7080 = vsel %vm590, %v7035, 0.0
      %v7081 = vadd.f32 %v7079, %v7080
      %v7082 = vsel %vm590, %v7036, 0.0
      %v7083 = vadd.f32 %v7081, %v7082
      %v7084 = vsel %vm590, %v7037, 0.0
      %v7085 = vadd.f32 %v7083, %v7084
      %v7086 = vsel %vm590, %v7038, 0.0
      %v7087 = vadd.f32 %v7085, %v7086
      %v7088 = vsel %vm590, %v7039, 0.0
      %v7089 = vadd.f32 %v7087, %v7088
      %v7090 = vsel %vm590, %v7040, 0.0
      %v7091 = vadd.f32 %v7089, %v7090
      %v7092 = vsel %vm590, %v7041, 0.0
      %v7093 = vadd.f32 %v7091, %v7092
      %v7094 = vsel %vm590, %v7042, 0.0
      %v7095 = vadd.f32 %v7093, %v7094
      %v7096 = vsel %vm590, %v7043, 0.0
      %v7097 = vadd.f32 %v7095, %v7096
      %v7098 = vsel %vm590, %v7044, 0.0
      %v7099 = vadd.f32 %v7097, %v7098
      %v7100 = vsel %vm590, %v7045, 0.0
      %v7101 = vadd.f32 %v7099, %v7100
      %v7102 = vsel %vm590, %v7046, 0.0
      %v7103 = vadd.f32 %v7101, %v7102
      %v7104 = vsel %vm590, %v7047, 0.0
      %v7105 = vadd.f32 %v7103, %v7104
      %v7106 = vsel %vm590, %v7048, 0.0
      %v7107 = vadd.f32 %v7105, %v7106
      %v7108 = vsel %vm590, %v7049, 0.0
      %v7109 = vadd.f32 %v7107, %v7108
      %v7110 = vsel %vm590, %v7050, 0.0
      %v7111 = vadd.f32 %v7109, %v7110
      %v7112 = vsel %vm590, %v7051, 0.0
      %v7113 = vadd.f32 %v7111, %v7112
      %v7114 = vsel %vm590, %v7052, 0.0
      %v7115 = vadd.f32 %v7113, %v7114
      %v7116 = vrot.slane %v7115, 4
      %v7117 = vadd.f32 %v7115, %v7116
      %v7118 = vrot.slane %v7117, 2
      %v7119 = vadd.f32 %v7117, %v7118
      %v7120 = vrot.slane %v7119, 1
      %v7121 = vadd.f32 %v7119, %v7120
      %7122 = vst.msk [vmem:[%s403 + $0x1] sm:$0x1] %vm7019, %v7121
      %p7123 = scmp.lt.s32.totalorder %s21, 1
      %s7124 = scalar_select %p7123, %s21, 1
      %s7125 = smul.addr %s7124, 32
      %s7126 = smul.addr %s7125, 8
      %s7127 = scalar_lea.vmem %s8, %s7126
      %p7128 = scmp.lt.s32.totalorder %s21, 1
      %s7129 = scalar_select %p7128, %s21, 1
      %s7130 = smul.addr %s7129, 2
      %s7131 = scalar_lea.vmem %s9, %s7130
      // Predicated region
      $region53: #{adj_encoder_forward.4} parent=51 // pred_check
        %p7132 = pneg %p227
      $region54: #{adj_encoder_forward.4} parent=51 // pred_check_branch
        %7134 = sbr.rel (%p7132) target = $region56
      $region55: #{adj_encoder_forward.4} parent=51 // pred_region
        _
      $region56: #{adj_encoder_forward.4} parent=51 // pred_fallthru
        _
      // Predicated region
      $region57: #{adj_encoder_forward.4} parent=51 // pred_check
        %p7135 = pneg %p253
      $region58: #{adj_encoder_forward.4} parent=51 // pred_check_branch
        %7137 = sbr.rel (%p7135) target = $region60
      $region59: #{adj_encoder_forward.4} parent=51 // pred_region
        _
      $region60: #{adj_encoder_forward.4} parent=51 // pred_fallthru
        _
    $region52: #{adj_encoder_forward.4} parent=5 // pred_fallthru
      _
    %p7138 = scmp.le.s32.totalorder 2, %s16
    // Predicated region
    $region61: #{adj_encoder_forward.4} parent=5 // pred_check
      %p7139 = pneg %p7138
    $region62: #{adj_encoder_forward.4} parent=5 // pred_check_branch
      %7141 = sbr.rel (%p7139) target = $region64
    $region63: #{adj_encoder_forward.4} parent=5 // pred_region
      %s7142 = ssub.s32 %s16, 2
      // Predicated region
      $region65: #{adj_encoder_forward.4} parent=63 // pred_check
        %p7143 = pneg %p233
      $region66: #{adj_encoder_forward.4} parent=63 // pred_check_branch
        %7145 = sbr.rel (%p7143) target = $region68
      $region67: #{adj_encoder_forward.4} parent=63 // pred_region
        %p7146 = scmp.lt.s32.totalorder %s22, 1
        %s7147 = scalar_select %p7146, %s22, 1
        %s7148 = smul.addr %s7147, 32
        %s7149 = smul.addr %s7148, 8
        %s7150 = scalar_lea.vmem %s8, %s7149
      $region68: #{adj_encoder_forward.4} parent=63 // pred_fallthru
        _
      // Predicated region
      $region69: #{adj_encoder_forward.4} parent=63 // pred_check
        %p7151 = pneg %p259
      $region70: #{adj_encoder_forward.4} parent=63 // pred_check_branch
        %7153 = sbr.rel (%p7151) target = $region72
      $region71: #{adj_encoder_forward.4} parent=63 // pred_region
        %p7154 = scmp.lt.s32.totalorder %s22, 1
        %s7155 = scalar_select %p7154, %s22, 1
        %s7156 = smul.addr %s7155, 2
        %s7157 = scalar_lea.vmem %s9, %s7156
      $region72: #{adj_encoder_forward.4} parent=63 // pred_fallthru
        _
    $region64: #{adj_encoder_forward.4} parent=5 // pred_fallthru
      _
  $region6: #{adj_encoder_forward.4} parent=0 // loop_footer
    %s20 = sadd.s32 1, %s16
  $region7: #{adj_encoder_forward.4} parent=0 // loop_footer_branch
    %15 = sbr.rel target = $region3
  $region8: #{adj_encoder_forward.4} parent=0 // loop_exit
    _

</llo_original>
